<compile_context>
chip_gen: v6e
topology: v6e:2x2x1
jax: 0.10.0
libtpu: 0.0.40
codegen_flags: <defaults>
</compile_context>

<pallas_src>
import jax
import jax.numpy as jnp
from jax.experimental import pallas as pl
from jax.experimental.pallas import tpu as pltpu

KSZ = 5      # conv kernel size (both layers)
C1 = 20      # conv1 output channels
C2 = 20      # conv2 output channels
CPAD = 128   # lane-padded channel dimension


def _model1_fused_kernel(x_ref, w1_ref, b1_ref, w2_ref, b2_ref, o_ref,
                         p1_ref, h_ref, p2_ref):
    """Fused relu(conv2(relu(conv1(x)))) for the whole batch in one step.

    x_ref : (N, H, W, 1)        f32   input (NHWC, Cin = 1)
    w1_ref: (25, 128)           bf16  conv1 weights, K = (kh,kw), Cout padded
    b1_ref: (1, 128)            f32
    w2_ref: (500, 128)          bf16  conv2 weights, K = (kh,kw,cin), Cout padded
    b2_ref: (1, 128)            f32
    o_ref : (N, 20, OH2*OW2)    f32   channels-first output rows
    p1_ref: (N*OH1*OW1, 25)     f32   scratch: conv1 im2col patches
    h_ref : (N, OH1, OW1, 128)  f32   scratch: intermediate activation (VMEM)
    p2_ref: (N*OH2*OW2, 500)    f32   scratch: conv2 im2col patches
    """
    N, H, W, _ = x_ref.shape
    OH1, OW1 = H - KSZ + 1, W - KSZ + 1
    OH2, OW2 = OH1 - KSZ + 1, OW1 - KSZ + 1
    R1 = N * OH1 * OW1
    R2 = N * OH2 * OW2
    S2 = OH2 * OW2

    # ---- layer 1: im2col  p1[(n,oh,ow), kh*5+kw] = x[n, oh+kh, ow+kw, 0] ----
    for kh in range(KSZ):
        for kw in range(KSZ):
            t = kh * KSZ + kw
            tap = x_ref[:, kh:kh + OH1, kw:kw + OW1, :]        # (N, OH1, OW1, 1)
            p1_ref[:, t:t + 1] = tap.reshape(R1, 1)

    # single MXU matmul (K = 25), bf16 operands, f32 accumulate
    acc1 = jnp.dot(p1_ref[...].astype(jnp.bfloat16), w1_ref[...],
                   preferred_element_type=jnp.float32)         # (R1, CPAD)
    h = jnp.maximum(acc1 + b1_ref[...], 0.0)                   # bias + ReLU in f32
    h_ref[...] = h.reshape(N, OH1, OW1, CPAD)                  # stays in VMEM

    # ---- layer 2: im2col  p2[(n,oh,ow), (kh*5+kw)*20 + c] = h[n,oh+kh,ow+kw,c] ----
    for kh in range(KSZ):
        for kw in range(KSZ):
            t = kh * KSZ + kw
            tap = h_ref[:, kh:kh + OH2, kw:kw + OW2, :C1]      # (N, OH2, OW2, 20)
            p2_ref[:, t * C1:(t + 1) * C1] = tap.reshape(R2, C1)

    # single MXU matmul (K = 500), bf16 operands, f32 accumulate
    acc2 = jnp.dot(p2_ref[...].astype(jnp.bfloat16), w2_ref[...],
                   preferred_element_type=jnp.float32)         # (R2, CPAD)
    y = jnp.maximum(acc2 + b2_ref[...], 0.0)                   # (R2, CPAD) f32

    # ---- emit channels-first directly: one XLU transpose, drop lane padding ----
    yt = y.T                                                   # (CPAD, R2)
    for n in range(N):
        o_ref[n] = yt[:C2, n * S2:(n + 1) * S2].astype(o_ref.dtype)


def model1_fused(x_nhwc, w1p, b1p, w2p, b2p):
    """x_nhwc: (N, H, W, 1) f32 -> (N, 20, (H-8)*(W-8)) f32 (channels-first rows)."""
    N, H, W, _ = x_nhwc.shape
    OH1, OW1 = H - KSZ + 1, W - KSZ + 1
    OH2, OW2 = OH1 - KSZ + 1, OW1 - KSZ + 1
    R1, R2 = N * OH1 * OW1, N * OH2 * OW2

    return pl.pallas_call(
        _model1_fused_kernel,
        out_shape=jax.ShapeDtypeStruct((N, C2, OH2 * OW2), jnp.float32),
        grid=(1,),
        in_specs=[
            pl.BlockSpec((N, H, W, 1), lambda i: (0, 0, 0, 0)),
            pl.BlockSpec((KSZ * KSZ, CPAD), lambda i: (0, 0)),
            pl.BlockSpec((1, CPAD), lambda i: (0, 0)),
            pl.BlockSpec((KSZ * KSZ * C1, CPAD), lambda i: (0, 0)),
            pl.BlockSpec((1, CPAD), lambda i: (0, 0)),
        ],
        out_specs=pl.BlockSpec((N, C2, OH2 * OW2), lambda i: (0, 0, 0)),
        scratch_shapes=[
            pltpu.VMEM((R1, KSZ * KSZ), jnp.float32),        # conv1 patches
            pltpu.VMEM((N, OH1, OW1, CPAD), jnp.float32),    # intermediate act.
            pltpu.VMEM((R2, KSZ * KSZ * C1), jnp.float32),   # conv2 patches
        ],
        compiler_params=pltpu.CompilerParams(
            dimension_semantics=("arbitrary",)),
    )(x_nhwc, w1p, b1p, w2p, b2p)


def init_params(key):
    """Deterministic init matching Model1.__init__ shapes (torch OIHW layout)."""
    k1, k2, k3, k4 = jax.random.split(key, 4)
    fan1 = 1 * KSZ * KSZ
    w1 = jax.random.uniform(k1, (C1, 1, KSZ, KSZ), jnp.float32,
                            -1.0 / jnp.sqrt(fan1), 1.0 / jnp.sqrt(fan1))
    b1 = jax.random.uniform(k2, (C1,), jnp.float32,
                            -1.0 / jnp.sqrt(fan1), 1.0 / jnp.sqrt(fan1))
    fan2 = C1 * KSZ * KSZ
    w2 = jax.random.uniform(k3, (C2, C1, KSZ, KSZ), jnp.float32,
                            -1.0 / jnp.sqrt(fan2), 1.0 / jnp.sqrt(fan2))
    b2 = jax.random.uniform(k4, (C2,), jnp.float32,
                            -1.0 / jnp.sqrt(fan2), 1.0 / jnp.sqrt(fan2))
    return (w1, b1), (w2, b2)


def pack_params(params):
    """One-time packing: OIHW -> (K, Cout_padded) bf16 matrices + padded biases."""
    (w1, b1), (w2, b2) = params
    w1r = jnp.transpose(w1, (2, 3, 1, 0)).reshape(KSZ * KSZ * 1, C1)   # (25, 20)
    w2r = jnp.transpose(w2, (2, 3, 1, 0)).reshape(KSZ * KSZ * C1, C2)  # (500, 20)
    w1p = jnp.zeros((KSZ * KSZ * 1, CPAD), jnp.float32).at[:, :C1].set(w1r)
    w2p = jnp.zeros((KSZ * KSZ * C1, CPAD), jnp.float32).at[:, :C2].set(w2r)
    b1p = jnp.zeros((1, CPAD), jnp.float32).at[0, :C1].set(b1)
    b2p = jnp.zeros((1, CPAD), jnp.float32).at[0, :C2].set(b2)
    return w1p.astype(jnp.bfloat16), b1p, w2p.astype(jnp.bfloat16), b2p


def model1_forward(x_nchw, packed):
    """Forward pass of Model1. x_nchw: (N, 1, H, W) f32 -> (N, 20, H-8, W-8) f32."""
    w1p, b1p, w2p, b2p = packed
    N, cin, H, W = x_nchw.shape
    assert cin == 1
    OH2, OW2 = H - 2 * (KSZ - 1), W - 2 * (KSZ - 1)
    x_nhwc = x_nchw.reshape(N, H, W, 1)                 # bitcast (Cin == 1)
    y = model1_fused(x_nhwc, w1p, b1p, w2p, b2p)        # (N, 20, OH2*OW2)
    return y.reshape(N, C2, OH2, OW2)                   # bitcast


def reference_forward(x_nchw, params):
    """Pure-JAX reference (f32) matching the PyTorch module."""
    (w1, b1), (w2, b2) = params
    dn = ("NCHW", "OIHW", "NCHW")
    h = jax.lax.conv_general_dilated(x_nchw, w1, (1, 1), "VALID",
                                     dimension_numbers=dn)
    h = jnp.maximum(h + b1.reshape(1, -1, 1, 1), 0.0)
    y = jax.lax.conv_general_dilated(h, w2, (1, 1), "VALID",
                                     dimension_numbers=dn)
    return jnp.maximum(y + b2.reshape(1, -1, 1, 1), 0.0)


if __name__ == "__main__":
    key = jax.random.PRNGKey(0)
    pkey, xkey = jax.random.split(key)
    params = init_params(pkey)
    packed = pack_params(params)

    # Small input consistent with the module: batch=2, 1 channel, 16x16 spatial.
    x = jax.random.normal(xkey, (2, 1, 16, 16), jnp.float32)

    y = model1_forward(x, packed)
    y = jax.block_until_ready(y)

    assert y.shape == (2, 20, 8, 8), y.shape
    assert bool(jnp.all(y >= 0.0))  # ReLU applied

    # Loose tolerance: MXU operands are bf16 (accumulation is f32).
    y_ref = reference_forward(x, params)
    max_err = float(jnp.max(jnp.abs(y - y_ref)))
    assert max_err < 5e-2, max_err

    print("KERNEL_OK")
</pallas_src>

<mosaic_0001>
module attributes {stable_mosaic.version = 11 : i64} {
  func.func @_model1_fused_kernel(%arg0: i32, %arg1: memref<2x16x16x1xf32, #tpu.memory_space<vmem>>, %arg2: memref<25x128xbf16, #tpu.memory_space<vmem>>, %arg3: memref<1x128xf32, #tpu.memory_space<vmem>>, %arg4: memref<500x128xbf16, #tpu.memory_space<vmem>>, %arg5: memref<1x128xf32, #tpu.memory_space<vmem>>, %arg6: memref<2x20x64xf32, #tpu.memory_space<vmem>>, %arg7: memref<288x25xf32, #tpu.memory_space<vmem>>, %arg8: memref<2x12x12x128xf32, #tpu.memory_space<vmem>>, %arg9: memref<128x500xf32, #tpu.memory_space<vmem>>) attributes {dimension_semantics = [#tpu.dimension_semantics<arbitrary>], iteration_bounds = array<i64: 1>, scalar_prefetch = 0 : i64, scratch_operands = 3 : i64, tpu.core_type = #tpu.core_type<tc>, window_params = [{pipeline_mode = #tpu.pipeline_mode<synchronous>, transform_indices = @transform_0, window_bounds = array<i64: 2, 16, 16, 1>}, {pipeline_mode = #tpu.pipeline_mode<synchronous>, transform_indices = @transform_1, window_bounds = array<i64: 25, 128>}, {pipeline_mode = #tpu.pipeline_mode<synchronous>, transform_indices = @transform_2, window_bounds = array<i64: 1, 128>}, {pipeline_mode = #tpu.pipeline_mode<synchronous>, transform_indices = @transform_3, window_bounds = array<i64: 500, 128>}, {pipeline_mode = #tpu.pipeline_mode<synchronous>, transform_indices = @transform_4, window_bounds = array<i64: 1, 128>}, {pipeline_mode = #tpu.pipeline_mode<synchronous>, transform_indices = @transform_5, window_bounds = array<i64: 2, 20, 64>}]} {
    %c0 = arith.constant 0 : index
    %c0_0 = arith.constant 0 : index
    %c0_1 = arith.constant 0 : index
    %c0_2 = arith.constant 0 : index
    %0 = vector.load %arg1[%c0, %c0_0, %c0_1, %c0_2] : memref<2x16x16x1xf32, #tpu.memory_space<vmem>>, vector<2x12x12x1xf32>
    %1 = vector.shape_cast %0 : vector<2x12x12x1xf32> to vector<288x1xf32>
    %c0_3 = arith.constant 0 : index
    %c0_4 = arith.constant 0 : index
    %2 = vector.load %arg7[%c0_3, %c0_4] : memref<288x25xf32, #tpu.memory_space<vmem>>, vector<288x1xf32>
    tpu.vector_store %arg7[%c0_3, %c0_4], %1 {strides = array<i32>} : memref<288x25xf32, #tpu.memory_space<vmem>>, vector<288x1xf32>,
    %c0_5 = arith.constant 0 : index
    %c0_6 = arith.constant 0 : index
    %c1 = arith.constant 1 : index
    %c0_7 = arith.constant 0 : index
    %3 = vector.load %arg1[%c0_5, %c0_6, %c1, %c0_7] : memref<2x16x16x1xf32, #tpu.memory_space<vmem>>, vector<2x12x12x1xf32>
    %4 = vector.shape_cast %3 : vector<2x12x12x1xf32> to vector<288x1xf32>
    %c0_8 = arith.constant 0 : index
    %c1_9 = arith.constant 1 : index
    %5 = vector.load %arg7[%c0_8, %c1_9] : memref<288x25xf32, #tpu.memory_space<vmem>>, vector<288x1xf32>
    tpu.vector_store %arg7[%c0_8, %c1_9], %4 {strides = array<i32>} : memref<288x25xf32, #tpu.memory_space<vmem>>, vector<288x1xf32>,
    %c0_10 = arith.constant 0 : index
    %c0_11 = arith.constant 0 : index
    %c2 = arith.constant 2 : index
    %c0_12 = arith.constant 0 : index
    %6 = vector.load %arg1[%c0_10, %c0_11, %c2, %c0_12] : memref<2x16x16x1xf32, #tpu.memory_space<vmem>>, vector<2x12x12x1xf32>
    %7 = vector.shape_cast %6 : vector<2x12x12x1xf32> to vector<288x1xf32>
    %c0_13 = arith.constant 0 : index
    %c2_14 = arith.constant 2 : index
    %8 = vector.load %arg7[%c0_13, %c2_14] : memref<288x25xf32, #tpu.memory_space<vmem>>, vector<288x1xf32>
    tpu.vector_store %arg7[%c0_13, %c2_14], %7 {strides = array<i32>} : memref<288x25xf32, #tpu.memory_space<vmem>>, vector<288x1xf32>,
    %c0_15 = arith.constant 0 : index
    %c0_16 = arith.constant 0 : index
    %c3 = arith.constant 3 : index
    %c0_17 = arith.constant 0 : index
    %9 = vector.load %arg1[%c0_15, %c0_16, %c3, %c0_17] : memref<2x16x16x1xf32, #tpu.memory_space<vmem>>, vector<2x12x12x1xf32>
    %10 = vector.shape_cast %9 : vector<2x12x12x1xf32> to vector<288x1xf32>
    %c0_18 = arith.constant 0 : index
    %c3_19 = arith.constant 3 : index
    %11 = vector.load %arg7[%c0_18, %c3_19] : memref<288x25xf32, #tpu.memory_space<vmem>>, vector<288x1xf32>
    tpu.vector_store %arg7[%c0_18, %c3_19], %10 {strides = array<i32>} : memref<288x25xf32, #tpu.memory_space<vmem>>, vector<288x1xf32>,
    %c0_20 = arith.constant 0 : index
    %c0_21 = arith.constant 0 : index
    %c4 = arith.constant 4 : index
    %c0_22 = arith.constant 0 : index
    %12 = vector.load %arg1[%c0_20, %c0_21, %c4, %c0_22] : memref<2x16x16x1xf32, #tpu.memory_space<vmem>>, vector<2x12x12x1xf32>
    %13 = vector.shape_cast %12 : vector<2x12x12x1xf32> to vector<288x1xf32>
    %c0_23 = arith.constant 0 : index
    %c4_24 = arith.constant 4 : index
    %14 = vector.load %arg7[%c0_23, %c4_24] : memref<288x25xf32, #tpu.memory_space<vmem>>, vector<288x1xf32>
    tpu.vector_store %arg7[%c0_23, %c4_24], %13 {strides = array<i32>} : memref<288x25xf32, #tpu.memory_space<vmem>>, vector<288x1xf32>,
    %c0_25 = arith.constant 0 : index
    %c1_26 = arith.constant 1 : index
    %c0_27 = arith.constant 0 : index
    %c0_28 = arith.constant 0 : index
    %15 = vector.load %arg1[%c0_25, %c1_26, %c0_27, %c0_28] : memref<2x16x16x1xf32, #tpu.memory_space<vmem>>, vector<2x12x12x1xf32>
    %16 = vector.shape_cast %15 : vector<2x12x12x1xf32> to vector<288x1xf32>
    %c0_29 = arith.constant 0 : index
    %c5 = arith.constant 5 : index
    %17 = vector.load %arg7[%c0_29, %c5] : memref<288x25xf32, #tpu.memory_space<vmem>>, vector<288x1xf32>
    tpu.vector_store %arg7[%c0_29, %c5], %16 {strides = array<i32>} : memref<288x25xf32, #tpu.memory_space<vmem>>, vector<288x1xf32>,
    %c0_30 = arith.constant 0 : index
    %c1_31 = arith.constant 1 : index
    %c1_32 = arith.constant 1 : index
    %c0_33 = arith.constant 0 : index
    %18 = vector.load %arg1[%c0_30, %c1_31, %c1_32, %c0_33] : memref<2x16x16x1xf32, #tpu.memory_space<vmem>>, vector<2x12x12x1xf32>
    %19 = vector.shape_cast %18 : vector<2x12x12x1xf32> to vector<288x1xf32>
    %c0_34 = arith.constant 0 : index
    %c6 = arith.constant 6 : index
    %20 = vector.load %arg7[%c0_34, %c6] : memref<288x25xf32, #tpu.memory_space<vmem>>, vector<288x1xf32>
    tpu.vector_store %arg7[%c0_34, %c6], %19 {strides = array<i32>} : memref<288x25xf32, #tpu.memory_space<vmem>>, vector<288x1xf32>,
    %c0_35 = arith.constant 0 : index
    %c1_36 = arith.constant 1 : index
    %c2_37 = arith.constant 2 : index
    %c0_38 = arith.constant 0 : index
    %21 = vector.load %arg1[%c0_35, %c1_36, %c2_37, %c0_38] : memref<2x16x16x1xf32, #tpu.memory_space<vmem>>, vector<2x12x12x1xf32>
    %22 = vector.shape_cast %21 : vector<2x12x12x1xf32> to vector<288x1xf32>
    %c0_39 = arith.constant 0 : index
    %c7 = arith.constant 7 : index
    %23 = vector.load %arg7[%c0_39, %c7] : memref<288x25xf32, #tpu.memory_space<vmem>>, vector<288x1xf32>
    tpu.vector_store %arg7[%c0_39, %c7], %22 {strides = array<i32>} : memref<288x25xf32, #tpu.memory_space<vmem>>, vector<288x1xf32>,
    %c0_40 = arith.constant 0 : index
    %c1_41 = arith.constant 1 : index
    %c3_42 = arith.constant 3 : index
    %c0_43 = arith.constant 0 : index
    %24 = vector.load %arg1[%c0_40, %c1_41, %c3_42, %c0_43] : memref<2x16x16x1xf32, #tpu.memory_space<vmem>>, vector<2x12x12x1xf32>
    %25 = vector.shape_cast %24 : vector<2x12x12x1xf32> to vector<288x1xf32>
    %c0_44 = arith.constant 0 : index
    %c8 = arith.constant 8 : index
    %26 = vector.load %arg7[%c0_44, %c8] : memref<288x25xf32, #tpu.memory_space<vmem>>, vector<288x1xf32>
    tpu.vector_store %arg7[%c0_44, %c8], %25 {strides = array<i32>} : memref<288x25xf32, #tpu.memory_space<vmem>>, vector<288x1xf32>,
    %c0_45 = arith.constant 0 : index
    %c1_46 = arith.constant 1 : index
    %c4_47 = arith.constant 4 : index
    %c0_48 = arith.constant 0 : index
    %27 = vector.load %arg1[%c0_45, %c1_46, %c4_47, %c0_48] : memref<2x16x16x1xf32, #tpu.memory_space<vmem>>, vector<2x12x12x1xf32>
    %28 = vector.shape_cast %27 : vector<2x12x12x1xf32> to vector<288x1xf32>
    %c0_49 = arith.constant 0 : index
    %c9 = arith.constant 9 : index
    %29 = vector.load %arg7[%c0_49, %c9] : memref<288x25xf32, #tpu.memory_space<vmem>>, vector<288x1xf32>
    tpu.vector_store %arg7[%c0_49, %c9], %28 {strides = array<i32>} : memref<288x25xf32, #tpu.memory_space<vmem>>, vector<288x1xf32>,
    %c0_50 = arith.constant 0 : index
    %c2_51 = arith.constant 2 : index
    %c0_52 = arith.constant 0 : index
    %c0_53 = arith.constant 0 : index
    %30 = vector.load %arg1[%c0_50, %c2_51, %c0_52, %c0_53] : memref<2x16x16x1xf32, #tpu.memory_space<vmem>>, vector<2x12x12x1xf32>
    %31 = vector.shape_cast %30 : vector<2x12x12x1xf32> to vector<288x1xf32>
    %c0_54 = arith.constant 0 : index
    %c10 = arith.constant 10 : index
    %32 = vector.load %arg7[%c0_54, %c10] : memref<288x25xf32, #tpu.memory_space<vmem>>, vector<288x1xf32>
    tpu.vector_store %arg7[%c0_54, %c10], %31 {strides = array<i32>} : memref<288x25xf32, #tpu.memory_space<vmem>>, vector<288x1xf32>,
    %c0_55 = arith.constant 0 : index
    %c2_56 = arith.constant 2 : index
    %c1_57 = arith.constant 1 : index
    %c0_58 = arith.constant 0 : index
    %33 = vector.load %arg1[%c0_55, %c2_56, %c1_57, %c0_58] : memref<2x16x16x1xf32, #tpu.memory_space<vmem>>, vector<2x12x12x1xf32>
    %34 = vector.shape_cast %33 : vector<2x12x12x1xf32> to vector<288x1xf32>
    %c0_59 = arith.constant 0 : index
    %c11 = arith.constant 11 : index
    %35 = vector.load %arg7[%c0_59, %c11] : memref<288x25xf32, #tpu.memory_space<vmem>>, vector<288x1xf32>
    tpu.vector_store %arg7[%c0_59, %c11], %34 {strides = array<i32>} : memref<288x25xf32, #tpu.memory_space<vmem>>, vector<288x1xf32>,
    %c0_60 = arith.constant 0 : index
    %c2_61 = arith.constant 2 : index
    %c2_62 = arith.constant 2 : index
    %c0_63 = arith.constant 0 : index
    %36 = vector.load %arg1[%c0_60, %c2_61, %c2_62, %c0_63] : memref<2x16x16x1xf32, #tpu.memory_space<vmem>>, vector<2x12x12x1xf32>
    %37 = vector.shape_cast %36 : vector<2x12x12x1xf32> to vector<288x1xf32>
    %c0_64 = arith.constant 0 : index
    %c12 = arith.constant 12 : index
    %38 = vector.load %arg7[%c0_64, %c12] : memref<288x25xf32, #tpu.memory_space<vmem>>, vector<288x1xf32>
    tpu.vector_store %arg7[%c0_64, %c12], %37 {strides = array<i32>} : memref<288x25xf32, #tpu.memory_space<vmem>>, vector<288x1xf32>,
    %c0_65 = arith.constant 0 : index
    %c2_66 = arith.constant 2 : index
    %c3_67 = arith.constant 3 : index
    %c0_68 = arith.constant 0 : index
    %39 = vector.load %arg1[%c0_65, %c2_66, %c3_67, %c0_68] : memref<2x16x16x1xf32, #tpu.memory_space<vmem>>, vector<2x12x12x1xf32>
    %40 = vector.shape_cast %39 : vector<2x12x12x1xf32> to vector<288x1xf32>
    %c0_69 = arith.constant 0 : index
    %c13 = arith.constant 13 : index
    %41 = vector.load %arg7[%c0_69, %c13] : memref<288x25xf32, #tpu.memory_space<vmem>>, vector<288x1xf32>
    tpu.vector_store %arg7[%c0_69, %c13], %40 {strides = array<i32>} : memref<288x25xf32, #tpu.memory_space<vmem>>, vector<288x1xf32>,
    %c0_70 = arith.constant 0 : index
    %c2_71 = arith.constant 2 : index
    %c4_72 = arith.constant 4 : index
    %c0_73 = arith.constant 0 : index
    %42 = vector.load %arg1[%c0_70, %c2_71, %c4_72, %c0_73] : memref<2x16x16x1xf32, #tpu.memory_space<vmem>>, vector<2x12x12x1xf32>
    %43 = vector.shape_cast %42 : vector<2x12x12x1xf32> to vector<288x1xf32>
    %c0_74 = arith.constant 0 : index
    %c14 = arith.constant 14 : index
    %44 = vector.load %arg7[%c0_74, %c14] : memref<288x25xf32, #tpu.memory_space<vmem>>, vector<288x1xf32>
    tpu.vector_store %arg7[%c0_74, %c14], %43 {strides = array<i32>} : memref<288x25xf32, #tpu.memory_space<vmem>>, vector<288x1xf32>,
    %c0_75 = arith.constant 0 : index
    %c3_76 = arith.constant 3 : index
    %c0_77 = arith.constant 0 : index
    %c0_78 = arith.constant 0 : index
    %45 = vector.load %arg1[%c0_75, %c3_76, %c0_77, %c0_78] : memref<2x16x16x1xf32, #tpu.memory_space<vmem>>, vector<2x12x12x1xf32>
    %46 = vector.shape_cast %45 : vector<2x12x12x1xf32> to vector<288x1xf32>
    %c0_79 = arith.constant 0 : index
    %c15 = arith.constant 15 : index
    %47 = vector.load %arg7[%c0_79, %c15] : memref<288x25xf32, #tpu.memory_space<vmem>>, vector<288x1xf32>
    tpu.vector_store %arg7[%c0_79, %c15], %46 {strides = array<i32>} : memref<288x25xf32, #tpu.memory_space<vmem>>, vector<288x1xf32>,
    %c0_80 = arith.constant 0 : index
    %c3_81 = arith.constant 3 : index
    %c1_82 = arith.constant 1 : index
    %c0_83 = arith.constant 0 : index
    %48 = vector.load %arg1[%c0_80, %c3_81, %c1_82, %c0_83] : memref<2x16x16x1xf32, #tpu.memory_space<vmem>>, vector<2x12x12x1xf32>
    %49 = vector.shape_cast %48 : vector<2x12x12x1xf32> to vector<288x1xf32>
    %c0_84 = arith.constant 0 : index
    %c16 = arith.constant 16 : index
    %50 = vector.load %arg7[%c0_84, %c16] : memref<288x25xf32, #tpu.memory_space<vmem>>, vector<288x1xf32>
    tpu.vector_store %arg7[%c0_84, %c16], %49 {strides = array<i32>} : memref<288x25xf32, #tpu.memory_space<vmem>>, vector<288x1xf32>,
    %c0_85 = arith.constant 0 : index
    %c3_86 = arith.constant 3 : index
    %c2_87 = arith.constant 2 : index
    %c0_88 = arith.constant 0 : index
    %51 = vector.load %arg1[%c0_85, %c3_86, %c2_87, %c0_88] : memref<2x16x16x1xf32, #tpu.memory_space<vmem>>, vector<2x12x12x1xf32>
    %52 = vector.shape_cast %51 : vector<2x12x12x1xf32> to vector<288x1xf32>
    %c0_89 = arith.constant 0 : index
    %c17 = arith.constant 17 : index
    %53 = vector.load %arg7[%c0_89, %c17] : memref<288x25xf32, #tpu.memory_space<vmem>>, vector<288x1xf32>
    tpu.vector_store %arg7[%c0_89, %c17], %52 {strides = array<i32>} : memref<288x25xf32, #tpu.memory_space<vmem>>, vector<288x1xf32>,
    %c0_90 = arith.constant 0 : index
    %c3_91 = arith.constant 3 : index
    %c3_92 = arith.constant 3 : index
    %c0_93 = arith.constant 0 : index
    %54 = vector.load %arg1[%c0_90, %c3_91, %c3_92, %c0_93] : memref<2x16x16x1xf32, #tpu.memory_space<vmem>>, vector<2x12x12x1xf32>
    %55 = vector.shape_cast %54 : vector<2x12x12x1xf32> to vector<288x1xf32>
    %c0_94 = arith.constant 0 : index
    %c18 = arith.constant 18 : index
    %56 = vector.load %arg7[%c0_94, %c18] : memref<288x25xf32, #tpu.memory_space<vmem>>, vector<288x1xf32>
    tpu.vector_store %arg7[%c0_94, %c18], %55 {strides = array<i32>} : memref<288x25xf32, #tpu.memory_space<vmem>>, vector<288x1xf32>,
    %c0_95 = arith.constant 0 : index
    %c3_96 = arith.constant 3 : index
    %c4_97 = arith.constant 4 : index
    %c0_98 = arith.constant 0 : index
    %57 = vector.load %arg1[%c0_95, %c3_96, %c4_97, %c0_98] : memref<2x16x16x1xf32, #tpu.memory_space<vmem>>, vector<2x12x12x1xf32>
    %58 = vector.shape_cast %57 : vector<2x12x12x1xf32> to vector<288x1xf32>
    %c0_99 = arith.constant 0 : index
    %c19 = arith.constant 19 : index
    %59 = vector.load %arg7[%c0_99, %c19] : memref<288x25xf32, #tpu.memory_space<vmem>>, vector<288x1xf32>
    tpu.vector_store %arg7[%c0_99, %c19], %58 {strides = array<i32>} : memref<288x25xf32, #tpu.memory_space<vmem>>, vector<288x1xf32>,
    %c0_100 = arith.constant 0 : index
    %c4_101 = arith.constant 4 : index
    %c0_102 = arith.constant 0 : index
    %c0_103 = arith.constant 0 : index
    %60 = vector.load %arg1[%c0_100, %c4_101, %c0_102, %c0_103] : memref<2x16x16x1xf32, #tpu.memory_space<vmem>>, vector<2x12x12x1xf32>
    %61 = vector.shape_cast %60 : vector<2x12x12x1xf32> to vector<288x1xf32>
    %c0_104 = arith.constant 0 : index
    %c20 = arith.constant 20 : index
    %62 = vector.load %arg7[%c0_104, %c20] : memref<288x25xf32, #tpu.memory_space<vmem>>, vector<288x1xf32>
    tpu.vector_store %arg7[%c0_104, %c20], %61 {strides = array<i32>} : memref<288x25xf32, #tpu.memory_space<vmem>>, vector<288x1xf32>,
    %c0_105 = arith.constant 0 : index
    %c4_106 = arith.constant 4 : index
    %c1_107 = arith.constant 1 : index
    %c0_108 = arith.constant 0 : index
    %63 = vector.load %arg1[%c0_105, %c4_106, %c1_107, %c0_108] : memref<2x16x16x1xf32, #tpu.memory_space<vmem>>, vector<2x12x12x1xf32>
    %64 = vector.shape_cast %63 : vector<2x12x12x1xf32> to vector<288x1xf32>
    %c0_109 = arith.constant 0 : index
    %c21 = arith.constant 21 : index
    %65 = vector.load %arg7[%c0_109, %c21] : memref<288x25xf32, #tpu.memory_space<vmem>>, vector<288x1xf32>
    tpu.vector_store %arg7[%c0_109, %c21], %64 {strides = array<i32>} : memref<288x25xf32, #tpu.memory_space<vmem>>, vector<288x1xf32>,
    %c0_110 = arith.constant 0 : index
    %c4_111 = arith.constant 4 : index
    %c2_112 = arith.constant 2 : index
    %c0_113 = arith.constant 0 : index
    %66 = vector.load %arg1[%c0_110, %c4_111, %c2_112, %c0_113] : memref<2x16x16x1xf32, #tpu.memory_space<vmem>>, vector<2x12x12x1xf32>
    %67 = vector.shape_cast %66 : vector<2x12x12x1xf32> to vector<288x1xf32>
    %c0_114 = arith.constant 0 : index
    %c22 = arith.constant 22 : index
    %68 = vector.load %arg7[%c0_114, %c22] : memref<288x25xf32, #tpu.memory_space<vmem>>, vector<288x1xf32>
    tpu.vector_store %arg7[%c0_114, %c22], %67 {strides = array<i32>} : memref<288x25xf32, #tpu.memory_space<vmem>>, vector<288x1xf32>,
    %c0_115 = arith.constant 0 : index
    %c4_116 = arith.constant 4 : index
    %c3_117 = arith.constant 3 : index
    %c0_118 = arith.constant 0 : index
    %69 = vector.load %arg1[%c0_115, %c4_116, %c3_117, %c0_118] : memref<2x16x16x1xf32, #tpu.memory_space<vmem>>, vector<2x12x12x1xf32>
    %70 = vector.shape_cast %69 : vector<2x12x12x1xf32> to vector<288x1xf32>
    %c0_119 = arith.constant 0 : index
    %c23 = arith.constant 23 : index
    %71 = vector.load %arg7[%c0_119, %c23] : memref<288x25xf32, #tpu.memory_space<vmem>>, vector<288x1xf32>
    tpu.vector_store %arg7[%c0_119, %c23], %70 {strides = array<i32>} : memref<288x25xf32, #tpu.memory_space<vmem>>, vector<288x1xf32>,
    %c0_120 = arith.constant 0 : index
    %c4_121 = arith.constant 4 : index
    %c4_122 = arith.constant 4 : index
    %c0_123 = arith.constant 0 : index
    %72 = vector.load %arg1[%c0_120, %c4_121, %c4_122, %c0_123] : memref<2x16x16x1xf32, #tpu.memory_space<vmem>>, vector<2x12x12x1xf32>
    %73 = vector.shape_cast %72 : vector<2x12x12x1xf32> to vector<288x1xf32>
    %c0_124 = arith.constant 0 : index
    %c24 = arith.constant 24 : index
    %74 = vector.load %arg7[%c0_124, %c24] : memref<288x25xf32, #tpu.memory_space<vmem>>, vector<288x1xf32>
    tpu.vector_store %arg7[%c0_124, %c24], %73 {strides = array<i32>} : memref<288x25xf32, #tpu.memory_space<vmem>>, vector<288x1xf32>,
    %c0_125 = arith.constant 0 : index
    %c0_126 = arith.constant 0 : index
    %75 = vector.load %arg7[%c0_125, %c0_126] : memref<288x25xf32, #tpu.memory_space<vmem>>, vector<288x25xf32>
    %76 = arith.truncf %75 : vector<288x25xf32> to vector<288x25xbf16>
    %c0_127 = arith.constant 0 : index
    %c0_128 = arith.constant 0 : index
    %77 = vector.load %arg2[%c0_127, %c0_128] : memref<25x128xbf16, #tpu.memory_space<vmem>>, vector<25x128xbf16>
    %cst = arith.constant dense<0.000000e+00> : vector<288x128xf32>
    %78 = tpu.matmul %76, %77, %cst {dimension_numbers = #tpu.dot_dimension_numbers<[1], [0], [0], [1], [0, 0, 1, 1], [], []>} : vector<288x25xbf16>, vector<25x128xbf16>, vector<288x128xf32> -> vector<288x128xf32>
    %c0_129 = arith.constant 0 : index
    %c0_130 = arith.constant 0 : index
    %79 = vector.load %arg3[%c0_129, %c0_130] : memref<1x128xf32, #tpu.memory_space<vmem>>, vector<1x128xf32>
    %80 = vector.broadcast %79 : vector<1x128xf32> to vector<288x128xf32>
    %81 = arith.addf %78, %80 : vector<288x128xf32>
    %cst_131 = arith.constant 0.000000e+00 : f32
    %82 = vector.broadcast %cst_131 : f32 to vector<288x128xf32>
    %83 = arith.maximumf %81, %82 : vector<288x128xf32>
    %84 = vector.shape_cast %83 : vector<288x128xf32> to vector<2x12x12x128xf32>
    %c0_132 = arith.constant 0 : index
    %c0_133 = arith.constant 0 : index
    %c0_134 = arith.constant 0 : index
    %c0_135 = arith.constant 0 : index
    %85 = vector.load %arg8[%c0_132, %c0_133, %c0_134, %c0_135] : memref<2x12x12x128xf32, #tpu.memory_space<vmem>>, vector<2x12x12x128xf32>
    tpu.vector_store %arg8[%c0_132, %c0_133, %c0_134, %c0_135], %84 {strides = array<i32>} : memref<2x12x12x128xf32, #tpu.memory_space<vmem>>, vector<2x12x12x128xf32>,
    %c0_136 = arith.constant 0 : index
    %c0_137 = arith.constant 0 : index
    %c0_138 = arith.constant 0 : index
    %c0_139 = arith.constant 0 : index
    %86 = vector.load %arg8[%c0_136, %c0_137, %c0_138, %c0_139] : memref<2x12x12x128xf32, #tpu.memory_space<vmem>>, vector<2x8x8x20xf32>
    %87 = vector.shape_cast %86 : vector<2x8x8x20xf32> to vector<128x20xf32>
    %c0_140 = arith.constant 0 : index
    %c0_141 = arith.constant 0 : index
    %88 = vector.load %arg9[%c0_140, %c0_141] : memref<128x500xf32, #tpu.memory_space<vmem>>, vector<128x20xf32>
    tpu.vector_store %arg9[%c0_140, %c0_141], %87 {strides = array<i32>} : memref<128x500xf32, #tpu.memory_space<vmem>>, vector<128x20xf32>,
    %c0_142 = arith.constant 0 : index
    %c0_143 = arith.constant 0 : index
    %c1_144 = arith.constant 1 : index
    %c0_145 = arith.constant 0 : index
    %89 = vector.load %arg8[%c0_142, %c0_143, %c1_144, %c0_145] : memref<2x12x12x128xf32, #tpu.memory_space<vmem>>, vector<2x8x8x20xf32>
    %90 = vector.shape_cast %89 : vector<2x8x8x20xf32> to vector<128x20xf32>
    %c0_146 = arith.constant 0 : index
    %c20_147 = arith.constant 20 : index
    %91 = vector.load %arg9[%c0_146, %c20_147] : memref<128x500xf32, #tpu.memory_space<vmem>>, vector<128x20xf32>
    tpu.vector_store %arg9[%c0_146, %c20_147], %90 {strides = array<i32>} : memref<128x500xf32, #tpu.memory_space<vmem>>, vector<128x20xf32>,
    %c0_148 = arith.constant 0 : index
    %c0_149 = arith.constant 0 : index
    %c2_150 = arith.constant 2 : index
    %c0_151 = arith.constant 0 : index
    %92 = vector.load %arg8[%c0_148, %c0_149, %c2_150, %c0_151] : memref<2x12x12x128xf32, #tpu.memory_space<vmem>>, vector<2x8x8x20xf32>
    %93 = vector.shape_cast %92 : vector<2x8x8x20xf32> to vector<128x20xf32>
    %c0_152 = arith.constant 0 : index
    %c40 = arith.constant 40 : index
    %94 = vector.load %arg9[%c0_152, %c40] : memref<128x500xf32, #tpu.memory_space<vmem>>, vector<128x20xf32>
    tpu.vector_store %arg9[%c0_152, %c40], %93 {strides = array<i32>} : memref<128x500xf32, #tpu.memory_space<vmem>>, vector<128x20xf32>,
    %c0_153 = arith.constant 0 : index
    %c0_154 = arith.constant 0 : index
    %c3_155 = arith.constant 3 : index
    %c0_156 = arith.constant 0 : index
    %95 = vector.load %arg8[%c0_153, %c0_154, %c3_155, %c0_156] : memref<2x12x12x128xf32, #tpu.memory_space<vmem>>, vector<2x8x8x20xf32>
    %96 = vector.shape_cast %95 : vector<2x8x8x20xf32> to vector<128x20xf32>
    %c0_157 = arith.constant 0 : index
    %c60 = arith.constant 60 : index
    %97 = vector.load %arg9[%c0_157, %c60] : memref<128x500xf32, #tpu.memory_space<vmem>>, vector<128x20xf32>
    tpu.vector_store %arg9[%c0_157, %c60], %96 {strides = array<i32>} : memref<128x500xf32, #tpu.memory_space<vmem>>, vector<128x20xf32>,
    %c0_158 = arith.constant 0 : index
    %c0_159 = arith.constant 0 : index
    %c4_160 = arith.constant 4 : index
    %c0_161 = arith.constant 0 : index
    %98 = vector.load %arg8[%c0_158, %c0_159, %c4_160, %c0_161] : memref<2x12x12x128xf32, #tpu.memory_space<vmem>>, vector<2x8x8x20xf32>
    %99 = vector.shape_cast %98 : vector<2x8x8x20xf32> to vector<128x20xf32>
    %c0_162 = arith.constant 0 : index
    %c80 = arith.constant 80 : index
    %100 = vector.load %arg9[%c0_162, %c80] : memref<128x500xf32, #tpu.memory_space<vmem>>, vector<128x20xf32>
    tpu.vector_store %arg9[%c0_162, %c80], %99 {strides = array<i32>} : memref<128x500xf32, #tpu.memory_space<vmem>>, vector<128x20xf32>,
    %c0_163 = arith.constant 0 : index
    %c1_164 = arith.constant 1 : index
    %c0_165 = arith.constant 0 : index
    %c0_166 = arith.constant 0 : index
    %101 = vector.load %arg8[%c0_163, %c1_164, %c0_165, %c0_166] : memref<2x12x12x128xf32, #tpu.memory_space<vmem>>, vector<2x8x8x20xf32>
    %102 = vector.shape_cast %101 : vector<2x8x8x20xf32> to vector<128x20xf32>
    %c0_167 = arith.constant 0 : index
    %c100 = arith.constant 100 : index
    %103 = vector.load %arg9[%c0_167, %c100] : memref<128x500xf32, #tpu.memory_space<vmem>>, vector<128x20xf32>
    tpu.vector_store %arg9[%c0_167, %c100], %102 {strides = array<i32>} : memref<128x500xf32, #tpu.memory_space<vmem>>, vector<128x20xf32>,
    %c0_168 = arith.constant 0 : index
    %c1_169 = arith.constant 1 : index
    %c1_170 = arith.constant 1 : index
    %c0_171 = arith.constant 0 : index
    %104 = vector.load %arg8[%c0_168, %c1_169, %c1_170, %c0_171] : memref<2x12x12x128xf32, #tpu.memory_space<vmem>>, vector<2x8x8x20xf32>
    %105 = vector.shape_cast %104 : vector<2x8x8x20xf32> to vector<128x20xf32>
    %c0_172 = arith.constant 0 : index
    %c120 = arith.constant 120 : index
    %106 = vector.load %arg9[%c0_172, %c120] : memref<128x500xf32, #tpu.memory_space<vmem>>, vector<128x20xf32>
    tpu.vector_store %arg9[%c0_172, %c120], %105 {strides = array<i32>} : memref<128x500xf32, #tpu.memory_space<vmem>>, vector<128x20xf32>,
    %c0_173 = arith.constant 0 : index
    %c1_174 = arith.constant 1 : index
    %c2_175 = arith.constant 2 : index
    %c0_176 = arith.constant 0 : index
    %107 = vector.load %arg8[%c0_173, %c1_174, %c2_175, %c0_176] : memref<2x12x12x128xf32, #tpu.memory_space<vmem>>, vector<2x8x8x20xf32>
    %108 = vector.shape_cast %107 : vector<2x8x8x20xf32> to vector<128x20xf32>
    %c0_177 = arith.constant 0 : index
    %c140 = arith.constant 140 : index
    %109 = vector.load %arg9[%c0_177, %c140] : memref<128x500xf32, #tpu.memory_space<vmem>>, vector<128x20xf32>
    tpu.vector_store %arg9[%c0_177, %c140], %108 {strides = array<i32>} : memref<128x500xf32, #tpu.memory_space<vmem>>, vector<128x20xf32>,
    %c0_178 = arith.constant 0 : index
    %c1_179 = arith.constant 1 : index
    %c3_180 = arith.constant 3 : index
    %c0_181 = arith.constant 0 : index
    %110 = vector.load %arg8[%c0_178, %c1_179, %c3_180, %c0_181] : memref<2x12x12x128xf32, #tpu.memory_space<vmem>>, vector<2x8x8x20xf32>
    %111 = vector.shape_cast %110 : vector<2x8x8x20xf32> to vector<128x20xf32>
    %c0_182 = arith.constant 0 : index
    %c160 = arith.constant 160 : index
    %112 = vector.load %arg9[%c0_182, %c160] : memref<128x500xf32, #tpu.memory_space<vmem>>, vector<128x20xf32>
    tpu.vector_store %arg9[%c0_182, %c160], %111 {strides = array<i32>} : memref<128x500xf32, #tpu.memory_space<vmem>>, vector<128x20xf32>,
    %c0_183 = arith.constant 0 : index
    %c1_184 = arith.constant 1 : index
    %c4_185 = arith.constant 4 : index
    %c0_186 = arith.constant 0 : index
    %113 = vector.load %arg8[%c0_183, %c1_184, %c4_185, %c0_186] : memref<2x12x12x128xf32, #tpu.memory_space<vmem>>, vector<2x8x8x20xf32>
    %114 = vector.shape_cast %113 : vector<2x8x8x20xf32> to vector<128x20xf32>
    %c0_187 = arith.constant 0 : index
    %c180 = arith.constant 180 : index
    %115 = vector.load %arg9[%c0_187, %c180] : memref<128x500xf32, #tpu.memory_space<vmem>>, vector<128x20xf32>
    tpu.vector_store %arg9[%c0_187, %c180], %114 {strides = array<i32>} : memref<128x500xf32, #tpu.memory_space<vmem>>, vector<128x20xf32>,
    %c0_188 = arith.constant 0 : index
    %c2_189 = arith.constant 2 : index
    %c0_190 = arith.constant 0 : index
    %c0_191 = arith.constant 0 : index
    %116 = vector.load %arg8[%c0_188, %c2_189, %c0_190, %c0_191] : memref<2x12x12x128xf32, #tpu.memory_space<vmem>>, vector<2x8x8x20xf32>
    %117 = vector.shape_cast %116 : vector<2x8x8x20xf32> to vector<128x20xf32>
    %c0_192 = arith.constant 0 : index
    %c200 = arith.constant 200 : index
    %118 = vector.load %arg9[%c0_192, %c200] : memref<128x500xf32, #tpu.memory_space<vmem>>, vector<128x20xf32>
    tpu.vector_store %arg9[%c0_192, %c200], %117 {strides = array<i32>} : memref<128x500xf32, #tpu.memory_space<vmem>>, vector<128x20xf32>,
    %c0_193 = arith.constant 0 : index
    %c2_194 = arith.constant 2 : index
    %c1_195 = arith.constant 1 : index
    %c0_196 = arith.constant 0 : index
    %119 = vector.load %arg8[%c0_193, %c2_194, %c1_195, %c0_196] : memref<2x12x12x128xf32, #tpu.memory_space<vmem>>, vector<2x8x8x20xf32>
    %120 = vector.shape_cast %119 : vector<2x8x8x20xf32> to vector<128x20xf32>
    %c0_197 = arith.constant 0 : index
    %c220 = arith.constant 220 : index
    %121 = vector.load %arg9[%c0_197, %c220] : memref<128x500xf32, #tpu.memory_space<vmem>>, vector<128x20xf32>
    tpu.vector_store %arg9[%c0_197, %c220], %120 {strides = array<i32>} : memref<128x500xf32, #tpu.memory_space<vmem>>, vector<128x20xf32>,
    %c0_198 = arith.constant 0 : index
    %c2_199 = arith.constant 2 : index
    %c2_200 = arith.constant 2 : index
    %c0_201 = arith.constant 0 : index
    %122 = vector.load %arg8[%c0_198, %c2_199, %c2_200, %c0_201] : memref<2x12x12x128xf32, #tpu.memory_space<vmem>>, vector<2x8x8x20xf32>
    %123 = vector.shape_cast %122 : vector<2x8x8x20xf32> to vector<128x20xf32>
    %c0_202 = arith.constant 0 : index
    %c240 = arith.constant 240 : index
    %124 = vector.load %arg9[%c0_202, %c240] : memref<128x500xf32, #tpu.memory_space<vmem>>, vector<128x20xf32>
    tpu.vector_store %arg9[%c0_202, %c240], %123 {strides = array<i32>} : memref<128x500xf32, #tpu.memory_space<vmem>>, vector<128x20xf32>,
    %c0_203 = arith.constant 0 : index
    %c2_204 = arith.constant 2 : index
    %c3_205 = arith.constant 3 : index
    %c0_206 = arith.constant 0 : index
    %125 = vector.load %arg8[%c0_203, %c2_204, %c3_205, %c0_206] : memref<2x12x12x128xf32, #tpu.memory_space<vmem>>, vector<2x8x8x20xf32>
    %126 = vector.shape_cast %125 : vector<2x8x8x20xf32> to vector<128x20xf32>
    %c0_207 = arith.constant 0 : index
    %c260 = arith.constant 260 : index
    %127 = vector.load %arg9[%c0_207, %c260] : memref<128x500xf32, #tpu.memory_space<vmem>>, vector<128x20xf32>
    tpu.vector_store %arg9[%c0_207, %c260], %126 {strides = array<i32>} : memref<128x500xf32, #tpu.memory_space<vmem>>, vector<128x20xf32>,
    %c0_208 = arith.constant 0 : index
    %c2_209 = arith.constant 2 : index
    %c4_210 = arith.constant 4 : index
    %c0_211 = arith.constant 0 : index
    %128 = vector.load %arg8[%c0_208, %c2_209, %c4_210, %c0_211] : memref<2x12x12x128xf32, #tpu.memory_space<vmem>>, vector<2x8x8x20xf32>
    %129 = vector.shape_cast %128 : vector<2x8x8x20xf32> to vector<128x20xf32>
    %c0_212 = arith.constant 0 : index
    %c280 = arith.constant 280 : index
    %130 = vector.load %arg9[%c0_212, %c280] : memref<128x500xf32, #tpu.memory_space<vmem>>, vector<128x20xf32>
    tpu.vector_store %arg9[%c0_212, %c280], %129 {strides = array<i32>} : memref<128x500xf32, #tpu.memory_space<vmem>>, vector<128x20xf32>,
    %c0_213 = arith.constant 0 : index
    %c3_214 = arith.constant 3 : index
    %c0_215 = arith.constant 0 : index
    %c0_216 = arith.constant 0 : index
    %131 = vector.load %arg8[%c0_213, %c3_214, %c0_215, %c0_216] : memref<2x12x12x128xf32, #tpu.memory_space<vmem>>, vector<2x8x8x20xf32>
    %132 = vector.shape_cast %131 : vector<2x8x8x20xf32> to vector<128x20xf32>
    %c0_217 = arith.constant 0 : index
    %c300 = arith.constant 300 : index
    %133 = vector.load %arg9[%c0_217, %c300] : memref<128x500xf32, #tpu.memory_space<vmem>>, vector<128x20xf32>
    tpu.vector_store %arg9[%c0_217, %c300], %132 {strides = array<i32>} : memref<128x500xf32, #tpu.memory_space<vmem>>, vector<128x20xf32>,
    %c0_218 = arith.constant 0 : index
    %c3_219 = arith.constant 3 : index
    %c1_220 = arith.constant 1 : index
    %c0_221 = arith.constant 0 : index
    %134 = vector.load %arg8[%c0_218, %c3_219, %c1_220, %c0_221] : memref<2x12x12x128xf32, #tpu.memory_space<vmem>>, vector<2x8x8x20xf32>
    %135 = vector.shape_cast %134 : vector<2x8x8x20xf32> to vector<128x20xf32>
    %c0_222 = arith.constant 0 : index
    %c320 = arith.constant 320 : index
    %136 = vector.load %arg9[%c0_222, %c320] : memref<128x500xf32, #tpu.memory_space<vmem>>, vector<128x20xf32>
    tpu.vector_store %arg9[%c0_222, %c320], %135 {strides = array<i32>} : memref<128x500xf32, #tpu.memory_space<vmem>>, vector<128x20xf32>,
    %c0_223 = arith.constant 0 : index
    %c3_224 = arith.constant 3 : index
    %c2_225 = arith.constant 2 : index
    %c0_226 = arith.constant 0 : index
    %137 = vector.load %arg8[%c0_223, %c3_224, %c2_225, %c0_226] : memref<2x12x12x128xf32, #tpu.memory_space<vmem>>, vector<2x8x8x20xf32>
    %138 = vector.shape_cast %137 : vector<2x8x8x20xf32> to vector<128x20xf32>
    %c0_227 = arith.constant 0 : index
    %c340 = arith.constant 340 : index
    %139 = vector.load %arg9[%c0_227, %c340] : memref<128x500xf32, #tpu.memory_space<vmem>>, vector<128x20xf32>
    tpu.vector_store %arg9[%c0_227, %c340], %138 {strides = array<i32>} : memref<128x500xf32, #tpu.memory_space<vmem>>, vector<128x20xf32>,
    %c0_228 = arith.constant 0 : index
    %c3_229 = arith.constant 3 : index
    %c3_230 = arith.constant 3 : index
    %c0_231 = arith.constant 0 : index
    %140 = vector.load %arg8[%c0_228, %c3_229, %c3_230, %c0_231] : memref<2x12x12x128xf32, #tpu.memory_space<vmem>>, vector<2x8x8x20xf32>
    %141 = vector.shape_cast %140 : vector<2x8x8x20xf32> to vector<128x20xf32>
    %c0_232 = arith.constant 0 : index
    %c360 = arith.constant 360 : index
    %142 = vector.load %arg9[%c0_232, %c360] : memref<128x500xf32, #tpu.memory_space<vmem>>, vector<128x20xf32>
    tpu.vector_store %arg9[%c0_232, %c360], %141 {strides = array<i32>} : memref<128x500xf32, #tpu.memory_space<vmem>>, vector<128x20xf32>,
    %c0_233 = arith.constant 0 : index
    %c3_234 = arith.constant 3 : index
    %c4_235 = arith.constant 4 : index
    %c0_236 = arith.constant 0 : index
    %143 = vector.load %arg8[%c0_233, %c3_234, %c4_235, %c0_236] : memref<2x12x12x128xf32, #tpu.memory_space<vmem>>, vector<2x8x8x20xf32>
    %144 = vector.shape_cast %143 : vector<2x8x8x20xf32> to vector<128x20xf32>
    %c0_237 = arith.constant 0 : index
    %c380 = arith.constant 380 : index
    %145 = vector.load %arg9[%c0_237, %c380] : memref<128x500xf32, #tpu.memory_space<vmem>>, vector<128x20xf32>
    tpu.vector_store %arg9[%c0_237, %c380], %144 {strides = array<i32>} : memref<128x500xf32, #tpu.memory_space<vmem>>, vector<128x20xf32>,
    %c0_238 = arith.constant 0 : index
    %c4_239 = arith.constant 4 : index
    %c0_240 = arith.constant 0 : index
    %c0_241 = arith.constant 0 : index
    %146 = vector.load %arg8[%c0_238, %c4_239, %c0_240, %c0_241] : memref<2x12x12x128xf32, #tpu.memory_space<vmem>>, vector<2x8x8x20xf32>
    %147 = vector.shape_cast %146 : vector<2x8x8x20xf32> to vector<128x20xf32>
    %c0_242 = arith.constant 0 : index
    %c400 = arith.constant 400 : index
    %148 = vector.load %arg9[%c0_242, %c400] : memref<128x500xf32, #tpu.memory_space<vmem>>, vector<128x20xf32>
    tpu.vector_store %arg9[%c0_242, %c400], %147 {strides = array<i32>} : memref<128x500xf32, #tpu.memory_space<vmem>>, vector<128x20xf32>,
    %c0_243 = arith.constant 0 : index
    %c4_244 = arith.constant 4 : index
    %c1_245 = arith.constant 1 : index
    %c0_246 = arith.constant 0 : index
    %149 = vector.load %arg8[%c0_243, %c4_244, %c1_245, %c0_246] : memref<2x12x12x128xf32, #tpu.memory_space<vmem>>, vector<2x8x8x20xf32>
    %150 = vector.shape_cast %149 : vector<2x8x8x20xf32> to vector<128x20xf32>
    %c0_247 = arith.constant 0 : index
    %c420 = arith.constant 420 : index
    %151 = vector.load %arg9[%c0_247, %c420] : memref<128x500xf32, #tpu.memory_space<vmem>>, vector<128x20xf32>
    tpu.vector_store %arg9[%c0_247, %c420], %150 {strides = array<i32>} : memref<128x500xf32, #tpu.memory_space<vmem>>, vector<128x20xf32>,
    %c0_248 = arith.constant 0 : index
    %c4_249 = arith.constant 4 : index
    %c2_250 = arith.constant 2 : index
    %c0_251 = arith.constant 0 : index
    %152 = vector.load %arg8[%c0_248, %c4_249, %c2_250, %c0_251] : memref<2x12x12x128xf32, #tpu.memory_space<vmem>>, vector<2x8x8x20xf32>
    %153 = vector.shape_cast %152 : vector<2x8x8x20xf32> to vector<128x20xf32>
    %c0_252 = arith.constant 0 : index
    %c440 = arith.constant 440 : index
    %154 = vector.load %arg9[%c0_252, %c440] : memref<128x500xf32, #tpu.memory_space<vmem>>, vector<128x20xf32>
    tpu.vector_store %arg9[%c0_252, %c440], %153 {strides = array<i32>} : memref<128x500xf32, #tpu.memory_space<vmem>>, vector<128x20xf32>,
    %c0_253 = arith.constant 0 : index
    %c4_254 = arith.constant 4 : index
    %c3_255 = arith.constant 3 : index
    %c0_256 = arith.constant 0 : index
    %155 = vector.load %arg8[%c0_253, %c4_254, %c3_255, %c0_256] : memref<2x12x12x128xf32, #tpu.memory_space<vmem>>, vector<2x8x8x20xf32>
    %156 = vector.shape_cast %155 : vector<2x8x8x20xf32> to vector<128x20xf32>
    %c0_257 = arith.constant 0 : index
    %c460 = arith.constant 460 : index
    %157 = vector.load %arg9[%c0_257, %c460] : memref<128x500xf32, #tpu.memory_space<vmem>>, vector<128x20xf32>
    tpu.vector_store %arg9[%c0_257, %c460], %156 {strides = array<i32>} : memref<128x500xf32, #tpu.memory_space<vmem>>, vector<128x20xf32>,
    %c0_258 = arith.constant 0 : index
    %c4_259 = arith.constant 4 : index
    %c4_260 = arith.constant 4 : index
    %c0_261 = arith.constant 0 : index
    %158 = vector.load %arg8[%c0_258, %c4_259, %c4_260, %c0_261] : memref<2x12x12x128xf32, #tpu.memory_space<vmem>>, vector<2x8x8x20xf32>
    %159 = vector.shape_cast %158 : vector<2x8x8x20xf32> to vector<128x20xf32>
    %c0_262 = arith.constant 0 : index
    %c480 = arith.constant 480 : index
    %160 = vector.load %arg9[%c0_262, %c480] : memref<128x500xf32, #tpu.memory_space<vmem>>, vector<128x20xf32>
    tpu.vector_store %arg9[%c0_262, %c480], %159 {strides = array<i32>} : memref<128x500xf32, #tpu.memory_space<vmem>>, vector<128x20xf32>,
    %c0_263 = arith.constant 0 : index
    %c0_264 = arith.constant 0 : index
    %161 = vector.load %arg9[%c0_263, %c0_264] : memref<128x500xf32, #tpu.memory_space<vmem>>, vector<128x500xf32>
    %162 = arith.truncf %161 : vector<128x500xf32> to vector<128x500xbf16>
    %c0_265 = arith.constant 0 : index
    %c0_266 = arith.constant 0 : index
    %163 = vector.load %arg4[%c0_265, %c0_266] : memref<500x128xbf16, #tpu.memory_space<vmem>>, vector<500x128xbf16>
    %cst_267 = arith.constant dense<0.000000e+00> : vector<128x128xf32>
    %164 = tpu.matmul %162, %163, %cst_267 {dimension_numbers = #tpu.dot_dimension_numbers<[1], [0], [0], [1], [0, 0, 1, 1], [], []>} : vector<128x500xbf16>, vector<500x128xbf16>, vector<128x128xf32> -> vector<128x128xf32>
    %c0_268 = arith.constant 0 : index
    %c0_269 = arith.constant 0 : index
    %165 = vector.load %arg5[%c0_268, %c0_269] : memref<1x128xf32, #tpu.memory_space<vmem>>, vector<1x128xf32>
    %166 = vector.broadcast %165 : vector<1x128xf32> to vector<128x128xf32>
    %167 = arith.addf %164, %166 : vector<128x128xf32>
    %cst_270 = arith.constant 0.000000e+00 : f32
    %168 = vector.broadcast %cst_270 : f32 to vector<128x128xf32>
    %169 = arith.maximumf %167, %168 : vector<128x128xf32>
    %170 = tpu.transpose %169, [1, 0] : vector<128x128xf32> -> vector<128x128xf32>
    %171 = vector.extract_strided_slice %170 {offsets = [0, 0], sizes = [20, 64], strides = [1, 1]} : vector<128x128xf32> to vector<20x64xf32>
    %c0_271 = arith.constant 0 : index
    %c0_272 = arith.constant 0 : index
    %c0_273 = arith.constant 0 : index
    %172 = vector.load %arg6[%c0_271, %c0_272, %c0_273] : memref<2x20x64xf32, #tpu.memory_space<vmem>>, vector<1x20x64xf32>
    %173 = vector.shape_cast %172 : vector<1x20x64xf32> to vector<20x64xf32>
    %174 = vector.shape_cast %171 : vector<20x64xf32> to vector<1x20x64xf32>
    tpu.vector_store %arg6[%c0_271, %c0_272, %c0_273], %174 {strides = array<i32>} : memref<2x20x64xf32, #tpu.memory_space<vmem>>, vector<1x20x64xf32>,
    %175 = vector.extract_strided_slice %170 {offsets = [0, 64], sizes = [20, 64], strides = [1, 1]} : vector<128x128xf32> to vector<20x64xf32>
    %c1_274 = arith.constant 1 : index
    %c0_275 = arith.constant 0 : index
    %c0_276 = arith.constant 0 : index
    %176 = vector.load %arg6[%c1_274, %c0_275, %c0_276] : memref<2x20x64xf32, #tpu.memory_space<vmem>>, vector<1x20x64xf32>
    %177 = vector.shape_cast %176 : vector<1x20x64xf32> to vector<20x64xf32>
    %178 = vector.shape_cast %175 : vector<20x64xf32> to vector<1x20x64xf32>
    tpu.vector_store %arg6[%c1_274, %c0_275, %c0_276], %178 {strides = array<i32>} : memref<2x20x64xf32, #tpu.memory_space<vmem>>, vector<1x20x64xf32>,
    return
  }
  func.func @transform_0(%arg0: i32) -> (i32, i32, i32, i32) {
    %c0_i32 = arith.constant 0 : i32
    %c0_i32_0 = arith.constant 0 : i32
    %c0_i32_1 = arith.constant 0 : i32
    %c0_i32_2 = arith.constant 0 : i32
    %c0_i32_3 = arith.constant 0 : i32
    return %c0_i32, %c0_i32_0, %c0_i32_1, %c0_i32_2 : i32, i32, i32, i32
  }
  func.func @transform_1(%arg0: i32) -> (i32, i32) {
    %c0_i32 = arith.constant 0 : i32
    %c0_i32_0 = arith.constant 0 : i32
    %c0_i32_1 = arith.constant 0 : i32
    return %c0_i32, %c0_i32_0 : i32, i32
  }
  func.func @transform_2(%arg0: i32) -> (i32, i32) {
    %c0_i32 = arith.constant 0 : i32
    %c0_i32_0 = arith.constant 0 : i32
    %c0_i32_1 = arith.constant 0 : i32
    return %c0_i32, %c0_i32_0 : i32, i32
  }
  func.func @transform_3(%arg0: i32) -> (i32, i32) {
    %c0_i32 = arith.constant 0 : i32
    %c0_i32_0 = arith.constant 0 : i32
    %c0_i32_1 = arith.constant 0 : i32
    return %c0_i32, %c0_i32_0 : i32, i32
  }
  func.func @transform_4(%arg0: i32) -> (i32, i32) {
    %c0_i32 = arith.constant 0 : i32
    %c0_i32_0 = arith.constant 0 : i32
    %c0_i32_1 = arith.constant 0 : i32
    return %c0_i32, %c0_i32_0 : i32, i32
  }
  func.func @transform_5(%arg0: i32) -> (i32, i32, i32) {
    %c0_i32 = arith.constant 0 : i32
    %c0_i32_0 = arith.constant 0 : i32
    %c0_i32_1 = arith.constant 0 : i32
    %c0_i32_2 = arith.constant 0 : i32
    return %c0_i32, %c0_i32_0, %c0_i32_1 : i32, i32, i32
  }
}

</mosaic_0001>

<llo_original>
// kernel: tpu_custom_call.1
$region0: #{tpu_custom_call.1}
  #allocation0 [shape = 'u32[]', space=smem, size = 0x4, offset = 0x4, fixed_abs, tag = 'smem constant byte address 0x4 - core index']
  #allocation1 [shape = 'u32[144,128]{1,0:T(1,128)}', space=vmem, size = 0x12000, scoped, tag = 'internal scratch']
  #allocation2 [shape = 'f32[288,25]{1,0:T(8,128)}', space=vmem, size = 0x24000, scoped, tag = 'scratch operand']
  #allocation3 [shape = 'f32[2,12,12,128]{3,2,1,0:T(8,128)}', space=vmem, size = 0x30000, scoped, tag = 'scratch operand']
  #allocation4 [shape = 'f32[128,500]{1,0:T(8,128)}', space=vmem, size = 0x40000, scoped, tag = 'scratch operand']
  %s0 = inlined_call_operand.vmem [shape: f32[2,16,16,1], index: 0, kind: input, shape index: {}]
  %s1 = inlined_call_operand.vmem [shape: bf16[25,128], index: 1, kind: input, shape index: {}]
  %s2 = inlined_call_operand.vmem [shape: f32[1,128], index: 2, kind: input, shape index: {}]
  %s3 = inlined_call_operand.vmem [shape: bf16[500,128], index: 3, kind: input, shape index: {}]
  %s4 = inlined_call_operand.vmem [shape: f32[1,128], index: 4, kind: input, shape index: {}]
  %s5 = inlined_call_operand.vmem [shape: f32[2,20,64], index: 5, kind: output, shape index: {}]
  %s6 = sld [smem:[#allocation0]]
  $region30: #{tpu_custom_call.1} parent=0
    _
  %s8 = ssub.s32 1, %s6
  %s9 = scalar_select 0, %s8, %s6
  // Predicated region
  $region2: #{tpu_custom_call.1} parent=0 // pred_check
    _
  $region3: #{tpu_custom_call.1} parent=0 // pred_check_branch
    %11 = sbr.rel (0) target = $region5
  $region4: #{tpu_custom_call.1} parent=0 // pred_region
    _
  $region5: #{tpu_custom_call.1} parent=0 // pred_fallthru
    _
  // Predicated region
  $region6: #{tpu_custom_call.1} parent=0 // pred_check
    _
  $region7: #{tpu_custom_call.1} parent=0 // pred_check_branch
    %13 = sbr.rel (0) target = $region9
  $region8: #{tpu_custom_call.1} parent=0 // pred_region
    _
  $region9: #{tpu_custom_call.1} parent=0 // pred_fallthru
    _
  // Predicated region
  $region10: #{tpu_custom_call.1} parent=0 // pred_check
    _
  $region11: #{tpu_custom_call.1} parent=0 // pred_check_branch
    %15 = sbr.rel (0) target = $region13
  $region12: #{tpu_custom_call.1} parent=0 // pred_region
    _
  $region13: #{tpu_custom_call.1} parent=0 // pred_fallthru
    _
  // Predicated region
  $region14: #{tpu_custom_call.1} parent=0 // pred_check
    _
  $region15: #{tpu_custom_call.1} parent=0 // pred_check_branch
    %17 = sbr.rel (0) target = $region17
  $region16: #{tpu_custom_call.1} parent=0 // pred_region
    _
  $region17: #{tpu_custom_call.1} parent=0 // pred_fallthru
    _
  // Predicated region
  $region18: #{tpu_custom_call.1} parent=0 // pred_check
    _
  $region19: #{tpu_custom_call.1} parent=0 // pred_check_branch
    %19 = sbr.rel (0) target = $region21
  $region20: #{tpu_custom_call.1} parent=0 // pred_region
    _
  $region21: #{tpu_custom_call.1} parent=0 // pred_fallthru
    _
  %v21 = vld [vmem:[%s0] sm:$0xff]
  %v22 = vld [vmem:[%s0 + $0x8] sm:$0xf]
  %v23 = vld [vmem:[%s0 + $0x10] sm:$0xff]
  %v24 = vld [vmem:[%s0 + $0x18] sm:$0xf]
  %v25 = vld [vmem:[%s0 + $0x20] sm:$0xff]
  %v26 = vld [vmem:[%s0 + $0x28] sm:$0xf]
  %v27 = vld [vmem:[%s0 + $0x30] sm:$0xff]
  %v28 = vld [vmem:[%s0 + $0x38] sm:$0xf]
  %v29 = vld [vmem:[%s0 + $0x40] sm:$0xff]
  %v30 = vld [vmem:[%s0 + $0x48] sm:$0xf]
  %v31 = vld [vmem:[%s0 + $0x50] sm:$0xff]
  %v32 = vld [vmem:[%s0 + $0x58] sm:$0xf]
  %v33 = vld [vmem:[%s0 + $0x60] sm:$0xff]
  %v34 = vld [vmem:[%s0 + $0x68] sm:$0xf]
  %v35 = vld [vmem:[%s0 + $0x70] sm:$0xff]
  %v36 = vld [vmem:[%s0 + $0x78] sm:$0xf]
  %v37 = vld [vmem:[%s0 + $0x80] sm:$0xff]
  %v38 = vld [vmem:[%s0 + $0x88] sm:$0xf]
  %v39 = vld [vmem:[%s0 + $0x90] sm:$0xff]
  %v40 = vld [vmem:[%s0 + $0x98] sm:$0xf]
  %v41 = vld [vmem:[%s0 + $0xa0] sm:$0xff]
  %v42 = vld [vmem:[%s0 + $0xa8] sm:$0xf]
  %v43 = vld [vmem:[%s0 + $0xb0] sm:$0xff]
  %v44 = vld [vmem:[%s0 + $0xb8] sm:$0xf]
  %v45 = vld [vmem:[%s0 + $0x100] sm:$0xff]
  %v46 = vld [vmem:[%s0 + $0x108] sm:$0xf]
  %v47 = vld [vmem:[%s0 + $0x110] sm:$0xff]
  %v48 = vld [vmem:[%s0 + $0x118] sm:$0xf]
  %v49 = vld [vmem:[%s0 + $0x120] sm:$0xff]
  %v50 = vld [vmem:[%s0 + $0x128] sm:$0xf]
  %v51 = vld [vmem:[%s0 + $0x130] sm:$0xff]
  %v52 = vld [vmem:[%s0 + $0x138] sm:$0xf]
  %v53 = vld [vmem:[%s0 + $0x140] sm:$0xff]
  %v54 = vld [vmem:[%s0 + $0x148] sm:$0xf]
  %v55 = vld [vmem:[%s0 + $0x150] sm:$0xff]
  %v56 = vld [vmem:[%s0 + $0x158] sm:$0xf]
  %v57 = vld [vmem:[%s0 + $0x160] sm:$0xff]
  %v58 = vld [vmem:[%s0 + $0x168] sm:$0xf]
  %v59 = vld [vmem:[%s0 + $0x170] sm:$0xff]
  %v60 = vld [vmem:[%s0 + $0x178] sm:$0xf]
  %v61 = vld [vmem:[%s0 + $0x180] sm:$0xff]
  %v62 = vld [vmem:[%s0 + $0x188] sm:$0xf]
  %v63 = vld [vmem:[%s0 + $0x190] sm:$0xff]
  %v64 = vld [vmem:[%s0 + $0x198] sm:$0xf]
  %v65 = vld [vmem:[%s0 + $0x1a0] sm:$0xff]
  %v66 = vld [vmem:[%s0 + $0x1a8] sm:$0xf]
  %v67 = vld [vmem:[%s0 + $0x1b0] sm:$0xff]
  %v68 = vld [vmem:[%s0 + $0x1b8] sm:$0xf]
  %v117 = vcombine.high %v21, %v21
  %v118 = vcombine.high %v23, %v23
  %v119 = vcombine.high %v25, %v25
  %v120 = vcombine.high %v27, %v27
  %v121 = vcombine.high %v29, %v29
  %v122 = vcombine.high %v31, %v31
  %v123 = vcombine.high %v33, %v33
  %v124 = vcombine.high %v35, %v35
  %v125 = vcombine.high %v37, %v37
  %v126 = vcombine.high %v39, %v39
  %v127 = vcombine.high %v41, %v41
  %v128 = vcombine.high %v43, %v43
  %v129 = vcombine.high %v45, %v45
  %v130 = vcombine.high %v47, %v47
  %v131 = vcombine.high %v49, %v49
  %v132 = vcombine.high %v51, %v51
  %v133 = vcombine.high %v53, %v53
  %v134 = vcombine.high %v55, %v55
  %v135 = vcombine.high %v57, %v57
  %v136 = vcombine.high %v59, %v59
  %v137 = vcombine.high %v61, %v61
  %v138 = vcombine.high %v63, %v63
  %v139 = vcombine.high %v65, %v65
  %v140 = vcombine.high %v67, %v67
  %v141 = vcombine.low %v21, %v117
  %v142 = vcombine.low %v22, %v23
  %v143 = vcombine.low %v118, %v24
  %v144 = vcombine.low %v25, %v119
  %v145 = vcombine.low %v26, %v27
  %v146 = vcombine.low %v120, %v28
  %v147 = vcombine.low %v29, %v121
  %v148 = vcombine.low %v30, %v31
  %v149 = vcombine.low %v122, %v32
  %v150 = vcombine.low %v33, %v123
  %v151 = vcombine.low %v34, %v35
  %v152 = vcombine.low %v124, %v36
  %v153 = vcombine.low %v37, %v125
  %v154 = vcombine.low %v38, %v39
  %v155 = vcombine.low %v126, %v40
  %v156 = vcombine.low %v41, %v127
  %v157 = vcombine.low %v42, %v43
  %v158 = vcombine.low %v128, %v44
  %v159 = vcombine.low %v45, %v129
  %v160 = vcombine.low %v46, %v47
  %v161 = vcombine.low %v130, %v48
  %v162 = vcombine.low %v49, %v131
  %v163 = vcombine.low %v50, %v51
  %v164 = vcombine.low %v132, %v52
  %v165 = vcombine.low %v53, %v133
  %v166 = vcombine.low %v54, %v55
  %v167 = vcombine.low %v134, %v56
  %v168 = vcombine.low %v57, %v135
  %v169 = vcombine.low %v58, %v59
  %v170 = vcombine.low %v136, %v60
  %v171 = vcombine.low %v61, %v137
  %v172 = vcombine.low %v62, %v63
  %v173 = vcombine.low %v138, %v64
  %v174 = vcombine.low %v65, %v139
  %v175 = vcombine.low %v66, %v67
  %v176 = vcombine.low %v140, %v68
  %vm213 = vcmask 7168
  %214 = vst.msk [vmem:[#allocation2] sm:$0xff] %vm213, %v141
  %215 = vst.msk [vmem:[#allocation2 + $0x8] sm:$0xff] %vm213, %v142
  %216 = vst.msk [vmem:[#allocation2 + $0x10] sm:$0xff] %vm213, %v143
  %217 = vst.msk [vmem:[#allocation2 + $0x18] sm:$0xff] %vm213, %v144
  %218 = vst.msk [vmem:[#allocation2 + $0x20] sm:$0xff] %vm213, %v145
  %219 = vst.msk [vmem:[#allocation2 + $0x28] sm:$0xff] %vm213, %v146
  %220 = vst.msk [vmem:[#allocation2 + $0x30] sm:$0xff] %vm213, %v147
  %221 = vst.msk [vmem:[#allocation2 + $0x38] sm:$0xff] %vm213, %v148
  %222 = vst.msk [vmem:[#allocation2 + $0x40] sm:$0xff] %vm213, %v149
  %223 = vst.msk [vmem:[#allocation2 + $0x48] sm:$0xff] %vm213, %v150
  %224 = vst.msk [vmem:[#allocation2 + $0x50] sm:$0xff] %vm213, %v151
  %225 = vst.msk [vmem:[#allocation2 + $0x58] sm:$0xff] %vm213, %v152
  %226 = vst.msk [vmem:[#allocation2 + $0x60] sm:$0xff] %vm213, %v153
  %227 = vst.msk [vmem:[#allocation2 + $0x68] sm:$0xff] %vm213, %v154
  %228 = vst.msk [vmem:[#allocation2 + $0x70] sm:$0xff] %vm213, %v155
  %229 = vst.msk [vmem:[#allocation2 + $0x78] sm:$0xff] %vm213, %v156
  %230 = vst.msk [vmem:[#allocation2 + $0x80] sm:$0xff] %vm213, %v157
  %231 = vst.msk [vmem:[#allocation2 + $0x88] sm:$0xff] %vm213, %v158
  %232 = vst.msk [vmem:[#allocation2 + $0x90] sm:$0xff] %vm213, %v159
  %233 = vst.msk [vmem:[#allocation2 + $0x98] sm:$0xff] %vm213, %v160
  %234 = vst.msk [vmem:[#allocation2 + $0xa0] sm:$0xff] %vm213, %v161
  %235 = vst.msk [vmem:[#allocation2 + $0xa8] sm:$0xff] %vm213, %v162
  %236 = vst.msk [vmem:[#allocation2 + $0xb0] sm:$0xff] %vm213, %v163
  %237 = vst.msk [vmem:[#allocation2 + $0xb8] sm:$0xff] %vm213, %v164
  %238 = vst.msk [vmem:[#allocation2 + $0xc0] sm:$0xff] %vm213, %v165
  %239 = vst.msk [vmem:[#allocation2 + $0xc8] sm:$0xff] %vm213, %v166
  %240 = vst.msk [vmem:[#allocation2 + $0xd0] sm:$0xff] %vm213, %v167
  %241 = vst.msk [vmem:[#allocation2 + $0xd8] sm:$0xff] %vm213, %v168
  %242 = vst.msk [vmem:[#allocation2 + $0xe0] sm:$0xff] %vm213, %v169
  %243 = vst.msk [vmem:[#allocation2 + $0xe8] sm:$0xff] %vm213, %v170
  %244 = vst.msk [vmem:[#allocation2 + $0xf0] sm:$0xff] %vm213, %v171
  %245 = vst.msk [vmem:[#allocation2 + $0xf8] sm:$0xff] %vm213, %v172
  %246 = vst.msk [vmem:[#allocation2 + $0x100] sm:$0xff] %vm213, %v173
  %247 = vst.msk [vmem:[#allocation2 + $0x108] sm:$0xff] %vm213, %v174
  %248 = vst.msk [vmem:[#allocation2 + $0x110] sm:$0xff] %vm213, %v175
  %249 = vst.msk [vmem:[#allocation2 + $0x118] sm:$0xff] %vm213, %v176
  %v250 = vld [vmem:[%s0 + $0x1] sm:$0xff]
  %v251 = vld [vmem:[%s0 + $0x9] sm:$0xf]
  %v252 = vld [vmem:[%s0 + $0x11] sm:$0xff]
  %v253 = vld [vmem:[%s0 + $0x19] sm:$0xf]
  %v254 = vld [vmem:[%s0 + $0x21] sm:$0xff]
  %v255 = vld [vmem:[%s0 + $0x29] sm:$0xf]
  %v256 = vld [vmem:[%s0 + $0x31] sm:$0xff]
  %v257 = vld [vmem:[%s0 + $0x39] sm:$0xf]
  %v258 = vld [vmem:[%s0 + $0x41] sm:$0xff]
  %v259 = vld [vmem:[%s0 + $0x49] sm:$0xf]
  %v260 = vld [vmem:[%s0 + $0x51] sm:$0xff]
  %v261 = vld [vmem:[%s0 + $0x59] sm:$0xf]
  %v262 = vld [vmem:[%s0 + $0x61] sm:$0xff]
  %v263 = vld [vmem:[%s0 + $0x69] sm:$0xf]
  %v264 = vld [vmem:[%s0 + $0x71] sm:$0xff]
  %v265 = vld [vmem:[%s0 + $0x79] sm:$0xf]
  %v266 = vld [vmem:[%s0 + $0x81] sm:$0xff]
  %v267 = vld [vmem:[%s0 + $0x89] sm:$0xf]
  %v268 = vld [vmem:[%s0 + $0x91] sm:$0xff]
  %v269 = vld [vmem:[%s0 + $0x99] sm:$0xf]
  %v270 = vld [vmem:[%s0 + $0xa1] sm:$0xff]
  %v271 = vld [vmem:[%s0 + $0xa9] sm:$0xf]
  %v272 = vld [vmem:[%s0 + $0xb1] sm:$0xff]
  %v273 = vld [vmem:[%s0 + $0xb9] sm:$0xf]
  %v274 = vld [vmem:[%s0 + $0x101] sm:$0xff]
  %v275 = vld [vmem:[%s0 + $0x109] sm:$0xf]
  %v276 = vld [vmem:[%s0 + $0x111] sm:$0xff]
  %v277 = vld [vmem:[%s0 + $0x119] sm:$0xf]
  %v278 = vld [vmem:[%s0 + $0x121] sm:$0xff]
  %v279 = vld [vmem:[%s0 + $0x129] sm:$0xf]
  %v280 = vld [vmem:[%s0 + $0x131] sm:$0xff]
  %v281 = vld [vmem:[%s0 + $0x139] sm:$0xf]
  %v282 = vld [vmem:[%s0 + $0x141] sm:$0xff]
  %v283 = vld [vmem:[%s0 + $0x149] sm:$0xf]
  %v284 = vld [vmem:[%s0 + $0x151] sm:$0xff]
  %v285 = vld [vmem:[%s0 + $0x159] sm:$0xf]
  %v286 = vld [vmem:[%s0 + $0x161] sm:$0xff]
  %v287 = vld [vmem:[%s0 + $0x169] sm:$0xf]
  %v288 = vld [vmem:[%s0 + $0x171] sm:$0xff]
  %v289 = vld [vmem:[%s0 + $0x179] sm:$0xf]
  %v290 = vld [vmem:[%s0 + $0x181] sm:$0xff]
  %v291 = vld [vmem:[%s0 + $0x189] sm:$0xf]
  %v292 = vld [vmem:[%s0 + $0x191] sm:$0xff]
  %v293 = vld [vmem:[%s0 + $0x199] sm:$0xf]
  %v294 = vld [vmem:[%s0 + $0x1a1] sm:$0xff]
  %v295 = vld [vmem:[%s0 + $0x1a9] sm:$0xf]
  %v296 = vld [vmem:[%s0 + $0x1b1] sm:$0xff]
  %v297 = vld [vmem:[%s0 + $0x1b9] sm:$0xf]
  %v346 = vcombine.high %v250, %v250
  %v347 = vcombine.high %v252, %v252
  %v348 = vcombine.high %v254, %v254
  %v349 = vcombine.high %v256, %v256
  %v350 = vcombine.high %v258, %v258
  %v351 = vcombine.high %v260, %v260
  %v352 = vcombine.high %v262, %v262
  %v353 = vcombine.high %v264, %v264
  %v354 = vcombine.high %v266, %v266
  %v355 = vcombine.high %v268, %v268
  %v356 = vcombine.high %v270, %v270
  %v357 = vcombine.high %v272, %v272
  %v358 = vcombine.high %v274, %v274
  %v359 = vcombine.high %v276, %v276
  %v360 = vcombine.high %v278, %v278
  %v361 = vcombine.high %v280, %v280
  %v362 = vcombine.high %v282, %v282
  %v363 = vcombine.high %v284, %v284
  %v364 = vcombine.high %v286, %v286
  %v365 = vcombine.high %v288, %v288
  %v366 = vcombine.high %v290, %v290
  %v367 = vcombine.high %v292, %v292
  %v368 = vcombine.high %v294, %v294
  %v369 = vcombine.high %v296, %v296
  %v370 = vcombine.low %v250, %v346
  %v371 = vcombine.low %v251, %v252
  %v372 = vcombine.low %v347, %v253
  %v373 = vcombine.low %v254, %v348
  %v374 = vcombine.low %v255, %v256
  %v375 = vcombine.low %v349, %v257
  %v376 = vcombine.low %v258, %v350
  %v377 = vcombine.low %v259, %v260
  %v378 = vcombine.low %v351, %v261
  %v379 = vcombine.low %v262, %v352
  %v380 = vcombine.low %v263, %v264
  %v381 = vcombine.low %v353, %v265
  %v382 = vcombine.low %v266, %v354
  %v383 = vcombine.low %v267, %v268
  %v384 = vcombine.low %v355, %v269
  %v385 = vcombine.low %v270, %v356
  %v386 = vcombine.low %v271, %v272
  %v387 = vcombine.low %v357, %v273
  %v388 = vcombine.low %v274, %v358
  %v389 = vcombine.low %v275, %v276
  %v390 = vcombine.low %v359, %v277
  %v391 = vcombine.low %v278, %v360
  %v392 = vcombine.low %v279, %v280
  %v393 = vcombine.low %v361, %v281
  %v394 = vcombine.low %v282, %v362
  %v395 = vcombine.low %v283, %v284
  %v396 = vcombine.low %v363, %v285
  %v397 = vcombine.low %v286, %v364
  %v398 = vcombine.low %v287, %v288
  %v399 = vcombine.low %v365, %v289
  %v400 = vcombine.low %v290, %v366
  %v401 = vcombine.low %v291, %v292
  %v402 = vcombine.low %v367, %v293
  %v403 = vcombine.low %v294, %v368
  %v404 = vcombine.low %v295, %v296
  %v405 = vcombine.low %v369, %v297
  %406 = vrot.lane.b32.xlu0 %v370, 1
  %v407 = vpop.permute.xlu0 %406
  %408 = vrot.lane.b32.xlu0 %v371, 1
  %v409 = vpop.permute.xlu0 %408
  %410 = vrot.lane.b32.xlu0 %v372, 1
  %v411 = vpop.permute.xlu0 %410
  %412 = vrot.lane.b32.xlu0 %v373, 1
  %v413 = vpop.permute.xlu0 %412
  %414 = vrot.lane.b32.xlu0 %v374, 1
  %v415 = vpop.permute.xlu0 %414
  %416 = vrot.lane.b32.xlu0 %v375, 1
  %v417 = vpop.permute.xlu0 %416
  %418 = vrot.lane.b32.xlu0 %v376, 1
  %v419 = vpop.permute.xlu0 %418
  %420 = vrot.lane.b32.xlu0 %v377, 1
  %v421 = vpop.permute.xlu0 %420
  %422 = vrot.lane.b32.xlu0 %v378, 1
  %v423 = vpop.permute.xlu0 %422
  %424 = vrot.lane.b32.xlu0 %v379, 1
  %v425 = vpop.permute.xlu0 %424
  %426 = vrot.lane.b32.xlu0 %v380, 1
  %v427 = vpop.permute.xlu0 %426
  %428 = vrot.lane.b32.xlu0 %v381, 1
  %v429 = vpop.permute.xlu0 %428
  %430 = vrot.lane.b32.xlu0 %v382, 1
  %v431 = vpop.permute.xlu0 %430
  %432 = vrot.lane.b32.xlu0 %v383, 1
  %v433 = vpop.permute.xlu0 %432
  %434 = vrot.lane.b32.xlu0 %v384, 1
  %v435 = vpop.permute.xlu0 %434
  %436 = vrot.lane.b32.xlu0 %v385, 1
  %v437 = vpop.permute.xlu0 %436
  %438 = vrot.lane.b32.xlu0 %v386, 1
  %v439 = vpop.permute.xlu0 %438
  %440 = vrot.lane.b32.xlu0 %v387, 1
  %v441 = vpop.permute.xlu0 %440
  %442 = vrot.lane.b32.xlu0 %v388, 1
  %v443 = vpop.permute.xlu0 %442
  %444 = vrot.lane.b32.xlu0 %v389, 1
  %v445 = vpop.permute.xlu0 %444
  %446 = vrot.lane.b32.xlu0 %v390, 1
  %v447 = vpop.permute.xlu0 %446
  %448 = vrot.lane.b32.xlu0 %v391, 1
  %v449 = vpop.permute.xlu0 %448
  %450 = vrot.lane.b32.xlu0 %v392, 1
  %v451 = vpop.permute.xlu0 %450
  %452 = vrot.lane.b32.xlu0 %v393, 1
  %v453 = vpop.permute.xlu0 %452
  %454 = vrot.lane.b32.xlu0 %v394, 1
  %v455 = vpop.permute.xlu0 %454
  %456 = vrot.lane.b32.xlu0 %v395, 1
  %v457 = vpop.permute.xlu0 %456
  %458 = vrot.lane.b32.xlu0 %v396, 1
  %v459 = vpop.permute.xlu0 %458
  %460 = vrot.lane.b32.xlu0 %v397, 1
  %v461 = vpop.permute.xlu0 %460
  %462 = vrot.lane.b32.xlu0 %v398, 1
  %v463 = vpop.permute.xlu0 %462
  %464 = vrot.lane.b32.xlu0 %v399, 1
  %v465 = vpop.permute.xlu0 %464
  %466 = vrot.lane.b32.xlu0 %v400, 1
  %v467 = vpop.permute.xlu0 %466
  %468 = vrot.lane.b32.xlu0 %v401, 1
  %v469 = vpop.permute.xlu0 %468
  %470 = vrot.lane.b32.xlu0 %v402, 1
  %v471 = vpop.permute.xlu0 %470
  %472 = vrot.lane.b32.xlu0 %v403, 1
  %v473 = vpop.permute.xlu0 %472
  %474 = vrot.lane.b32.xlu0 %v404, 1
  %v475 = vpop.permute.xlu0 %474
  %476 = vrot.lane.b32.xlu0 %v405, 1
  %v477 = vpop.permute.xlu0 %476
  %vm514 = vcmask 15368
  %515 = vst.msk [vmem:[#allocation2] sm:$0xff] %vm514, %v407
  %516 = vst.msk [vmem:[#allocation2 + $0x8] sm:$0xff] %vm514, %v409
  %517 = vst.msk [vmem:[#allocation2 + $0x10] sm:$0xff] %vm514, %v411
  %518 = vst.msk [vmem:[#allocation2 + $0x18] sm:$0xff] %vm514, %v413
  %519 = vst.msk [vmem:[#allocation2 + $0x20] sm:$0xff] %vm514, %v415
  %520 = vst.msk [vmem:[#allocation2 + $0x28] sm:$0xff] %vm514, %v417
  %521 = vst.msk [vmem:[#allocation2 + $0x30] sm:$0xff] %vm514, %v419
  %522 = vst.msk [vmem:[#allocation2 + $0x38] sm:$0xff] %vm514, %v421
  %523 = vst.msk [vmem:[#allocation2 + $0x40] sm:$0xff] %vm514, %v423
  %524 = vst.msk [vmem:[#allocation2 + $0x48] sm:$0xff] %vm514, %v425
  %525 = vst.msk [vmem:[#allocation2 + $0x50] sm:$0xff] %vm514, %v427
  %526 = vst.msk [vmem:[#allocation2 + $0x58] sm:$0xff] %vm514, %v429
  %527 = vst.msk [vmem:[#allocation2 + $0x60] sm:$0xff] %vm514, %v431
  %528 = vst.msk [vmem:[#allocation2 + $0x68] sm:$0xff] %vm514, %v433
  %529 = vst.msk [vmem:[#allocation2 + $0x70] sm:$0xff] %vm514, %v435
  %530 = vst.msk [vmem:[#allocation2 + $0x78] sm:$0xff] %vm514, %v437
  %531 = vst.msk [vmem:[#allocation2 + $0x80] sm:$0xff] %vm514, %v439
  %532 = vst.msk [vmem:[#allocation2 + $0x88] sm:$0xff] %vm514, %v441
  %533 = vst.msk [vmem:[#allocation2 + $0x90] sm:$0xff] %vm514, %v443
  %534 = vst.msk [vmem:[#allocation2 + $0x98] sm:$0xff] %vm514, %v445
  %535 = vst.msk [vmem:[#allocation2 + $0xa0] sm:$0xff] %vm514, %v447
  %536 = vst.msk [vmem:[#allocation2 + $0xa8] sm:$0xff] %vm514, %v449
  %537 = vst.msk [vmem:[#allocation2 + $0xb0] sm:$0xff] %vm514, %v451
  %538 = vst.msk [vmem:[#allocation2 + $0xb8] sm:$0xff] %vm514, %v453
  %539 = vst.msk [vmem:[#allocation2 + $0xc0] sm:$0xff] %vm514, %v455
  %540 = vst.msk [vmem:[#allocation2 + $0xc8] sm:$0xff] %vm514, %v457
  %541 = vst.msk [vmem:[#allocation2 + $0xd0] sm:$0xff] %vm514, %v459
  %542 = vst.msk [vmem:[#allocation2 + $0xd8] sm:$0xff] %vm514, %v461
  %543 = vst.msk [vmem:[#allocation2 + $0xe0] sm:$0xff] %vm514, %v463
  %544 = vst.msk [vmem:[#allocation2 + $0xe8] sm:$0xff] %vm514, %v465
  %545 = vst.msk [vmem:[#allocation2 + $0xf0] sm:$0xff] %vm514, %v467
  %546 = vst.msk [vmem:[#allocation2 + $0xf8] sm:$0xff] %vm514, %v469
  %547 = vst.msk [vmem:[#allocation2 + $0x100] sm:$0xff] %vm514, %v471
  %548 = vst.msk [vmem:[#allocation2 + $0x108] sm:$0xff] %vm514, %v473
  %549 = vst.msk [vmem:[#allocation2 + $0x110] sm:$0xff] %vm514, %v475
  %550 = vst.msk [vmem:[#allocation2 + $0x118] sm:$0xff] %vm514, %v477
  %v551 = vld [vmem:[%s0 + $0x2] sm:$0xff]
  %v552 = vld [vmem:[%s0 + $0xa] sm:$0xf]
  %v553 = vld [vmem:[%s0 + $0x12] sm:$0xff]
  %v554 = vld [vmem:[%s0 + $0x1a] sm:$0xf]
  %v555 = vld [vmem:[%s0 + $0x22] sm:$0xff]
  %v556 = vld [vmem:[%s0 + $0x2a] sm:$0xf]
  %v557 = vld [vmem:[%s0 + $0x32] sm:$0xff]
  %v558 = vld [vmem:[%s0 + $0x3a] sm:$0xf]
  %v559 = vld [vmem:[%s0 + $0x42] sm:$0xff]
  %v560 = vld [vmem:[%s0 + $0x4a] sm:$0xf]
  %v561 = vld [vmem:[%s0 + $0x52] sm:$0xff]
  %v562 = vld [vmem:[%s0 + $0x5a] sm:$0xf]
  %v563 = vld [vmem:[%s0 + $0x62] sm:$0xff]
  %v564 = vld [vmem:[%s0 + $0x6a] sm:$0xf]
  %v565 = vld [vmem:[%s0 + $0x72] sm:$0xff]
  %v566 = vld [vmem:[%s0 + $0x7a] sm:$0xf]
  %v567 = vld [vmem:[%s0 + $0x82] sm:$0xff]
  %v568 = vld [vmem:[%s0 + $0x8a] sm:$0xf]
  %v569 = vld [vmem:[%s0 + $0x92] sm:$0xff]
  %v570 = vld [vmem:[%s0 + $0x9a] sm:$0xf]
  %v571 = vld [vmem:[%s0 + $0xa2] sm:$0xff]
  %v572 = vld [vmem:[%s0 + $0xaa] sm:$0xf]
  %v573 = vld [vmem:[%s0 + $0xb2] sm:$0xff]
  %v574 = vld [vmem:[%s0 + $0xba] sm:$0xf]
  %v575 = vld [vmem:[%s0 + $0x102] sm:$0xff]
  %v576 = vld [vmem:[%s0 + $0x10a] sm:$0xf]
  %v577 = vld [vmem:[%s0 + $0x112] sm:$0xff]
  %v578 = vld [vmem:[%s0 + $0x11a] sm:$0xf]
  %v579 = vld [vmem:[%s0 + $0x122] sm:$0xff]
  %v580 = vld [vmem:[%s0 + $0x12a] sm:$0xf]
  %v581 = vld [vmem:[%s0 + $0x132] sm:$0xff]
  %v582 = vld [vmem:[%s0 + $0x13a] sm:$0xf]
  %v583 = vld [vmem:[%s0 + $0x142] sm:$0xff]
  %v584 = vld [vmem:[%s0 + $0x14a] sm:$0xf]
  %v585 = vld [vmem:[%s0 + $0x152] sm:$0xff]
  %v586 = vld [vmem:[%s0 + $0x15a] sm:$0xf]
  %v587 = vld [vmem:[%s0 + $0x162] sm:$0xff]
  %v588 = vld [vmem:[%s0 + $0x16a] sm:$0xf]
  %v589 = vld [vmem:[%s0 + $0x172] sm:$0xff]
  %v590 = vld [vmem:[%s0 + $0x17a] sm:$0xf]
  %v591 = vld [vmem:[%s0 + $0x182] sm:$0xff]
  %v592 = vld [vmem:[%s0 + $0x18a] sm:$0xf]
  %v593 = vld [vmem:[%s0 + $0x192] sm:$0xff]
  %v594 = vld [vmem:[%s0 + $0x19a] sm:$0xf]
  %v595 = vld [vmem:[%s0 + $0x1a2] sm:$0xff]
  %v596 = vld [vmem:[%s0 + $0x1aa] sm:$0xf]
  %v597 = vld [vmem:[%s0 + $0x1b2] sm:$0xff]
  %v598 = vld [vmem:[%s0 + $0x1ba] sm:$0xf]
  %v647 = vcombine.high %v551, %v551
  %v648 = vcombine.high %v553, %v553
  %v649 = vcombine.high %v555, %v555
  %v650 = vcombine.high %v557, %v557
  %v651 = vcombine.high %v559, %v559
  %v652 = vcombine.high %v561, %v561
  %v653 = vcombine.high %v563, %v563
  %v654 = vcombine.high %v565, %v565
  %v655 = vcombine.high %v567, %v567
  %v656 = vcombine.high %v569, %v569
  %v657 = vcombine.high %v571, %v571
  %v658 = vcombine.high %v573, %v573
  %v659 = vcombine.high %v575, %v575
  %v660 = vcombine.high %v577, %v577
  %v661 = vcombine.high %v579, %v579
  %v662 = vcombine.high %v581, %v581
  %v663 = vcombine.high %v583, %v583
  %v664 = vcombine.high %v585, %v585
  %v665 = vcombine.high %v587, %v587
  %v666 = vcombine.high %v589, %v589
  %v667 = vcombine.high %v591, %v591
  %v668 = vcombine.high %v593, %v593
  %v669 = vcombine.high %v595, %v595
  %v670 = vcombine.high %v597, %v597
  %v671 = vcombine.low %v551, %v647
  %v672 = vcombine.low %v552, %v553
  %v673 = vcombine.low %v648, %v554
  %v674 = vcombine.low %v555, %v649
  %v675 = vcombine.low %v556, %v557
  %v676 = vcombine.low %v650, %v558
  %v677 = vcombine.low %v559, %v651
  %v678 = vcombine.low %v560, %v561
  %v679 = vcombine.low %v652, %v562
  %v680 = vcombine.low %v563, %v653
  %v681 = vcombine.low %v564, %v565
  %v682 = vcombine.low %v654, %v566
  %v683 = vcombine.low %v567, %v655
  %v684 = vcombine.low %v568, %v569
  %v685 = vcombine.low %v656, %v570
  %v686 = vcombine.low %v571, %v657
  %v687 = vcombine.low %v572, %v573
  %v688 = vcombine.low %v658, %v574
  %v689 = vcombine.low %v575, %v659
  %v690 = vcombine.low %v576, %v577
  %v691 = vcombine.low %v660, %v578
  %v692 = vcombine.low %v579, %v661
  %v693 = vcombine.low %v580, %v581
  %v694 = vcombine.low %v662, %v582
  %v695 = vcombine.low %v583, %v663
  %v696 = vcombine.low %v584, %v585
  %v697 = vcombine.low %v664, %v586
  %v698 = vcombine.low %v587, %v665
  %v699 = vcombine.low %v588, %v589
  %v700 = vcombine.low %v666, %v590
  %v701 = vcombine.low %v591, %v667
  %v702 = vcombine.low %v592, %v593
  %v703 = vcombine.low %v668, %v594
  %v704 = vcombine.low %v595, %v669
  %v705 = vcombine.low %v596, %v597
  %v706 = vcombine.low %v670, %v598
  %707 = vrot.lane.b32.xlu0 %v671, 2
  %v708 = vpop.permute.xlu0 %707
  %709 = vrot.lane.b32.xlu0 %v672, 2
  %v710 = vpop.permute.xlu0 %709
  %711 = vrot.lane.b32.xlu0 %v673, 2
  %v712 = vpop.permute.xlu0 %711
  %713 = vrot.lane.b32.xlu0 %v674, 2
  %v714 = vpop.permute.xlu0 %713
  %715 = vrot.lane.b32.xlu0 %v675, 2
  %v716 = vpop.permute.xlu0 %715
  %717 = vrot.lane.b32.xlu0 %v676, 2
  %v718 = vpop.permute.xlu0 %717
  %719 = vrot.lane.b32.xlu0 %v677, 2
  %v720 = vpop.permute.xlu0 %719
  %721 = vrot.lane.b32.xlu0 %v678, 2
  %v722 = vpop.permute.xlu0 %721
  %723 = vrot.lane.b32.xlu0 %v679, 2
  %v724 = vpop.permute.xlu0 %723
  %725 = vrot.lane.b32.xlu0 %v680, 2
  %v726 = vpop.permute.xlu0 %725
  %727 = vrot.lane.b32.xlu0 %v681, 2
  %v728 = vpop.permute.xlu0 %727
  %729 = vrot.lane.b32.xlu0 %v682, 2
  %v730 = vpop.permute.xlu0 %729
  %731 = vrot.lane.b32.xlu0 %v683, 2
  %v732 = vpop.permute.xlu0 %731
  %733 = vrot.lane.b32.xlu0 %v684, 2
  %v734 = vpop.permute.xlu0 %733
  %735 = vrot.lane.b32.xlu0 %v685, 2
  %v736 = vpop.permute.xlu0 %735
  %737 = vrot.lane.b32.xlu0 %v686, 2
  %v738 = vpop.permute.xlu0 %737
  %739 = vrot.lane.b32.xlu0 %v687, 2
  %v740 = vpop.permute.xlu0 %739
  %741 = vrot.lane.b32.xlu0 %v688, 2
  %v742 = vpop.permute.xlu0 %741
  %743 = vrot.lane.b32.xlu0 %v689, 2
  %v744 = vpop.permute.xlu0 %743
  %745 = vrot.lane.b32.xlu0 %v690, 2
  %v746 = vpop.permute.xlu0 %745
  %747 = vrot.lane.b32.xlu0 %v691, 2
  %v748 = vpop.permute.xlu0 %747
  %749 = vrot.lane.b32.xlu0 %v692, 2
  %v750 = vpop.permute.xlu0 %749
  %751 = vrot.lane.b32.xlu0 %v693, 2
  %v752 = vpop.permute.xlu0 %751
  %753 = vrot.lane.b32.xlu0 %v694, 2
  %v754 = vpop.permute.xlu0 %753
  %755 = vrot.lane.b32.xlu0 %v695, 2
  %v756 = vpop.permute.xlu0 %755
  %757 = vrot.lane.b32.xlu0 %v696, 2
  %v758 = vpop.permute.xlu0 %757
  %759 = vrot.lane.b32.xlu0 %v697, 2
  %v760 = vpop.permute.xlu0 %759
  %761 = vrot.lane.b32.xlu0 %v698, 2
  %v762 = vpop.permute.xlu0 %761
  %763 = vrot.lane.b32.xlu0 %v699, 2
  %v764 = vpop.permute.xlu0 %763
  %765 = vrot.lane.b32.xlu0 %v700, 2
  %v766 = vpop.permute.xlu0 %765
  %767 = vrot.lane.b32.xlu0 %v701, 2
  %v768 = vpop.permute.xlu0 %767
  %769 = vrot.lane.b32.xlu0 %v702, 2
  %v770 = vpop.permute.xlu0 %769
  %771 = vrot.lane.b32.xlu0 %v703, 2
  %v772 = vpop.permute.xlu0 %771
  %773 = vrot.lane.b32.xlu0 %v704, 2
  %v774 = vpop.permute.xlu0 %773
  %775 = vrot.lane.b32.xlu0 %v705, 2
  %v776 = vpop.permute.xlu0 %775
  %777 = vrot.lane.b32.xlu0 %v706, 2
  %v778 = vpop.permute.xlu0 %777
  %vm815 = vcmask 23568
  %816 = vst.msk [vmem:[#allocation2] sm:$0xff] %vm815, %v708
  %817 = vst.msk [vmem:[#allocation2 + $0x8] sm:$0xff] %vm815, %v710
  %818 = vst.msk [vmem:[#allocation2 + $0x10] sm:$0xff] %vm815, %v712
  %819 = vst.msk [vmem:[#allocation2 + $0x18] sm:$0xff] %vm815, %v714
  %820 = vst.msk [vmem:[#allocation2 + $0x20] sm:$0xff] %vm815, %v716
  %821 = vst.msk [vmem:[#allocation2 + $0x28] sm:$0xff] %vm815, %v718
  %822 = vst.msk [vmem:[#allocation2 + $0x30] sm:$0xff] %vm815, %v720
  %823 = vst.msk [vmem:[#allocation2 + $0x38] sm:$0xff] %vm815, %v722
  %824 = vst.msk [vmem:[#allocation2 + $0x40] sm:$0xff] %vm815, %v724
  %825 = vst.msk [vmem:[#allocation2 + $0x48] sm:$0xff] %vm815, %v726
  %826 = vst.msk [vmem:[#allocation2 + $0x50] sm:$0xff] %vm815, %v728
  %827 = vst.msk [vmem:[#allocation2 + $0x58] sm:$0xff] %vm815, %v730
  %828 = vst.msk [vmem:[#allocation2 + $0x60] sm:$0xff] %vm815, %v732
  %829 = vst.msk [vmem:[#allocation2 + $0x68] sm:$0xff] %vm815, %v734
  %830 = vst.msk [vmem:[#allocation2 + $0x70] sm:$0xff] %vm815, %v736
  %831 = vst.msk [vmem:[#allocation2 + $0x78] sm:$0xff] %vm815, %v738
  %832 = vst.msk [vmem:[#allocation2 + $0x80] sm:$0xff] %vm815, %v740
  %833 = vst.msk [vmem:[#allocation2 + $0x88] sm:$0xff] %vm815, %v742
  %834 = vst.msk [vmem:[#allocation2 + $0x90] sm:$0xff] %vm815, %v744
  %835 = vst.msk [vmem:[#allocation2 + $0x98] sm:$0xff] %vm815, %v746
  %836 = vst.msk [vmem:[#allocation2 + $0xa0] sm:$0xff] %vm815, %v748
  %837 = vst.msk [vmem:[#allocation2 + $0xa8] sm:$0xff] %vm815, %v750
  %838 = vst.msk [vmem:[#allocation2 + $0xb0] sm:$0xff] %vm815, %v752
  %839 = vst.msk [vmem:[#allocation2 + $0xb8] sm:$0xff] %vm815, %v754
  %840 = vst.msk [vmem:[#allocation2 + $0xc0] sm:$0xff] %vm815, %v756
  %841 = vst.msk [vmem:[#allocation2 + $0xc8] sm:$0xff] %vm815, %v758
  %842 = vst.msk [vmem:[#allocation2 + $0xd0] sm:$0xff] %vm815, %v760
  %843 = vst.msk [vmem:[#allocation2 + $0xd8] sm:$0xff] %vm815, %v762
  %844 = vst.msk [vmem:[#allocation2 + $0xe0] sm:$0xff] %vm815, %v764
  %845 = vst.msk [vmem:[#allocation2 + $0xe8] sm:$0xff] %vm815, %v766
  %846 = vst.msk [vmem:[#allocation2 + $0xf0] sm:$0xff] %vm815, %v768
  %847 = vst.msk [vmem:[#allocation2 + $0xf8] sm:$0xff] %vm815, %v770
  %848 = vst.msk [vmem:[#allocation2 + $0x100] sm:$0xff] %vm815, %v772
  %849 = vst.msk [vmem:[#allocation2 + $0x108] sm:$0xff] %vm815, %v774
  %850 = vst.msk [vmem:[#allocation2 + $0x110] sm:$0xff] %vm815, %v776
  %851 = vst.msk [vmem:[#allocation2 + $0x118] sm:$0xff] %vm815, %v778
  %v852 = vld [vmem:[%s0 + $0x3] sm:$0xff]
  %v853 = vld [vmem:[%s0 + $0xb] sm:$0xf]
  %v854 = vld [vmem:[%s0 + $0x13] sm:$0xff]
  %v855 = vld [vmem:[%s0 + $0x1b] sm:$0xf]
  %v856 = vld [vmem:[%s0 + $0x23] sm:$0xff]
  %v857 = vld [vmem:[%s0 + $0x2b] sm:$0xf]
  %v858 = vld [vmem:[%s0 + $0x33] sm:$0xff]
  %v859 = vld [vmem:[%s0 + $0x3b] sm:$0xf]
  %v860 = vld [vmem:[%s0 + $0x43] sm:$0xff]
  %v861 = vld [vmem:[%s0 + $0x4b] sm:$0xf]
  %v862 = vld [vmem:[%s0 + $0x53] sm:$0xff]
  %v863 = vld [vmem:[%s0 + $0x5b] sm:$0xf]
  %v864 = vld [vmem:[%s0 + $0x63] sm:$0xff]
  %v865 = vld [vmem:[%s0 + $0x6b] sm:$0xf]
  %v866 = vld [vmem:[%s0 + $0x73] sm:$0xff]
  %v867 = vld [vmem:[%s0 + $0x7b] sm:$0xf]
  %v868 = vld [vmem:[%s0 + $0x83] sm:$0xff]
  %v869 = vld [vmem:[%s0 + $0x8b] sm:$0xf]
  %v870 = vld [vmem:[%s0 + $0x93] sm:$0xff]
  %v871 = vld [vmem:[%s0 + $0x9b] sm:$0xf]
  %v872 = vld [vmem:[%s0 + $0xa3] sm:$0xff]
  %v873 = vld [vmem:[%s0 + $0xab] sm:$0xf]
  %v874 = vld [vmem:[%s0 + $0xb3] sm:$0xff]
  %v875 = vld [vmem:[%s0 + $0xbb] sm:$0xf]
  %v876 = vld [vmem:[%s0 + $0x103] sm:$0xff]
  %v877 = vld [vmem:[%s0 + $0x10b] sm:$0xf]
  %v878 = vld [vmem:[%s0 + $0x113] sm:$0xff]
  %v879 = vld [vmem:[%s0 + $0x11b] sm:$0xf]
  %v880 = vld [vmem:[%s0 + $0x123] sm:$0xff]
  %v881 = vld [vmem:[%s0 + $0x12b] sm:$0xf]
  %v882 = vld [vmem:[%s0 + $0x133] sm:$0xff]
  %v883 = vld [vmem:[%s0 + $0x13b] sm:$0xf]
  %v884 = vld [vmem:[%s0 + $0x143] sm:$0xff]
  %v885 = vld [vmem:[%s0 + $0x14b] sm:$0xf]
  %v886 = vld [vmem:[%s0 + $0x153] sm:$0xff]
  %v887 = vld [vmem:[%s0 + $0x15b] sm:$0xf]
  %v888 = vld [vmem:[%s0 + $0x163] sm:$0xff]
  %v889 = vld [vmem:[%s0 + $0x16b] sm:$0xf]
  %v890 = vld [vmem:[%s0 + $0x173] sm:$0xff]
  %v891 = vld [vmem:[%s0 + $0x17b] sm:$0xf]
  %v892 = vld [vmem:[%s0 + $0x183] sm:$0xff]
  %v893 = vld [vmem:[%s0 + $0x18b] sm:$0xf]
  %v894 = vld [vmem:[%s0 + $0x193] sm:$0xff]
  %v895 = vld [vmem:[%s0 + $0x19b] sm:$0xf]
  %v896 = vld [vmem:[%s0 + $0x1a3] sm:$0xff]
  %v897 = vld [vmem:[%s0 + $0x1ab] sm:$0xf]
  %v898 = vld [vmem:[%s0 + $0x1b3] sm:$0xff]
  %v899 = vld [vmem:[%s0 + $0x1bb] sm:$0xf]
  %v948 = vcombine.high %v852, %v852
  %v949 = vcombine.high %v854, %v854
  %v950 = vcombine.high %v856, %v856
  %v951 = vcombine.high %v858, %v858
  %v952 = vcombine.high %v860, %v860
  %v953 = vcombine.high %v862, %v862
  %v954 = vcombine.high %v864, %v864
  %v955 = vcombine.high %v866, %v866
  %v956 = vcombine.high %v868, %v868
  %v957 = vcombine.high %v870, %v870
  %v958 = vcombine.high %v872, %v872
  %v959 = vcombine.high %v874, %v874
  %v960 = vcombine.high %v876, %v876
  %v961 = vcombine.high %v878, %v878
  %v962 = vcombine.high %v880, %v880
  %v963 = vcombine.high %v882, %v882
  %v964 = vcombine.high %v884, %v884
  %v965 = vcombine.high %v886, %v886
  %v966 = vcombine.high %v888, %v888
  %v967 = vcombine.high %v890, %v890
  %v968 = vcombine.high %v892, %v892
  %v969 = vcombine.high %v894, %v894
  %v970 = vcombine.high %v896, %v896
  %v971 = vcombine.high %v898, %v898
  %v972 = vcombine.low %v852, %v948
  %v973 = vcombine.low %v853, %v854
  %v974 = vcombine.low %v949, %v855
  %v975 = vcombine.low %v856, %v950
  %v976 = vcombine.low %v857, %v858
  %v977 = vcombine.low %v951, %v859
  %v978 = vcombine.low %v860, %v952
  %v979 = vcombine.low %v861, %v862
  %v980 = vcombine.low %v953, %v863
  %v981 = vcombine.low %v864, %v954
  %v982 = vcombine.low %v865, %v866
  %v983 = vcombine.low %v955, %v867
  %v984 = vcombine.low %v868, %v956
  %v985 = vcombine.low %v869, %v870
  %v986 = vcombine.low %v957, %v871
  %v987 = vcombine.low %v872, %v958
  %v988 = vcombine.low %v873, %v874
  %v989 = vcombine.low %v959, %v875
  %v990 = vcombine.low %v876, %v960
  %v991 = vcombine.low %v877, %v878
  %v992 = vcombine.low %v961, %v879
  %v993 = vcombine.low %v880, %v962
  %v994 = vcombine.low %v881, %v882
  %v995 = vcombine.low %v963, %v883
  %v996 = vcombine.low %v884, %v964
  %v997 = vcombine.low %v885, %v886
  %v998 = vcombine.low %v965, %v887
  %v999 = vcombine.low %v888, %v966
  %v1000 = vcombine.low %v889, %v890
  %v1001 = vcombine.low %v967, %v891
  %v1002 = vcombine.low %v892, %v968
  %v1003 = vcombine.low %v893, %v894
  %v1004 = vcombine.low %v969, %v895
  %v1005 = vcombine.low %v896, %v970
  %v1006 = vcombine.low %v897, %v898
  %v1007 = vcombine.low %v971, %v899
  %1008 = vrot.lane.b32.xlu0 %v972, 3
  %v1009 = vpop.permute.xlu0 %1008
  %1010 = vrot.lane.b32.xlu0 %v973, 3
  %v1011 = vpop.permute.xlu0 %1010
  %1012 = vrot.lane.b32.xlu0 %v974, 3
  %v1013 = vpop.permute.xlu0 %1012
  %1014 = vrot.lane.b32.xlu0 %v975, 3
  %v1015 = vpop.permute.xlu0 %1014
  %1016 = vrot.lane.b32.xlu0 %v976, 3
  %v1017 = vpop.permute.xlu0 %1016
  %1018 = vrot.lane.b32.xlu0 %v977, 3
  %v1019 = vpop.permute.xlu0 %1018
  %1020 = vrot.lane.b32.xlu0 %v978, 3
  %v1021 = vpop.permute.xlu0 %1020
  %1022 = vrot.lane.b32.xlu0 %v979, 3
  %v1023 = vpop.permute.xlu0 %1022
  %1024 = vrot.lane.b32.xlu0 %v980, 3
  %v1025 = vpop.permute.xlu0 %1024
  %1026 = vrot.lane.b32.xlu0 %v981, 3
  %v1027 = vpop.permute.xlu0 %1026
  %1028 = vrot.lane.b32.xlu0 %v982, 3
  %v1029 = vpop.permute.xlu0 %1028
  %1030 = vrot.lane.b32.xlu0 %v983, 3
  %v1031 = vpop.permute.xlu0 %1030
  %1032 = vrot.lane.b32.xlu0 %v984, 3
  %v1033 = vpop.permute.xlu0 %1032
  %1034 = vrot.lane.b32.xlu0 %v985, 3
  %v1035 = vpop.permute.xlu0 %1034
  %1036 = vrot.lane.b32.xlu0 %v986, 3
  %v1037 = vpop.permute.xlu0 %1036
  %1038 = vrot.lane.b32.xlu0 %v987, 3
  %v1039 = vpop.permute.xlu0 %1038
  %1040 = vrot.lane.b32.xlu0 %v988, 3
  %v1041 = vpop.permute.xlu0 %1040
  %1042 = vrot.lane.b32.xlu0 %v989, 3
  %v1043 = vpop.permute.xlu0 %1042
  %1044 = vrot.lane.b32.xlu0 %v990, 3
  %v1045 = vpop.permute.xlu0 %1044
  %1046 = vrot.lane.b32.xlu0 %v991, 3
  %v1047 = vpop.permute.xlu0 %1046
  %1048 = vrot.lane.b32.xlu0 %v992, 3
  %v1049 = vpop.permute.xlu0 %1048
  %1050 = vrot.lane.b32.xlu0 %v993, 3
  %v1051 = vpop.permute.xlu0 %1050
  %1052 = vrot.lane.b32.xlu0 %v994, 3
  %v1053 = vpop.permute.xlu0 %1052
  %1054 = vrot.lane.b32.xlu0 %v995, 3
  %v1055 = vpop.permute.xlu0 %1054
  %1056 = vrot.lane.b32.xlu0 %v996, 3
  %v1057 = vpop.permute.xlu0 %1056
  %1058 = vrot.lane.b32.xlu0 %v997, 3
  %v1059 = vpop.permute.xlu0 %1058
  %1060 = vrot.lane.b32.xlu0 %v998, 3
  %v1061 = vpop.permute.xlu0 %1060
  %1062 = vrot.lane.b32.xlu0 %v999, 3
  %v1063 = vpop.permute.xlu0 %1062
  %1064 = vrot.lane.b32.xlu0 %v1000, 3
  %v1065 = vpop.permute.xlu0 %1064
  %1066 = vrot.lane.b32.xlu0 %v1001, 3
  %v1067 = vpop.permute.xlu0 %1066
  %1068 = vrot.lane.b32.xlu0 %v1002, 3
  %v1069 = vpop.permute.xlu0 %1068
  %1070 = vrot.lane.b32.xlu0 %v1003, 3
  %v1071 = vpop.permute.xlu0 %1070
  %1072 = vrot.lane.b32.xlu0 %v1004, 3
  %v1073 = vpop.permute.xlu0 %1072
  %1074 = vrot.lane.b32.xlu0 %v1005, 3
  %v1075 = vpop.permute.xlu0 %1074
  %1076 = vrot.lane.b32.xlu0 %v1006, 3
  %v1077 = vpop.permute.xlu0 %1076
  %1078 = vrot.lane.b32.xlu0 %v1007, 3
  %v1079 = vpop.permute.xlu0 %1078
  %vm1116 = vcmask 31768
  %1117 = vst.msk [vmem:[#allocation2] sm:$0xff] %vm1116, %v1009
  %1118 = vst.msk [vmem:[#allocation2 + $0x8] sm:$0xff] %vm1116, %v1011
  %1119 = vst.msk [vmem:[#allocation2 + $0x10] sm:$0xff] %vm1116, %v1013
  %1120 = vst.msk [vmem:[#allocation2 + $0x18] sm:$0xff] %vm1116, %v1015
  %1121 = vst.msk [vmem:[#allocation2 + $0x20] sm:$0xff] %vm1116, %v1017
  %1122 = vst.msk [vmem:[#allocation2 + $0x28] sm:$0xff] %vm1116, %v1019
  %1123 = vst.msk [vmem:[#allocation2 + $0x30] sm:$0xff] %vm1116, %v1021
  %1124 = vst.msk [vmem:[#allocation2 + $0x38] sm:$0xff] %vm1116, %v1023
  %1125 = vst.msk [vmem:[#allocation2 + $0x40] sm:$0xff] %vm1116, %v1025
  %1126 = vst.msk [vmem:[#allocation2 + $0x48] sm:$0xff] %vm1116, %v1027
  %1127 = vst.msk [vmem:[#allocation2 + $0x50] sm:$0xff] %vm1116, %v1029
  %1128 = vst.msk [vmem:[#allocation2 + $0x58] sm:$0xff] %vm1116, %v1031
  %1129 = vst.msk [vmem:[#allocation2 + $0x60] sm:$0xff] %vm1116, %v1033
  %1130 = vst.msk [vmem:[#allocation2 + $0x68] sm:$0xff] %vm1116, %v1035
  %1131 = vst.msk [vmem:[#allocation2 + $0x70] sm:$0xff] %vm1116, %v1037
  %1132 = vst.msk [vmem:[#allocation2 + $0x78] sm:$0xff] %vm1116, %v1039
  %1133 = vst.msk [vmem:[#allocation2 + $0x80] sm:$0xff] %vm1116, %v1041
  %1134 = vst.msk [vmem:[#allocation2 + $0x88] sm:$0xff] %vm1116, %v1043
  %1135 = vst.msk [vmem:[#allocation2 + $0x90] sm:$0xff] %vm1116, %v1045
  %1136 = vst.msk [vmem:[#allocation2 + $0x98] sm:$0xff] %vm1116, %v1047
  %1137 = vst.msk [vmem:[#allocation2 + $0xa0] sm:$0xff] %vm1116, %v1049
  %1138 = vst.msk [vmem:[#allocation2 + $0xa8] sm:$0xff] %vm1116, %v1051
  %1139 = vst.msk [vmem:[#allocation2 + $0xb0] sm:$0xff] %vm1116, %v1053
  %1140 = vst.msk [vmem:[#allocation2 + $0xb8] sm:$0xff] %vm1116, %v1055
  %1141 = vst.msk [vmem:[#allocation2 + $0xc0] sm:$0xff] %vm1116, %v1057
  %1142 = vst.msk [vmem:[#allocation2 + $0xc8] sm:$0xff] %vm1116, %v1059
  %1143 = vst.msk [vmem:[#allocation2 + $0xd0] sm:$0xff] %vm1116, %v1061
  %1144 = vst.msk [vmem:[#allocation2 + $0xd8] sm:$0xff] %vm1116, %v1063
  %1145 = vst.msk [vmem:[#allocation2 + $0xe0] sm:$0xff] %vm1116, %v1065
  %1146 = vst.msk [vmem:[#allocation2 + $0xe8] sm:$0xff] %vm1116, %v1067
  %1147 = vst.msk [vmem:[#allocation2 + $0xf0] sm:$0xff] %vm1116, %v1069
  %1148 = vst.msk [vmem:[#allocation2 + $0xf8] sm:$0xff] %vm1116, %v1071
  %1149 = vst.msk [vmem:[#allocation2 + $0x100] sm:$0xff] %vm1116, %v1073
  %1150 = vst.msk [vmem:[#allocation2 + $0x108] sm:$0xff] %vm1116, %v1075
  %1151 = vst.msk [vmem:[#allocation2 + $0x110] sm:$0xff] %vm1116, %v1077
  %1152 = vst.msk [vmem:[#allocation2 + $0x118] sm:$0xff] %vm1116, %v1079
  %v1153 = vld [vmem:[%s0 + $0x4] sm:$0xff]
  %v1154 = vld [vmem:[%s0 + $0xc] sm:$0xf]
  %v1155 = vld [vmem:[%s0 + $0x14] sm:$0xff]
  %v1156 = vld [vmem:[%s0 + $0x1c] sm:$0xf]
  %v1157 = vld [vmem:[%s0 + $0x24] sm:$0xff]
  %v1158 = vld [vmem:[%s0 + $0x2c] sm:$0xf]
  %v1159 = vld [vmem:[%s0 + $0x34] sm:$0xff]
  %v1160 = vld [vmem:[%s0 + $0x3c] sm:$0xf]
  %v1161 = vld [vmem:[%s0 + $0x44] sm:$0xff]
  %v1162 = vld [vmem:[%s0 + $0x4c] sm:$0xf]
  %v1163 = vld [vmem:[%s0 + $0x54] sm:$0xff]
  %v1164 = vld [vmem:[%s0 + $0x5c] sm:$0xf]
  %v1165 = vld [vmem:[%s0 + $0x64] sm:$0xff]
  %v1166 = vld [vmem:[%s0 + $0x6c] sm:$0xf]
  %v1167 = vld [vmem:[%s0 + $0x74] sm:$0xff]
  %v1168 = vld [vmem:[%s0 + $0x7c] sm:$0xf]
  %v1169 = vld [vmem:[%s0 + $0x84] sm:$0xff]
  %v1170 = vld [vmem:[%s0 + $0x8c] sm:$0xf]
  %v1171 = vld [vmem:[%s0 + $0x94] sm:$0xff]
  %v1172 = vld [vmem:[%s0 + $0x9c] sm:$0xf]
  %v1173 = vld [vmem:[%s0 + $0xa4] sm:$0xff]
  %v1174 = vld [vmem:[%s0 + $0xac] sm:$0xf]
  %v1175 = vld [vmem:[%s0 + $0xb4] sm:$0xff]
  %v1176 = vld [vmem:[%s0 + $0xbc] sm:$0xf]
  %v1177 = vld [vmem:[%s0 + $0x104] sm:$0xff]
  %v1178 = vld [vmem:[%s0 + $0x10c] sm:$0xf]
  %v1179 = vld [vmem:[%s0 + $0x114] sm:$0xff]
  %v1180 = vld [vmem:[%s0 + $0x11c] sm:$0xf]
  %v1181 = vld [vmem:[%s0 + $0x124] sm:$0xff]
  %v1182 = vld [vmem:[%s0 + $0x12c] sm:$0xf]
  %v1183 = vld [vmem:[%s0 + $0x134] sm:$0xff]
  %v1184 = vld [vmem:[%s0 + $0x13c] sm:$0xf]
  %v1185 = vld [vmem:[%s0 + $0x144] sm:$0xff]
  %v1186 = vld [vmem:[%s0 + $0x14c] sm:$0xf]
  %v1187 = vld [vmem:[%s0 + $0x154] sm:$0xff]
  %v1188 = vld [vmem:[%s0 + $0x15c] sm:$0xf]
  %v1189 = vld [vmem:[%s0 + $0x164] sm:$0xff]
  %v1190 = vld [vmem:[%s0 + $0x16c] sm:$0xf]
  %v1191 = vld [vmem:[%s0 + $0x174] sm:$0xff]
  %v1192 = vld [vmem:[%s0 + $0x17c] sm:$0xf]
  %v1193 = vld [vmem:[%s0 + $0x184] sm:$0xff]
  %v1194 = vld [vmem:[%s0 + $0x18c] sm:$0xf]
  %v1195 = vld [vmem:[%s0 + $0x194] sm:$0xff]
  %v1196 = vld [vmem:[%s0 + $0x19c] sm:$0xf]
  %v1197 = vld [vmem:[%s0 + $0x1a4] sm:$0xff]
  %v1198 = vld [vmem:[%s0 + $0x1ac] sm:$0xf]
  %v1199 = vld [vmem:[%s0 + $0x1b4] sm:$0xff]
  %v1200 = vld [vmem:[%s0 + $0x1bc] sm:$0xf]
  %v1249 = vcombine.high %v1153, %v1153
  %v1250 = vcombine.high %v1155, %v1155
  %v1251 = vcombine.high %v1157, %v1157
  %v1252 = vcombine.high %v1159, %v1159
  %v1253 = vcombine.high %v1161, %v1161
  %v1254 = vcombine.high %v1163, %v1163
  %v1255 = vcombine.high %v1165, %v1165
  %v1256 = vcombine.high %v1167, %v1167
  %v1257 = vcombine.high %v1169, %v1169
  %v1258 = vcombine.high %v1171, %v1171
  %v1259 = vcombine.high %v1173, %v1173
  %v1260 = vcombine.high %v1175, %v1175
  %v1261 = vcombine.high %v1177, %v1177
  %v1262 = vcombine.high %v1179, %v1179
  %v1263 = vcombine.high %v1181, %v1181
  %v1264 = vcombine.high %v1183, %v1183
  %v1265 = vcombine.high %v1185, %v1185
  %v1266 = vcombine.high %v1187, %v1187
  %v1267 = vcombine.high %v1189, %v1189
  %v1268 = vcombine.high %v1191, %v1191
  %v1269 = vcombine.high %v1193, %v1193
  %v1270 = vcombine.high %v1195, %v1195
  %v1271 = vcombine.high %v1197, %v1197
  %v1272 = vcombine.high %v1199, %v1199
  %v1273 = vcombine.low %v1153, %v1249
  %v1274 = vcombine.low %v1154, %v1155
  %v1275 = vcombine.low %v1250, %v1156
  %v1276 = vcombine.low %v1157, %v1251
  %v1277 = vcombine.low %v1158, %v1159
  %v1278 = vcombine.low %v1252, %v1160
  %v1279 = vcombine.low %v1161, %v1253
  %v1280 = vcombine.low %v1162, %v1163
  %v1281 = vcombine.low %v1254, %v1164
  %v1282 = vcombine.low %v1165, %v1255
  %v1283 = vcombine.low %v1166, %v1167
  %v1284 = vcombine.low %v1256, %v1168
  %v1285 = vcombine.low %v1169, %v1257
  %v1286 = vcombine.low %v1170, %v1171
  %v1287 = vcombine.low %v1258, %v1172
  %v1288 = vcombine.low %v1173, %v1259
  %v1289 = vcombine.low %v1174, %v1175
  %v1290 = vcombine.low %v1260, %v1176
  %v1291 = vcombine.low %v1177, %v1261
  %v1292 = vcombine.low %v1178, %v1179
  %v1293 = vcombine.low %v1262, %v1180
  %v1294 = vcombine.low %v1181, %v1263
  %v1295 = vcombine.low %v1182, %v1183
  %v1296 = vcombine.low %v1264, %v1184
  %v1297 = vcombine.low %v1185, %v1265
  %v1298 = vcombine.low %v1186, %v1187
  %v1299 = vcombine.low %v1266, %v1188
  %v1300 = vcombine.low %v1189, %v1267
  %v1301 = vcombine.low %v1190, %v1191
  %v1302 = vcombine.low %v1268, %v1192
  %v1303 = vcombine.low %v1193, %v1269
  %v1304 = vcombine.low %v1194, %v1195
  %v1305 = vcombine.low %v1270, %v1196
  %v1306 = vcombine.low %v1197, %v1271
  %v1307 = vcombine.low %v1198, %v1199
  %v1308 = vcombine.low %v1272, %v1200
  %1309 = vrot.lane.b32.xlu0 %v1273, 4
  %v1310 = vpop.permute.xlu0 %1309
  %1311 = vrot.lane.b32.xlu0 %v1274, 4
  %v1312 = vpop.permute.xlu0 %1311
  %1313 = vrot.lane.b32.xlu0 %v1275, 4
  %v1314 = vpop.permute.xlu0 %1313
  %1315 = vrot.lane.b32.xlu0 %v1276, 4
  %v1316 = vpop.permute.xlu0 %1315
  %1317 = vrot.lane.b32.xlu0 %v1277, 4
  %v1318 = vpop.permute.xlu0 %1317
  %1319 = vrot.lane.b32.xlu0 %v1278, 4
  %v1320 = vpop.permute.xlu0 %1319
  %1321 = vrot.lane.b32.xlu0 %v1279, 4
  %v1322 = vpop.permute.xlu0 %1321
  %1323 = vrot.lane.b32.xlu0 %v1280, 4
  %v1324 = vpop.permute.xlu0 %1323
  %1325 = vrot.lane.b32.xlu0 %v1281, 4
  %v1326 = vpop.permute.xlu0 %1325
  %1327 = vrot.lane.b32.xlu0 %v1282, 4
  %v1328 = vpop.permute.xlu0 %1327
  %1329 = vrot.lane.b32.xlu0 %v1283, 4
  %v1330 = vpop.permute.xlu0 %1329
  %1331 = vrot.lane.b32.xlu0 %v1284, 4
  %v1332 = vpop.permute.xlu0 %1331
  %1333 = vrot.lane.b32.xlu0 %v1285, 4
  %v1334 = vpop.permute.xlu0 %1333
  %1335 = vrot.lane.b32.xlu0 %v1286, 4
  %v1336 = vpop.permute.xlu0 %1335
  %1337 = vrot.lane.b32.xlu0 %v1287, 4
  %v1338 = vpop.permute.xlu0 %1337
  %1339 = vrot.lane.b32.xlu0 %v1288, 4
  %v1340 = vpop.permute.xlu0 %1339
  %1341 = vrot.lane.b32.xlu0 %v1289, 4
  %v1342 = vpop.permute.xlu0 %1341
  %1343 = vrot.lane.b32.xlu0 %v1290, 4
  %v1344 = vpop.permute.xlu0 %1343
  %1345 = vrot.lane.b32.xlu0 %v1291, 4
  %v1346 = vpop.permute.xlu0 %1345
  %1347 = vrot.lane.b32.xlu0 %v1292, 4
  %v1348 = vpop.permute.xlu0 %1347
  %1349 = vrot.lane.b32.xlu0 %v1293, 4
  %v1350 = vpop.permute.xlu0 %1349
  %1351 = vrot.lane.b32.xlu0 %v1294, 4
  %v1352 = vpop.permute.xlu0 %1351
  %1353 = vrot.lane.b32.xlu0 %v1295, 4
  %v1354 = vpop.permute.xlu0 %1353
  %1355 = vrot.lane.b32.xlu0 %v1296, 4
  %v1356 = vpop.permute.xlu0 %1355
  %1357 = vrot.lane.b32.xlu0 %v1297, 4
  %v1358 = vpop.permute.xlu0 %1357
  %1359 = vrot.lane.b32.xlu0 %v1298, 4
  %v1360 = vpop.permute.xlu0 %1359
  %1361 = vrot.lane.b32.xlu0 %v1299, 4
  %v1362 = vpop.permute.xlu0 %1361
  %1363 = vrot.lane.b32.xlu0 %v1300, 4
  %v1364 = vpop.permute.xlu0 %1363
  %1365 = vrot.lane.b32.xlu0 %v1301, 4
  %v1366 = vpop.permute.xlu0 %1365
  %1367 = vrot.lane.b32.xlu0 %v1302, 4
  %v1368 = vpop.permute.xlu0 %1367
  %1369 = vrot.lane.b32.xlu0 %v1303, 4
  %v1370 = vpop.permute.xlu0 %1369
  %1371 = vrot.lane.b32.xlu0 %v1304, 4
  %v1372 = vpop.permute.xlu0 %1371
  %1373 = vrot.lane.b32.xlu0 %v1305, 4
  %v1374 = vpop.permute.xlu0 %1373
  %1375 = vrot.lane.b32.xlu0 %v1306, 4
  %v1376 = vpop.permute.xlu0 %1375
  %1377 = vrot.lane.b32.xlu0 %v1307, 4
  %v1378 = vpop.permute.xlu0 %1377
  %1379 = vrot.lane.b32.xlu0 %v1308, 4
  %v1380 = vpop.permute.xlu0 %1379
  %vm1417 = vcmask 39968
  %1418 = vst.msk [vmem:[#allocation2] sm:$0xff] %vm1417, %v1310
  %1419 = vst.msk [vmem:[#allocation2 + $0x8] sm:$0xff] %vm1417, %v1312
  %1420 = vst.msk [vmem:[#allocation2 + $0x10] sm:$0xff] %vm1417, %v1314
  %1421 = vst.msk [vmem:[#allocation2 + $0x18] sm:$0xff] %vm1417, %v1316
  %1422 = vst.msk [vmem:[#allocation2 + $0x20] sm:$0xff] %vm1417, %v1318
  %1423 = vst.msk [vmem:[#allocation2 + $0x28] sm:$0xff] %vm1417, %v1320
  %1424 = vst.msk [vmem:[#allocation2 + $0x30] sm:$0xff] %vm1417, %v1322
  %1425 = vst.msk [vmem:[#allocation2 + $0x38] sm:$0xff] %vm1417, %v1324
  %1426 = vst.msk [vmem:[#allocation2 + $0x40] sm:$0xff] %vm1417, %v1326
  %1427 = vst.msk [vmem:[#allocation2 + $0x48] sm:$0xff] %vm1417, %v1328
  %1428 = vst.msk [vmem:[#allocation2 + $0x50] sm:$0xff] %vm1417, %v1330
  %1429 = vst.msk [vmem:[#allocation2 + $0x58] sm:$0xff] %vm1417, %v1332
  %1430 = vst.msk [vmem:[#allocation2 + $0x60] sm:$0xff] %vm1417, %v1334
  %1431 = vst.msk [vmem:[#allocation2 + $0x68] sm:$0xff] %vm1417, %v1336
  %1432 = vst.msk [vmem:[#allocation2 + $0x70] sm:$0xff] %vm1417, %v1338
  %1433 = vst.msk [vmem:[#allocation2 + $0x78] sm:$0xff] %vm1417, %v1340
  %1434 = vst.msk [vmem:[#allocation2 + $0x80] sm:$0xff] %vm1417, %v1342
  %1435 = vst.msk [vmem:[#allocation2 + $0x88] sm:$0xff] %vm1417, %v1344
  %1436 = vst.msk [vmem:[#allocation2 + $0x90] sm:$0xff] %vm1417, %v1346
  %1437 = vst.msk [vmem:[#allocation2 + $0x98] sm:$0xff] %vm1417, %v1348
  %1438 = vst.msk [vmem:[#allocation2 + $0xa0] sm:$0xff] %vm1417, %v1350
  %1439 = vst.msk [vmem:[#allocation2 + $0xa8] sm:$0xff] %vm1417, %v1352
  %1440 = vst.msk [vmem:[#allocation2 + $0xb0] sm:$0xff] %vm1417, %v1354
  %1441 = vst.msk [vmem:[#allocation2 + $0xb8] sm:$0xff] %vm1417, %v1356
  %1442 = vst.msk [vmem:[#allocation2 + $0xc0] sm:$0xff] %vm1417, %v1358
  %1443 = vst.msk [vmem:[#allocation2 + $0xc8] sm:$0xff] %vm1417, %v1360
  %1444 = vst.msk [vmem:[#allocation2 + $0xd0] sm:$0xff] %vm1417, %v1362
  %1445 = vst.msk [vmem:[#allocation2 + $0xd8] sm:$0xff] %vm1417, %v1364
  %1446 = vst.msk [vmem:[#allocation2 + $0xe0] sm:$0xff] %vm1417, %v1366
  %1447 = vst.msk [vmem:[#allocation2 + $0xe8] sm:$0xff] %vm1417, %v1368
  %1448 = vst.msk [vmem:[#allocation2 + $0xf0] sm:$0xff] %vm1417, %v1370
  %1449 = vst.msk [vmem:[#allocation2 + $0xf8] sm:$0xff] %vm1417, %v1372
  %1450 = vst.msk [vmem:[#allocation2 + $0x100] sm:$0xff] %vm1417, %v1374
  %1451 = vst.msk [vmem:[#allocation2 + $0x108] sm:$0xff] %vm1417, %v1376
  %1452 = vst.msk [vmem:[#allocation2 + $0x110] sm:$0xff] %vm1417, %v1378
  %1453 = vst.msk [vmem:[#allocation2 + $0x118] sm:$0xff] %vm1417, %v1380
  %s1454 = scalar_lea.vmem %s0, 16
  %v1455 = vld [vmem:[%s1454] sm:$0xff]
  %v1456 = vld [vmem:[%s1454 + $0x8] sm:$0xf]
  %v1457 = vld [vmem:[%s1454 + $0x10] sm:$0xff]
  %v1458 = vld [vmem:[%s1454 + $0x18] sm:$0xf]
  %v1459 = vld [vmem:[%s1454 + $0x20] sm:$0xff]
  %v1460 = vld [vmem:[%s1454 + $0x28] sm:$0xf]
  %v1461 = vld [vmem:[%s1454 + $0x30] sm:$0xff]
  %v1462 = vld [vmem:[%s1454 + $0x38] sm:$0xf]
  %v1463 = vld [vmem:[%s1454 + $0x40] sm:$0xff]
  %v1464 = vld [vmem:[%s1454 + $0x48] sm:$0xf]
  %v1465 = vld [vmem:[%s1454 + $0x50] sm:$0xff]
  %v1466 = vld [vmem:[%s1454 + $0x58] sm:$0xf]
  %v1467 = vld [vmem:[%s1454 + $0x60] sm:$0xff]
  %v1468 = vld [vmem:[%s1454 + $0x68] sm:$0xf]
  %v1469 = vld [vmem:[%s1454 + $0x70] sm:$0xff]
  %v1470 = vld [vmem:[%s1454 + $0x78] sm:$0xf]
  %v1471 = vld [vmem:[%s1454 + $0x80] sm:$0xff]
  %v1472 = vld [vmem:[%s1454 + $0x88] sm:$0xf]
  %v1473 = vld [vmem:[%s1454 + $0x90] sm:$0xff]
  %v1474 = vld [vmem:[%s1454 + $0x98] sm:$0xf]
  %v1475 = vld [vmem:[%s1454 + $0xa0] sm:$0xff]
  %v1476 = vld [vmem:[%s1454 + $0xa8] sm:$0xf]
  %v1477 = vld [vmem:[%s1454 + $0xb0] sm:$0xff]
  %v1478 = vld [vmem:[%s1454 + $0xb8] sm:$0xf]
  %v1479 = vld [vmem:[%s1454 + $0x100] sm:$0xff]
  %v1480 = vld [vmem:[%s1454 + $0x108] sm:$0xf]
  %v1481 = vld [vmem:[%s1454 + $0x110] sm:$0xff]
  %v1482 = vld [vmem:[%s1454 + $0x118] sm:$0xf]
  %v1483 = vld [vmem:[%s1454 + $0x120] sm:$0xff]
  %v1484 = vld [vmem:[%s1454 + $0x128] sm:$0xf]
  %v1485 = vld [vmem:[%s1454 + $0x130] sm:$0xff]
  %v1486 = vld [vmem:[%s1454 + $0x138] sm:$0xf]
  %v1487 = vld [vmem:[%s1454 + $0x140] sm:$0xff]
  %v1488 = vld [vmem:[%s1454 + $0x148] sm:$0xf]
  %v1489 = vld [vmem:[%s1454 + $0x150] sm:$0xff]
  %v1490 = vld [vmem:[%s1454 + $0x158] sm:$0xf]
  %v1491 = vld [vmem:[%s1454 + $0x160] sm:$0xff]
  %v1492 = vld [vmem:[%s1454 + $0x168] sm:$0xf]
  %v1493 = vld [vmem:[%s1454 + $0x170] sm:$0xff]
  %v1494 = vld [vmem:[%s1454 + $0x178] sm:$0xf]
  %v1495 = vld [vmem:[%s1454 + $0x180] sm:$0xff]
  %v1496 = vld [vmem:[%s1454 + $0x188] sm:$0xf]
  %v1497 = vld [vmem:[%s1454 + $0x190] sm:$0xff]
  %v1498 = vld [vmem:[%s1454 + $0x198] sm:$0xf]
  %v1499 = vld [vmem:[%s1454 + $0x1a0] sm:$0xff]
  %v1500 = vld [vmem:[%s1454 + $0x1a8] sm:$0xf]
  %v1501 = vld [vmem:[%s1454 + $0x1b0] sm:$0xff]
  %v1502 = vld [vmem:[%s1454 + $0x1b8] sm:$0xf]
  %v1551 = vcombine.high %v1455, %v1455
  %v1552 = vcombine.high %v1457, %v1457
  %v1553 = vcombine.high %v1459, %v1459
  %v1554 = vcombine.high %v1461, %v1461
  %v1555 = vcombine.high %v1463, %v1463
  %v1556 = vcombine.high %v1465, %v1465
  %v1557 = vcombine.high %v1467, %v1467
  %v1558 = vcombine.high %v1469, %v1469
  %v1559 = vcombine.high %v1471, %v1471
  %v1560 = vcombine.high %v1473, %v1473
  %v1561 = vcombine.high %v1475, %v1475
  %v1562 = vcombine.high %v1477, %v1477
  %v1563 = vcombine.high %v1479, %v1479
  %v1564 = vcombine.high %v1481, %v1481
  %v1565 = vcombine.high %v1483, %v1483
  %v1566 = vcombine.high %v1485, %v1485
  %v1567 = vcombine.high %v1487, %v1487
  %v1568 = vcombine.high %v1489, %v1489
  %v1569 = vcombine.high %v1491, %v1491
  %v1570 = vcombine.high %v1493, %v1493
  %v1571 = vcombine.high %v1495, %v1495
  %v1572 = vcombine.high %v1497, %v1497
  %v1573 = vcombine.high %v1499, %v1499
  %v1574 = vcombine.high %v1501, %v1501
  %v1575 = vcombine.low %v1455, %v1551
  %v1576 = vcombine.low %v1456, %v1457
  %v1577 = vcombine.low %v1552, %v1458
  %v1578 = vcombine.low %v1459, %v1553
  %v1579 = vcombine.low %v1460, %v1461
  %v1580 = vcombine.low %v1554, %v1462
  %v1581 = vcombine.low %v1463, %v1555
  %v1582 = vcombine.low %v1464, %v1465
  %v1583 = vcombine.low %v1556, %v1466
  %v1584 = vcombine.low %v1467, %v1557
  %v1585 = vcombine.low %v1468, %v1469
  %v1586 = vcombine.low %v1558, %v1470
  %v1587 = vcombine.low %v1471, %v1559
  %v1588 = vcombine.low %v1472, %v1473
  %v1589 = vcombine.low %v1560, %v1474
  %v1590 = vcombine.low %v1475, %v1561
  %v1591 = vcombine.low %v1476, %v1477
  %v1592 = vcombine.low %v1562, %v1478
  %v1593 = vcombine.low %v1479, %v1563
  %v1594 = vcombine.low %v1480, %v1481
  %v1595 = vcombine.low %v1564, %v1482
  %v1596 = vcombine.low %v1483, %v1565
  %v1597 = vcombine.low %v1484, %v1485
  %v1598 = vcombine.low %v1566, %v1486
  %v1599 = vcombine.low %v1487, %v1567
  %v1600 = vcombine.low %v1488, %v1489
  %v1601 = vcombine.low %v1568, %v1490
  %v1602 = vcombine.low %v1491, %v1569
  %v1603 = vcombine.low %v1492, %v1493
  %v1604 = vcombine.low %v1570, %v1494
  %v1605 = vcombine.low %v1495, %v1571
  %v1606 = vcombine.low %v1496, %v1497
  %v1607 = vcombine.low %v1572, %v1498
  %v1608 = vcombine.low %v1499, %v1573
  %v1609 = vcombine.low %v1500, %v1501
  %v1610 = vcombine.low %v1574, %v1502
  %1611 = vrot.lane.b32.xlu0 %v1575, 5
  %v1612 = vpop.permute.xlu0 %1611
  %1613 = vrot.lane.b32.xlu0 %v1576, 5
  %v1614 = vpop.permute.xlu0 %1613
  %1615 = vrot.lane.b32.xlu0 %v1577, 5
  %v1616 = vpop.permute.xlu0 %1615
  %1617 = vrot.lane.b32.xlu0 %v1578, 5
  %v1618 = vpop.permute.xlu0 %1617
  %1619 = vrot.lane.b32.xlu0 %v1579, 5
  %v1620 = vpop.permute.xlu0 %1619
  %1621 = vrot.lane.b32.xlu0 %v1580, 5
  %v1622 = vpop.permute.xlu0 %1621
  %1623 = vrot.lane.b32.xlu0 %v1581, 5
  %v1624 = vpop.permute.xlu0 %1623
  %1625 = vrot.lane.b32.xlu0 %v1582, 5
  %v1626 = vpop.permute.xlu0 %1625
  %1627 = vrot.lane.b32.xlu0 %v1583, 5
  %v1628 = vpop.permute.xlu0 %1627
  %1629 = vrot.lane.b32.xlu0 %v1584, 5
  %v1630 = vpop.permute.xlu0 %1629
  %1631 = vrot.lane.b32.xlu0 %v1585, 5
  %v1632 = vpop.permute.xlu0 %1631
  %1633 = vrot.lane.b32.xlu0 %v1586, 5
  %v1634 = vpop.permute.xlu0 %1633
  %1635 = vrot.lane.b32.xlu0 %v1587, 5
  %v1636 = vpop.permute.xlu0 %1635
  %1637 = vrot.lane.b32.xlu0 %v1588, 5
  %v1638 = vpop.permute.xlu0 %1637
  %1639 = vrot.lane.b32.xlu0 %v1589, 5
  %v1640 = vpop.permute.xlu0 %1639
  %1641 = vrot.lane.b32.xlu0 %v1590, 5
  %v1642 = vpop.permute.xlu0 %1641
  %1643 = vrot.lane.b32.xlu0 %v1591, 5
  %v1644 = vpop.permute.xlu0 %1643
  %1645 = vrot.lane.b32.xlu0 %v1592, 5
  %v1646 = vpop.permute.xlu0 %1645
  %1647 = vrot.lane.b32.xlu0 %v1593, 5
  %v1648 = vpop.permute.xlu0 %1647
  %1649 = vrot.lane.b32.xlu0 %v1594, 5
  %v1650 = vpop.permute.xlu0 %1649
  %1651 = vrot.lane.b32.xlu0 %v1595, 5
  %v1652 = vpop.permute.xlu0 %1651
  %1653 = vrot.lane.b32.xlu0 %v1596, 5
  %v1654 = vpop.permute.xlu0 %1653
  %1655 = vrot.lane.b32.xlu0 %v1597, 5
  %v1656 = vpop.permute.xlu0 %1655
  %1657 = vrot.lane.b32.xlu0 %v1598, 5
  %v1658 = vpop.permute.xlu0 %1657
  %1659 = vrot.lane.b32.xlu0 %v1599, 5
  %v1660 = vpop.permute.xlu0 %1659
  %1661 = vrot.lane.b32.xlu0 %v1600, 5
  %v1662 = vpop.permute.xlu0 %1661
  %1663 = vrot.lane.b32.xlu0 %v1601, 5
  %v1664 = vpop.permute.xlu0 %1663
  %1665 = vrot.lane.b32.xlu0 %v1602, 5
  %v1666 = vpop.permute.xlu0 %1665
  %1667 = vrot.lane.b32.xlu0 %v1603, 5
  %v1668 = vpop.permute.xlu0 %1667
  %1669 = vrot.lane.b32.xlu0 %v1604, 5
  %v1670 = vpop.permute.xlu0 %1669
  %1671 = vrot.lane.b32.xlu0 %v1605, 5
  %v1672 = vpop.permute.xlu0 %1671
  %1673 = vrot.lane.b32.xlu0 %v1606, 5
  %v1674 = vpop.permute.xlu0 %1673
  %1675 = vrot.lane.b32.xlu0 %v1607, 5
  %v1676 = vpop.permute.xlu0 %1675
  %1677 = vrot.lane.b32.xlu0 %v1608, 5
  %v1678 = vpop.permute.xlu0 %1677
  %1679 = vrot.lane.b32.xlu0 %v1609, 5
  %v1680 = vpop.permute.xlu0 %1679
  %1681 = vrot.lane.b32.xlu0 %v1610, 5
  %v1682 = vpop.permute.xlu0 %1681
  %vm1719 = vcmask 48168
  %1720 = vst.msk [vmem:[#allocation2] sm:$0xff] %vm1719, %v1612
  %1721 = vst.msk [vmem:[#allocation2 + $0x8] sm:$0xff] %vm1719, %v1614
  %1722 = vst.msk [vmem:[#allocation2 + $0x10] sm:$0xff] %vm1719, %v1616
  %1723 = vst.msk [vmem:[#allocation2 + $0x18] sm:$0xff] %vm1719, %v1618
  %1724 = vst.msk [vmem:[#allocation2 + $0x20] sm:$0xff] %vm1719, %v1620
  %1725 = vst.msk [vmem:[#allocation2 + $0x28] sm:$0xff] %vm1719, %v1622
  %1726 = vst.msk [vmem:[#allocation2 + $0x30] sm:$0xff] %vm1719, %v1624
  %1727 = vst.msk [vmem:[#allocation2 + $0x38] sm:$0xff] %vm1719, %v1626
  %1728 = vst.msk [vmem:[#allocation2 + $0x40] sm:$0xff] %vm1719, %v1628
  %1729 = vst.msk [vmem:[#allocation2 + $0x48] sm:$0xff] %vm1719, %v1630
  %1730 = vst.msk [vmem:[#allocation2 + $0x50] sm:$0xff] %vm1719, %v1632
  %1731 = vst.msk [vmem:[#allocation2 + $0x58] sm:$0xff] %vm1719, %v1634
  %1732 = vst.msk [vmem:[#allocation2 + $0x60] sm:$0xff] %vm1719, %v1636
  %1733 = vst.msk [vmem:[#allocation2 + $0x68] sm:$0xff] %vm1719, %v1638
  %1734 = vst.msk [vmem:[#allocation2 + $0x70] sm:$0xff] %vm1719, %v1640
  %1735 = vst.msk [vmem:[#allocation2 + $0x78] sm:$0xff] %vm1719, %v1642
  %1736 = vst.msk [vmem:[#allocation2 + $0x80] sm:$0xff] %vm1719, %v1644
  %1737 = vst.msk [vmem:[#allocation2 + $0x88] sm:$0xff] %vm1719, %v1646
  %1738 = vst.msk [vmem:[#allocation2 + $0x90] sm:$0xff] %vm1719, %v1648
  %1739 = vst.msk [vmem:[#allocation2 + $0x98] sm:$0xff] %vm1719, %v1650
  %1740 = vst.msk [vmem:[#allocation2 + $0xa0] sm:$0xff] %vm1719, %v1652
  %1741 = vst.msk [vmem:[#allocation2 + $0xa8] sm:$0xff] %vm1719, %v1654
  %1742 = vst.msk [vmem:[#allocation2 + $0xb0] sm:$0xff] %vm1719, %v1656
  %1743 = vst.msk [vmem:[#allocation2 + $0xb8] sm:$0xff] %vm1719, %v1658
  %1744 = vst.msk [vmem:[#allocation2 + $0xc0] sm:$0xff] %vm1719, %v1660
  %1745 = vst.msk [vmem:[#allocation2 + $0xc8] sm:$0xff] %vm1719, %v1662
  %1746 = vst.msk [vmem:[#allocation2 + $0xd0] sm:$0xff] %vm1719, %v1664
  %1747 = vst.msk [vmem:[#allocation2 + $0xd8] sm:$0xff] %vm1719, %v1666
  %1748 = vst.msk [vmem:[#allocation2 + $0xe0] sm:$0xff] %vm1719, %v1668
  %1749 = vst.msk [vmem:[#allocation2 + $0xe8] sm:$0xff] %vm1719, %v1670
  %1750 = vst.msk [vmem:[#allocation2 + $0xf0] sm:$0xff] %vm1719, %v1672
  %1751 = vst.msk [vmem:[#allocation2 + $0xf8] sm:$0xff] %vm1719, %v1674
  %1752 = vst.msk [vmem:[#allocation2 + $0x100] sm:$0xff] %vm1719, %v1676
  %1753 = vst.msk [vmem:[#allocation2 + $0x108] sm:$0xff] %vm1719, %v1678
  %1754 = vst.msk [vmem:[#allocation2 + $0x110] sm:$0xff] %vm1719, %v1680
  %1755 = vst.msk [vmem:[#allocation2 + $0x118] sm:$0xff] %vm1719, %v1682
  %v1756 = vld [vmem:[%s1454 + $0x1] sm:$0xff]
  %v1757 = vld [vmem:[%s1454 + $0x9] sm:$0xf]
  %v1758 = vld [vmem:[%s1454 + $0x11] sm:$0xff]
  %v1759 = vld [vmem:[%s1454 + $0x19] sm:$0xf]
  %v1760 = vld [vmem:[%s1454 + $0x21] sm:$0xff]
  %v1761 = vld [vmem:[%s1454 + $0x29] sm:$0xf]
  %v1762 = vld [vmem:[%s1454 + $0x31] sm:$0xff]
  %v1763 = vld [vmem:[%s1454 + $0x39] sm:$0xf]
  %v1764 = vld [vmem:[%s1454 + $0x41] sm:$0xff]
  %v1765 = vld [vmem:[%s1454 + $0x49] sm:$0xf]
  %v1766 = vld [vmem:[%s1454 + $0x51] sm:$0xff]
  %v1767 = vld [vmem:[%s1454 + $0x59] sm:$0xf]
  %v1768 = vld [vmem:[%s1454 + $0x61] sm:$0xff]
  %v1769 = vld [vmem:[%s1454 + $0x69] sm:$0xf]
  %v1770 = vld [vmem:[%s1454 + $0x71] sm:$0xff]
  %v1771 = vld [vmem:[%s1454 + $0x79] sm:$0xf]
  %v1772 = vld [vmem:[%s1454 + $0x81] sm:$0xff]
  %v1773 = vld [vmem:[%s1454 + $0x89] sm:$0xf]
  %v1774 = vld [vmem:[%s1454 + $0x91] sm:$0xff]
  %v1775 = vld [vmem:[%s1454 + $0x99] sm:$0xf]
  %v1776 = vld [vmem:[%s1454 + $0xa1] sm:$0xff]
  %v1777 = vld [vmem:[%s1454 + $0xa9] sm:$0xf]
  %v1778 = vld [vmem:[%s1454 + $0xb1] sm:$0xff]
  %v1779 = vld [vmem:[%s1454 + $0xb9] sm:$0xf]
  %v1780 = vld [vmem:[%s1454 + $0x101] sm:$0xff]
  %v1781 = vld [vmem:[%s1454 + $0x109] sm:$0xf]
  %v1782 = vld [vmem:[%s1454 + $0x111] sm:$0xff]
  %v1783 = vld [vmem:[%s1454 + $0x119] sm:$0xf]
  %v1784 = vld [vmem:[%s1454 + $0x121] sm:$0xff]
  %v1785 = vld [vmem:[%s1454 + $0x129] sm:$0xf]
  %v1786 = vld [vmem:[%s1454 + $0x131] sm:$0xff]
  %v1787 = vld [vmem:[%s1454 + $0x139] sm:$0xf]
  %v1788 = vld [vmem:[%s1454 + $0x141] sm:$0xff]
  %v1789 = vld [vmem:[%s1454 + $0x149] sm:$0xf]
  %v1790 = vld [vmem:[%s1454 + $0x151] sm:$0xff]
  %v1791 = vld [vmem:[%s1454 + $0x159] sm:$0xf]
  %v1792 = vld [vmem:[%s1454 + $0x161] sm:$0xff]
  %v1793 = vld [vmem:[%s1454 + $0x169] sm:$0xf]
  %v1794 = vld [vmem:[%s1454 + $0x171] sm:$0xff]
  %v1795 = vld [vmem:[%s1454 + $0x179] sm:$0xf]
  %v1796 = vld [vmem:[%s1454 + $0x181] sm:$0xff]
  %v1797 = vld [vmem:[%s1454 + $0x189] sm:$0xf]
  %v1798 = vld [vmem:[%s1454 + $0x191] sm:$0xff]
  %v1799 = vld [vmem:[%s1454 + $0x199] sm:$0xf]
  %v1800 = vld [vmem:[%s1454 + $0x1a1] sm:$0xff]
  %v1801 = vld [vmem:[%s1454 + $0x1a9] sm:$0xf]
  %v1802 = vld [vmem:[%s1454 + $0x1b1] sm:$0xff]
  %v1803 = vld [vmem:[%s1454 + $0x1b9] sm:$0xf]
  %v1852 = vcombine.high %v1756, %v1756
  %v1853 = vcombine.high %v1758, %v1758
  %v1854 = vcombine.high %v1760, %v1760
  %v1855 = vcombine.high %v1762, %v1762
  %v1856 = vcombine.high %v1764, %v1764
  %v1857 = vcombine.high %v1766, %v1766
  %v1858 = vcombine.high %v1768, %v1768
  %v1859 = vcombine.high %v1770, %v1770
  %v1860 = vcombine.high %v1772, %v1772
  %v1861 = vcombine.high %v1774, %v1774
  %v1862 = vcombine.high %v1776, %v1776
  %v1863 = vcombine.high %v1778, %v1778
  %v1864 = vcombine.high %v1780, %v1780
  %v1865 = vcombine.high %v1782, %v1782
  %v1866 = vcombine.high %v1784, %v1784
  %v1867 = vcombine.high %v1786, %v1786
  %v1868 = vcombine.high %v1788, %v1788
  %v1869 = vcombine.high %v1790, %v1790
  %v1870 = vcombine.high %v1792, %v1792
  %v1871 = vcombine.high %v1794, %v1794
  %v1872 = vcombine.high %v1796, %v1796
  %v1873 = vcombine.high %v1798, %v1798
  %v1874 = vcombine.high %v1800, %v1800
  %v1875 = vcombine.high %v1802, %v1802
  %v1876 = vcombine.low %v1756, %v1852
  %v1877 = vcombine.low %v1757, %v1758
  %v1878 = vcombine.low %v1853, %v1759
  %v1879 = vcombine.low %v1760, %v1854
  %v1880 = vcombine.low %v1761, %v1762
  %v1881 = vcombine.low %v1855, %v1763
  %v1882 = vcombine.low %v1764, %v1856
  %v1883 = vcombine.low %v1765, %v1766
  %v1884 = vcombine.low %v1857, %v1767
  %v1885 = vcombine.low %v1768, %v1858
  %v1886 = vcombine.low %v1769, %v1770
  %v1887 = vcombine.low %v1859, %v1771
  %v1888 = vcombine.low %v1772, %v1860
  %v1889 = vcombine.low %v1773, %v1774
  %v1890 = vcombine.low %v1861, %v1775
  %v1891 = vcombine.low %v1776, %v1862
  %v1892 = vcombine.low %v1777, %v1778
  %v1893 = vcombine.low %v1863, %v1779
  %v1894 = vcombine.low %v1780, %v1864
  %v1895 = vcombine.low %v1781, %v1782
  %v1896 = vcombine.low %v1865, %v1783
  %v1897 = vcombine.low %v1784, %v1866
  %v1898 = vcombine.low %v1785, %v1786
  %v1899 = vcombine.low %v1867, %v1787
  %v1900 = vcombine.low %v1788, %v1868
  %v1901 = vcombine.low %v1789, %v1790
  %v1902 = vcombine.low %v1869, %v1791
  %v1903 = vcombine.low %v1792, %v1870
  %v1904 = vcombine.low %v1793, %v1794
  %v1905 = vcombine.low %v1871, %v1795
  %v1906 = vcombine.low %v1796, %v1872
  %v1907 = vcombine.low %v1797, %v1798
  %v1908 = vcombine.low %v1873, %v1799
  %v1909 = vcombine.low %v1800, %v1874
  %v1910 = vcombine.low %v1801, %v1802
  %v1911 = vcombine.low %v1875, %v1803
  %1912 = vrot.lane.b32.xlu0 %v1876, 6
  %v1913 = vpop.permute.xlu0 %1912
  %1914 = vrot.lane.b32.xlu0 %v1877, 6
  %v1915 = vpop.permute.xlu0 %1914
  %1916 = vrot.lane.b32.xlu0 %v1878, 6
  %v1917 = vpop.permute.xlu0 %1916
  %1918 = vrot.lane.b32.xlu0 %v1879, 6
  %v1919 = vpop.permute.xlu0 %1918
  %1920 = vrot.lane.b32.xlu0 %v1880, 6
  %v1921 = vpop.permute.xlu0 %1920
  %1922 = vrot.lane.b32.xlu0 %v1881, 6
  %v1923 = vpop.permute.xlu0 %1922
  %1924 = vrot.lane.b32.xlu0 %v1882, 6
  %v1925 = vpop.permute.xlu0 %1924
  %1926 = vrot.lane.b32.xlu0 %v1883, 6
  %v1927 = vpop.permute.xlu0 %1926
  %1928 = vrot.lane.b32.xlu0 %v1884, 6
  %v1929 = vpop.permute.xlu0 %1928
  %1930 = vrot.lane.b32.xlu0 %v1885, 6
  %v1931 = vpop.permute.xlu0 %1930
  %1932 = vrot.lane.b32.xlu0 %v1886, 6
  %v1933 = vpop.permute.xlu0 %1932
  %1934 = vrot.lane.b32.xlu0 %v1887, 6
  %v1935 = vpop.permute.xlu0 %1934
  %1936 = vrot.lane.b32.xlu0 %v1888, 6
  %v1937 = vpop.permute.xlu0 %1936
  %1938 = vrot.lane.b32.xlu0 %v1889, 6
  %v1939 = vpop.permute.xlu0 %1938
  %1940 = vrot.lane.b32.xlu0 %v1890, 6
  %v1941 = vpop.permute.xlu0 %1940
  %1942 = vrot.lane.b32.xlu0 %v1891, 6
  %v1943 = vpop.permute.xlu0 %1942
  %1944 = vrot.lane.b32.xlu0 %v1892, 6
  %v1945 = vpop.permute.xlu0 %1944
  %1946 = vrot.lane.b32.xlu0 %v1893, 6
  %v1947 = vpop.permute.xlu0 %1946
  %1948 = vrot.lane.b32.xlu0 %v1894, 6
  %v1949 = vpop.permute.xlu0 %1948
  %1950 = vrot.lane.b32.xlu0 %v1895, 6
  %v1951 = vpop.permute.xlu0 %1950
  %1952 = vrot.lane.b32.xlu0 %v1896, 6
  %v1953 = vpop.permute.xlu0 %1952
  %1954 = vrot.lane.b32.xlu0 %v1897, 6
  %v1955 = vpop.permute.xlu0 %1954
  %1956 = vrot.lane.b32.xlu0 %v1898, 6
  %v1957 = vpop.permute.xlu0 %1956
  %1958 = vrot.lane.b32.xlu0 %v1899, 6
  %v1959 = vpop.permute.xlu0 %1958
  %1960 = vrot.lane.b32.xlu0 %v1900, 6
  %v1961 = vpop.permute.xlu0 %1960
  %1962 = vrot.lane.b32.xlu0 %v1901, 6
  %v1963 = vpop.permute.xlu0 %1962
  %1964 = vrot.lane.b32.xlu0 %v1902, 6
  %v1965 = vpop.permute.xlu0 %1964
  %1966 = vrot.lane.b32.xlu0 %v1903, 6
  %v1967 = vpop.permute.xlu0 %1966
  %1968 = vrot.lane.b32.xlu0 %v1904, 6
  %v1969 = vpop.permute.xlu0 %1968
  %1970 = vrot.lane.b32.xlu0 %v1905, 6
  %v1971 = vpop.permute.xlu0 %1970
  %1972 = vrot.lane.b32.xlu0 %v1906, 6
  %v1973 = vpop.permute.xlu0 %1972
  %1974 = vrot.lane.b32.xlu0 %v1907, 6
  %v1975 = vpop.permute.xlu0 %1974
  %1976 = vrot.lane.b32.xlu0 %v1908, 6
  %v1977 = vpop.permute.xlu0 %1976
  %1978 = vrot.lane.b32.xlu0 %v1909, 6
  %v1979 = vpop.permute.xlu0 %1978
  %1980 = vrot.lane.b32.xlu0 %v1910, 6
  %v1981 = vpop.permute.xlu0 %1980
  %1982 = vrot.lane.b32.xlu0 %v1911, 6
  %v1983 = vpop.permute.xlu0 %1982
  %vm2020 = vcmask 56368
  %2021 = vst.msk [vmem:[#allocation2] sm:$0xff] %vm2020, %v1913
  %2022 = vst.msk [vmem:[#allocation2 + $0x8] sm:$0xff] %vm2020, %v1915
  %2023 = vst.msk [vmem:[#allocation2 + $0x10] sm:$0xff] %vm2020, %v1917
  %2024 = vst.msk [vmem:[#allocation2 + $0x18] sm:$0xff] %vm2020, %v1919
  %2025 = vst.msk [vmem:[#allocation2 + $0x20] sm:$0xff] %vm2020, %v1921
  %2026 = vst.msk [vmem:[#allocation2 + $0x28] sm:$0xff] %vm2020, %v1923
  %2027 = vst.msk [vmem:[#allocation2 + $0x30] sm:$0xff] %vm2020, %v1925
  %2028 = vst.msk [vmem:[#allocation2 + $0x38] sm:$0xff] %vm2020, %v1927
  %2029 = vst.msk [vmem:[#allocation2 + $0x40] sm:$0xff] %vm2020, %v1929
  %2030 = vst.msk [vmem:[#allocation2 + $0x48] sm:$0xff] %vm2020, %v1931
  %2031 = vst.msk [vmem:[#allocation2 + $0x50] sm:$0xff] %vm2020, %v1933
  %2032 = vst.msk [vmem:[#allocation2 + $0x58] sm:$0xff] %vm2020, %v1935
  %2033 = vst.msk [vmem:[#allocation2 + $0x60] sm:$0xff] %vm2020, %v1937
  %2034 = vst.msk [vmem:[#allocation2 + $0x68] sm:$0xff] %vm2020, %v1939
  %2035 = vst.msk [vmem:[#allocation2 + $0x70] sm:$0xff] %vm2020, %v1941
  %2036 = vst.msk [vmem:[#allocation2 + $0x78] sm:$0xff] %vm2020, %v1943
  %2037 = vst.msk [vmem:[#allocation2 + $0x80] sm:$0xff] %vm2020, %v1945
  %2038 = vst.msk [vmem:[#allocation2 + $0x88] sm:$0xff] %vm2020, %v1947
  %2039 = vst.msk [vmem:[#allocation2 + $0x90] sm:$0xff] %vm2020, %v1949
  %2040 = vst.msk [vmem:[#allocation2 + $0x98] sm:$0xff] %vm2020, %v1951
  %2041 = vst.msk [vmem:[#allocation2 + $0xa0] sm:$0xff] %vm2020, %v1953
  %2042 = vst.msk [vmem:[#allocation2 + $0xa8] sm:$0xff] %vm2020, %v1955
  %2043 = vst.msk [vmem:[#allocation2 + $0xb0] sm:$0xff] %vm2020, %v1957
  %2044 = vst.msk [vmem:[#allocation2 + $0xb8] sm:$0xff] %vm2020, %v1959
  %2045 = vst.msk [vmem:[#allocation2 + $0xc0] sm:$0xff] %vm2020, %v1961
  %2046 = vst.msk [vmem:[#allocation2 + $0xc8] sm:$0xff] %vm2020, %v1963
  %2047 = vst.msk [vmem:[#allocation2 + $0xd0] sm:$0xff] %vm2020, %v1965
  %2048 = vst.msk [vmem:[#allocation2 + $0xd8] sm:$0xff] %vm2020, %v1967
  %2049 = vst.msk [vmem:[#allocation2 + $0xe0] sm:$0xff] %vm2020, %v1969
  %2050 = vst.msk [vmem:[#allocation2 + $0xe8] sm:$0xff] %vm2020, %v1971
  %2051 = vst.msk [vmem:[#allocation2 + $0xf0] sm:$0xff] %vm2020, %v1973
  %2052 = vst.msk [vmem:[#allocation2 + $0xf8] sm:$0xff] %vm2020, %v1975
  %2053 = vst.msk [vmem:[#allocation2 + $0x100] sm:$0xff] %vm2020, %v1977
  %2054 = vst.msk [vmem:[#allocation2 + $0x108] sm:$0xff] %vm2020, %v1979
  %2055 = vst.msk [vmem:[#allocation2 + $0x110] sm:$0xff] %vm2020, %v1981
  %2056 = vst.msk [vmem:[#allocation2 + $0x118] sm:$0xff] %vm2020, %v1983
  %v2057 = vld [vmem:[%s1454 + $0x2] sm:$0xff]
  %v2058 = vld [vmem:[%s1454 + $0xa] sm:$0xf]
  %v2059 = vld [vmem:[%s1454 + $0x12] sm:$0xff]
  %v2060 = vld [vmem:[%s1454 + $0x1a] sm:$0xf]
  %v2061 = vld [vmem:[%s1454 + $0x22] sm:$0xff]
  %v2062 = vld [vmem:[%s1454 + $0x2a] sm:$0xf]
  %v2063 = vld [vmem:[%s1454 + $0x32] sm:$0xff]
  %v2064 = vld [vmem:[%s1454 + $0x3a] sm:$0xf]
  %v2065 = vld [vmem:[%s1454 + $0x42] sm:$0xff]
  %v2066 = vld [vmem:[%s1454 + $0x4a] sm:$0xf]
  %v2067 = vld [vmem:[%s1454 + $0x52] sm:$0xff]
  %v2068 = vld [vmem:[%s1454 + $0x5a] sm:$0xf]
  %v2069 = vld [vmem:[%s1454 + $0x62] sm:$0xff]
  %v2070 = vld [vmem:[%s1454 + $0x6a] sm:$0xf]
  %v2071 = vld [vmem:[%s1454 + $0x72] sm:$0xff]
  %v2072 = vld [vmem:[%s1454 + $0x7a] sm:$0xf]
  %v2073 = vld [vmem:[%s1454 + $0x82] sm:$0xff]
  %v2074 = vld [vmem:[%s1454 + $0x8a] sm:$0xf]
  %v2075 = vld [vmem:[%s1454 + $0x92] sm:$0xff]
  %v2076 = vld [vmem:[%s1454 + $0x9a] sm:$0xf]
  %v2077 = vld [vmem:[%s1454 + $0xa2] sm:$0xff]
  %v2078 = vld [vmem:[%s1454 + $0xaa] sm:$0xf]
  %v2079 = vld [vmem:[%s1454 + $0xb2] sm:$0xff]
  %v2080 = vld [vmem:[%s1454 + $0xba] sm:$0xf]
  %v2081 = vld [vmem:[%s1454 + $0x102] sm:$0xff]
  %v2082 = vld [vmem:[%s1454 + $0x10a] sm:$0xf]
  %v2083 = vld [vmem:[%s1454 + $0x112] sm:$0xff]
  %v2084 = vld [vmem:[%s1454 + $0x11a] sm:$0xf]
  %v2085 = vld [vmem:[%s1454 + $0x122] sm:$0xff]
  %v2086 = vld [vmem:[%s1454 + $0x12a] sm:$0xf]
  %v2087 = vld [vmem:[%s1454 + $0x132] sm:$0xff]
  %v2088 = vld [vmem:[%s1454 + $0x13a] sm:$0xf]
  %v2089 = vld [vmem:[%s1454 + $0x142] sm:$0xff]
  %v2090 = vld [vmem:[%s1454 + $0x14a] sm:$0xf]
  %v2091 = vld [vmem:[%s1454 + $0x152] sm:$0xff]
  %v2092 = vld [vmem:[%s1454 + $0x15a] sm:$0xf]
  %v2093 = vld [vmem:[%s1454 + $0x162] sm:$0xff]
  %v2094 = vld [vmem:[%s1454 + $0x16a] sm:$0xf]
  %v2095 = vld [vmem:[%s1454 + $0x172] sm:$0xff]
  %v2096 = vld [vmem:[%s1454 + $0x17a] sm:$0xf]
  %v2097 = vld [vmem:[%s1454 + $0x182] sm:$0xff]
  %v2098 = vld [vmem:[%s1454 + $0x18a] sm:$0xf]
  %v2099 = vld [vmem:[%s1454 + $0x192] sm:$0xff]
  %v2100 = vld [vmem:[%s1454 + $0x19a] sm:$0xf]
  %v2101 = vld [vmem:[%s1454 + $0x1a2] sm:$0xff]
  %v2102 = vld [vmem:[%s1454 + $0x1aa] sm:$0xf]
  %v2103 = vld [vmem:[%s1454 + $0x1b2] sm:$0xff]
  %v2104 = vld [vmem:[%s1454 + $0x1ba] sm:$0xf]
  %v2153 = vcombine.high %v2057, %v2057
  %v2154 = vcombine.high %v2059, %v2059
  %v2155 = vcombine.high %v2061, %v2061
  %v2156 = vcombine.high %v2063, %v2063
  %v2157 = vcombine.high %v2065, %v2065
  %v2158 = vcombine.high %v2067, %v2067
  %v2159 = vcombine.high %v2069, %v2069
  %v2160 = vcombine.high %v2071, %v2071
  %v2161 = vcombine.high %v2073, %v2073
  %v2162 = vcombine.high %v2075, %v2075
  %v2163 = vcombine.high %v2077, %v2077
  %v2164 = vcombine.high %v2079, %v2079
  %v2165 = vcombine.high %v2081, %v2081
  %v2166 = vcombine.high %v2083, %v2083
  %v2167 = vcombine.high %v2085, %v2085
  %v2168 = vcombine.high %v2087, %v2087
  %v2169 = vcombine.high %v2089, %v2089
  %v2170 = vcombine.high %v2091, %v2091
  %v2171 = vcombine.high %v2093, %v2093
  %v2172 = vcombine.high %v2095, %v2095
  %v2173 = vcombine.high %v2097, %v2097
  %v2174 = vcombine.high %v2099, %v2099
  %v2175 = vcombine.high %v2101, %v2101
  %v2176 = vcombine.high %v2103, %v2103
  %v2177 = vcombine.low %v2057, %v2153
  %v2178 = vcombine.low %v2058, %v2059
  %v2179 = vcombine.low %v2154, %v2060
  %v2180 = vcombine.low %v2061, %v2155
  %v2181 = vcombine.low %v2062, %v2063
  %v2182 = vcombine.low %v2156, %v2064
  %v2183 = vcombine.low %v2065, %v2157
  %v2184 = vcombine.low %v2066, %v2067
  %v2185 = vcombine.low %v2158, %v2068
  %v2186 = vcombine.low %v2069, %v2159
  %v2187 = vcombine.low %v2070, %v2071
  %v2188 = vcombine.low %v2160, %v2072
  %v2189 = vcombine.low %v2073, %v2161
  %v2190 = vcombine.low %v2074, %v2075
  %v2191 = vcombine.low %v2162, %v2076
  %v2192 = vcombine.low %v2077, %v2163
  %v2193 = vcombine.low %v2078, %v2079
  %v2194 = vcombine.low %v2164, %v2080
  %v2195 = vcombine.low %v2081, %v2165
  %v2196 = vcombine.low %v2082, %v2083
  %v2197 = vcombine.low %v2166, %v2084
  %v2198 = vcombine.low %v2085, %v2167
  %v2199 = vcombine.low %v2086, %v2087
  %v2200 = vcombine.low %v2168, %v2088
  %v2201 = vcombine.low %v2089, %v2169
  %v2202 = vcombine.low %v2090, %v2091
  %v2203 = vcombine.low %v2170, %v2092
  %v2204 = vcombine.low %v2093, %v2171
  %v2205 = vcombine.low %v2094, %v2095
  %v2206 = vcombine.low %v2172, %v2096
  %v2207 = vcombine.low %v2097, %v2173
  %v2208 = vcombine.low %v2098, %v2099
  %v2209 = vcombine.low %v2174, %v2100
  %v2210 = vcombine.low %v2101, %v2175
  %v2211 = vcombine.low %v2102, %v2103
  %v2212 = vcombine.low %v2176, %v2104
  %2213 = vrot.lane.b32.xlu0 %v2177, 7
  %v2214 = vpop.permute.xlu0 %2213
  %2215 = vrot.lane.b32.xlu0 %v2178, 7
  %v2216 = vpop.permute.xlu0 %2215
  %2217 = vrot.lane.b32.xlu0 %v2179, 7
  %v2218 = vpop.permute.xlu0 %2217
  %2219 = vrot.lane.b32.xlu0 %v2180, 7
  %v2220 = vpop.permute.xlu0 %2219
  %2221 = vrot.lane.b32.xlu0 %v2181, 7
  %v2222 = vpop.permute.xlu0 %2221
  %2223 = vrot.lane.b32.xlu0 %v2182, 7
  %v2224 = vpop.permute.xlu0 %2223
  %2225 = vrot.lane.b32.xlu0 %v2183, 7
  %v2226 = vpop.permute.xlu0 %2225
  %2227 = vrot.lane.b32.xlu0 %v2184, 7
  %v2228 = vpop.permute.xlu0 %2227
  %2229 = vrot.lane.b32.xlu0 %v2185, 7
  %v2230 = vpop.permute.xlu0 %2229
  %2231 = vrot.lane.b32.xlu0 %v2186, 7
  %v2232 = vpop.permute.xlu0 %2231
  %2233 = vrot.lane.b32.xlu0 %v2187, 7
  %v2234 = vpop.permute.xlu0 %2233
  %2235 = vrot.lane.b32.xlu0 %v2188, 7
  %v2236 = vpop.permute.xlu0 %2235
  %2237 = vrot.lane.b32.xlu0 %v2189, 7
  %v2238 = vpop.permute.xlu0 %2237
  %2239 = vrot.lane.b32.xlu0 %v2190, 7
  %v2240 = vpop.permute.xlu0 %2239
  %2241 = vrot.lane.b32.xlu0 %v2191, 7
  %v2242 = vpop.permute.xlu0 %2241
  %2243 = vrot.lane.b32.xlu0 %v2192, 7
  %v2244 = vpop.permute.xlu0 %2243
  %2245 = vrot.lane.b32.xlu0 %v2193, 7
  %v2246 = vpop.permute.xlu0 %2245
  %2247 = vrot.lane.b32.xlu0 %v2194, 7
  %v2248 = vpop.permute.xlu0 %2247
  %2249 = vrot.lane.b32.xlu0 %v2195, 7
  %v2250 = vpop.permute.xlu0 %2249
  %2251 = vrot.lane.b32.xlu0 %v2196, 7
  %v2252 = vpop.permute.xlu0 %2251
  %2253 = vrot.lane.b32.xlu0 %v2197, 7
  %v2254 = vpop.permute.xlu0 %2253
  %2255 = vrot.lane.b32.xlu0 %v2198, 7
  %v2256 = vpop.permute.xlu0 %2255
  %2257 = vrot.lane.b32.xlu0 %v2199, 7
  %v2258 = vpop.permute.xlu0 %2257
  %2259 = vrot.lane.b32.xlu0 %v2200, 7
  %v2260 = vpop.permute.xlu0 %2259
  %2261 = vrot.lane.b32.xlu0 %v2201, 7
  %v2262 = vpop.permute.xlu0 %2261
  %2263 = vrot.lane.b32.xlu0 %v2202, 7
  %v2264 = vpop.permute.xlu0 %2263
  %2265 = vrot.lane.b32.xlu0 %v2203, 7
  %v2266 = vpop.permute.xlu0 %2265
  %2267 = vrot.lane.b32.xlu0 %v2204, 7
  %v2268 = vpop.permute.xlu0 %2267
  %2269 = vrot.lane.b32.xlu0 %v2205, 7
  %v2270 = vpop.permute.xlu0 %2269
  %2271 = vrot.lane.b32.xlu0 %v2206, 7
  %v2272 = vpop.permute.xlu0 %2271
  %2273 = vrot.lane.b32.xlu0 %v2207, 7
  %v2274 = vpop.permute.xlu0 %2273
  %2275 = vrot.lane.b32.xlu0 %v2208, 7
  %v2276 = vpop.permute.xlu0 %2275
  %2277 = vrot.lane.b32.xlu0 %v2209, 7
  %v2278 = vpop.permute.xlu0 %2277
  %2279 = vrot.lane.b32.xlu0 %v2210, 7
  %v2280 = vpop.permute.xlu0 %2279
  %2281 = vrot.lane.b32.xlu0 %v2211, 7
  %v2282 = vpop.permute.xlu0 %2281
  %2283 = vrot.lane.b32.xlu0 %v2212, 7
  %v2284 = vpop.permute.xlu0 %2283
  %vm2321 = vcmask 64568
  %2322 = vst.msk [vmem:[#allocation2] sm:$0xff] %vm2321, %v2214
  %2323 = vst.msk [vmem:[#allocation2 + $0x8] sm:$0xff] %vm2321, %v2216
  %2324 = vst.msk [vmem:[#allocation2 + $0x10] sm:$0xff] %vm2321, %v2218
  %2325 = vst.msk [vmem:[#allocation2 + $0x18] sm:$0xff] %vm2321, %v2220
  %2326 = vst.msk [vmem:[#allocation2 + $0x20] sm:$0xff] %vm2321, %v2222
  %2327 = vst.msk [vmem:[#allocation2 + $0x28] sm:$0xff] %vm2321, %v2224
  %2328 = vst.msk [vmem:[#allocation2 + $0x30] sm:$0xff] %vm2321, %v2226
  %2329 = vst.msk [vmem:[#allocation2 + $0x38] sm:$0xff] %vm2321, %v2228
  %2330 = vst.msk [vmem:[#allocation2 + $0x40] sm:$0xff] %vm2321, %v2230
  %2331 = vst.msk [vmem:[#allocation2 + $0x48] sm:$0xff] %vm2321, %v2232
  %2332 = vst.msk [vmem:[#allocation2 + $0x50] sm:$0xff] %vm2321, %v2234
  %2333 = vst.msk [vmem:[#allocation2 + $0x58] sm:$0xff] %vm2321, %v2236
  %2334 = vst.msk [vmem:[#allocation2 + $0x60] sm:$0xff] %vm2321, %v2238
  %2335 = vst.msk [vmem:[#allocation2 + $0x68] sm:$0xff] %vm2321, %v2240
  %2336 = vst.msk [vmem:[#allocation2 + $0x70] sm:$0xff] %vm2321, %v2242
  %2337 = vst.msk [vmem:[#allocation2 + $0x78] sm:$0xff] %vm2321, %v2244
  %2338 = vst.msk [vmem:[#allocation2 + $0x80] sm:$0xff] %vm2321, %v2246
  %2339 = vst.msk [vmem:[#allocation2 + $0x88] sm:$0xff] %vm2321, %v2248
  %2340 = vst.msk [vmem:[#allocation2 + $0x90] sm:$0xff] %vm2321, %v2250
  %2341 = vst.msk [vmem:[#allocation2 + $0x98] sm:$0xff] %vm2321, %v2252
  %2342 = vst.msk [vmem:[#allocation2 + $0xa0] sm:$0xff] %vm2321, %v2254
  %2343 = vst.msk [vmem:[#allocation2 + $0xa8] sm:$0xff] %vm2321, %v2256
  %2344 = vst.msk [vmem:[#allocation2 + $0xb0] sm:$0xff] %vm2321, %v2258
  %2345 = vst.msk [vmem:[#allocation2 + $0xb8] sm:$0xff] %vm2321, %v2260
  %2346 = vst.msk [vmem:[#allocation2 + $0xc0] sm:$0xff] %vm2321, %v2262
  %2347 = vst.msk [vmem:[#allocation2 + $0xc8] sm:$0xff] %vm2321, %v2264
  %2348 = vst.msk [vmem:[#allocation2 + $0xd0] sm:$0xff] %vm2321, %v2266
  %2349 = vst.msk [vmem:[#allocation2 + $0xd8] sm:$0xff] %vm2321, %v2268
  %2350 = vst.msk [vmem:[#allocation2 + $0xe0] sm:$0xff] %vm2321, %v2270
  %2351 = vst.msk [vmem:[#allocation2 + $0xe8] sm:$0xff] %vm2321, %v2272
  %2352 = vst.msk [vmem:[#allocation2 + $0xf0] sm:$0xff] %vm2321, %v2274
  %2353 = vst.msk [vmem:[#allocation2 + $0xf8] sm:$0xff] %vm2321, %v2276
  %2354 = vst.msk [vmem:[#allocation2 + $0x100] sm:$0xff] %vm2321, %v2278
  %2355 = vst.msk [vmem:[#allocation2 + $0x108] sm:$0xff] %vm2321, %v2280
  %2356 = vst.msk [vmem:[#allocation2 + $0x110] sm:$0xff] %vm2321, %v2282
  %2357 = vst.msk [vmem:[#allocation2 + $0x118] sm:$0xff] %vm2321, %v2284
  %v2358 = vld [vmem:[%s1454 + $0x3] sm:$0xff]
  %v2359 = vld [vmem:[%s1454 + $0xb] sm:$0xf]
  %v2360 = vld [vmem:[%s1454 + $0x13] sm:$0xff]
  %v2361 = vld [vmem:[%s1454 + $0x1b] sm:$0xf]
  %v2362 = vld [vmem:[%s1454 + $0x23] sm:$0xff]
  %v2363 = vld [vmem:[%s1454 + $0x2b] sm:$0xf]
  %v2364 = vld [vmem:[%s1454 + $0x33] sm:$0xff]
  %v2365 = vld [vmem:[%s1454 + $0x3b] sm:$0xf]
  %v2366 = vld [vmem:[%s1454 + $0x43] sm:$0xff]
  %v2367 = vld [vmem:[%s1454 + $0x4b] sm:$0xf]
  %v2368 = vld [vmem:[%s1454 + $0x53] sm:$0xff]
  %v2369 = vld [vmem:[%s1454 + $0x5b] sm:$0xf]
  %v2370 = vld [vmem:[%s1454 + $0x63] sm:$0xff]
  %v2371 = vld [vmem:[%s1454 + $0x6b] sm:$0xf]
  %v2372 = vld [vmem:[%s1454 + $0x73] sm:$0xff]
  %v2373 = vld [vmem:[%s1454 + $0x7b] sm:$0xf]
  %v2374 = vld [vmem:[%s1454 + $0x83] sm:$0xff]
  %v2375 = vld [vmem:[%s1454 + $0x8b] sm:$0xf]
  %v2376 = vld [vmem:[%s1454 + $0x93] sm:$0xff]
  %v2377 = vld [vmem:[%s1454 + $0x9b] sm:$0xf]
  %v2378 = vld [vmem:[%s1454 + $0xa3] sm:$0xff]
  %v2379 = vld [vmem:[%s1454 + $0xab] sm:$0xf]
  %v2380 = vld [vmem:[%s1454 + $0xb3] sm:$0xff]
  %v2381 = vld [vmem:[%s1454 + $0xbb] sm:$0xf]
  %v2382 = vld [vmem:[%s1454 + $0x103] sm:$0xff]
  %v2383 = vld [vmem:[%s1454 + $0x10b] sm:$0xf]
  %v2384 = vld [vmem:[%s1454 + $0x113] sm:$0xff]
  %v2385 = vld [vmem:[%s1454 + $0x11b] sm:$0xf]
  %v2386 = vld [vmem:[%s1454 + $0x123] sm:$0xff]
  %v2387 = vld [vmem:[%s1454 + $0x12b] sm:$0xf]
  %v2388 = vld [vmem:[%s1454 + $0x133] sm:$0xff]
  %v2389 = vld [vmem:[%s1454 + $0x13b] sm:$0xf]
  %v2390 = vld [vmem:[%s1454 + $0x143] sm:$0xff]
  %v2391 = vld [vmem:[%s1454 + $0x14b] sm:$0xf]
  %v2392 = vld [vmem:[%s1454 + $0x153] sm:$0xff]
  %v2393 = vld [vmem:[%s1454 + $0x15b] sm:$0xf]
  %v2394 = vld [vmem:[%s1454 + $0x163] sm:$0xff]
  %v2395 = vld [vmem:[%s1454 + $0x16b] sm:$0xf]
  %v2396 = vld [vmem:[%s1454 + $0x173] sm:$0xff]
  %v2397 = vld [vmem:[%s1454 + $0x17b] sm:$0xf]
  %v2398 = vld [vmem:[%s1454 + $0x183] sm:$0xff]
  %v2399 = vld [vmem:[%s1454 + $0x18b] sm:$0xf]
  %v2400 = vld [vmem:[%s1454 + $0x193] sm:$0xff]
  %v2401 = vld [vmem:[%s1454 + $0x19b] sm:$0xf]
  %v2402 = vld [vmem:[%s1454 + $0x1a3] sm:$0xff]
  %v2403 = vld [vmem:[%s1454 + $0x1ab] sm:$0xf]
  %v2404 = vld [vmem:[%s1454 + $0x1b3] sm:$0xff]
  %v2405 = vld [vmem:[%s1454 + $0x1bb] sm:$0xf]
  %v2454 = vcombine.high %v2358, %v2358
  %v2455 = vcombine.high %v2360, %v2360
  %v2456 = vcombine.high %v2362, %v2362
  %v2457 = vcombine.high %v2364, %v2364
  %v2458 = vcombine.high %v2366, %v2366
  %v2459 = vcombine.high %v2368, %v2368
  %v2460 = vcombine.high %v2370, %v2370
  %v2461 = vcombine.high %v2372, %v2372
  %v2462 = vcombine.high %v2374, %v2374
  %v2463 = vcombine.high %v2376, %v2376
  %v2464 = vcombine.high %v2378, %v2378
  %v2465 = vcombine.high %v2380, %v2380
  %v2466 = vcombine.high %v2382, %v2382
  %v2467 = vcombine.high %v2384, %v2384
  %v2468 = vcombine.high %v2386, %v2386
  %v2469 = vcombine.high %v2388, %v2388
  %v2470 = vcombine.high %v2390, %v2390
  %v2471 = vcombine.high %v2392, %v2392
  %v2472 = vcombine.high %v2394, %v2394
  %v2473 = vcombine.high %v2396, %v2396
  %v2474 = vcombine.high %v2398, %v2398
  %v2475 = vcombine.high %v2400, %v2400
  %v2476 = vcombine.high %v2402, %v2402
  %v2477 = vcombine.high %v2404, %v2404
  %v2478 = vcombine.low %v2358, %v2454
  %v2479 = vcombine.low %v2359, %v2360
  %v2480 = vcombine.low %v2455, %v2361
  %v2481 = vcombine.low %v2362, %v2456
  %v2482 = vcombine.low %v2363, %v2364
  %v2483 = vcombine.low %v2457, %v2365
  %v2484 = vcombine.low %v2366, %v2458
  %v2485 = vcombine.low %v2367, %v2368
  %v2486 = vcombine.low %v2459, %v2369
  %v2487 = vcombine.low %v2370, %v2460
  %v2488 = vcombine.low %v2371, %v2372
  %v2489 = vcombine.low %v2461, %v2373
  %v2490 = vcombine.low %v2374, %v2462
  %v2491 = vcombine.low %v2375, %v2376
  %v2492 = vcombine.low %v2463, %v2377
  %v2493 = vcombine.low %v2378, %v2464
  %v2494 = vcombine.low %v2379, %v2380
  %v2495 = vcombine.low %v2465, %v2381
  %v2496 = vcombine.low %v2382, %v2466
  %v2497 = vcombine.low %v2383, %v2384
  %v2498 = vcombine.low %v2467, %v2385
  %v2499 = vcombine.low %v2386, %v2468
  %v2500 = vcombine.low %v2387, %v2388
  %v2501 = vcombine.low %v2469, %v2389
  %v2502 = vcombine.low %v2390, %v2470
  %v2503 = vcombine.low %v2391, %v2392
  %v2504 = vcombine.low %v2471, %v2393
  %v2505 = vcombine.low %v2394, %v2472
  %v2506 = vcombine.low %v2395, %v2396
  %v2507 = vcombine.low %v2473, %v2397
  %v2508 = vcombine.low %v2398, %v2474
  %v2509 = vcombine.low %v2399, %v2400
  %v2510 = vcombine.low %v2475, %v2401
  %v2511 = vcombine.low %v2402, %v2476
  %v2512 = vcombine.low %v2403, %v2404
  %v2513 = vcombine.low %v2477, %v2405
  %2514 = vrot.lane.b32.xlu0 %v2478, 8
  %v2515 = vpop.permute.xlu0 %2514
  %2516 = vrot.lane.b32.xlu0 %v2479, 8
  %v2517 = vpop.permute.xlu0 %2516
  %2518 = vrot.lane.b32.xlu0 %v2480, 8
  %v2519 = vpop.permute.xlu0 %2518
  %2520 = vrot.lane.b32.xlu0 %v2481, 8
  %v2521 = vpop.permute.xlu0 %2520
  %2522 = vrot.lane.b32.xlu0 %v2482, 8
  %v2523 = vpop.permute.xlu0 %2522
  %2524 = vrot.lane.b32.xlu0 %v2483, 8
  %v2525 = vpop.permute.xlu0 %2524
  %2526 = vrot.lane.b32.xlu0 %v2484, 8
  %v2527 = vpop.permute.xlu0 %2526
  %2528 = vrot.lane.b32.xlu0 %v2485, 8
  %v2529 = vpop.permute.xlu0 %2528
  %2530 = vrot.lane.b32.xlu0 %v2486, 8
  %v2531 = vpop.permute.xlu0 %2530
  %2532 = vrot.lane.b32.xlu0 %v2487, 8
  %v2533 = vpop.permute.xlu0 %2532
  %2534 = vrot.lane.b32.xlu0 %v2488, 8
  %v2535 = vpop.permute.xlu0 %2534
  %2536 = vrot.lane.b32.xlu0 %v2489, 8
  %v2537 = vpop.permute.xlu0 %2536
  %2538 = vrot.lane.b32.xlu0 %v2490, 8
  %v2539 = vpop.permute.xlu0 %2538
  %2540 = vrot.lane.b32.xlu0 %v2491, 8
  %v2541 = vpop.permute.xlu0 %2540
  %2542 = vrot.lane.b32.xlu0 %v2492, 8
  %v2543 = vpop.permute.xlu0 %2542
  %2544 = vrot.lane.b32.xlu0 %v2493, 8
  %v2545 = vpop.permute.xlu0 %2544
  %2546 = vrot.lane.b32.xlu0 %v2494, 8
  %v2547 = vpop.permute.xlu0 %2546
  %2548 = vrot.lane.b32.xlu0 %v2495, 8
  %v2549 = vpop.permute.xlu0 %2548
  %2550 = vrot.lane.b32.xlu0 %v2496, 8
  %v2551 = vpop.permute.xlu0 %2550
  %2552 = vrot.lane.b32.xlu0 %v2497, 8
  %v2553 = vpop.permute.xlu0 %2552
  %2554 = vrot.lane.b32.xlu0 %v2498, 8
  %v2555 = vpop.permute.xlu0 %2554
  %2556 = vrot.lane.b32.xlu0 %v2499, 8
  %v2557 = vpop.permute.xlu0 %2556
  %2558 = vrot.lane.b32.xlu0 %v2500, 8
  %v2559 = vpop.permute.xlu0 %2558
  %2560 = vrot.lane.b32.xlu0 %v2501, 8
  %v2561 = vpop.permute.xlu0 %2560
  %2562 = vrot.lane.b32.xlu0 %v2502, 8
  %v2563 = vpop.permute.xlu0 %2562
  %2564 = vrot.lane.b32.xlu0 %v2503, 8
  %v2565 = vpop.permute.xlu0 %2564
  %2566 = vrot.lane.b32.xlu0 %v2504, 8
  %v2567 = vpop.permute.xlu0 %2566
  %2568 = vrot.lane.b32.xlu0 %v2505, 8
  %v2569 = vpop.permute.xlu0 %2568
  %2570 = vrot.lane.b32.xlu0 %v2506, 8
  %v2571 = vpop.permute.xlu0 %2570
  %2572 = vrot.lane.b32.xlu0 %v2507, 8
  %v2573 = vpop.permute.xlu0 %2572
  %2574 = vrot.lane.b32.xlu0 %v2508, 8
  %v2575 = vpop.permute.xlu0 %2574
  %2576 = vrot.lane.b32.xlu0 %v2509, 8
  %v2577 = vpop.permute.xlu0 %2576
  %2578 = vrot.lane.b32.xlu0 %v2510, 8
  %v2579 = vpop.permute.xlu0 %2578
  %2580 = vrot.lane.b32.xlu0 %v2511, 8
  %v2581 = vpop.permute.xlu0 %2580
  %2582 = vrot.lane.b32.xlu0 %v2512, 8
  %v2583 = vpop.permute.xlu0 %2582
  %2584 = vrot.lane.b32.xlu0 %v2513, 8
  %v2585 = vpop.permute.xlu0 %2584
  %vm2622 = vcmask 72768
  %2623 = vst.msk [vmem:[#allocation2] sm:$0xff] %vm2622, %v2515
  %2624 = vst.msk [vmem:[#allocation2 + $0x8] sm:$0xff] %vm2622, %v2517
  %2625 = vst.msk [vmem:[#allocation2 + $0x10] sm:$0xff] %vm2622, %v2519
  %2626 = vst.msk [vmem:[#allocation2 + $0x18] sm:$0xff] %vm2622, %v2521
  %2627 = vst.msk [vmem:[#allocation2 + $0x20] sm:$0xff] %vm2622, %v2523
  %2628 = vst.msk [vmem:[#allocation2 + $0x28] sm:$0xff] %vm2622, %v2525
  %2629 = vst.msk [vmem:[#allocation2 + $0x30] sm:$0xff] %vm2622, %v2527
  %2630 = vst.msk [vmem:[#allocation2 + $0x38] sm:$0xff] %vm2622, %v2529
  %2631 = vst.msk [vmem:[#allocation2 + $0x40] sm:$0xff] %vm2622, %v2531
  %2632 = vst.msk [vmem:[#allocation2 + $0x48] sm:$0xff] %vm2622, %v2533
  %2633 = vst.msk [vmem:[#allocation2 + $0x50] sm:$0xff] %vm2622, %v2535
  %2634 = vst.msk [vmem:[#allocation2 + $0x58] sm:$0xff] %vm2622, %v2537
  %2635 = vst.msk [vmem:[#allocation2 + $0x60] sm:$0xff] %vm2622, %v2539
  %2636 = vst.msk [vmem:[#allocation2 + $0x68] sm:$0xff] %vm2622, %v2541
  %2637 = vst.msk [vmem:[#allocation2 + $0x70] sm:$0xff] %vm2622, %v2543
  %2638 = vst.msk [vmem:[#allocation2 + $0x78] sm:$0xff] %vm2622, %v2545
  %2639 = vst.msk [vmem:[#allocation2 + $0x80] sm:$0xff] %vm2622, %v2547
  %2640 = vst.msk [vmem:[#allocation2 + $0x88] sm:$0xff] %vm2622, %v2549
  %2641 = vst.msk [vmem:[#allocation2 + $0x90] sm:$0xff] %vm2622, %v2551
  %2642 = vst.msk [vmem:[#allocation2 + $0x98] sm:$0xff] %vm2622, %v2553
  %2643 = vst.msk [vmem:[#allocation2 + $0xa0] sm:$0xff] %vm2622, %v2555
  %2644 = vst.msk [vmem:[#allocation2 + $0xa8] sm:$0xff] %vm2622, %v2557
  %2645 = vst.msk [vmem:[#allocation2 + $0xb0] sm:$0xff] %vm2622, %v2559
  %2646 = vst.msk [vmem:[#allocation2 + $0xb8] sm:$0xff] %vm2622, %v2561
  %2647 = vst.msk [vmem:[#allocation2 + $0xc0] sm:$0xff] %vm2622, %v2563
  %2648 = vst.msk [vmem:[#allocation2 + $0xc8] sm:$0xff] %vm2622, %v2565
  %2649 = vst.msk [vmem:[#allocation2 + $0xd0] sm:$0xff] %vm2622, %v2567
  %2650 = vst.msk [vmem:[#allocation2 + $0xd8] sm:$0xff] %vm2622, %v2569
  %2651 = vst.msk [vmem:[#allocation2 + $0xe0] sm:$0xff] %vm2622, %v2571
  %2652 = vst.msk [vmem:[#allocation2 + $0xe8] sm:$0xff] %vm2622, %v2573
  %2653 = vst.msk [vmem:[#allocation2 + $0xf0] sm:$0xff] %vm2622, %v2575
  %2654 = vst.msk [vmem:[#allocation2 + $0xf8] sm:$0xff] %vm2622, %v2577
  %2655 = vst.msk [vmem:[#allocation2 + $0x100] sm:$0xff] %vm2622, %v2579
  %2656 = vst.msk [vmem:[#allocation2 + $0x108] sm:$0xff] %vm2622, %v2581
  %2657 = vst.msk [vmem:[#allocation2 + $0x110] sm:$0xff] %vm2622, %v2583
  %2658 = vst.msk [vmem:[#allocation2 + $0x118] sm:$0xff] %vm2622, %v2585
  %v2659 = vld [vmem:[%s1454 + $0x4] sm:$0xff]
  %v2660 = vld [vmem:[%s1454 + $0xc] sm:$0xf]
  %v2661 = vld [vmem:[%s1454 + $0x14] sm:$0xff]
  %v2662 = vld [vmem:[%s1454 + $0x1c] sm:$0xf]
  %v2663 = vld [vmem:[%s1454 + $0x24] sm:$0xff]
  %v2664 = vld [vmem:[%s1454 + $0x2c] sm:$0xf]
  %v2665 = vld [vmem:[%s1454 + $0x34] sm:$0xff]
  %v2666 = vld [vmem:[%s1454 + $0x3c] sm:$0xf]
  %v2667 = vld [vmem:[%s1454 + $0x44] sm:$0xff]
  %v2668 = vld [vmem:[%s1454 + $0x4c] sm:$0xf]
  %v2669 = vld [vmem:[%s1454 + $0x54] sm:$0xff]
  %v2670 = vld [vmem:[%s1454 + $0x5c] sm:$0xf]
  %v2671 = vld [vmem:[%s1454 + $0x64] sm:$0xff]
  %v2672 = vld [vmem:[%s1454 + $0x6c] sm:$0xf]
  %v2673 = vld [vmem:[%s1454 + $0x74] sm:$0xff]
  %v2674 = vld [vmem:[%s1454 + $0x7c] sm:$0xf]
  %v2675 = vld [vmem:[%s1454 + $0x84] sm:$0xff]
  %v2676 = vld [vmem:[%s1454 + $0x8c] sm:$0xf]
  %v2677 = vld [vmem:[%s1454 + $0x94] sm:$0xff]
  %v2678 = vld [vmem:[%s1454 + $0x9c] sm:$0xf]
  %v2679 = vld [vmem:[%s1454 + $0xa4] sm:$0xff]
  %v2680 = vld [vmem:[%s1454 + $0xac] sm:$0xf]
  %v2681 = vld [vmem:[%s1454 + $0xb4] sm:$0xff]
  %v2682 = vld [vmem:[%s1454 + $0xbc] sm:$0xf]
  %v2683 = vld [vmem:[%s1454 + $0x104] sm:$0xff]
  %v2684 = vld [vmem:[%s1454 + $0x10c] sm:$0xf]
  %v2685 = vld [vmem:[%s1454 + $0x114] sm:$0xff]
  %v2686 = vld [vmem:[%s1454 + $0x11c] sm:$0xf]
  %v2687 = vld [vmem:[%s1454 + $0x124] sm:$0xff]
  %v2688 = vld [vmem:[%s1454 + $0x12c] sm:$0xf]
  %v2689 = vld [vmem:[%s1454 + $0x134] sm:$0xff]
  %v2690 = vld [vmem:[%s1454 + $0x13c] sm:$0xf]
  %v2691 = vld [vmem:[%s1454 + $0x144] sm:$0xff]
  %v2692 = vld [vmem:[%s1454 + $0x14c] sm:$0xf]
  %v2693 = vld [vmem:[%s1454 + $0x154] sm:$0xff]
  %v2694 = vld [vmem:[%s1454 + $0x15c] sm:$0xf]
  %v2695 = vld [vmem:[%s1454 + $0x164] sm:$0xff]
  %v2696 = vld [vmem:[%s1454 + $0x16c] sm:$0xf]
  %v2697 = vld [vmem:[%s1454 + $0x174] sm:$0xff]
  %v2698 = vld [vmem:[%s1454 + $0x17c] sm:$0xf]
  %v2699 = vld [vmem:[%s1454 + $0x184] sm:$0xff]
  %v2700 = vld [vmem:[%s1454 + $0x18c] sm:$0xf]
  %v2701 = vld [vmem:[%s1454 + $0x194] sm:$0xff]
  %v2702 = vld [vmem:[%s1454 + $0x19c] sm:$0xf]
  %v2703 = vld [vmem:[%s1454 + $0x1a4] sm:$0xff]
  %v2704 = vld [vmem:[%s1454 + $0x1ac] sm:$0xf]
  %v2705 = vld [vmem:[%s1454 + $0x1b4] sm:$0xff]
  %v2706 = vld [vmem:[%s1454 + $0x1bc] sm:$0xf]
  %v2755 = vcombine.high %v2659, %v2659
  %v2756 = vcombine.high %v2661, %v2661
  %v2757 = vcombine.high %v2663, %v2663
  %v2758 = vcombine.high %v2665, %v2665
  %v2759 = vcombine.high %v2667, %v2667
  %v2760 = vcombine.high %v2669, %v2669
  %v2761 = vcombine.high %v2671, %v2671
  %v2762 = vcombine.high %v2673, %v2673
  %v2763 = vcombine.high %v2675, %v2675
  %v2764 = vcombine.high %v2677, %v2677
  %v2765 = vcombine.high %v2679, %v2679
  %v2766 = vcombine.high %v2681, %v2681
  %v2767 = vcombine.high %v2683, %v2683
  %v2768 = vcombine.high %v2685, %v2685
  %v2769 = vcombine.high %v2687, %v2687
  %v2770 = vcombine.high %v2689, %v2689
  %v2771 = vcombine.high %v2691, %v2691
  %v2772 = vcombine.high %v2693, %v2693
  %v2773 = vcombine.high %v2695, %v2695
  %v2774 = vcombine.high %v2697, %v2697
  %v2775 = vcombine.high %v2699, %v2699
  %v2776 = vcombine.high %v2701, %v2701
  %v2777 = vcombine.high %v2703, %v2703
  %v2778 = vcombine.high %v2705, %v2705
  %v2779 = vcombine.low %v2659, %v2755
  %v2780 = vcombine.low %v2660, %v2661
  %v2781 = vcombine.low %v2756, %v2662
  %v2782 = vcombine.low %v2663, %v2757
  %v2783 = vcombine.low %v2664, %v2665
  %v2784 = vcombine.low %v2758, %v2666
  %v2785 = vcombine.low %v2667, %v2759
  %v2786 = vcombine.low %v2668, %v2669
  %v2787 = vcombine.low %v2760, %v2670
  %v2788 = vcombine.low %v2671, %v2761
  %v2789 = vcombine.low %v2672, %v2673
  %v2790 = vcombine.low %v2762, %v2674
  %v2791 = vcombine.low %v2675, %v2763
  %v2792 = vcombine.low %v2676, %v2677
  %v2793 = vcombine.low %v2764, %v2678
  %v2794 = vcombine.low %v2679, %v2765
  %v2795 = vcombine.low %v2680, %v2681
  %v2796 = vcombine.low %v2766, %v2682
  %v2797 = vcombine.low %v2683, %v2767
  %v2798 = vcombine.low %v2684, %v2685
  %v2799 = vcombine.low %v2768, %v2686
  %v2800 = vcombine.low %v2687, %v2769
  %v2801 = vcombine.low %v2688, %v2689
  %v2802 = vcombine.low %v2770, %v2690
  %v2803 = vcombine.low %v2691, %v2771
  %v2804 = vcombine.low %v2692, %v2693
  %v2805 = vcombine.low %v2772, %v2694
  %v2806 = vcombine.low %v2695, %v2773
  %v2807 = vcombine.low %v2696, %v2697
  %v2808 = vcombine.low %v2774, %v2698
  %v2809 = vcombine.low %v2699, %v2775
  %v2810 = vcombine.low %v2700, %v2701
  %v2811 = vcombine.low %v2776, %v2702
  %v2812 = vcombine.low %v2703, %v2777
  %v2813 = vcombine.low %v2704, %v2705
  %v2814 = vcombine.low %v2778, %v2706
  %2815 = vrot.lane.b32.xlu0 %v2779, 9
  %v2816 = vpop.permute.xlu0 %2815
  %2817 = vrot.lane.b32.xlu0 %v2780, 9
  %v2818 = vpop.permute.xlu0 %2817
  %2819 = vrot.lane.b32.xlu0 %v2781, 9
  %v2820 = vpop.permute.xlu0 %2819
  %2821 = vrot.lane.b32.xlu0 %v2782, 9
  %v2822 = vpop.permute.xlu0 %2821
  %2823 = vrot.lane.b32.xlu0 %v2783, 9
  %v2824 = vpop.permute.xlu0 %2823
  %2825 = vrot.lane.b32.xlu0 %v2784, 9
  %v2826 = vpop.permute.xlu0 %2825
  %2827 = vrot.lane.b32.xlu0 %v2785, 9
  %v2828 = vpop.permute.xlu0 %2827
  %2829 = vrot.lane.b32.xlu0 %v2786, 9
  %v2830 = vpop.permute.xlu0 %2829
  %2831 = vrot.lane.b32.xlu0 %v2787, 9
  %v2832 = vpop.permute.xlu0 %2831
  %2833 = vrot.lane.b32.xlu0 %v2788, 9
  %v2834 = vpop.permute.xlu0 %2833
  %2835 = vrot.lane.b32.xlu0 %v2789, 9
  %v2836 = vpop.permute.xlu0 %2835
  %2837 = vrot.lane.b32.xlu0 %v2790, 9
  %v2838 = vpop.permute.xlu0 %2837
  %2839 = vrot.lane.b32.xlu0 %v2791, 9
  %v2840 = vpop.permute.xlu0 %2839
  %2841 = vrot.lane.b32.xlu0 %v2792, 9
  %v2842 = vpop.permute.xlu0 %2841
  %2843 = vrot.lane.b32.xlu0 %v2793, 9
  %v2844 = vpop.permute.xlu0 %2843
  %2845 = vrot.lane.b32.xlu0 %v2794, 9
  %v2846 = vpop.permute.xlu0 %2845
  %2847 = vrot.lane.b32.xlu0 %v2795, 9
  %v2848 = vpop.permute.xlu0 %2847
  %2849 = vrot.lane.b32.xlu0 %v2796, 9
  %v2850 = vpop.permute.xlu0 %2849
  %2851 = vrot.lane.b32.xlu0 %v2797, 9
  %v2852 = vpop.permute.xlu0 %2851
  %2853 = vrot.lane.b32.xlu0 %v2798, 9
  %v2854 = vpop.permute.xlu0 %2853
  %2855 = vrot.lane.b32.xlu0 %v2799, 9
  %v2856 = vpop.permute.xlu0 %2855
  %2857 = vrot.lane.b32.xlu0 %v2800, 9
  %v2858 = vpop.permute.xlu0 %2857
  %2859 = vrot.lane.b32.xlu0 %v2801, 9
  %v2860 = vpop.permute.xlu0 %2859
  %2861 = vrot.lane.b32.xlu0 %v2802, 9
  %v2862 = vpop.permute.xlu0 %2861
  %2863 = vrot.lane.b32.xlu0 %v2803, 9
  %v2864 = vpop.permute.xlu0 %2863
  %2865 = vrot.lane.b32.xlu0 %v2804, 9
  %v2866 = vpop.permute.xlu0 %2865
  %2867 = vrot.lane.b32.xlu0 %v2805, 9
  %v2868 = vpop.permute.xlu0 %2867
  %2869 = vrot.lane.b32.xlu0 %v2806, 9
  %v2870 = vpop.permute.xlu0 %2869
  %2871 = vrot.lane.b32.xlu0 %v2807, 9
  %v2872 = vpop.permute.xlu0 %2871
  %2873 = vrot.lane.b32.xlu0 %v2808, 9
  %v2874 = vpop.permute.xlu0 %2873
  %2875 = vrot.lane.b32.xlu0 %v2809, 9
  %v2876 = vpop.permute.xlu0 %2875
  %2877 = vrot.lane.b32.xlu0 %v2810, 9
  %v2878 = vpop.permute.xlu0 %2877
  %2879 = vrot.lane.b32.xlu0 %v2811, 9
  %v2880 = vpop.permute.xlu0 %2879
  %2881 = vrot.lane.b32.xlu0 %v2812, 9
  %v2882 = vpop.permute.xlu0 %2881
  %2883 = vrot.lane.b32.xlu0 %v2813, 9
  %v2884 = vpop.permute.xlu0 %2883
  %2885 = vrot.lane.b32.xlu0 %v2814, 9
  %v2886 = vpop.permute.xlu0 %2885
  %vm2923 = vcmask 80968
  %2924 = vst.msk [vmem:[#allocation2] sm:$0xff] %vm2923, %v2816
  %2925 = vst.msk [vmem:[#allocation2 + $0x8] sm:$0xff] %vm2923, %v2818
  %2926 = vst.msk [vmem:[#allocation2 + $0x10] sm:$0xff] %vm2923, %v2820
  %2927 = vst.msk [vmem:[#allocation2 + $0x18] sm:$0xff] %vm2923, %v2822
  %2928 = vst.msk [vmem:[#allocation2 + $0x20] sm:$0xff] %vm2923, %v2824
  %2929 = vst.msk [vmem:[#allocation2 + $0x28] sm:$0xff] %vm2923, %v2826
  %2930 = vst.msk [vmem:[#allocation2 + $0x30] sm:$0xff] %vm2923, %v2828
  %2931 = vst.msk [vmem:[#allocation2 + $0x38] sm:$0xff] %vm2923, %v2830
  %2932 = vst.msk [vmem:[#allocation2 + $0x40] sm:$0xff] %vm2923, %v2832
  %2933 = vst.msk [vmem:[#allocation2 + $0x48] sm:$0xff] %vm2923, %v2834
  %2934 = vst.msk [vmem:[#allocation2 + $0x50] sm:$0xff] %vm2923, %v2836
  %2935 = vst.msk [vmem:[#allocation2 + $0x58] sm:$0xff] %vm2923, %v2838
  %2936 = vst.msk [vmem:[#allocation2 + $0x60] sm:$0xff] %vm2923, %v2840
  %2937 = vst.msk [vmem:[#allocation2 + $0x68] sm:$0xff] %vm2923, %v2842
  %2938 = vst.msk [vmem:[#allocation2 + $0x70] sm:$0xff] %vm2923, %v2844
  %2939 = vst.msk [vmem:[#allocation2 + $0x78] sm:$0xff] %vm2923, %v2846
  %2940 = vst.msk [vmem:[#allocation2 + $0x80] sm:$0xff] %vm2923, %v2848
  %2941 = vst.msk [vmem:[#allocation2 + $0x88] sm:$0xff] %vm2923, %v2850
  %2942 = vst.msk [vmem:[#allocation2 + $0x90] sm:$0xff] %vm2923, %v2852
  %2943 = vst.msk [vmem:[#allocation2 + $0x98] sm:$0xff] %vm2923, %v2854
  %2944 = vst.msk [vmem:[#allocation2 + $0xa0] sm:$0xff] %vm2923, %v2856
  %2945 = vst.msk [vmem:[#allocation2 + $0xa8] sm:$0xff] %vm2923, %v2858
  %2946 = vst.msk [vmem:[#allocation2 + $0xb0] sm:$0xff] %vm2923, %v2860
  %2947 = vst.msk [vmem:[#allocation2 + $0xb8] sm:$0xff] %vm2923, %v2862
  %2948 = vst.msk [vmem:[#allocation2 + $0xc0] sm:$0xff] %vm2923, %v2864
  %2949 = vst.msk [vmem:[#allocation2 + $0xc8] sm:$0xff] %vm2923, %v2866
  %2950 = vst.msk [vmem:[#allocation2 + $0xd0] sm:$0xff] %vm2923, %v2868
  %2951 = vst.msk [vmem:[#allocation2 + $0xd8] sm:$0xff] %vm2923, %v2870
  %2952 = vst.msk [vmem:[#allocation2 + $0xe0] sm:$0xff] %vm2923, %v2872
  %2953 = vst.msk [vmem:[#allocation2 + $0xe8] sm:$0xff] %vm2923, %v2874
  %2954 = vst.msk [vmem:[#allocation2 + $0xf0] sm:$0xff] %vm2923, %v2876
  %2955 = vst.msk [vmem:[#allocation2 + $0xf8] sm:$0xff] %vm2923, %v2878
  %2956 = vst.msk [vmem:[#allocation2 + $0x100] sm:$0xff] %vm2923, %v2880
  %2957 = vst.msk [vmem:[#allocation2 + $0x108] sm:$0xff] %vm2923, %v2882
  %2958 = vst.msk [vmem:[#allocation2 + $0x110] sm:$0xff] %vm2923, %v2884
  %2959 = vst.msk [vmem:[#allocation2 + $0x118] sm:$0xff] %vm2923, %v2886
  %s2960 = scalar_lea.vmem %s0, 32
  %v2961 = vld [vmem:[%s2960] sm:$0xff]
  %v2962 = vld [vmem:[%s2960 + $0x8] sm:$0xf]
  %v2963 = vld [vmem:[%s2960 + $0x10] sm:$0xff]
  %v2964 = vld [vmem:[%s2960 + $0x18] sm:$0xf]
  %v2965 = vld [vmem:[%s2960 + $0x20] sm:$0xff]
  %v2966 = vld [vmem:[%s2960 + $0x28] sm:$0xf]
  %v2967 = vld [vmem:[%s2960 + $0x30] sm:$0xff]
  %v2968 = vld [vmem:[%s2960 + $0x38] sm:$0xf]
  %v2969 = vld [vmem:[%s2960 + $0x40] sm:$0xff]
  %v2970 = vld [vmem:[%s2960 + $0x48] sm:$0xf]
  %v2971 = vld [vmem:[%s2960 + $0x50] sm:$0xff]
  %v2972 = vld [vmem:[%s2960 + $0x58] sm:$0xf]
  %v2973 = vld [vmem:[%s2960 + $0x60] sm:$0xff]
  %v2974 = vld [vmem:[%s2960 + $0x68] sm:$0xf]
  %v2975 = vld [vmem:[%s2960 + $0x70] sm:$0xff]
  %v2976 = vld [vmem:[%s2960 + $0x78] sm:$0xf]
  %v2977 = vld [vmem:[%s2960 + $0x80] sm:$0xff]
  %v2978 = vld [vmem:[%s2960 + $0x88] sm:$0xf]
  %v2979 = vld [vmem:[%s2960 + $0x90] sm:$0xff]
  %v2980 = vld [vmem:[%s2960 + $0x98] sm:$0xf]
  %v2981 = vld [vmem:[%s2960 + $0xa0] sm:$0xff]
  %v2982 = vld [vmem:[%s2960 + $0xa8] sm:$0xf]
  %v2983 = vld [vmem:[%s2960 + $0xb0] sm:$0xff]
  %v2984 = vld [vmem:[%s2960 + $0xb8] sm:$0xf]
  %v2985 = vld [vmem:[%s2960 + $0x100] sm:$0xff]
  %v2986 = vld [vmem:[%s2960 + $0x108] sm:$0xf]
  %v2987 = vld [vmem:[%s2960 + $0x110] sm:$0xff]
  %v2988 = vld [vmem:[%s2960 + $0x118] sm:$0xf]
  %v2989 = vld [vmem:[%s2960 + $0x120] sm:$0xff]
  %v2990 = vld [vmem:[%s2960 + $0x128] sm:$0xf]
  %v2991 = vld [vmem:[%s2960 + $0x130] sm:$0xff]
  %v2992 = vld [vmem:[%s2960 + $0x138] sm:$0xf]
  %v2993 = vld [vmem:[%s2960 + $0x140] sm:$0xff]
  %v2994 = vld [vmem:[%s2960 + $0x148] sm:$0xf]
  %v2995 = vld [vmem:[%s2960 + $0x150] sm:$0xff]
  %v2996 = vld [vmem:[%s2960 + $0x158] sm:$0xf]
  %v2997 = vld [vmem:[%s2960 + $0x160] sm:$0xff]
  %v2998 = vld [vmem:[%s2960 + $0x168] sm:$0xf]
  %v2999 = vld [vmem:[%s2960 + $0x170] sm:$0xff]
  %v3000 = vld [vmem:[%s2960 + $0x178] sm:$0xf]
  %v3001 = vld [vmem:[%s2960 + $0x180] sm:$0xff]
  %v3002 = vld [vmem:[%s2960 + $0x188] sm:$0xf]
  %v3003 = vld [vmem:[%s2960 + $0x190] sm:$0xff]
  %v3004 = vld [vmem:[%s2960 + $0x198] sm:$0xf]
  %v3005 = vld [vmem:[%s2960 + $0x1a0] sm:$0xff]
  %v3006 = vld [vmem:[%s2960 + $0x1a8] sm:$0xf]
  %v3007 = vld [vmem:[%s2960 + $0x1b0] sm:$0xff]
  %v3008 = vld [vmem:[%s2960 + $0x1b8] sm:$0xf]
  %v3057 = vcombine.high %v2961, %v2961
  %v3058 = vcombine.high %v2963, %v2963
  %v3059 = vcombine.high %v2965, %v2965
  %v3060 = vcombine.high %v2967, %v2967
  %v3061 = vcombine.high %v2969, %v2969
  %v3062 = vcombine.high %v2971, %v2971
  %v3063 = vcombine.high %v2973, %v2973
  %v3064 = vcombine.high %v2975, %v2975
  %v3065 = vcombine.high %v2977, %v2977
  %v3066 = vcombine.high %v2979, %v2979
  %v3067 = vcombine.high %v2981, %v2981
  %v3068 = vcombine.high %v2983, %v2983
  %v3069 = vcombine.high %v2985, %v2985
  %v3070 = vcombine.high %v2987, %v2987
  %v3071 = vcombine.high %v2989, %v2989
  %v3072 = vcombine.high %v2991, %v2991
  %v3073 = vcombine.high %v2993, %v2993
  %v3074 = vcombine.high %v2995, %v2995
  %v3075 = vcombine.high %v2997, %v2997
  %v3076 = vcombine.high %v2999, %v2999
  %v3077 = vcombine.high %v3001, %v3001
  %v3078 = vcombine.high %v3003, %v3003
  %v3079 = vcombine.high %v3005, %v3005
  %v3080 = vcombine.high %v3007, %v3007
  %v3081 = vcombine.low %v2961, %v3057
  %v3082 = vcombine.low %v2962, %v2963
  %v3083 = vcombine.low %v3058, %v2964
  %v3084 = vcombine.low %v2965, %v3059
  %v3085 = vcombine.low %v2966, %v2967
  %v3086 = vcombine.low %v3060, %v2968
  %v3087 = vcombine.low %v2969, %v3061
  %v3088 = vcombine.low %v2970, %v2971
  %v3089 = vcombine.low %v3062, %v2972
  %v3090 = vcombine.low %v2973, %v3063
  %v3091 = vcombine.low %v2974, %v2975
  %v3092 = vcombine.low %v3064, %v2976
  %v3093 = vcombine.low %v2977, %v3065
  %v3094 = vcombine.low %v2978, %v2979
  %v3095 = vcombine.low %v3066, %v2980
  %v3096 = vcombine.low %v2981, %v3067
  %v3097 = vcombine.low %v2982, %v2983
  %v3098 = vcombine.low %v3068, %v2984
  %v3099 = vcombine.low %v2985, %v3069
  %v3100 = vcombine.low %v2986, %v2987
  %v3101 = vcombine.low %v3070, %v2988
  %v3102 = vcombine.low %v2989, %v3071
  %v3103 = vcombine.low %v2990, %v2991
  %v3104 = vcombine.low %v3072, %v2992
  %v3105 = vcombine.low %v2993, %v3073
  %v3106 = vcombine.low %v2994, %v2995
  %v3107 = vcombine.low %v3074, %v2996
  %v3108 = vcombine.low %v2997, %v3075
  %v3109 = vcombine.low %v2998, %v2999
  %v3110 = vcombine.low %v3076, %v3000
  %v3111 = vcombine.low %v3001, %v3077
  %v3112 = vcombine.low %v3002, %v3003
  %v3113 = vcombine.low %v3078, %v3004
  %v3114 = vcombine.low %v3005, %v3079
  %v3115 = vcombine.low %v3006, %v3007
  %v3116 = vcombine.low %v3080, %v3008
  %3117 = vrot.lane.b32.xlu0 %v3081, 10
  %v3118 = vpop.permute.xlu0 %3117
  %3119 = vrot.lane.b32.xlu0 %v3082, 10
  %v3120 = vpop.permute.xlu0 %3119
  %3121 = vrot.lane.b32.xlu0 %v3083, 10
  %v3122 = vpop.permute.xlu0 %3121
  %3123 = vrot.lane.b32.xlu0 %v3084, 10
  %v3124 = vpop.permute.xlu0 %3123
  %3125 = vrot.lane.b32.xlu0 %v3085, 10
  %v3126 = vpop.permute.xlu0 %3125
  %3127 = vrot.lane.b32.xlu0 %v3086, 10
  %v3128 = vpop.permute.xlu0 %3127
  %3129 = vrot.lane.b32.xlu0 %v3087, 10
  %v3130 = vpop.permute.xlu0 %3129
  %3131 = vrot.lane.b32.xlu0 %v3088, 10
  %v3132 = vpop.permute.xlu0 %3131
  %3133 = vrot.lane.b32.xlu0 %v3089, 10
  %v3134 = vpop.permute.xlu0 %3133
  %3135 = vrot.lane.b32.xlu0 %v3090, 10
  %v3136 = vpop.permute.xlu0 %3135
  %3137 = vrot.lane.b32.xlu0 %v3091, 10
  %v3138 = vpop.permute.xlu0 %3137
  %3139 = vrot.lane.b32.xlu0 %v3092, 10
  %v3140 = vpop.permute.xlu0 %3139
  %3141 = vrot.lane.b32.xlu0 %v3093, 10
  %v3142 = vpop.permute.xlu0 %3141
  %3143 = vrot.lane.b32.xlu0 %v3094, 10
  %v3144 = vpop.permute.xlu0 %3143
  %3145 = vrot.lane.b32.xlu0 %v3095, 10
  %v3146 = vpop.permute.xlu0 %3145
  %3147 = vrot.lane.b32.xlu0 %v3096, 10
  %v3148 = vpop.permute.xlu0 %3147
  %3149 = vrot.lane.b32.xlu0 %v3097, 10
  %v3150 = vpop.permute.xlu0 %3149
  %3151 = vrot.lane.b32.xlu0 %v3098, 10
  %v3152 = vpop.permute.xlu0 %3151
  %3153 = vrot.lane.b32.xlu0 %v3099, 10
  %v3154 = vpop.permute.xlu0 %3153
  %3155 = vrot.lane.b32.xlu0 %v3100, 10
  %v3156 = vpop.permute.xlu0 %3155
  %3157 = vrot.lane.b32.xlu0 %v3101, 10
  %v3158 = vpop.permute.xlu0 %3157
  %3159 = vrot.lane.b32.xlu0 %v3102, 10
  %v3160 = vpop.permute.xlu0 %3159
  %3161 = vrot.lane.b32.xlu0 %v3103, 10
  %v3162 = vpop.permute.xlu0 %3161
  %3163 = vrot.lane.b32.xlu0 %v3104, 10
  %v3164 = vpop.permute.xlu0 %3163
  %3165 = vrot.lane.b32.xlu0 %v3105, 10
  %v3166 = vpop.permute.xlu0 %3165
  %3167 = vrot.lane.b32.xlu0 %v3106, 10
  %v3168 = vpop.permute.xlu0 %3167
  %3169 = vrot.lane.b32.xlu0 %v3107, 10
  %v3170 = vpop.permute.xlu0 %3169
  %3171 = vrot.lane.b32.xlu0 %v3108, 10
  %v3172 = vpop.permute.xlu0 %3171
  %3173 = vrot.lane.b32.xlu0 %v3109, 10
  %v3174 = vpop.permute.xlu0 %3173
  %3175 = vrot.lane.b32.xlu0 %v3110, 10
  %v3176 = vpop.permute.xlu0 %3175
  %3177 = vrot.lane.b32.xlu0 %v3111, 10
  %v3178 = vpop.permute.xlu0 %3177
  %3179 = vrot.lane.b32.xlu0 %v3112, 10
  %v3180 = vpop.permute.xlu0 %3179
  %3181 = vrot.lane.b32.xlu0 %v3113, 10
  %v3182 = vpop.permute.xlu0 %3181
  %3183 = vrot.lane.b32.xlu0 %v3114, 10
  %v3184 = vpop.permute.xlu0 %3183
  %3185 = vrot.lane.b32.xlu0 %v3115, 10
  %v3186 = vpop.permute.xlu0 %3185
  %3187 = vrot.lane.b32.xlu0 %v3116, 10
  %v3188 = vpop.permute.xlu0 %3187
  %vm3225 = vcmask 89168
  %3226 = vst.msk [vmem:[#allocation2] sm:$0xff] %vm3225, %v3118
  %3227 = vst.msk [vmem:[#allocation2 + $0x8] sm:$0xff] %vm3225, %v3120
  %3228 = vst.msk [vmem:[#allocation2 + $0x10] sm:$0xff] %vm3225, %v3122
  %3229 = vst.msk [vmem:[#allocation2 + $0x18] sm:$0xff] %vm3225, %v3124
  %3230 = vst.msk [vmem:[#allocation2 + $0x20] sm:$0xff] %vm3225, %v3126
  %3231 = vst.msk [vmem:[#allocation2 + $0x28] sm:$0xff] %vm3225, %v3128
  %3232 = vst.msk [vmem:[#allocation2 + $0x30] sm:$0xff] %vm3225, %v3130
  %3233 = vst.msk [vmem:[#allocation2 + $0x38] sm:$0xff] %vm3225, %v3132
  %3234 = vst.msk [vmem:[#allocation2 + $0x40] sm:$0xff] %vm3225, %v3134
  %3235 = vst.msk [vmem:[#allocation2 + $0x48] sm:$0xff] %vm3225, %v3136
  %3236 = vst.msk [vmem:[#allocation2 + $0x50] sm:$0xff] %vm3225, %v3138
  %3237 = vst.msk [vmem:[#allocation2 + $0x58] sm:$0xff] %vm3225, %v3140
  %3238 = vst.msk [vmem:[#allocation2 + $0x60] sm:$0xff] %vm3225, %v3142
  %3239 = vst.msk [vmem:[#allocation2 + $0x68] sm:$0xff] %vm3225, %v3144
  %3240 = vst.msk [vmem:[#allocation2 + $0x70] sm:$0xff] %vm3225, %v3146
  %3241 = vst.msk [vmem:[#allocation2 + $0x78] sm:$0xff] %vm3225, %v3148
  %3242 = vst.msk [vmem:[#allocation2 + $0x80] sm:$0xff] %vm3225, %v3150
  %3243 = vst.msk [vmem:[#allocation2 + $0x88] sm:$0xff] %vm3225, %v3152
  %3244 = vst.msk [vmem:[#allocation2 + $0x90] sm:$0xff] %vm3225, %v3154
  %3245 = vst.msk [vmem:[#allocation2 + $0x98] sm:$0xff] %vm3225, %v3156
  %3246 = vst.msk [vmem:[#allocation2 + $0xa0] sm:$0xff] %vm3225, %v3158
  %3247 = vst.msk [vmem:[#allocation2 + $0xa8] sm:$0xff] %vm3225, %v3160
  %3248 = vst.msk [vmem:[#allocation2 + $0xb0] sm:$0xff] %vm3225, %v3162
  %3249 = vst.msk [vmem:[#allocation2 + $0xb8] sm:$0xff] %vm3225, %v3164
  %3250 = vst.msk [vmem:[#allocation2 + $0xc0] sm:$0xff] %vm3225, %v3166
  %3251 = vst.msk [vmem:[#allocation2 + $0xc8] sm:$0xff] %vm3225, %v3168
  %3252 = vst.msk [vmem:[#allocation2 + $0xd0] sm:$0xff] %vm3225, %v3170
  %3253 = vst.msk [vmem:[#allocation2 + $0xd8] sm:$0xff] %vm3225, %v3172
  %3254 = vst.msk [vmem:[#allocation2 + $0xe0] sm:$0xff] %vm3225, %v3174
  %3255 = vst.msk [vmem:[#allocation2 + $0xe8] sm:$0xff] %vm3225, %v3176
  %3256 = vst.msk [vmem:[#allocation2 + $0xf0] sm:$0xff] %vm3225, %v3178
  %3257 = vst.msk [vmem:[#allocation2 + $0xf8] sm:$0xff] %vm3225, %v3180
  %3258 = vst.msk [vmem:[#allocation2 + $0x100] sm:$0xff] %vm3225, %v3182
  %3259 = vst.msk [vmem:[#allocation2 + $0x108] sm:$0xff] %vm3225, %v3184
  %3260 = vst.msk [vmem:[#allocation2 + $0x110] sm:$0xff] %vm3225, %v3186
  %3261 = vst.msk [vmem:[#allocation2 + $0x118] sm:$0xff] %vm3225, %v3188
  %v3262 = vld [vmem:[%s2960 + $0x1] sm:$0xff]
  %v3263 = vld [vmem:[%s2960 + $0x9] sm:$0xf]
  %v3264 = vld [vmem:[%s2960 + $0x11] sm:$0xff]
  %v3265 = vld [vmem:[%s2960 + $0x19] sm:$0xf]
  %v3266 = vld [vmem:[%s2960 + $0x21] sm:$0xff]
  %v3267 = vld [vmem:[%s2960 + $0x29] sm:$0xf]
  %v3268 = vld [vmem:[%s2960 + $0x31] sm:$0xff]
  %v3269 = vld [vmem:[%s2960 + $0x39] sm:$0xf]
  %v3270 = vld [vmem:[%s2960 + $0x41] sm:$0xff]
  %v3271 = vld [vmem:[%s2960 + $0x49] sm:$0xf]
  %v3272 = vld [vmem:[%s2960 + $0x51] sm:$0xff]
  %v3273 = vld [vmem:[%s2960 + $0x59] sm:$0xf]
  %v3274 = vld [vmem:[%s2960 + $0x61] sm:$0xff]
  %v3275 = vld [vmem:[%s2960 + $0x69] sm:$0xf]
  %v3276 = vld [vmem:[%s2960 + $0x71] sm:$0xff]
  %v3277 = vld [vmem:[%s2960 + $0x79] sm:$0xf]
  %v3278 = vld [vmem:[%s2960 + $0x81] sm:$0xff]
  %v3279 = vld [vmem:[%s2960 + $0x89] sm:$0xf]
  %v3280 = vld [vmem:[%s2960 + $0x91] sm:$0xff]
  %v3281 = vld [vmem:[%s2960 + $0x99] sm:$0xf]
  %v3282 = vld [vmem:[%s2960 + $0xa1] sm:$0xff]
  %v3283 = vld [vmem:[%s2960 + $0xa9] sm:$0xf]
  %v3284 = vld [vmem:[%s2960 + $0xb1] sm:$0xff]
  %v3285 = vld [vmem:[%s2960 + $0xb9] sm:$0xf]
  %v3286 = vld [vmem:[%s2960 + $0x101] sm:$0xff]
  %v3287 = vld [vmem:[%s2960 + $0x109] sm:$0xf]
  %v3288 = vld [vmem:[%s2960 + $0x111] sm:$0xff]
  %v3289 = vld [vmem:[%s2960 + $0x119] sm:$0xf]
  %v3290 = vld [vmem:[%s2960 + $0x121] sm:$0xff]
  %v3291 = vld [vmem:[%s2960 + $0x129] sm:$0xf]
  %v3292 = vld [vmem:[%s2960 + $0x131] sm:$0xff]
  %v3293 = vld [vmem:[%s2960 + $0x139] sm:$0xf]
  %v3294 = vld [vmem:[%s2960 + $0x141] sm:$0xff]
  %v3295 = vld [vmem:[%s2960 + $0x149] sm:$0xf]
  %v3296 = vld [vmem:[%s2960 + $0x151] sm:$0xff]
  %v3297 = vld [vmem:[%s2960 + $0x159] sm:$0xf]
  %v3298 = vld [vmem:[%s2960 + $0x161] sm:$0xff]
  %v3299 = vld [vmem:[%s2960 + $0x169] sm:$0xf]
  %v3300 = vld [vmem:[%s2960 + $0x171] sm:$0xff]
  %v3301 = vld [vmem:[%s2960 + $0x179] sm:$0xf]
  %v3302 = vld [vmem:[%s2960 + $0x181] sm:$0xff]
  %v3303 = vld [vmem:[%s2960 + $0x189] sm:$0xf]
  %v3304 = vld [vmem:[%s2960 + $0x191] sm:$0xff]
  %v3305 = vld [vmem:[%s2960 + $0x199] sm:$0xf]
  %v3306 = vld [vmem:[%s2960 + $0x1a1] sm:$0xff]
  %v3307 = vld [vmem:[%s2960 + $0x1a9] sm:$0xf]
  %v3308 = vld [vmem:[%s2960 + $0x1b1] sm:$0xff]
  %v3309 = vld [vmem:[%s2960 + $0x1b9] sm:$0xf]
  %v3358 = vcombine.high %v3262, %v3262
  %v3359 = vcombine.high %v3264, %v3264
  %v3360 = vcombine.high %v3266, %v3266
  %v3361 = vcombine.high %v3268, %v3268
  %v3362 = vcombine.high %v3270, %v3270
  %v3363 = vcombine.high %v3272, %v3272
  %v3364 = vcombine.high %v3274, %v3274
  %v3365 = vcombine.high %v3276, %v3276
  %v3366 = vcombine.high %v3278, %v3278
  %v3367 = vcombine.high %v3280, %v3280
  %v3368 = vcombine.high %v3282, %v3282
  %v3369 = vcombine.high %v3284, %v3284
  %v3370 = vcombine.high %v3286, %v3286
  %v3371 = vcombine.high %v3288, %v3288
  %v3372 = vcombine.high %v3290, %v3290
  %v3373 = vcombine.high %v3292, %v3292
  %v3374 = vcombine.high %v3294, %v3294
  %v3375 = vcombine.high %v3296, %v3296
  %v3376 = vcombine.high %v3298, %v3298
  %v3377 = vcombine.high %v3300, %v3300
  %v3378 = vcombine.high %v3302, %v3302
  %v3379 = vcombine.high %v3304, %v3304
  %v3380 = vcombine.high %v3306, %v3306
  %v3381 = vcombine.high %v3308, %v3308
  %v3382 = vcombine.low %v3262, %v3358
  %v3383 = vcombine.low %v3263, %v3264
  %v3384 = vcombine.low %v3359, %v3265
  %v3385 = vcombine.low %v3266, %v3360
  %v3386 = vcombine.low %v3267, %v3268
  %v3387 = vcombine.low %v3361, %v3269
  %v3388 = vcombine.low %v3270, %v3362
  %v3389 = vcombine.low %v3271, %v3272
  %v3390 = vcombine.low %v3363, %v3273
  %v3391 = vcombine.low %v3274, %v3364
  %v3392 = vcombine.low %v3275, %v3276
  %v3393 = vcombine.low %v3365, %v3277
  %v3394 = vcombine.low %v3278, %v3366
  %v3395 = vcombine.low %v3279, %v3280
  %v3396 = vcombine.low %v3367, %v3281
  %v3397 = vcombine.low %v3282, %v3368
  %v3398 = vcombine.low %v3283, %v3284
  %v3399 = vcombine.low %v3369, %v3285
  %v3400 = vcombine.low %v3286, %v3370
  %v3401 = vcombine.low %v3287, %v3288
  %v3402 = vcombine.low %v3371, %v3289
  %v3403 = vcombine.low %v3290, %v3372
  %v3404 = vcombine.low %v3291, %v3292
  %v3405 = vcombine.low %v3373, %v3293
  %v3406 = vcombine.low %v3294, %v3374
  %v3407 = vcombine.low %v3295, %v3296
  %v3408 = vcombine.low %v3375, %v3297
  %v3409 = vcombine.low %v3298, %v3376
  %v3410 = vcombine.low %v3299, %v3300
  %v3411 = vcombine.low %v3377, %v3301
  %v3412 = vcombine.low %v3302, %v3378
  %v3413 = vcombine.low %v3303, %v3304
  %v3414 = vcombine.low %v3379, %v3305
  %v3415 = vcombine.low %v3306, %v3380
  %v3416 = vcombine.low %v3307, %v3308
  %v3417 = vcombine.low %v3381, %v3309
  %3418 = vrot.lane.b32.xlu0 %v3382, 11
  %v3419 = vpop.permute.xlu0 %3418
  %3420 = vrot.lane.b32.xlu0 %v3383, 11
  %v3421 = vpop.permute.xlu0 %3420
  %3422 = vrot.lane.b32.xlu0 %v3384, 11
  %v3423 = vpop.permute.xlu0 %3422
  %3424 = vrot.lane.b32.xlu0 %v3385, 11
  %v3425 = vpop.permute.xlu0 %3424
  %3426 = vrot.lane.b32.xlu0 %v3386, 11
  %v3427 = vpop.permute.xlu0 %3426
  %3428 = vrot.lane.b32.xlu0 %v3387, 11
  %v3429 = vpop.permute.xlu0 %3428
  %3430 = vrot.lane.b32.xlu0 %v3388, 11
  %v3431 = vpop.permute.xlu0 %3430
  %3432 = vrot.lane.b32.xlu0 %v3389, 11
  %v3433 = vpop.permute.xlu0 %3432
  %3434 = vrot.lane.b32.xlu0 %v3390, 11
  %v3435 = vpop.permute.xlu0 %3434
  %3436 = vrot.lane.b32.xlu0 %v3391, 11
  %v3437 = vpop.permute.xlu0 %3436
  %3438 = vrot.lane.b32.xlu0 %v3392, 11
  %v3439 = vpop.permute.xlu0 %3438
  %3440 = vrot.lane.b32.xlu0 %v3393, 11
  %v3441 = vpop.permute.xlu0 %3440
  %3442 = vrot.lane.b32.xlu0 %v3394, 11
  %v3443 = vpop.permute.xlu0 %3442
  %3444 = vrot.lane.b32.xlu0 %v3395, 11
  %v3445 = vpop.permute.xlu0 %3444
  %3446 = vrot.lane.b32.xlu0 %v3396, 11
  %v3447 = vpop.permute.xlu0 %3446
  %3448 = vrot.lane.b32.xlu0 %v3397, 11
  %v3449 = vpop.permute.xlu0 %3448
  %3450 = vrot.lane.b32.xlu0 %v3398, 11
  %v3451 = vpop.permute.xlu0 %3450
  %3452 = vrot.lane.b32.xlu0 %v3399, 11
  %v3453 = vpop.permute.xlu0 %3452
  %3454 = vrot.lane.b32.xlu0 %v3400, 11
  %v3455 = vpop.permute.xlu0 %3454
  %3456 = vrot.lane.b32.xlu0 %v3401, 11
  %v3457 = vpop.permute.xlu0 %3456
  %3458 = vrot.lane.b32.xlu0 %v3402, 11
  %v3459 = vpop.permute.xlu0 %3458
  %3460 = vrot.lane.b32.xlu0 %v3403, 11
  %v3461 = vpop.permute.xlu0 %3460
  %3462 = vrot.lane.b32.xlu0 %v3404, 11
  %v3463 = vpop.permute.xlu0 %3462
  %3464 = vrot.lane.b32.xlu0 %v3405, 11
  %v3465 = vpop.permute.xlu0 %3464
  %3466 = vrot.lane.b32.xlu0 %v3406, 11
  %v3467 = vpop.permute.xlu0 %3466
  %3468 = vrot.lane.b32.xlu0 %v3407, 11
  %v3469 = vpop.permute.xlu0 %3468
  %3470 = vrot.lane.b32.xlu0 %v3408, 11
  %v3471 = vpop.permute.xlu0 %3470
  %3472 = vrot.lane.b32.xlu0 %v3409, 11
  %v3473 = vpop.permute.xlu0 %3472
  %3474 = vrot.lane.b32.xlu0 %v3410, 11
  %v3475 = vpop.permute.xlu0 %3474
  %3476 = vrot.lane.b32.xlu0 %v3411, 11
  %v3477 = vpop.permute.xlu0 %3476
  %3478 = vrot.lane.b32.xlu0 %v3412, 11
  %v3479 = vpop.permute.xlu0 %3478
  %3480 = vrot.lane.b32.xlu0 %v3413, 11
  %v3481 = vpop.permute.xlu0 %3480
  %3482 = vrot.lane.b32.xlu0 %v3414, 11
  %v3483 = vpop.permute.xlu0 %3482
  %3484 = vrot.lane.b32.xlu0 %v3415, 11
  %v3485 = vpop.permute.xlu0 %3484
  %3486 = vrot.lane.b32.xlu0 %v3416, 11
  %v3487 = vpop.permute.xlu0 %3486
  %3488 = vrot.lane.b32.xlu0 %v3417, 11
  %v3489 = vpop.permute.xlu0 %3488
  %vm3526 = vcmask 97368
  %3527 = vst.msk [vmem:[#allocation2] sm:$0xff] %vm3526, %v3419
  %3528 = vst.msk [vmem:[#allocation2 + $0x8] sm:$0xff] %vm3526, %v3421
  %3529 = vst.msk [vmem:[#allocation2 + $0x10] sm:$0xff] %vm3526, %v3423
  %3530 = vst.msk [vmem:[#allocation2 + $0x18] sm:$0xff] %vm3526, %v3425
  %3531 = vst.msk [vmem:[#allocation2 + $0x20] sm:$0xff] %vm3526, %v3427
  %3532 = vst.msk [vmem:[#allocation2 + $0x28] sm:$0xff] %vm3526, %v3429
  %3533 = vst.msk [vmem:[#allocation2 + $0x30] sm:$0xff] %vm3526, %v3431
  %3534 = vst.msk [vmem:[#allocation2 + $0x38] sm:$0xff] %vm3526, %v3433
  %3535 = vst.msk [vmem:[#allocation2 + $0x40] sm:$0xff] %vm3526, %v3435
  %3536 = vst.msk [vmem:[#allocation2 + $0x48] sm:$0xff] %vm3526, %v3437
  %3537 = vst.msk [vmem:[#allocation2 + $0x50] sm:$0xff] %vm3526, %v3439
  %3538 = vst.msk [vmem:[#allocation2 + $0x58] sm:$0xff] %vm3526, %v3441
  %3539 = vst.msk [vmem:[#allocation2 + $0x60] sm:$0xff] %vm3526, %v3443
  %3540 = vst.msk [vmem:[#allocation2 + $0x68] sm:$0xff] %vm3526, %v3445
  %3541 = vst.msk [vmem:[#allocation2 + $0x70] sm:$0xff] %vm3526, %v3447
  %3542 = vst.msk [vmem:[#allocation2 + $0x78] sm:$0xff] %vm3526, %v3449
  %3543 = vst.msk [vmem:[#allocation2 + $0x80] sm:$0xff] %vm3526, %v3451
  %3544 = vst.msk [vmem:[#allocation2 + $0x88] sm:$0xff] %vm3526, %v3453
  %3545 = vst.msk [vmem:[#allocation2 + $0x90] sm:$0xff] %vm3526, %v3455
  %3546 = vst.msk [vmem:[#allocation2 + $0x98] sm:$0xff] %vm3526, %v3457
  %3547 = vst.msk [vmem:[#allocation2 + $0xa0] sm:$0xff] %vm3526, %v3459
  %3548 = vst.msk [vmem:[#allocation2 + $0xa8] sm:$0xff] %vm3526, %v3461
  %3549 = vst.msk [vmem:[#allocation2 + $0xb0] sm:$0xff] %vm3526, %v3463
  %3550 = vst.msk [vmem:[#allocation2 + $0xb8] sm:$0xff] %vm3526, %v3465
  %3551 = vst.msk [vmem:[#allocation2 + $0xc0] sm:$0xff] %vm3526, %v3467
  %3552 = vst.msk [vmem:[#allocation2 + $0xc8] sm:$0xff] %vm3526, %v3469
  %3553 = vst.msk [vmem:[#allocation2 + $0xd0] sm:$0xff] %vm3526, %v3471
  %3554 = vst.msk [vmem:[#allocation2 + $0xd8] sm:$0xff] %vm3526, %v3473
  %3555 = vst.msk [vmem:[#allocation2 + $0xe0] sm:$0xff] %vm3526, %v3475
  %3556 = vst.msk [vmem:[#allocation2 + $0xe8] sm:$0xff] %vm3526, %v3477
  %3557 = vst.msk [vmem:[#allocation2 + $0xf0] sm:$0xff] %vm3526, %v3479
  %3558 = vst.msk [vmem:[#allocation2 + $0xf8] sm:$0xff] %vm3526, %v3481
  %3559 = vst.msk [vmem:[#allocation2 + $0x100] sm:$0xff] %vm3526, %v3483
  %3560 = vst.msk [vmem:[#allocation2 + $0x108] sm:$0xff] %vm3526, %v3485
  %3561 = vst.msk [vmem:[#allocation2 + $0x110] sm:$0xff] %vm3526, %v3487
  %3562 = vst.msk [vmem:[#allocation2 + $0x118] sm:$0xff] %vm3526, %v3489
  %v3563 = vld [vmem:[%s2960 + $0x2] sm:$0xff]
  %v3564 = vld [vmem:[%s2960 + $0xa] sm:$0xf]
  %v3565 = vld [vmem:[%s2960 + $0x12] sm:$0xff]
  %v3566 = vld [vmem:[%s2960 + $0x1a] sm:$0xf]
  %v3567 = vld [vmem:[%s2960 + $0x22] sm:$0xff]
  %v3568 = vld [vmem:[%s2960 + $0x2a] sm:$0xf]
  %v3569 = vld [vmem:[%s2960 + $0x32] sm:$0xff]
  %v3570 = vld [vmem:[%s2960 + $0x3a] sm:$0xf]
  %v3571 = vld [vmem:[%s2960 + $0x42] sm:$0xff]
  %v3572 = vld [vmem:[%s2960 + $0x4a] sm:$0xf]
  %v3573 = vld [vmem:[%s2960 + $0x52] sm:$0xff]
  %v3574 = vld [vmem:[%s2960 + $0x5a] sm:$0xf]
  %v3575 = vld [vmem:[%s2960 + $0x62] sm:$0xff]
  %v3576 = vld [vmem:[%s2960 + $0x6a] sm:$0xf]
  %v3577 = vld [vmem:[%s2960 + $0x72] sm:$0xff]
  %v3578 = vld [vmem:[%s2960 + $0x7a] sm:$0xf]
  %v3579 = vld [vmem:[%s2960 + $0x82] sm:$0xff]
  %v3580 = vld [vmem:[%s2960 + $0x8a] sm:$0xf]
  %v3581 = vld [vmem:[%s2960 + $0x92] sm:$0xff]
  %v3582 = vld [vmem:[%s2960 + $0x9a] sm:$0xf]
  %v3583 = vld [vmem:[%s2960 + $0xa2] sm:$0xff]
  %v3584 = vld [vmem:[%s2960 + $0xaa] sm:$0xf]
  %v3585 = vld [vmem:[%s2960 + $0xb2] sm:$0xff]
  %v3586 = vld [vmem:[%s2960 + $0xba] sm:$0xf]
  %v3587 = vld [vmem:[%s2960 + $0x102] sm:$0xff]
  %v3588 = vld [vmem:[%s2960 + $0x10a] sm:$0xf]
  %v3589 = vld [vmem:[%s2960 + $0x112] sm:$0xff]
  %v3590 = vld [vmem:[%s2960 + $0x11a] sm:$0xf]
  %v3591 = vld [vmem:[%s2960 + $0x122] sm:$0xff]
  %v3592 = vld [vmem:[%s2960 + $0x12a] sm:$0xf]
  %v3593 = vld [vmem:[%s2960 + $0x132] sm:$0xff]
  %v3594 = vld [vmem:[%s2960 + $0x13a] sm:$0xf]
  %v3595 = vld [vmem:[%s2960 + $0x142] sm:$0xff]
  %v3596 = vld [vmem:[%s2960 + $0x14a] sm:$0xf]
  %v3597 = vld [vmem:[%s2960 + $0x152] sm:$0xff]
  %v3598 = vld [vmem:[%s2960 + $0x15a] sm:$0xf]
  %v3599 = vld [vmem:[%s2960 + $0x162] sm:$0xff]
  %v3600 = vld [vmem:[%s2960 + $0x16a] sm:$0xf]
  %v3601 = vld [vmem:[%s2960 + $0x172] sm:$0xff]
  %v3602 = vld [vmem:[%s2960 + $0x17a] sm:$0xf]
  %v3603 = vld [vmem:[%s2960 + $0x182] sm:$0xff]
  %v3604 = vld [vmem:[%s2960 + $0x18a] sm:$0xf]
  %v3605 = vld [vmem:[%s2960 + $0x192] sm:$0xff]
  %v3606 = vld [vmem:[%s2960 + $0x19a] sm:$0xf]
  %v3607 = vld [vmem:[%s2960 + $0x1a2] sm:$0xff]
  %v3608 = vld [vmem:[%s2960 + $0x1aa] sm:$0xf]
  %v3609 = vld [vmem:[%s2960 + $0x1b2] sm:$0xff]
  %v3610 = vld [vmem:[%s2960 + $0x1ba] sm:$0xf]
  %v3659 = vcombine.high %v3563, %v3563
  %v3660 = vcombine.high %v3565, %v3565
  %v3661 = vcombine.high %v3567, %v3567
  %v3662 = vcombine.high %v3569, %v3569
  %v3663 = vcombine.high %v3571, %v3571
  %v3664 = vcombine.high %v3573, %v3573
  %v3665 = vcombine.high %v3575, %v3575
  %v3666 = vcombine.high %v3577, %v3577
  %v3667 = vcombine.high %v3579, %v3579
  %v3668 = vcombine.high %v3581, %v3581
  %v3669 = vcombine.high %v3583, %v3583
  %v3670 = vcombine.high %v3585, %v3585
  %v3671 = vcombine.high %v3587, %v3587
  %v3672 = vcombine.high %v3589, %v3589
  %v3673 = vcombine.high %v3591, %v3591
  %v3674 = vcombine.high %v3593, %v3593
  %v3675 = vcombine.high %v3595, %v3595
  %v3676 = vcombine.high %v3597, %v3597
  %v3677 = vcombine.high %v3599, %v3599
  %v3678 = vcombine.high %v3601, %v3601
  %v3679 = vcombine.high %v3603, %v3603
  %v3680 = vcombine.high %v3605, %v3605
  %v3681 = vcombine.high %v3607, %v3607
  %v3682 = vcombine.high %v3609, %v3609
  %v3683 = vcombine.low %v3563, %v3659
  %v3684 = vcombine.low %v3564, %v3565
  %v3685 = vcombine.low %v3660, %v3566
  %v3686 = vcombine.low %v3567, %v3661
  %v3687 = vcombine.low %v3568, %v3569
  %v3688 = vcombine.low %v3662, %v3570
  %v3689 = vcombine.low %v3571, %v3663
  %v3690 = vcombine.low %v3572, %v3573
  %v3691 = vcombine.low %v3664, %v3574
  %v3692 = vcombine.low %v3575, %v3665
  %v3693 = vcombine.low %v3576, %v3577
  %v3694 = vcombine.low %v3666, %v3578
  %v3695 = vcombine.low %v3579, %v3667
  %v3696 = vcombine.low %v3580, %v3581
  %v3697 = vcombine.low %v3668, %v3582
  %v3698 = vcombine.low %v3583, %v3669
  %v3699 = vcombine.low %v3584, %v3585
  %v3700 = vcombine.low %v3670, %v3586
  %v3701 = vcombine.low %v3587, %v3671
  %v3702 = vcombine.low %v3588, %v3589
  %v3703 = vcombine.low %v3672, %v3590
  %v3704 = vcombine.low %v3591, %v3673
  %v3705 = vcombine.low %v3592, %v3593
  %v3706 = vcombine.low %v3674, %v3594
  %v3707 = vcombine.low %v3595, %v3675
  %v3708 = vcombine.low %v3596, %v3597
  %v3709 = vcombine.low %v3676, %v3598
  %v3710 = vcombine.low %v3599, %v3677
  %v3711 = vcombine.low %v3600, %v3601
  %v3712 = vcombine.low %v3678, %v3602
  %v3713 = vcombine.low %v3603, %v3679
  %v3714 = vcombine.low %v3604, %v3605
  %v3715 = vcombine.low %v3680, %v3606
  %v3716 = vcombine.low %v3607, %v3681
  %v3717 = vcombine.low %v3608, %v3609
  %v3718 = vcombine.low %v3682, %v3610
  %3719 = vrot.lane.b32.xlu0 %v3683, 12
  %v3720 = vpop.permute.xlu0 %3719
  %3721 = vrot.lane.b32.xlu0 %v3684, 12
  %v3722 = vpop.permute.xlu0 %3721
  %3723 = vrot.lane.b32.xlu0 %v3685, 12
  %v3724 = vpop.permute.xlu0 %3723
  %3725 = vrot.lane.b32.xlu0 %v3686, 12
  %v3726 = vpop.permute.xlu0 %3725
  %3727 = vrot.lane.b32.xlu0 %v3687, 12
  %v3728 = vpop.permute.xlu0 %3727
  %3729 = vrot.lane.b32.xlu0 %v3688, 12
  %v3730 = vpop.permute.xlu0 %3729
  %3731 = vrot.lane.b32.xlu0 %v3689, 12
  %v3732 = vpop.permute.xlu0 %3731
  %3733 = vrot.lane.b32.xlu0 %v3690, 12
  %v3734 = vpop.permute.xlu0 %3733
  %3735 = vrot.lane.b32.xlu0 %v3691, 12
  %v3736 = vpop.permute.xlu0 %3735
  %3737 = vrot.lane.b32.xlu0 %v3692, 12
  %v3738 = vpop.permute.xlu0 %3737
  %3739 = vrot.lane.b32.xlu0 %v3693, 12
  %v3740 = vpop.permute.xlu0 %3739
  %3741 = vrot.lane.b32.xlu0 %v3694, 12
  %v3742 = vpop.permute.xlu0 %3741
  %3743 = vrot.lane.b32.xlu0 %v3695, 12
  %v3744 = vpop.permute.xlu0 %3743
  %3745 = vrot.lane.b32.xlu0 %v3696, 12
  %v3746 = vpop.permute.xlu0 %3745
  %3747 = vrot.lane.b32.xlu0 %v3697, 12
  %v3748 = vpop.permute.xlu0 %3747
  %3749 = vrot.lane.b32.xlu0 %v3698, 12
  %v3750 = vpop.permute.xlu0 %3749
  %3751 = vrot.lane.b32.xlu0 %v3699, 12
  %v3752 = vpop.permute.xlu0 %3751
  %3753 = vrot.lane.b32.xlu0 %v3700, 12
  %v3754 = vpop.permute.xlu0 %3753
  %3755 = vrot.lane.b32.xlu0 %v3701, 12
  %v3756 = vpop.permute.xlu0 %3755
  %3757 = vrot.lane.b32.xlu0 %v3702, 12
  %v3758 = vpop.permute.xlu0 %3757
  %3759 = vrot.lane.b32.xlu0 %v3703, 12
  %v3760 = vpop.permute.xlu0 %3759
  %3761 = vrot.lane.b32.xlu0 %v3704, 12
  %v3762 = vpop.permute.xlu0 %3761
  %3763 = vrot.lane.b32.xlu0 %v3705, 12
  %v3764 = vpop.permute.xlu0 %3763
  %3765 = vrot.lane.b32.xlu0 %v3706, 12
  %v3766 = vpop.permute.xlu0 %3765
  %3767 = vrot.lane.b32.xlu0 %v3707, 12
  %v3768 = vpop.permute.xlu0 %3767
  %3769 = vrot.lane.b32.xlu0 %v3708, 12
  %v3770 = vpop.permute.xlu0 %3769
  %3771 = vrot.lane.b32.xlu0 %v3709, 12
  %v3772 = vpop.permute.xlu0 %3771
  %3773 = vrot.lane.b32.xlu0 %v3710, 12
  %v3774 = vpop.permute.xlu0 %3773
  %3775 = vrot.lane.b32.xlu0 %v3711, 12
  %v3776 = vpop.permute.xlu0 %3775
  %3777 = vrot.lane.b32.xlu0 %v3712, 12
  %v3778 = vpop.permute.xlu0 %3777
  %3779 = vrot.lane.b32.xlu0 %v3713, 12
  %v3780 = vpop.permute.xlu0 %3779
  %3781 = vrot.lane.b32.xlu0 %v3714, 12
  %v3782 = vpop.permute.xlu0 %3781
  %3783 = vrot.lane.b32.xlu0 %v3715, 12
  %v3784 = vpop.permute.xlu0 %3783
  %3785 = vrot.lane.b32.xlu0 %v3716, 12
  %v3786 = vpop.permute.xlu0 %3785
  %3787 = vrot.lane.b32.xlu0 %v3717, 12
  %v3788 = vpop.permute.xlu0 %3787
  %3789 = vrot.lane.b32.xlu0 %v3718, 12
  %v3790 = vpop.permute.xlu0 %3789
  %vm3827 = vcmask 105568
  %3828 = vst.msk [vmem:[#allocation2] sm:$0xff] %vm3827, %v3720
  %3829 = vst.msk [vmem:[#allocation2 + $0x8] sm:$0xff] %vm3827, %v3722
  %3830 = vst.msk [vmem:[#allocation2 + $0x10] sm:$0xff] %vm3827, %v3724
  %3831 = vst.msk [vmem:[#allocation2 + $0x18] sm:$0xff] %vm3827, %v3726
  %3832 = vst.msk [vmem:[#allocation2 + $0x20] sm:$0xff] %vm3827, %v3728
  %3833 = vst.msk [vmem:[#allocation2 + $0x28] sm:$0xff] %vm3827, %v3730
  %3834 = vst.msk [vmem:[#allocation2 + $0x30] sm:$0xff] %vm3827, %v3732
  %3835 = vst.msk [vmem:[#allocation2 + $0x38] sm:$0xff] %vm3827, %v3734
  %3836 = vst.msk [vmem:[#allocation2 + $0x40] sm:$0xff] %vm3827, %v3736
  %3837 = vst.msk [vmem:[#allocation2 + $0x48] sm:$0xff] %vm3827, %v3738
  %3838 = vst.msk [vmem:[#allocation2 + $0x50] sm:$0xff] %vm3827, %v3740
  %3839 = vst.msk [vmem:[#allocation2 + $0x58] sm:$0xff] %vm3827, %v3742
  %3840 = vst.msk [vmem:[#allocation2 + $0x60] sm:$0xff] %vm3827, %v3744
  %3841 = vst.msk [vmem:[#allocation2 + $0x68] sm:$0xff] %vm3827, %v3746
  %3842 = vst.msk [vmem:[#allocation2 + $0x70] sm:$0xff] %vm3827, %v3748
  %3843 = vst.msk [vmem:[#allocation2 + $0x78] sm:$0xff] %vm3827, %v3750
  %3844 = vst.msk [vmem:[#allocation2 + $0x80] sm:$0xff] %vm3827, %v3752
  %3845 = vst.msk [vmem:[#allocation2 + $0x88] sm:$0xff] %vm3827, %v3754
  %3846 = vst.msk [vmem:[#allocation2 + $0x90] sm:$0xff] %vm3827, %v3756
  %3847 = vst.msk [vmem:[#allocation2 + $0x98] sm:$0xff] %vm3827, %v3758
  %3848 = vst.msk [vmem:[#allocation2 + $0xa0] sm:$0xff] %vm3827, %v3760
  %3849 = vst.msk [vmem:[#allocation2 + $0xa8] sm:$0xff] %vm3827, %v3762
  %3850 = vst.msk [vmem:[#allocation2 + $0xb0] sm:$0xff] %vm3827, %v3764
  %3851 = vst.msk [vmem:[#allocation2 + $0xb8] sm:$0xff] %vm3827, %v3766
  %3852 = vst.msk [vmem:[#allocation2 + $0xc0] sm:$0xff] %vm3827, %v3768
  %3853 = vst.msk [vmem:[#allocation2 + $0xc8] sm:$0xff] %vm3827, %v3770
  %3854 = vst.msk [vmem:[#allocation2 + $0xd0] sm:$0xff] %vm3827, %v3772
  %3855 = vst.msk [vmem:[#allocation2 + $0xd8] sm:$0xff] %vm3827, %v3774
  %3856 = vst.msk [vmem:[#allocation2 + $0xe0] sm:$0xff] %vm3827, %v3776
  %3857 = vst.msk [vmem:[#allocation2 + $0xe8] sm:$0xff] %vm3827, %v3778
  %3858 = vst.msk [vmem:[#allocation2 + $0xf0] sm:$0xff] %vm3827, %v3780
  %3859 = vst.msk [vmem:[#allocation2 + $0xf8] sm:$0xff] %vm3827, %v3782
  %3860 = vst.msk [vmem:[#allocation2 + $0x100] sm:$0xff] %vm3827, %v3784
  %3861 = vst.msk [vmem:[#allocation2 + $0x108] sm:$0xff] %vm3827, %v3786
  %3862 = vst.msk [vmem:[#allocation2 + $0x110] sm:$0xff] %vm3827, %v3788
  %3863 = vst.msk [vmem:[#allocation2 + $0x118] sm:$0xff] %vm3827, %v3790
  %v3864 = vld [vmem:[%s2960 + $0x3] sm:$0xff]
  %v3865 = vld [vmem:[%s2960 + $0xb] sm:$0xf]
  %v3866 = vld [vmem:[%s2960 + $0x13] sm:$0xff]
  %v3867 = vld [vmem:[%s2960 + $0x1b] sm:$0xf]
  %v3868 = vld [vmem:[%s2960 + $0x23] sm:$0xff]
  %v3869 = vld [vmem:[%s2960 + $0x2b] sm:$0xf]
  %v3870 = vld [vmem:[%s2960 + $0x33] sm:$0xff]
  %v3871 = vld [vmem:[%s2960 + $0x3b] sm:$0xf]
  %v3872 = vld [vmem:[%s2960 + $0x43] sm:$0xff]
  %v3873 = vld [vmem:[%s2960 + $0x4b] sm:$0xf]
  %v3874 = vld [vmem:[%s2960 + $0x53] sm:$0xff]
  %v3875 = vld [vmem:[%s2960 + $0x5b] sm:$0xf]
  %v3876 = vld [vmem:[%s2960 + $0x63] sm:$0xff]
  %v3877 = vld [vmem:[%s2960 + $0x6b] sm:$0xf]
  %v3878 = vld [vmem:[%s2960 + $0x73] sm:$0xff]
  %v3879 = vld [vmem:[%s2960 + $0x7b] sm:$0xf]
  %v3880 = vld [vmem:[%s2960 + $0x83] sm:$0xff]
  %v3881 = vld [vmem:[%s2960 + $0x8b] sm:$0xf]
  %v3882 = vld [vmem:[%s2960 + $0x93] sm:$0xff]
  %v3883 = vld [vmem:[%s2960 + $0x9b] sm:$0xf]
  %v3884 = vld [vmem:[%s2960 + $0xa3] sm:$0xff]
  %v3885 = vld [vmem:[%s2960 + $0xab] sm:$0xf]
  %v3886 = vld [vmem:[%s2960 + $0xb3] sm:$0xff]
  %v3887 = vld [vmem:[%s2960 + $0xbb] sm:$0xf]
  %v3888 = vld [vmem:[%s2960 + $0x103] sm:$0xff]
  %v3889 = vld [vmem:[%s2960 + $0x10b] sm:$0xf]
  %v3890 = vld [vmem:[%s2960 + $0x113] sm:$0xff]
  %v3891 = vld [vmem:[%s2960 + $0x11b] sm:$0xf]
  %v3892 = vld [vmem:[%s2960 + $0x123] sm:$0xff]
  %v3893 = vld [vmem:[%s2960 + $0x12b] sm:$0xf]
  %v3894 = vld [vmem:[%s2960 + $0x133] sm:$0xff]
  %v3895 = vld [vmem:[%s2960 + $0x13b] sm:$0xf]
  %v3896 = vld [vmem:[%s2960 + $0x143] sm:$0xff]
  %v3897 = vld [vmem:[%s2960 + $0x14b] sm:$0xf]
  %v3898 = vld [vmem:[%s2960 + $0x153] sm:$0xff]
  %v3899 = vld [vmem:[%s2960 + $0x15b] sm:$0xf]
  %v3900 = vld [vmem:[%s2960 + $0x163] sm:$0xff]
  %v3901 = vld [vmem:[%s2960 + $0x16b] sm:$0xf]
  %v3902 = vld [vmem:[%s2960 + $0x173] sm:$0xff]
  %v3903 = vld [vmem:[%s2960 + $0x17b] sm:$0xf]
  %v3904 = vld [vmem:[%s2960 + $0x183] sm:$0xff]
  %v3905 = vld [vmem:[%s2960 + $0x18b] sm:$0xf]
  %v3906 = vld [vmem:[%s2960 + $0x193] sm:$0xff]
  %v3907 = vld [vmem:[%s2960 + $0x19b] sm:$0xf]
  %v3908 = vld [vmem:[%s2960 + $0x1a3] sm:$0xff]
  %v3909 = vld [vmem:[%s2960 + $0x1ab] sm:$0xf]
  %v3910 = vld [vmem:[%s2960 + $0x1b3] sm:$0xff]
  %v3911 = vld [vmem:[%s2960 + $0x1bb] sm:$0xf]
  %v3960 = vcombine.high %v3864, %v3864
  %v3961 = vcombine.high %v3866, %v3866
  %v3962 = vcombine.high %v3868, %v3868
  %v3963 = vcombine.high %v3870, %v3870
  %v3964 = vcombine.high %v3872, %v3872
  %v3965 = vcombine.high %v3874, %v3874
  %v3966 = vcombine.high %v3876, %v3876
  %v3967 = vcombine.high %v3878, %v3878
  %v3968 = vcombine.high %v3880, %v3880
  %v3969 = vcombine.high %v3882, %v3882
  %v3970 = vcombine.high %v3884, %v3884
  %v3971 = vcombine.high %v3886, %v3886
  %v3972 = vcombine.high %v3888, %v3888
  %v3973 = vcombine.high %v3890, %v3890
  %v3974 = vcombine.high %v3892, %v3892
  %v3975 = vcombine.high %v3894, %v3894
  %v3976 = vcombine.high %v3896, %v3896
  %v3977 = vcombine.high %v3898, %v3898
  %v3978 = vcombine.high %v3900, %v3900
  %v3979 = vcombine.high %v3902, %v3902
  %v3980 = vcombine.high %v3904, %v3904
  %v3981 = vcombine.high %v3906, %v3906
  %v3982 = vcombine.high %v3908, %v3908
  %v3983 = vcombine.high %v3910, %v3910
  %v3984 = vcombine.low %v3864, %v3960
  %v3985 = vcombine.low %v3865, %v3866
  %v3986 = vcombine.low %v3961, %v3867
  %v3987 = vcombine.low %v3868, %v3962
  %v3988 = vcombine.low %v3869, %v3870
  %v3989 = vcombine.low %v3963, %v3871
  %v3990 = vcombine.low %v3872, %v3964
  %v3991 = vcombine.low %v3873, %v3874
  %v3992 = vcombine.low %v3965, %v3875
  %v3993 = vcombine.low %v3876, %v3966
  %v3994 = vcombine.low %v3877, %v3878
  %v3995 = vcombine.low %v3967, %v3879
  %v3996 = vcombine.low %v3880, %v3968
  %v3997 = vcombine.low %v3881, %v3882
  %v3998 = vcombine.low %v3969, %v3883
  %v3999 = vcombine.low %v3884, %v3970
  %v4000 = vcombine.low %v3885, %v3886
  %v4001 = vcombine.low %v3971, %v3887
  %v4002 = vcombine.low %v3888, %v3972
  %v4003 = vcombine.low %v3889, %v3890
  %v4004 = vcombine.low %v3973, %v3891
  %v4005 = vcombine.low %v3892, %v3974
  %v4006 = vcombine.low %v3893, %v3894
  %v4007 = vcombine.low %v3975, %v3895
  %v4008 = vcombine.low %v3896, %v3976
  %v4009 = vcombine.low %v3897, %v3898
  %v4010 = vcombine.low %v3977, %v3899
  %v4011 = vcombine.low %v3900, %v3978
  %v4012 = vcombine.low %v3901, %v3902
  %v4013 = vcombine.low %v3979, %v3903
  %v4014 = vcombine.low %v3904, %v3980
  %v4015 = vcombine.low %v3905, %v3906
  %v4016 = vcombine.low %v3981, %v3907
  %v4017 = vcombine.low %v3908, %v3982
  %v4018 = vcombine.low %v3909, %v3910
  %v4019 = vcombine.low %v3983, %v3911
  %4020 = vrot.lane.b32.xlu0 %v3984, 13
  %v4021 = vpop.permute.xlu0 %4020
  %4022 = vrot.lane.b32.xlu0 %v3985, 13
  %v4023 = vpop.permute.xlu0 %4022
  %4024 = vrot.lane.b32.xlu0 %v3986, 13
  %v4025 = vpop.permute.xlu0 %4024
  %4026 = vrot.lane.b32.xlu0 %v3987, 13
  %v4027 = vpop.permute.xlu0 %4026
  %4028 = vrot.lane.b32.xlu0 %v3988, 13
  %v4029 = vpop.permute.xlu0 %4028
  %4030 = vrot.lane.b32.xlu0 %v3989, 13
  %v4031 = vpop.permute.xlu0 %4030
  %4032 = vrot.lane.b32.xlu0 %v3990, 13
  %v4033 = vpop.permute.xlu0 %4032
  %4034 = vrot.lane.b32.xlu0 %v3991, 13
  %v4035 = vpop.permute.xlu0 %4034
  %4036 = vrot.lane.b32.xlu0 %v3992, 13
  %v4037 = vpop.permute.xlu0 %4036
  %4038 = vrot.lane.b32.xlu0 %v3993, 13
  %v4039 = vpop.permute.xlu0 %4038
  %4040 = vrot.lane.b32.xlu0 %v3994, 13
  %v4041 = vpop.permute.xlu0 %4040
  %4042 = vrot.lane.b32.xlu0 %v3995, 13
  %v4043 = vpop.permute.xlu0 %4042
  %4044 = vrot.lane.b32.xlu0 %v3996, 13
  %v4045 = vpop.permute.xlu0 %4044
  %4046 = vrot.lane.b32.xlu0 %v3997, 13
  %v4047 = vpop.permute.xlu0 %4046
  %4048 = vrot.lane.b32.xlu0 %v3998, 13
  %v4049 = vpop.permute.xlu0 %4048
  %4050 = vrot.lane.b32.xlu0 %v3999, 13
  %v4051 = vpop.permute.xlu0 %4050
  %4052 = vrot.lane.b32.xlu0 %v4000, 13
  %v4053 = vpop.permute.xlu0 %4052
  %4054 = vrot.lane.b32.xlu0 %v4001, 13
  %v4055 = vpop.permute.xlu0 %4054
  %4056 = vrot.lane.b32.xlu0 %v4002, 13
  %v4057 = vpop.permute.xlu0 %4056
  %4058 = vrot.lane.b32.xlu0 %v4003, 13
  %v4059 = vpop.permute.xlu0 %4058
  %4060 = vrot.lane.b32.xlu0 %v4004, 13
  %v4061 = vpop.permute.xlu0 %4060
  %4062 = vrot.lane.b32.xlu0 %v4005, 13
  %v4063 = vpop.permute.xlu0 %4062
  %4064 = vrot.lane.b32.xlu0 %v4006, 13
  %v4065 = vpop.permute.xlu0 %4064
  %4066 = vrot.lane.b32.xlu0 %v4007, 13
  %v4067 = vpop.permute.xlu0 %4066
  %4068 = vrot.lane.b32.xlu0 %v4008, 13
  %v4069 = vpop.permute.xlu0 %4068
  %4070 = vrot.lane.b32.xlu0 %v4009, 13
  %v4071 = vpop.permute.xlu0 %4070
  %4072 = vrot.lane.b32.xlu0 %v4010, 13
  %v4073 = vpop.permute.xlu0 %4072
  %4074 = vrot.lane.b32.xlu0 %v4011, 13
  %v4075 = vpop.permute.xlu0 %4074
  %4076 = vrot.lane.b32.xlu0 %v4012, 13
  %v4077 = vpop.permute.xlu0 %4076
  %4078 = vrot.lane.b32.xlu0 %v4013, 13
  %v4079 = vpop.permute.xlu0 %4078
  %4080 = vrot.lane.b32.xlu0 %v4014, 13
  %v4081 = vpop.permute.xlu0 %4080
  %4082 = vrot.lane.b32.xlu0 %v4015, 13
  %v4083 = vpop.permute.xlu0 %4082
  %4084 = vrot.lane.b32.xlu0 %v4016, 13
  %v4085 = vpop.permute.xlu0 %4084
  %4086 = vrot.lane.b32.xlu0 %v4017, 13
  %v4087 = vpop.permute.xlu0 %4086
  %4088 = vrot.lane.b32.xlu0 %v4018, 13
  %v4089 = vpop.permute.xlu0 %4088
  %4090 = vrot.lane.b32.xlu0 %v4019, 13
  %v4091 = vpop.permute.xlu0 %4090
  %vm4128 = vcmask 113768
  %4129 = vst.msk [vmem:[#allocation2] sm:$0xff] %vm4128, %v4021
  %4130 = vst.msk [vmem:[#allocation2 + $0x8] sm:$0xff] %vm4128, %v4023
  %4131 = vst.msk [vmem:[#allocation2 + $0x10] sm:$0xff] %vm4128, %v4025
  %4132 = vst.msk [vmem:[#allocation2 + $0x18] sm:$0xff] %vm4128, %v4027
  %4133 = vst.msk [vmem:[#allocation2 + $0x20] sm:$0xff] %vm4128, %v4029
  %4134 = vst.msk [vmem:[#allocation2 + $0x28] sm:$0xff] %vm4128, %v4031
  %4135 = vst.msk [vmem:[#allocation2 + $0x30] sm:$0xff] %vm4128, %v4033
  %4136 = vst.msk [vmem:[#allocation2 + $0x38] sm:$0xff] %vm4128, %v4035
  %4137 = vst.msk [vmem:[#allocation2 + $0x40] sm:$0xff] %vm4128, %v4037
  %4138 = vst.msk [vmem:[#allocation2 + $0x48] sm:$0xff] %vm4128, %v4039
  %4139 = vst.msk [vmem:[#allocation2 + $0x50] sm:$0xff] %vm4128, %v4041
  %4140 = vst.msk [vmem:[#allocation2 + $0x58] sm:$0xff] %vm4128, %v4043
  %4141 = vst.msk [vmem:[#allocation2 + $0x60] sm:$0xff] %vm4128, %v4045
  %4142 = vst.msk [vmem:[#allocation2 + $0x68] sm:$0xff] %vm4128, %v4047
  %4143 = vst.msk [vmem:[#allocation2 + $0x70] sm:$0xff] %vm4128, %v4049
  %4144 = vst.msk [vmem:[#allocation2 + $0x78] sm:$0xff] %vm4128, %v4051
  %4145 = vst.msk [vmem:[#allocation2 + $0x80] sm:$0xff] %vm4128, %v4053
  %4146 = vst.msk [vmem:[#allocation2 + $0x88] sm:$0xff] %vm4128, %v4055
  %4147 = vst.msk [vmem:[#allocation2 + $0x90] sm:$0xff] %vm4128, %v4057
  %4148 = vst.msk [vmem:[#allocation2 + $0x98] sm:$0xff] %vm4128, %v4059
  %4149 = vst.msk [vmem:[#allocation2 + $0xa0] sm:$0xff] %vm4128, %v4061
  %4150 = vst.msk [vmem:[#allocation2 + $0xa8] sm:$0xff] %vm4128, %v4063
  %4151 = vst.msk [vmem:[#allocation2 + $0xb0] sm:$0xff] %vm4128, %v4065
  %4152 = vst.msk [vmem:[#allocation2 + $0xb8] sm:$0xff] %vm4128, %v4067
  %4153 = vst.msk [vmem:[#allocation2 + $0xc0] sm:$0xff] %vm4128, %v4069
  %4154 = vst.msk [vmem:[#allocation2 + $0xc8] sm:$0xff] %vm4128, %v4071
  %4155 = vst.msk [vmem:[#allocation2 + $0xd0] sm:$0xff] %vm4128, %v4073
  %4156 = vst.msk [vmem:[#allocation2 + $0xd8] sm:$0xff] %vm4128, %v4075
  %4157 = vst.msk [vmem:[#allocation2 + $0xe0] sm:$0xff] %vm4128, %v4077
  %4158 = vst.msk [vmem:[#allocation2 + $0xe8] sm:$0xff] %vm4128, %v4079
  %4159 = vst.msk [vmem:[#allocation2 + $0xf0] sm:$0xff] %vm4128, %v4081
  %4160 = vst.msk [vmem:[#allocation2 + $0xf8] sm:$0xff] %vm4128, %v4083
  %4161 = vst.msk [vmem:[#allocation2 + $0x100] sm:$0xff] %vm4128, %v4085
  %4162 = vst.msk [vmem:[#allocation2 + $0x108] sm:$0xff] %vm4128, %v4087
  %4163 = vst.msk [vmem:[#allocation2 + $0x110] sm:$0xff] %vm4128, %v4089
  %4164 = vst.msk [vmem:[#allocation2 + $0x118] sm:$0xff] %vm4128, %v4091
  %v4165 = vld [vmem:[%s2960 + $0x4] sm:$0xff]
  %v4166 = vld [vmem:[%s2960 + $0xc] sm:$0xf]
  %v4167 = vld [vmem:[%s2960 + $0x14] sm:$0xff]
  %v4168 = vld [vmem:[%s2960 + $0x1c] sm:$0xf]
  %v4169 = vld [vmem:[%s2960 + $0x24] sm:$0xff]
  %v4170 = vld [vmem:[%s2960 + $0x2c] sm:$0xf]
  %v4171 = vld [vmem:[%s2960 + $0x34] sm:$0xff]
  %v4172 = vld [vmem:[%s2960 + $0x3c] sm:$0xf]
  %v4173 = vld [vmem:[%s2960 + $0x44] sm:$0xff]
  %v4174 = vld [vmem:[%s2960 + $0x4c] sm:$0xf]
  %v4175 = vld [vmem:[%s2960 + $0x54] sm:$0xff]
  %v4176 = vld [vmem:[%s2960 + $0x5c] sm:$0xf]
  %v4177 = vld [vmem:[%s2960 + $0x64] sm:$0xff]
  %v4178 = vld [vmem:[%s2960 + $0x6c] sm:$0xf]
  %v4179 = vld [vmem:[%s2960 + $0x74] sm:$0xff]
  %v4180 = vld [vmem:[%s2960 + $0x7c] sm:$0xf]
  %v4181 = vld [vmem:[%s2960 + $0x84] sm:$0xff]
  %v4182 = vld [vmem:[%s2960 + $0x8c] sm:$0xf]
  %v4183 = vld [vmem:[%s2960 + $0x94] sm:$0xff]
  %v4184 = vld [vmem:[%s2960 + $0x9c] sm:$0xf]
  %v4185 = vld [vmem:[%s2960 + $0xa4] sm:$0xff]
  %v4186 = vld [vmem:[%s2960 + $0xac] sm:$0xf]
  %v4187 = vld [vmem:[%s2960 + $0xb4] sm:$0xff]
  %v4188 = vld [vmem:[%s2960 + $0xbc] sm:$0xf]
  %v4189 = vld [vmem:[%s2960 + $0x104] sm:$0xff]
  %v4190 = vld [vmem:[%s2960 + $0x10c] sm:$0xf]
  %v4191 = vld [vmem:[%s2960 + $0x114] sm:$0xff]
  %v4192 = vld [vmem:[%s2960 + $0x11c] sm:$0xf]
  %v4193 = vld [vmem:[%s2960 + $0x124] sm:$0xff]
  %v4194 = vld [vmem:[%s2960 + $0x12c] sm:$0xf]
  %v4195 = vld [vmem:[%s2960 + $0x134] sm:$0xff]
  %v4196 = vld [vmem:[%s2960 + $0x13c] sm:$0xf]
  %v4197 = vld [vmem:[%s2960 + $0x144] sm:$0xff]
  %v4198 = vld [vmem:[%s2960 + $0x14c] sm:$0xf]
  %v4199 = vld [vmem:[%s2960 + $0x154] sm:$0xff]
  %v4200 = vld [vmem:[%s2960 + $0x15c] sm:$0xf]
  %v4201 = vld [vmem:[%s2960 + $0x164] sm:$0xff]
  %v4202 = vld [vmem:[%s2960 + $0x16c] sm:$0xf]
  %v4203 = vld [vmem:[%s2960 + $0x174] sm:$0xff]
  %v4204 = vld [vmem:[%s2960 + $0x17c] sm:$0xf]
  %v4205 = vld [vmem:[%s2960 + $0x184] sm:$0xff]
  %v4206 = vld [vmem:[%s2960 + $0x18c] sm:$0xf]
  %v4207 = vld [vmem:[%s2960 + $0x194] sm:$0xff]
  %v4208 = vld [vmem:[%s2960 + $0x19c] sm:$0xf]
  %v4209 = vld [vmem:[%s2960 + $0x1a4] sm:$0xff]
  %v4210 = vld [vmem:[%s2960 + $0x1ac] sm:$0xf]
  %v4211 = vld [vmem:[%s2960 + $0x1b4] sm:$0xff]
  %v4212 = vld [vmem:[%s2960 + $0x1bc] sm:$0xf]
  %v4261 = vcombine.high %v4165, %v4165
  %v4262 = vcombine.high %v4167, %v4167
  %v4263 = vcombine.high %v4169, %v4169
  %v4264 = vcombine.high %v4171, %v4171
  %v4265 = vcombine.high %v4173, %v4173
  %v4266 = vcombine.high %v4175, %v4175
  %v4267 = vcombine.high %v4177, %v4177
  %v4268 = vcombine.high %v4179, %v4179
  %v4269 = vcombine.high %v4181, %v4181
  %v4270 = vcombine.high %v4183, %v4183
  %v4271 = vcombine.high %v4185, %v4185
  %v4272 = vcombine.high %v4187, %v4187
  %v4273 = vcombine.high %v4189, %v4189
  %v4274 = vcombine.high %v4191, %v4191
  %v4275 = vcombine.high %v4193, %v4193
  %v4276 = vcombine.high %v4195, %v4195
  %v4277 = vcombine.high %v4197, %v4197
  %v4278 = vcombine.high %v4199, %v4199
  %v4279 = vcombine.high %v4201, %v4201
  %v4280 = vcombine.high %v4203, %v4203
  %v4281 = vcombine.high %v4205, %v4205
  %v4282 = vcombine.high %v4207, %v4207
  %v4283 = vcombine.high %v4209, %v4209
  %v4284 = vcombine.high %v4211, %v4211
  %v4285 = vcombine.low %v4165, %v4261
  %v4286 = vcombine.low %v4166, %v4167
  %v4287 = vcombine.low %v4262, %v4168
  %v4288 = vcombine.low %v4169, %v4263
  %v4289 = vcombine.low %v4170, %v4171
  %v4290 = vcombine.low %v4264, %v4172
  %v4291 = vcombine.low %v4173, %v4265
  %v4292 = vcombine.low %v4174, %v4175
  %v4293 = vcombine.low %v4266, %v4176
  %v4294 = vcombine.low %v4177, %v4267
  %v4295 = vcombine.low %v4178, %v4179
  %v4296 = vcombine.low %v4268, %v4180
  %v4297 = vcombine.low %v4181, %v4269
  %v4298 = vcombine.low %v4182, %v4183
  %v4299 = vcombine.low %v4270, %v4184
  %v4300 = vcombine.low %v4185, %v4271
  %v4301 = vcombine.low %v4186, %v4187
  %v4302 = vcombine.low %v4272, %v4188
  %v4303 = vcombine.low %v4189, %v4273
  %v4304 = vcombine.low %v4190, %v4191
  %v4305 = vcombine.low %v4274, %v4192
  %v4306 = vcombine.low %v4193, %v4275
  %v4307 = vcombine.low %v4194, %v4195
  %v4308 = vcombine.low %v4276, %v4196
  %v4309 = vcombine.low %v4197, %v4277
  %v4310 = vcombine.low %v4198, %v4199
  %v4311 = vcombine.low %v4278, %v4200
  %v4312 = vcombine.low %v4201, %v4279
  %v4313 = vcombine.low %v4202, %v4203
  %v4314 = vcombine.low %v4280, %v4204
  %v4315 = vcombine.low %v4205, %v4281
  %v4316 = vcombine.low %v4206, %v4207
  %v4317 = vcombine.low %v4282, %v4208
  %v4318 = vcombine.low %v4209, %v4283
  %v4319 = vcombine.low %v4210, %v4211
  %v4320 = vcombine.low %v4284, %v4212
  %4321 = vrot.lane.b32.xlu0 %v4285, 14
  %v4322 = vpop.permute.xlu0 %4321
  %4323 = vrot.lane.b32.xlu0 %v4286, 14
  %v4324 = vpop.permute.xlu0 %4323
  %4325 = vrot.lane.b32.xlu0 %v4287, 14
  %v4326 = vpop.permute.xlu0 %4325
  %4327 = vrot.lane.b32.xlu0 %v4288, 14
  %v4328 = vpop.permute.xlu0 %4327
  %4329 = vrot.lane.b32.xlu0 %v4289, 14
  %v4330 = vpop.permute.xlu0 %4329
  %4331 = vrot.lane.b32.xlu0 %v4290, 14
  %v4332 = vpop.permute.xlu0 %4331
  %4333 = vrot.lane.b32.xlu0 %v4291, 14
  %v4334 = vpop.permute.xlu0 %4333
  %4335 = vrot.lane.b32.xlu0 %v4292, 14
  %v4336 = vpop.permute.xlu0 %4335
  %4337 = vrot.lane.b32.xlu0 %v4293, 14
  %v4338 = vpop.permute.xlu0 %4337
  %4339 = vrot.lane.b32.xlu0 %v4294, 14
  %v4340 = vpop.permute.xlu0 %4339
  %4341 = vrot.lane.b32.xlu0 %v4295, 14
  %v4342 = vpop.permute.xlu0 %4341
  %4343 = vrot.lane.b32.xlu0 %v4296, 14
  %v4344 = vpop.permute.xlu0 %4343
  %4345 = vrot.lane.b32.xlu0 %v4297, 14
  %v4346 = vpop.permute.xlu0 %4345
  %4347 = vrot.lane.b32.xlu0 %v4298, 14
  %v4348 = vpop.permute.xlu0 %4347
  %4349 = vrot.lane.b32.xlu0 %v4299, 14
  %v4350 = vpop.permute.xlu0 %4349
  %4351 = vrot.lane.b32.xlu0 %v4300, 14
  %v4352 = vpop.permute.xlu0 %4351
  %4353 = vrot.lane.b32.xlu0 %v4301, 14
  %v4354 = vpop.permute.xlu0 %4353
  %4355 = vrot.lane.b32.xlu0 %v4302, 14
  %v4356 = vpop.permute.xlu0 %4355
  %4357 = vrot.lane.b32.xlu0 %v4303, 14
  %v4358 = vpop.permute.xlu0 %4357
  %4359 = vrot.lane.b32.xlu0 %v4304, 14
  %v4360 = vpop.permute.xlu0 %4359
  %4361 = vrot.lane.b32.xlu0 %v4305, 14
  %v4362 = vpop.permute.xlu0 %4361
  %4363 = vrot.lane.b32.xlu0 %v4306, 14
  %v4364 = vpop.permute.xlu0 %4363
  %4365 = vrot.lane.b32.xlu0 %v4307, 14
  %v4366 = vpop.permute.xlu0 %4365
  %4367 = vrot.lane.b32.xlu0 %v4308, 14
  %v4368 = vpop.permute.xlu0 %4367
  %4369 = vrot.lane.b32.xlu0 %v4309, 14
  %v4370 = vpop.permute.xlu0 %4369
  %4371 = vrot.lane.b32.xlu0 %v4310, 14
  %v4372 = vpop.permute.xlu0 %4371
  %4373 = vrot.lane.b32.xlu0 %v4311, 14
  %v4374 = vpop.permute.xlu0 %4373
  %4375 = vrot.lane.b32.xlu0 %v4312, 14
  %v4376 = vpop.permute.xlu0 %4375
  %4377 = vrot.lane.b32.xlu0 %v4313, 14
  %v4378 = vpop.permute.xlu0 %4377
  %4379 = vrot.lane.b32.xlu0 %v4314, 14
  %v4380 = vpop.permute.xlu0 %4379
  %4381 = vrot.lane.b32.xlu0 %v4315, 14
  %v4382 = vpop.permute.xlu0 %4381
  %4383 = vrot.lane.b32.xlu0 %v4316, 14
  %v4384 = vpop.permute.xlu0 %4383
  %4385 = vrot.lane.b32.xlu0 %v4317, 14
  %v4386 = vpop.permute.xlu0 %4385
  %4387 = vrot.lane.b32.xlu0 %v4318, 14
  %v4388 = vpop.permute.xlu0 %4387
  %4389 = vrot.lane.b32.xlu0 %v4319, 14
  %v4390 = vpop.permute.xlu0 %4389
  %4391 = vrot.lane.b32.xlu0 %v4320, 14
  %v4392 = vpop.permute.xlu0 %4391
  %vm4429 = vcmask 121968
  %4430 = vst.msk [vmem:[#allocation2] sm:$0xff] %vm4429, %v4322
  %4431 = vst.msk [vmem:[#allocation2 + $0x8] sm:$0xff] %vm4429, %v4324
  %4432 = vst.msk [vmem:[#allocation2 + $0x10] sm:$0xff] %vm4429, %v4326
  %4433 = vst.msk [vmem:[#allocation2 + $0x18] sm:$0xff] %vm4429, %v4328
  %4434 = vst.msk [vmem:[#allocation2 + $0x20] sm:$0xff] %vm4429, %v4330
  %4435 = vst.msk [vmem:[#allocation2 + $0x28] sm:$0xff] %vm4429, %v4332
  %4436 = vst.msk [vmem:[#allocation2 + $0x30] sm:$0xff] %vm4429, %v4334
  %4437 = vst.msk [vmem:[#allocation2 + $0x38] sm:$0xff] %vm4429, %v4336
  %4438 = vst.msk [vmem:[#allocation2 + $0x40] sm:$0xff] %vm4429, %v4338
  %4439 = vst.msk [vmem:[#allocation2 + $0x48] sm:$0xff] %vm4429, %v4340
  %4440 = vst.msk [vmem:[#allocation2 + $0x50] sm:$0xff] %vm4429, %v4342
  %4441 = vst.msk [vmem:[#allocation2 + $0x58] sm:$0xff] %vm4429, %v4344
  %4442 = vst.msk [vmem:[#allocation2 + $0x60] sm:$0xff] %vm4429, %v4346
  %4443 = vst.msk [vmem:[#allocation2 + $0x68] sm:$0xff] %vm4429, %v4348
  %4444 = vst.msk [vmem:[#allocation2 + $0x70] sm:$0xff] %vm4429, %v4350
  %4445 = vst.msk [vmem:[#allocation2 + $0x78] sm:$0xff] %vm4429, %v4352
  %4446 = vst.msk [vmem:[#allocation2 + $0x80] sm:$0xff] %vm4429, %v4354
  %4447 = vst.msk [vmem:[#allocation2 + $0x88] sm:$0xff] %vm4429, %v4356
  %4448 = vst.msk [vmem:[#allocation2 + $0x90] sm:$0xff] %vm4429, %v4358
  %4449 = vst.msk [vmem:[#allocation2 + $0x98] sm:$0xff] %vm4429, %v4360
  %4450 = vst.msk [vmem:[#allocation2 + $0xa0] sm:$0xff] %vm4429, %v4362
  %4451 = vst.msk [vmem:[#allocation2 + $0xa8] sm:$0xff] %vm4429, %v4364
  %4452 = vst.msk [vmem:[#allocation2 + $0xb0] sm:$0xff] %vm4429, %v4366
  %4453 = vst.msk [vmem:[#allocation2 + $0xb8] sm:$0xff] %vm4429, %v4368
  %4454 = vst.msk [vmem:[#allocation2 + $0xc0] sm:$0xff] %vm4429, %v4370
  %4455 = vst.msk [vmem:[#allocation2 + $0xc8] sm:$0xff] %vm4429, %v4372
  %4456 = vst.msk [vmem:[#allocation2 + $0xd0] sm:$0xff] %vm4429, %v4374
  %4457 = vst.msk [vmem:[#allocation2 + $0xd8] sm:$0xff] %vm4429, %v4376
  %4458 = vst.msk [vmem:[#allocation2 + $0xe0] sm:$0xff] %vm4429, %v4378
  %4459 = vst.msk [vmem:[#allocation2 + $0xe8] sm:$0xff] %vm4429, %v4380
  %4460 = vst.msk [vmem:[#allocation2 + $0xf0] sm:$0xff] %vm4429, %v4382
  %4461 = vst.msk [vmem:[#allocation2 + $0xf8] sm:$0xff] %vm4429, %v4384
  %4462 = vst.msk [vmem:[#allocation2 + $0x100] sm:$0xff] %vm4429, %v4386
  %4463 = vst.msk [vmem:[#allocation2 + $0x108] sm:$0xff] %vm4429, %v4388
  %4464 = vst.msk [vmem:[#allocation2 + $0x110] sm:$0xff] %vm4429, %v4390
  %4465 = vst.msk [vmem:[#allocation2 + $0x118] sm:$0xff] %vm4429, %v4392
  %s4466 = scalar_lea.vmem %s0, 48
  %v4467 = vld [vmem:[%s4466] sm:$0xff]
  %v4468 = vld [vmem:[%s4466 + $0x8] sm:$0xf]
  %v4469 = vld [vmem:[%s4466 + $0x10] sm:$0xff]
  %v4470 = vld [vmem:[%s4466 + $0x18] sm:$0xf]
  %v4471 = vld [vmem:[%s4466 + $0x20] sm:$0xff]
  %v4472 = vld [vmem:[%s4466 + $0x28] sm:$0xf]
  %v4473 = vld [vmem:[%s4466 + $0x30] sm:$0xff]
  %v4474 = vld [vmem:[%s4466 + $0x38] sm:$0xf]
  %v4475 = vld [vmem:[%s4466 + $0x40] sm:$0xff]
  %v4476 = vld [vmem:[%s4466 + $0x48] sm:$0xf]
  %v4477 = vld [vmem:[%s4466 + $0x50] sm:$0xff]
  %v4478 = vld [vmem:[%s4466 + $0x58] sm:$0xf]
  %v4479 = vld [vmem:[%s4466 + $0x60] sm:$0xff]
  %v4480 = vld [vmem:[%s4466 + $0x68] sm:$0xf]
  %v4481 = vld [vmem:[%s4466 + $0x70] sm:$0xff]
  %v4482 = vld [vmem:[%s4466 + $0x78] sm:$0xf]
  %v4483 = vld [vmem:[%s4466 + $0x80] sm:$0xff]
  %v4484 = vld [vmem:[%s4466 + $0x88] sm:$0xf]
  %v4485 = vld [vmem:[%s4466 + $0x90] sm:$0xff]
  %v4486 = vld [vmem:[%s4466 + $0x98] sm:$0xf]
  %v4487 = vld [vmem:[%s4466 + $0xa0] sm:$0xff]
  %v4488 = vld [vmem:[%s4466 + $0xa8] sm:$0xf]
  %v4489 = vld [vmem:[%s4466 + $0xb0] sm:$0xff]
  %v4490 = vld [vmem:[%s4466 + $0xb8] sm:$0xf]
  %v4491 = vld [vmem:[%s4466 + $0x100] sm:$0xff]
  %v4492 = vld [vmem:[%s4466 + $0x108] sm:$0xf]
  %v4493 = vld [vmem:[%s4466 + $0x110] sm:$0xff]
  %v4494 = vld [vmem:[%s4466 + $0x118] sm:$0xf]
  %v4495 = vld [vmem:[%s4466 + $0x120] sm:$0xff]
  %v4496 = vld [vmem:[%s4466 + $0x128] sm:$0xf]
  %v4497 = vld [vmem:[%s4466 + $0x130] sm:$0xff]
  %v4498 = vld [vmem:[%s4466 + $0x138] sm:$0xf]
  %v4499 = vld [vmem:[%s4466 + $0x140] sm:$0xff]
  %v4500 = vld [vmem:[%s4466 + $0x148] sm:$0xf]
  %v4501 = vld [vmem:[%s4466 + $0x150] sm:$0xff]
  %v4502 = vld [vmem:[%s4466 + $0x158] sm:$0xf]
  %v4503 = vld [vmem:[%s4466 + $0x160] sm:$0xff]
  %v4504 = vld [vmem:[%s4466 + $0x168] sm:$0xf]
  %v4505 = vld [vmem:[%s4466 + $0x170] sm:$0xff]
  %v4506 = vld [vmem:[%s4466 + $0x178] sm:$0xf]
  %v4507 = vld [vmem:[%s4466 + $0x180] sm:$0xff]
  %v4508 = vld [vmem:[%s4466 + $0x188] sm:$0xf]
  %v4509 = vld [vmem:[%s4466 + $0x190] sm:$0xff]
  %v4510 = vld [vmem:[%s4466 + $0x198] sm:$0xf]
  %v4511 = vld [vmem:[%s4466 + $0x1a0] sm:$0xff]
  %v4512 = vld [vmem:[%s4466 + $0x1a8] sm:$0xf]
  %v4513 = vld [vmem:[%s4466 + $0x1b0] sm:$0xff]
  %v4514 = vld [vmem:[%s4466 + $0x1b8] sm:$0xf]
  %v4563 = vcombine.high %v4467, %v4467
  %v4564 = vcombine.high %v4469, %v4469
  %v4565 = vcombine.high %v4471, %v4471
  %v4566 = vcombine.high %v4473, %v4473
  %v4567 = vcombine.high %v4475, %v4475
  %v4568 = vcombine.high %v4477, %v4477
  %v4569 = vcombine.high %v4479, %v4479
  %v4570 = vcombine.high %v4481, %v4481
  %v4571 = vcombine.high %v4483, %v4483
  %v4572 = vcombine.high %v4485, %v4485
  %v4573 = vcombine.high %v4487, %v4487
  %v4574 = vcombine.high %v4489, %v4489
  %v4575 = vcombine.high %v4491, %v4491
  %v4576 = vcombine.high %v4493, %v4493
  %v4577 = vcombine.high %v4495, %v4495
  %v4578 = vcombine.high %v4497, %v4497
  %v4579 = vcombine.high %v4499, %v4499
  %v4580 = vcombine.high %v4501, %v4501
  %v4581 = vcombine.high %v4503, %v4503
  %v4582 = vcombine.high %v4505, %v4505
  %v4583 = vcombine.high %v4507, %v4507
  %v4584 = vcombine.high %v4509, %v4509
  %v4585 = vcombine.high %v4511, %v4511
  %v4586 = vcombine.high %v4513, %v4513
  %v4587 = vcombine.low %v4467, %v4563
  %v4588 = vcombine.low %v4468, %v4469
  %v4589 = vcombine.low %v4564, %v4470
  %v4590 = vcombine.low %v4471, %v4565
  %v4591 = vcombine.low %v4472, %v4473
  %v4592 = vcombine.low %v4566, %v4474
  %v4593 = vcombine.low %v4475, %v4567
  %v4594 = vcombine.low %v4476, %v4477
  %v4595 = vcombine.low %v4568, %v4478
  %v4596 = vcombine.low %v4479, %v4569
  %v4597 = vcombine.low %v4480, %v4481
  %v4598 = vcombine.low %v4570, %v4482
  %v4599 = vcombine.low %v4483, %v4571
  %v4600 = vcombine.low %v4484, %v4485
  %v4601 = vcombine.low %v4572, %v4486
  %v4602 = vcombine.low %v4487, %v4573
  %v4603 = vcombine.low %v4488, %v4489
  %v4604 = vcombine.low %v4574, %v4490
  %v4605 = vcombine.low %v4491, %v4575
  %v4606 = vcombine.low %v4492, %v4493
  %v4607 = vcombine.low %v4576, %v4494
  %v4608 = vcombine.low %v4495, %v4577
  %v4609 = vcombine.low %v4496, %v4497
  %v4610 = vcombine.low %v4578, %v4498
  %v4611 = vcombine.low %v4499, %v4579
  %v4612 = vcombine.low %v4500, %v4501
  %v4613 = vcombine.low %v4580, %v4502
  %v4614 = vcombine.low %v4503, %v4581
  %v4615 = vcombine.low %v4504, %v4505
  %v4616 = vcombine.low %v4582, %v4506
  %v4617 = vcombine.low %v4507, %v4583
  %v4618 = vcombine.low %v4508, %v4509
  %v4619 = vcombine.low %v4584, %v4510
  %v4620 = vcombine.low %v4511, %v4585
  %v4621 = vcombine.low %v4512, %v4513
  %v4622 = vcombine.low %v4586, %v4514
  %4623 = vrot.lane.b32.xlu0 %v4587, 15
  %v4624 = vpop.permute.xlu0 %4623
  %4625 = vrot.lane.b32.xlu0 %v4588, 15
  %v4626 = vpop.permute.xlu0 %4625
  %4627 = vrot.lane.b32.xlu0 %v4589, 15
  %v4628 = vpop.permute.xlu0 %4627
  %4629 = vrot.lane.b32.xlu0 %v4590, 15
  %v4630 = vpop.permute.xlu0 %4629
  %4631 = vrot.lane.b32.xlu0 %v4591, 15
  %v4632 = vpop.permute.xlu0 %4631
  %4633 = vrot.lane.b32.xlu0 %v4592, 15
  %v4634 = vpop.permute.xlu0 %4633
  %4635 = vrot.lane.b32.xlu0 %v4593, 15
  %v4636 = vpop.permute.xlu0 %4635
  %4637 = vrot.lane.b32.xlu0 %v4594, 15
  %v4638 = vpop.permute.xlu0 %4637
  %4639 = vrot.lane.b32.xlu0 %v4595, 15
  %v4640 = vpop.permute.xlu0 %4639
  %4641 = vrot.lane.b32.xlu0 %v4596, 15
  %v4642 = vpop.permute.xlu0 %4641
  %4643 = vrot.lane.b32.xlu0 %v4597, 15
  %v4644 = vpop.permute.xlu0 %4643
  %4645 = vrot.lane.b32.xlu0 %v4598, 15
  %v4646 = vpop.permute.xlu0 %4645
  %4647 = vrot.lane.b32.xlu0 %v4599, 15
  %v4648 = vpop.permute.xlu0 %4647
  %4649 = vrot.lane.b32.xlu0 %v4600, 15
  %v4650 = vpop.permute.xlu0 %4649
  %4651 = vrot.lane.b32.xlu0 %v4601, 15
  %v4652 = vpop.permute.xlu0 %4651
  %4653 = vrot.lane.b32.xlu0 %v4602, 15
  %v4654 = vpop.permute.xlu0 %4653
  %4655 = vrot.lane.b32.xlu0 %v4603, 15
  %v4656 = vpop.permute.xlu0 %4655
  %4657 = vrot.lane.b32.xlu0 %v4604, 15
  %v4658 = vpop.permute.xlu0 %4657
  %4659 = vrot.lane.b32.xlu0 %v4605, 15
  %v4660 = vpop.permute.xlu0 %4659
  %4661 = vrot.lane.b32.xlu0 %v4606, 15
  %v4662 = vpop.permute.xlu0 %4661
  %4663 = vrot.lane.b32.xlu0 %v4607, 15
  %v4664 = vpop.permute.xlu0 %4663
  %4665 = vrot.lane.b32.xlu0 %v4608, 15
  %v4666 = vpop.permute.xlu0 %4665
  %4667 = vrot.lane.b32.xlu0 %v4609, 15
  %v4668 = vpop.permute.xlu0 %4667
  %4669 = vrot.lane.b32.xlu0 %v4610, 15
  %v4670 = vpop.permute.xlu0 %4669
  %4671 = vrot.lane.b32.xlu0 %v4611, 15
  %v4672 = vpop.permute.xlu0 %4671
  %4673 = vrot.lane.b32.xlu0 %v4612, 15
  %v4674 = vpop.permute.xlu0 %4673
  %4675 = vrot.lane.b32.xlu0 %v4613, 15
  %v4676 = vpop.permute.xlu0 %4675
  %4677 = vrot.lane.b32.xlu0 %v4614, 15
  %v4678 = vpop.permute.xlu0 %4677
  %4679 = vrot.lane.b32.xlu0 %v4615, 15
  %v4680 = vpop.permute.xlu0 %4679
  %4681 = vrot.lane.b32.xlu0 %v4616, 15
  %v4682 = vpop.permute.xlu0 %4681
  %4683 = vrot.lane.b32.xlu0 %v4617, 15
  %v4684 = vpop.permute.xlu0 %4683
  %4685 = vrot.lane.b32.xlu0 %v4618, 15
  %v4686 = vpop.permute.xlu0 %4685
  %4687 = vrot.lane.b32.xlu0 %v4619, 15
  %v4688 = vpop.permute.xlu0 %4687
  %4689 = vrot.lane.b32.xlu0 %v4620, 15
  %v4690 = vpop.permute.xlu0 %4689
  %4691 = vrot.lane.b32.xlu0 %v4621, 15
  %v4692 = vpop.permute.xlu0 %4691
  %4693 = vrot.lane.b32.xlu0 %v4622, 15
  %v4694 = vpop.permute.xlu0 %4693
  %vm4731 = vcmask 130168
  %4732 = vst.msk [vmem:[#allocation2] sm:$0xff] %vm4731, %v4624
  %4733 = vst.msk [vmem:[#allocation2 + $0x8] sm:$0xff] %vm4731, %v4626
  %4734 = vst.msk [vmem:[#allocation2 + $0x10] sm:$0xff] %vm4731, %v4628
  %4735 = vst.msk [vmem:[#allocation2 + $0x18] sm:$0xff] %vm4731, %v4630
  %4736 = vst.msk [vmem:[#allocation2 + $0x20] sm:$0xff] %vm4731, %v4632
  %4737 = vst.msk [vmem:[#allocation2 + $0x28] sm:$0xff] %vm4731, %v4634
  %4738 = vst.msk [vmem:[#allocation2 + $0x30] sm:$0xff] %vm4731, %v4636
  %4739 = vst.msk [vmem:[#allocation2 + $0x38] sm:$0xff] %vm4731, %v4638
  %4740 = vst.msk [vmem:[#allocation2 + $0x40] sm:$0xff] %vm4731, %v4640
  %4741 = vst.msk [vmem:[#allocation2 + $0x48] sm:$0xff] %vm4731, %v4642
  %4742 = vst.msk [vmem:[#allocation2 + $0x50] sm:$0xff] %vm4731, %v4644
  %4743 = vst.msk [vmem:[#allocation2 + $0x58] sm:$0xff] %vm4731, %v4646
  %4744 = vst.msk [vmem:[#allocation2 + $0x60] sm:$0xff] %vm4731, %v4648
  %4745 = vst.msk [vmem:[#allocation2 + $0x68] sm:$0xff] %vm4731, %v4650
  %4746 = vst.msk [vmem:[#allocation2 + $0x70] sm:$0xff] %vm4731, %v4652
  %4747 = vst.msk [vmem:[#allocation2 + $0x78] sm:$0xff] %vm4731, %v4654
  %4748 = vst.msk [vmem:[#allocation2 + $0x80] sm:$0xff] %vm4731, %v4656
  %4749 = vst.msk [vmem:[#allocation2 + $0x88] sm:$0xff] %vm4731, %v4658
  %4750 = vst.msk [vmem:[#allocation2 + $0x90] sm:$0xff] %vm4731, %v4660
  %4751 = vst.msk [vmem:[#allocation2 + $0x98] sm:$0xff] %vm4731, %v4662
  %4752 = vst.msk [vmem:[#allocation2 + $0xa0] sm:$0xff] %vm4731, %v4664
  %4753 = vst.msk [vmem:[#allocation2 + $0xa8] sm:$0xff] %vm4731, %v4666
  %4754 = vst.msk [vmem:[#allocation2 + $0xb0] sm:$0xff] %vm4731, %v4668
  %4755 = vst.msk [vmem:[#allocation2 + $0xb8] sm:$0xff] %vm4731, %v4670
  %4756 = vst.msk [vmem:[#allocation2 + $0xc0] sm:$0xff] %vm4731, %v4672
  %4757 = vst.msk [vmem:[#allocation2 + $0xc8] sm:$0xff] %vm4731, %v4674
  %4758 = vst.msk [vmem:[#allocation2 + $0xd0] sm:$0xff] %vm4731, %v4676
  %4759 = vst.msk [vmem:[#allocation2 + $0xd8] sm:$0xff] %vm4731, %v4678
  %4760 = vst.msk [vmem:[#allocation2 + $0xe0] sm:$0xff] %vm4731, %v4680
  %4761 = vst.msk [vmem:[#allocation2 + $0xe8] sm:$0xff] %vm4731, %v4682
  %4762 = vst.msk [vmem:[#allocation2 + $0xf0] sm:$0xff] %vm4731, %v4684
  %4763 = vst.msk [vmem:[#allocation2 + $0xf8] sm:$0xff] %vm4731, %v4686
  %4764 = vst.msk [vmem:[#allocation2 + $0x100] sm:$0xff] %vm4731, %v4688
  %4765 = vst.msk [vmem:[#allocation2 + $0x108] sm:$0xff] %vm4731, %v4690
  %4766 = vst.msk [vmem:[#allocation2 + $0x110] sm:$0xff] %vm4731, %v4692
  %4767 = vst.msk [vmem:[#allocation2 + $0x118] sm:$0xff] %vm4731, %v4694
  %v4768 = vld [vmem:[%s4466 + $0x1] sm:$0xff]
  %v4769 = vld [vmem:[%s4466 + $0x9] sm:$0xf]
  %v4770 = vld [vmem:[%s4466 + $0x11] sm:$0xff]
  %v4771 = vld [vmem:[%s4466 + $0x19] sm:$0xf]
  %v4772 = vld [vmem:[%s4466 + $0x21] sm:$0xff]
  %v4773 = vld [vmem:[%s4466 + $0x29] sm:$0xf]
  %v4774 = vld [vmem:[%s4466 + $0x31] sm:$0xff]
  %v4775 = vld [vmem:[%s4466 + $0x39] sm:$0xf]
  %v4776 = vld [vmem:[%s4466 + $0x41] sm:$0xff]
  %v4777 = vld [vmem:[%s4466 + $0x49] sm:$0xf]
  %v4778 = vld [vmem:[%s4466 + $0x51] sm:$0xff]
  %v4779 = vld [vmem:[%s4466 + $0x59] sm:$0xf]
  %v4780 = vld [vmem:[%s4466 + $0x61] sm:$0xff]
  %v4781 = vld [vmem:[%s4466 + $0x69] sm:$0xf]
  %v4782 = vld [vmem:[%s4466 + $0x71] sm:$0xff]
  %v4783 = vld [vmem:[%s4466 + $0x79] sm:$0xf]
  %v4784 = vld [vmem:[%s4466 + $0x81] sm:$0xff]
  %v4785 = vld [vmem:[%s4466 + $0x89] sm:$0xf]
  %v4786 = vld [vmem:[%s4466 + $0x91] sm:$0xff]
  %v4787 = vld [vmem:[%s4466 + $0x99] sm:$0xf]
  %v4788 = vld [vmem:[%s4466 + $0xa1] sm:$0xff]
  %v4789 = vld [vmem:[%s4466 + $0xa9] sm:$0xf]
  %v4790 = vld [vmem:[%s4466 + $0xb1] sm:$0xff]
  %v4791 = vld [vmem:[%s4466 + $0xb9] sm:$0xf]
  %v4792 = vld [vmem:[%s4466 + $0x101] sm:$0xff]
  %v4793 = vld [vmem:[%s4466 + $0x109] sm:$0xf]
  %v4794 = vld [vmem:[%s4466 + $0x111] sm:$0xff]
  %v4795 = vld [vmem:[%s4466 + $0x119] sm:$0xf]
  %v4796 = vld [vmem:[%s4466 + $0x121] sm:$0xff]
  %v4797 = vld [vmem:[%s4466 + $0x129] sm:$0xf]
  %v4798 = vld [vmem:[%s4466 + $0x131] sm:$0xff]
  %v4799 = vld [vmem:[%s4466 + $0x139] sm:$0xf]
  %v4800 = vld [vmem:[%s4466 + $0x141] sm:$0xff]
  %v4801 = vld [vmem:[%s4466 + $0x149] sm:$0xf]
  %v4802 = vld [vmem:[%s4466 + $0x151] sm:$0xff]
  %v4803 = vld [vmem:[%s4466 + $0x159] sm:$0xf]
  %v4804 = vld [vmem:[%s4466 + $0x161] sm:$0xff]
  %v4805 = vld [vmem:[%s4466 + $0x169] sm:$0xf]
  %v4806 = vld [vmem:[%s4466 + $0x171] sm:$0xff]
  %v4807 = vld [vmem:[%s4466 + $0x179] sm:$0xf]
  %v4808 = vld [vmem:[%s4466 + $0x181] sm:$0xff]
  %v4809 = vld [vmem:[%s4466 + $0x189] sm:$0xf]
  %v4810 = vld [vmem:[%s4466 + $0x191] sm:$0xff]
  %v4811 = vld [vmem:[%s4466 + $0x199] sm:$0xf]
  %v4812 = vld [vmem:[%s4466 + $0x1a1] sm:$0xff]
  %v4813 = vld [vmem:[%s4466 + $0x1a9] sm:$0xf]
  %v4814 = vld [vmem:[%s4466 + $0x1b1] sm:$0xff]
  %v4815 = vld [vmem:[%s4466 + $0x1b9] sm:$0xf]
  %v4864 = vcombine.high %v4768, %v4768
  %v4865 = vcombine.high %v4770, %v4770
  %v4866 = vcombine.high %v4772, %v4772
  %v4867 = vcombine.high %v4774, %v4774
  %v4868 = vcombine.high %v4776, %v4776
  %v4869 = vcombine.high %v4778, %v4778
  %v4870 = vcombine.high %v4780, %v4780
  %v4871 = vcombine.high %v4782, %v4782
  %v4872 = vcombine.high %v4784, %v4784
  %v4873 = vcombine.high %v4786, %v4786
  %v4874 = vcombine.high %v4788, %v4788
  %v4875 = vcombine.high %v4790, %v4790
  %v4876 = vcombine.high %v4792, %v4792
  %v4877 = vcombine.high %v4794, %v4794
  %v4878 = vcombine.high %v4796, %v4796
  %v4879 = vcombine.high %v4798, %v4798
  %v4880 = vcombine.high %v4800, %v4800
  %v4881 = vcombine.high %v4802, %v4802
  %v4882 = vcombine.high %v4804, %v4804
  %v4883 = vcombine.high %v4806, %v4806
  %v4884 = vcombine.high %v4808, %v4808
  %v4885 = vcombine.high %v4810, %v4810
  %v4886 = vcombine.high %v4812, %v4812
  %v4887 = vcombine.high %v4814, %v4814
  %v4888 = vcombine.low %v4768, %v4864
  %v4889 = vcombine.low %v4769, %v4770
  %v4890 = vcombine.low %v4865, %v4771
  %v4891 = vcombine.low %v4772, %v4866
  %v4892 = vcombine.low %v4773, %v4774
  %v4893 = vcombine.low %v4867, %v4775
  %v4894 = vcombine.low %v4776, %v4868
  %v4895 = vcombine.low %v4777, %v4778
  %v4896 = vcombine.low %v4869, %v4779
  %v4897 = vcombine.low %v4780, %v4870
  %v4898 = vcombine.low %v4781, %v4782
  %v4899 = vcombine.low %v4871, %v4783
  %v4900 = vcombine.low %v4784, %v4872
  %v4901 = vcombine.low %v4785, %v4786
  %v4902 = vcombine.low %v4873, %v4787
  %v4903 = vcombine.low %v4788, %v4874
  %v4904 = vcombine.low %v4789, %v4790
  %v4905 = vcombine.low %v4875, %v4791
  %v4906 = vcombine.low %v4792, %v4876
  %v4907 = vcombine.low %v4793, %v4794
  %v4908 = vcombine.low %v4877, %v4795
  %v4909 = vcombine.low %v4796, %v4878
  %v4910 = vcombine.low %v4797, %v4798
  %v4911 = vcombine.low %v4879, %v4799
  %v4912 = vcombine.low %v4800, %v4880
  %v4913 = vcombine.low %v4801, %v4802
  %v4914 = vcombine.low %v4881, %v4803
  %v4915 = vcombine.low %v4804, %v4882
  %v4916 = vcombine.low %v4805, %v4806
  %v4917 = vcombine.low %v4883, %v4807
  %v4918 = vcombine.low %v4808, %v4884
  %v4919 = vcombine.low %v4809, %v4810
  %v4920 = vcombine.low %v4885, %v4811
  %v4921 = vcombine.low %v4812, %v4886
  %v4922 = vcombine.low %v4813, %v4814
  %v4923 = vcombine.low %v4887, %v4815
  %4924 = vrot.lane.b32.xlu0 %v4888, 16
  %v4925 = vpop.permute.xlu0 %4924
  %4926 = vrot.lane.b32.xlu0 %v4889, 16
  %v4927 = vpop.permute.xlu0 %4926
  %4928 = vrot.lane.b32.xlu0 %v4890, 16
  %v4929 = vpop.permute.xlu0 %4928
  %4930 = vrot.lane.b32.xlu0 %v4891, 16
  %v4931 = vpop.permute.xlu0 %4930
  %4932 = vrot.lane.b32.xlu0 %v4892, 16
  %v4933 = vpop.permute.xlu0 %4932
  %4934 = vrot.lane.b32.xlu0 %v4893, 16
  %v4935 = vpop.permute.xlu0 %4934
  %4936 = vrot.lane.b32.xlu0 %v4894, 16
  %v4937 = vpop.permute.xlu0 %4936
  %4938 = vrot.lane.b32.xlu0 %v4895, 16
  %v4939 = vpop.permute.xlu0 %4938
  %4940 = vrot.lane.b32.xlu0 %v4896, 16
  %v4941 = vpop.permute.xlu0 %4940
  %4942 = vrot.lane.b32.xlu0 %v4897, 16
  %v4943 = vpop.permute.xlu0 %4942
  %4944 = vrot.lane.b32.xlu0 %v4898, 16
  %v4945 = vpop.permute.xlu0 %4944
  %4946 = vrot.lane.b32.xlu0 %v4899, 16
  %v4947 = vpop.permute.xlu0 %4946
  %4948 = vrot.lane.b32.xlu0 %v4900, 16
  %v4949 = vpop.permute.xlu0 %4948
  %4950 = vrot.lane.b32.xlu0 %v4901, 16
  %v4951 = vpop.permute.xlu0 %4950
  %4952 = vrot.lane.b32.xlu0 %v4902, 16
  %v4953 = vpop.permute.xlu0 %4952
  %4954 = vrot.lane.b32.xlu0 %v4903, 16
  %v4955 = vpop.permute.xlu0 %4954
  %4956 = vrot.lane.b32.xlu0 %v4904, 16
  %v4957 = vpop.permute.xlu0 %4956
  %4958 = vrot.lane.b32.xlu0 %v4905, 16
  %v4959 = vpop.permute.xlu0 %4958
  %4960 = vrot.lane.b32.xlu0 %v4906, 16
  %v4961 = vpop.permute.xlu0 %4960
  %4962 = vrot.lane.b32.xlu0 %v4907, 16
  %v4963 = vpop.permute.xlu0 %4962
  %4964 = vrot.lane.b32.xlu0 %v4908, 16
  %v4965 = vpop.permute.xlu0 %4964
  %4966 = vrot.lane.b32.xlu0 %v4909, 16
  %v4967 = vpop.permute.xlu0 %4966
  %4968 = vrot.lane.b32.xlu0 %v4910, 16
  %v4969 = vpop.permute.xlu0 %4968
  %4970 = vrot.lane.b32.xlu0 %v4911, 16
  %v4971 = vpop.permute.xlu0 %4970
  %4972 = vrot.lane.b32.xlu0 %v4912, 16
  %v4973 = vpop.permute.xlu0 %4972
  %4974 = vrot.lane.b32.xlu0 %v4913, 16
  %v4975 = vpop.permute.xlu0 %4974
  %4976 = vrot.lane.b32.xlu0 %v4914, 16
  %v4977 = vpop.permute.xlu0 %4976
  %4978 = vrot.lane.b32.xlu0 %v4915, 16
  %v4979 = vpop.permute.xlu0 %4978
  %4980 = vrot.lane.b32.xlu0 %v4916, 16
  %v4981 = vpop.permute.xlu0 %4980
  %4982 = vrot.lane.b32.xlu0 %v4917, 16
  %v4983 = vpop.permute.xlu0 %4982
  %4984 = vrot.lane.b32.xlu0 %v4918, 16
  %v4985 = vpop.permute.xlu0 %4984
  %4986 = vrot.lane.b32.xlu0 %v4919, 16
  %v4987 = vpop.permute.xlu0 %4986
  %4988 = vrot.lane.b32.xlu0 %v4920, 16
  %v4989 = vpop.permute.xlu0 %4988
  %4990 = vrot.lane.b32.xlu0 %v4921, 16
  %v4991 = vpop.permute.xlu0 %4990
  %4992 = vrot.lane.b32.xlu0 %v4922, 16
  %v4993 = vpop.permute.xlu0 %4992
  %4994 = vrot.lane.b32.xlu0 %v4923, 16
  %v4995 = vpop.permute.xlu0 %4994
  %vm5032 = vcmask 138368
  %5033 = vst.msk [vmem:[#allocation2] sm:$0xff] %vm5032, %v4925
  %5034 = vst.msk [vmem:[#allocation2 + $0x8] sm:$0xff] %vm5032, %v4927
  %5035 = vst.msk [vmem:[#allocation2 + $0x10] sm:$0xff] %vm5032, %v4929
  %5036 = vst.msk [vmem:[#allocation2 + $0x18] sm:$0xff] %vm5032, %v4931
  %5037 = vst.msk [vmem:[#allocation2 + $0x20] sm:$0xff] %vm5032, %v4933
  %5038 = vst.msk [vmem:[#allocation2 + $0x28] sm:$0xff] %vm5032, %v4935
  %5039 = vst.msk [vmem:[#allocation2 + $0x30] sm:$0xff] %vm5032, %v4937
  %5040 = vst.msk [vmem:[#allocation2 + $0x38] sm:$0xff] %vm5032, %v4939
  %5041 = vst.msk [vmem:[#allocation2 + $0x40] sm:$0xff] %vm5032, %v4941
  %5042 = vst.msk [vmem:[#allocation2 + $0x48] sm:$0xff] %vm5032, %v4943
  %5043 = vst.msk [vmem:[#allocation2 + $0x50] sm:$0xff] %vm5032, %v4945
  %5044 = vst.msk [vmem:[#allocation2 + $0x58] sm:$0xff] %vm5032, %v4947
  %5045 = vst.msk [vmem:[#allocation2 + $0x60] sm:$0xff] %vm5032, %v4949
  %5046 = vst.msk [vmem:[#allocation2 + $0x68] sm:$0xff] %vm5032, %v4951
  %5047 = vst.msk [vmem:[#allocation2 + $0x70] sm:$0xff] %vm5032, %v4953
  %5048 = vst.msk [vmem:[#allocation2 + $0x78] sm:$0xff] %vm5032, %v4955
  %5049 = vst.msk [vmem:[#allocation2 + $0x80] sm:$0xff] %vm5032, %v4957
  %5050 = vst.msk [vmem:[#allocation2 + $0x88] sm:$0xff] %vm5032, %v4959
  %5051 = vst.msk [vmem:[#allocation2 + $0x90] sm:$0xff] %vm5032, %v4961
  %5052 = vst.msk [vmem:[#allocation2 + $0x98] sm:$0xff] %vm5032, %v4963
  %5053 = vst.msk [vmem:[#allocation2 + $0xa0] sm:$0xff] %vm5032, %v4965
  %5054 = vst.msk [vmem:[#allocation2 + $0xa8] sm:$0xff] %vm5032, %v4967
  %5055 = vst.msk [vmem:[#allocation2 + $0xb0] sm:$0xff] %vm5032, %v4969
  %5056 = vst.msk [vmem:[#allocation2 + $0xb8] sm:$0xff] %vm5032, %v4971
  %5057 = vst.msk [vmem:[#allocation2 + $0xc0] sm:$0xff] %vm5032, %v4973
  %5058 = vst.msk [vmem:[#allocation2 + $0xc8] sm:$0xff] %vm5032, %v4975
  %5059 = vst.msk [vmem:[#allocation2 + $0xd0] sm:$0xff] %vm5032, %v4977
  %5060 = vst.msk [vmem:[#allocation2 + $0xd8] sm:$0xff] %vm5032, %v4979
  %5061 = vst.msk [vmem:[#allocation2 + $0xe0] sm:$0xff] %vm5032, %v4981
  %5062 = vst.msk [vmem:[#allocation2 + $0xe8] sm:$0xff] %vm5032, %v4983
  %5063 = vst.msk [vmem:[#allocation2 + $0xf0] sm:$0xff] %vm5032, %v4985
  %5064 = vst.msk [vmem:[#allocation2 + $0xf8] sm:$0xff] %vm5032, %v4987
  %5065 = vst.msk [vmem:[#allocation2 + $0x100] sm:$0xff] %vm5032, %v4989
  %5066 = vst.msk [vmem:[#allocation2 + $0x108] sm:$0xff] %vm5032, %v4991
  %5067 = vst.msk [vmem:[#allocation2 + $0x110] sm:$0xff] %vm5032, %v4993
  %5068 = vst.msk [vmem:[#allocation2 + $0x118] sm:$0xff] %vm5032, %v4995
  %v5069 = vld [vmem:[%s4466 + $0x2] sm:$0xff]
  %v5070 = vld [vmem:[%s4466 + $0xa] sm:$0xf]
  %v5071 = vld [vmem:[%s4466 + $0x12] sm:$0xff]
  %v5072 = vld [vmem:[%s4466 + $0x1a] sm:$0xf]
  %v5073 = vld [vmem:[%s4466 + $0x22] sm:$0xff]
  %v5074 = vld [vmem:[%s4466 + $0x2a] sm:$0xf]
  %v5075 = vld [vmem:[%s4466 + $0x32] sm:$0xff]
  %v5076 = vld [vmem:[%s4466 + $0x3a] sm:$0xf]
  %v5077 = vld [vmem:[%s4466 + $0x42] sm:$0xff]
  %v5078 = vld [vmem:[%s4466 + $0x4a] sm:$0xf]
  %v5079 = vld [vmem:[%s4466 + $0x52] sm:$0xff]
  %v5080 = vld [vmem:[%s4466 + $0x5a] sm:$0xf]
  %v5081 = vld [vmem:[%s4466 + $0x62] sm:$0xff]
  %v5082 = vld [vmem:[%s4466 + $0x6a] sm:$0xf]
  %v5083 = vld [vmem:[%s4466 + $0x72] sm:$0xff]
  %v5084 = vld [vmem:[%s4466 + $0x7a] sm:$0xf]
  %v5085 = vld [vmem:[%s4466 + $0x82] sm:$0xff]
  %v5086 = vld [vmem:[%s4466 + $0x8a] sm:$0xf]
  %v5087 = vld [vmem:[%s4466 + $0x92] sm:$0xff]
  %v5088 = vld [vmem:[%s4466 + $0x9a] sm:$0xf]
  %v5089 = vld [vmem:[%s4466 + $0xa2] sm:$0xff]
  %v5090 = vld [vmem:[%s4466 + $0xaa] sm:$0xf]
  %v5091 = vld [vmem:[%s4466 + $0xb2] sm:$0xff]
  %v5092 = vld [vmem:[%s4466 + $0xba] sm:$0xf]
  %v5093 = vld [vmem:[%s4466 + $0x102] sm:$0xff]
  %v5094 = vld [vmem:[%s4466 + $0x10a] sm:$0xf]
  %v5095 = vld [vmem:[%s4466 + $0x112] sm:$0xff]
  %v5096 = vld [vmem:[%s4466 + $0x11a] sm:$0xf]
  %v5097 = vld [vmem:[%s4466 + $0x122] sm:$0xff]
  %v5098 = vld [vmem:[%s4466 + $0x12a] sm:$0xf]
  %v5099 = vld [vmem:[%s4466 + $0x132] sm:$0xff]
  %v5100 = vld [vmem:[%s4466 + $0x13a] sm:$0xf]
  %v5101 = vld [vmem:[%s4466 + $0x142] sm:$0xff]
  %v5102 = vld [vmem:[%s4466 + $0x14a] sm:$0xf]
  %v5103 = vld [vmem:[%s4466 + $0x152] sm:$0xff]
  %v5104 = vld [vmem:[%s4466 + $0x15a] sm:$0xf]
  %v5105 = vld [vmem:[%s4466 + $0x162] sm:$0xff]
  %v5106 = vld [vmem:[%s4466 + $0x16a] sm:$0xf]
  %v5107 = vld [vmem:[%s4466 + $0x172] sm:$0xff]
  %v5108 = vld [vmem:[%s4466 + $0x17a] sm:$0xf]
  %v5109 = vld [vmem:[%s4466 + $0x182] sm:$0xff]
  %v5110 = vld [vmem:[%s4466 + $0x18a] sm:$0xf]
  %v5111 = vld [vmem:[%s4466 + $0x192] sm:$0xff]
  %v5112 = vld [vmem:[%s4466 + $0x19a] sm:$0xf]
  %v5113 = vld [vmem:[%s4466 + $0x1a2] sm:$0xff]
  %v5114 = vld [vmem:[%s4466 + $0x1aa] sm:$0xf]
  %v5115 = vld [vmem:[%s4466 + $0x1b2] sm:$0xff]
  %v5116 = vld [vmem:[%s4466 + $0x1ba] sm:$0xf]
  %v5165 = vcombine.high %v5069, %v5069
  %v5166 = vcombine.high %v5071, %v5071
  %v5167 = vcombine.high %v5073, %v5073
  %v5168 = vcombine.high %v5075, %v5075
  %v5169 = vcombine.high %v5077, %v5077
  %v5170 = vcombine.high %v5079, %v5079
  %v5171 = vcombine.high %v5081, %v5081
  %v5172 = vcombine.high %v5083, %v5083
  %v5173 = vcombine.high %v5085, %v5085
  %v5174 = vcombine.high %v5087, %v5087
  %v5175 = vcombine.high %v5089, %v5089
  %v5176 = vcombine.high %v5091, %v5091
  %v5177 = vcombine.high %v5093, %v5093
  %v5178 = vcombine.high %v5095, %v5095
  %v5179 = vcombine.high %v5097, %v5097
  %v5180 = vcombine.high %v5099, %v5099
  %v5181 = vcombine.high %v5101, %v5101
  %v5182 = vcombine.high %v5103, %v5103
  %v5183 = vcombine.high %v5105, %v5105
  %v5184 = vcombine.high %v5107, %v5107
  %v5185 = vcombine.high %v5109, %v5109
  %v5186 = vcombine.high %v5111, %v5111
  %v5187 = vcombine.high %v5113, %v5113
  %v5188 = vcombine.high %v5115, %v5115
  %v5189 = vcombine.low %v5069, %v5165
  %v5190 = vcombine.low %v5070, %v5071
  %v5191 = vcombine.low %v5166, %v5072
  %v5192 = vcombine.low %v5073, %v5167
  %v5193 = vcombine.low %v5074, %v5075
  %v5194 = vcombine.low %v5168, %v5076
  %v5195 = vcombine.low %v5077, %v5169
  %v5196 = vcombine.low %v5078, %v5079
  %v5197 = vcombine.low %v5170, %v5080
  %v5198 = vcombine.low %v5081, %v5171
  %v5199 = vcombine.low %v5082, %v5083
  %v5200 = vcombine.low %v5172, %v5084
  %v5201 = vcombine.low %v5085, %v5173
  %v5202 = vcombine.low %v5086, %v5087
  %v5203 = vcombine.low %v5174, %v5088
  %v5204 = vcombine.low %v5089, %v5175
  %v5205 = vcombine.low %v5090, %v5091
  %v5206 = vcombine.low %v5176, %v5092
  %v5207 = vcombine.low %v5093, %v5177
  %v5208 = vcombine.low %v5094, %v5095
  %v5209 = vcombine.low %v5178, %v5096
  %v5210 = vcombine.low %v5097, %v5179
  %v5211 = vcombine.low %v5098, %v5099
  %v5212 = vcombine.low %v5180, %v5100
  %v5213 = vcombine.low %v5101, %v5181
  %v5214 = vcombine.low %v5102, %v5103
  %v5215 = vcombine.low %v5182, %v5104
  %v5216 = vcombine.low %v5105, %v5183
  %v5217 = vcombine.low %v5106, %v5107
  %v5218 = vcombine.low %v5184, %v5108
  %v5219 = vcombine.low %v5109, %v5185
  %v5220 = vcombine.low %v5110, %v5111
  %v5221 = vcombine.low %v5186, %v5112
  %v5222 = vcombine.low %v5113, %v5187
  %v5223 = vcombine.low %v5114, %v5115
  %v5224 = vcombine.low %v5188, %v5116
  %5225 = vrot.lane.b32.xlu0 %v5189, 17
  %v5226 = vpop.permute.xlu0 %5225
  %5227 = vrot.lane.b32.xlu0 %v5190, 17
  %v5228 = vpop.permute.xlu0 %5227
  %5229 = vrot.lane.b32.xlu0 %v5191, 17
  %v5230 = vpop.permute.xlu0 %5229
  %5231 = vrot.lane.b32.xlu0 %v5192, 17
  %v5232 = vpop.permute.xlu0 %5231
  %5233 = vrot.lane.b32.xlu0 %v5193, 17
  %v5234 = vpop.permute.xlu0 %5233
  %5235 = vrot.lane.b32.xlu0 %v5194, 17
  %v5236 = vpop.permute.xlu0 %5235
  %5237 = vrot.lane.b32.xlu0 %v5195, 17
  %v5238 = vpop.permute.xlu0 %5237
  %5239 = vrot.lane.b32.xlu0 %v5196, 17
  %v5240 = vpop.permute.xlu0 %5239
  %5241 = vrot.lane.b32.xlu0 %v5197, 17
  %v5242 = vpop.permute.xlu0 %5241
  %5243 = vrot.lane.b32.xlu0 %v5198, 17
  %v5244 = vpop.permute.xlu0 %5243
  %5245 = vrot.lane.b32.xlu0 %v5199, 17
  %v5246 = vpop.permute.xlu0 %5245
  %5247 = vrot.lane.b32.xlu0 %v5200, 17
  %v5248 = vpop.permute.xlu0 %5247
  %5249 = vrot.lane.b32.xlu0 %v5201, 17
  %v5250 = vpop.permute.xlu0 %5249
  %5251 = vrot.lane.b32.xlu0 %v5202, 17
  %v5252 = vpop.permute.xlu0 %5251
  %5253 = vrot.lane.b32.xlu0 %v5203, 17
  %v5254 = vpop.permute.xlu0 %5253
  %5255 = vrot.lane.b32.xlu0 %v5204, 17
  %v5256 = vpop.permute.xlu0 %5255
  %5257 = vrot.lane.b32.xlu0 %v5205, 17
  %v5258 = vpop.permute.xlu0 %5257
  %5259 = vrot.lane.b32.xlu0 %v5206, 17
  %v5260 = vpop.permute.xlu0 %5259
  %5261 = vrot.lane.b32.xlu0 %v5207, 17
  %v5262 = vpop.permute.xlu0 %5261
  %5263 = vrot.lane.b32.xlu0 %v5208, 17
  %v5264 = vpop.permute.xlu0 %5263
  %5265 = vrot.lane.b32.xlu0 %v5209, 17
  %v5266 = vpop.permute.xlu0 %5265
  %5267 = vrot.lane.b32.xlu0 %v5210, 17
  %v5268 = vpop.permute.xlu0 %5267
  %5269 = vrot.lane.b32.xlu0 %v5211, 17
  %v5270 = vpop.permute.xlu0 %5269
  %5271 = vrot.lane.b32.xlu0 %v5212, 17
  %v5272 = vpop.permute.xlu0 %5271
  %5273 = vrot.lane.b32.xlu0 %v5213, 17
  %v5274 = vpop.permute.xlu0 %5273
  %5275 = vrot.lane.b32.xlu0 %v5214, 17
  %v5276 = vpop.permute.xlu0 %5275
  %5277 = vrot.lane.b32.xlu0 %v5215, 17
  %v5278 = vpop.permute.xlu0 %5277
  %5279 = vrot.lane.b32.xlu0 %v5216, 17
  %v5280 = vpop.permute.xlu0 %5279
  %5281 = vrot.lane.b32.xlu0 %v5217, 17
  %v5282 = vpop.permute.xlu0 %5281
  %5283 = vrot.lane.b32.xlu0 %v5218, 17
  %v5284 = vpop.permute.xlu0 %5283
  %5285 = vrot.lane.b32.xlu0 %v5219, 17
  %v5286 = vpop.permute.xlu0 %5285
  %5287 = vrot.lane.b32.xlu0 %v5220, 17
  %v5288 = vpop.permute.xlu0 %5287
  %5289 = vrot.lane.b32.xlu0 %v5221, 17
  %v5290 = vpop.permute.xlu0 %5289
  %5291 = vrot.lane.b32.xlu0 %v5222, 17
  %v5292 = vpop.permute.xlu0 %5291
  %5293 = vrot.lane.b32.xlu0 %v5223, 17
  %v5294 = vpop.permute.xlu0 %5293
  %5295 = vrot.lane.b32.xlu0 %v5224, 17
  %v5296 = vpop.permute.xlu0 %5295
  %vm5333 = vcmask 146568
  %5334 = vst.msk [vmem:[#allocation2] sm:$0xff] %vm5333, %v5226
  %5335 = vst.msk [vmem:[#allocation2 + $0x8] sm:$0xff] %vm5333, %v5228
  %5336 = vst.msk [vmem:[#allocation2 + $0x10] sm:$0xff] %vm5333, %v5230
  %5337 = vst.msk [vmem:[#allocation2 + $0x18] sm:$0xff] %vm5333, %v5232
  %5338 = vst.msk [vmem:[#allocation2 + $0x20] sm:$0xff] %vm5333, %v5234
  %5339 = vst.msk [vmem:[#allocation2 + $0x28] sm:$0xff] %vm5333, %v5236
  %5340 = vst.msk [vmem:[#allocation2 + $0x30] sm:$0xff] %vm5333, %v5238
  %5341 = vst.msk [vmem:[#allocation2 + $0x38] sm:$0xff] %vm5333, %v5240
  %5342 = vst.msk [vmem:[#allocation2 + $0x40] sm:$0xff] %vm5333, %v5242
  %5343 = vst.msk [vmem:[#allocation2 + $0x48] sm:$0xff] %vm5333, %v5244
  %5344 = vst.msk [vmem:[#allocation2 + $0x50] sm:$0xff] %vm5333, %v5246
  %5345 = vst.msk [vmem:[#allocation2 + $0x58] sm:$0xff] %vm5333, %v5248
  %5346 = vst.msk [vmem:[#allocation2 + $0x60] sm:$0xff] %vm5333, %v5250
  %5347 = vst.msk [vmem:[#allocation2 + $0x68] sm:$0xff] %vm5333, %v5252
  %5348 = vst.msk [vmem:[#allocation2 + $0x70] sm:$0xff] %vm5333, %v5254
  %5349 = vst.msk [vmem:[#allocation2 + $0x78] sm:$0xff] %vm5333, %v5256
  %5350 = vst.msk [vmem:[#allocation2 + $0x80] sm:$0xff] %vm5333, %v5258
  %5351 = vst.msk [vmem:[#allocation2 + $0x88] sm:$0xff] %vm5333, %v5260
  %5352 = vst.msk [vmem:[#allocation2 + $0x90] sm:$0xff] %vm5333, %v5262
  %5353 = vst.msk [vmem:[#allocation2 + $0x98] sm:$0xff] %vm5333, %v5264
  %5354 = vst.msk [vmem:[#allocation2 + $0xa0] sm:$0xff] %vm5333, %v5266
  %5355 = vst.msk [vmem:[#allocation2 + $0xa8] sm:$0xff] %vm5333, %v5268
  %5356 = vst.msk [vmem:[#allocation2 + $0xb0] sm:$0xff] %vm5333, %v5270
  %5357 = vst.msk [vmem:[#allocation2 + $0xb8] sm:$0xff] %vm5333, %v5272
  %5358 = vst.msk [vmem:[#allocation2 + $0xc0] sm:$0xff] %vm5333, %v5274
  %5359 = vst.msk [vmem:[#allocation2 + $0xc8] sm:$0xff] %vm5333, %v5276
  %5360 = vst.msk [vmem:[#allocation2 + $0xd0] sm:$0xff] %vm5333, %v5278
  %5361 = vst.msk [vmem:[#allocation2 + $0xd8] sm:$0xff] %vm5333, %v5280
  %5362 = vst.msk [vmem:[#allocation2 + $0xe0] sm:$0xff] %vm5333, %v5282
  %5363 = vst.msk [vmem:[#allocation2 + $0xe8] sm:$0xff] %vm5333, %v5284
  %5364 = vst.msk [vmem:[#allocation2 + $0xf0] sm:$0xff] %vm5333, %v5286
  %5365 = vst.msk [vmem:[#allocation2 + $0xf8] sm:$0xff] %vm5333, %v5288
  %5366 = vst.msk [vmem:[#allocation2 + $0x100] sm:$0xff] %vm5333, %v5290
  %5367 = vst.msk [vmem:[#allocation2 + $0x108] sm:$0xff] %vm5333, %v5292
  %5368 = vst.msk [vmem:[#allocation2 + $0x110] sm:$0xff] %vm5333, %v5294
  %5369 = vst.msk [vmem:[#allocation2 + $0x118] sm:$0xff] %vm5333, %v5296
  %v5370 = vld [vmem:[%s4466 + $0x3] sm:$0xff]
  %v5371 = vld [vmem:[%s4466 + $0xb] sm:$0xf]
  %v5372 = vld [vmem:[%s4466 + $0x13] sm:$0xff]
  %v5373 = vld [vmem:[%s4466 + $0x1b] sm:$0xf]
  %v5374 = vld [vmem:[%s4466 + $0x23] sm:$0xff]
  %v5375 = vld [vmem:[%s4466 + $0x2b] sm:$0xf]
  %v5376 = vld [vmem:[%s4466 + $0x33] sm:$0xff]
  %v5377 = vld [vmem:[%s4466 + $0x3b] sm:$0xf]
  %v5378 = vld [vmem:[%s4466 + $0x43] sm:$0xff]
  %v5379 = vld [vmem:[%s4466 + $0x4b] sm:$0xf]
  %v5380 = vld [vmem:[%s4466 + $0x53] sm:$0xff]
  %v5381 = vld [vmem:[%s4466 + $0x5b] sm:$0xf]
  %v5382 = vld [vmem:[%s4466 + $0x63] sm:$0xff]
  %v5383 = vld [vmem:[%s4466 + $0x6b] sm:$0xf]
  %v5384 = vld [vmem:[%s4466 + $0x73] sm:$0xff]
  %v5385 = vld [vmem:[%s4466 + $0x7b] sm:$0xf]
  %v5386 = vld [vmem:[%s4466 + $0x83] sm:$0xff]
  %v5387 = vld [vmem:[%s4466 + $0x8b] sm:$0xf]
  %v5388 = vld [vmem:[%s4466 + $0x93] sm:$0xff]
  %v5389 = vld [vmem:[%s4466 + $0x9b] sm:$0xf]
  %v5390 = vld [vmem:[%s4466 + $0xa3] sm:$0xff]
  %v5391 = vld [vmem:[%s4466 + $0xab] sm:$0xf]
  %v5392 = vld [vmem:[%s4466 + $0xb3] sm:$0xff]
  %v5393 = vld [vmem:[%s4466 + $0xbb] sm:$0xf]
  %v5394 = vld [vmem:[%s4466 + $0x103] sm:$0xff]
  %v5395 = vld [vmem:[%s4466 + $0x10b] sm:$0xf]
  %v5396 = vld [vmem:[%s4466 + $0x113] sm:$0xff]
  %v5397 = vld [vmem:[%s4466 + $0x11b] sm:$0xf]
  %v5398 = vld [vmem:[%s4466 + $0x123] sm:$0xff]
  %v5399 = vld [vmem:[%s4466 + $0x12b] sm:$0xf]
  %v5400 = vld [vmem:[%s4466 + $0x133] sm:$0xff]
  %v5401 = vld [vmem:[%s4466 + $0x13b] sm:$0xf]
  %v5402 = vld [vmem:[%s4466 + $0x143] sm:$0xff]
  %v5403 = vld [vmem:[%s4466 + $0x14b] sm:$0xf]
  %v5404 = vld [vmem:[%s4466 + $0x153] sm:$0xff]
  %v5405 = vld [vmem:[%s4466 + $0x15b] sm:$0xf]
  %v5406 = vld [vmem:[%s4466 + $0x163] sm:$0xff]
  %v5407 = vld [vmem:[%s4466 + $0x16b] sm:$0xf]
  %v5408 = vld [vmem:[%s4466 + $0x173] sm:$0xff]
  %v5409 = vld [vmem:[%s4466 + $0x17b] sm:$0xf]
  %v5410 = vld [vmem:[%s4466 + $0x183] sm:$0xff]
  %v5411 = vld [vmem:[%s4466 + $0x18b] sm:$0xf]
  %v5412 = vld [vmem:[%s4466 + $0x193] sm:$0xff]
  %v5413 = vld [vmem:[%s4466 + $0x19b] sm:$0xf]
  %v5414 = vld [vmem:[%s4466 + $0x1a3] sm:$0xff]
  %v5415 = vld [vmem:[%s4466 + $0x1ab] sm:$0xf]
  %v5416 = vld [vmem:[%s4466 + $0x1b3] sm:$0xff]
  %v5417 = vld [vmem:[%s4466 + $0x1bb] sm:$0xf]
  %v5466 = vcombine.high %v5370, %v5370
  %v5467 = vcombine.high %v5372, %v5372
  %v5468 = vcombine.high %v5374, %v5374
  %v5469 = vcombine.high %v5376, %v5376
  %v5470 = vcombine.high %v5378, %v5378
  %v5471 = vcombine.high %v5380, %v5380
  %v5472 = vcombine.high %v5382, %v5382
  %v5473 = vcombine.high %v5384, %v5384
  %v5474 = vcombine.high %v5386, %v5386
  %v5475 = vcombine.high %v5388, %v5388
  %v5476 = vcombine.high %v5390, %v5390
  %v5477 = vcombine.high %v5392, %v5392
  %v5478 = vcombine.high %v5394, %v5394
  %v5479 = vcombine.high %v5396, %v5396
  %v5480 = vcombine.high %v5398, %v5398
  %v5481 = vcombine.high %v5400, %v5400
  %v5482 = vcombine.high %v5402, %v5402
  %v5483 = vcombine.high %v5404, %v5404
  %v5484 = vcombine.high %v5406, %v5406
  %v5485 = vcombine.high %v5408, %v5408
  %v5486 = vcombine.high %v5410, %v5410
  %v5487 = vcombine.high %v5412, %v5412
  %v5488 = vcombine.high %v5414, %v5414
  %v5489 = vcombine.high %v5416, %v5416
  %v5490 = vcombine.low %v5370, %v5466
  %v5491 = vcombine.low %v5371, %v5372
  %v5492 = vcombine.low %v5467, %v5373
  %v5493 = vcombine.low %v5374, %v5468
  %v5494 = vcombine.low %v5375, %v5376
  %v5495 = vcombine.low %v5469, %v5377
  %v5496 = vcombine.low %v5378, %v5470
  %v5497 = vcombine.low %v5379, %v5380
  %v5498 = vcombine.low %v5471, %v5381
  %v5499 = vcombine.low %v5382, %v5472
  %v5500 = vcombine.low %v5383, %v5384
  %v5501 = vcombine.low %v5473, %v5385
  %v5502 = vcombine.low %v5386, %v5474
  %v5503 = vcombine.low %v5387, %v5388
  %v5504 = vcombine.low %v5475, %v5389
  %v5505 = vcombine.low %v5390, %v5476
  %v5506 = vcombine.low %v5391, %v5392
  %v5507 = vcombine.low %v5477, %v5393
  %v5508 = vcombine.low %v5394, %v5478
  %v5509 = vcombine.low %v5395, %v5396
  %v5510 = vcombine.low %v5479, %v5397
  %v5511 = vcombine.low %v5398, %v5480
  %v5512 = vcombine.low %v5399, %v5400
  %v5513 = vcombine.low %v5481, %v5401
  %v5514 = vcombine.low %v5402, %v5482
  %v5515 = vcombine.low %v5403, %v5404
  %v5516 = vcombine.low %v5483, %v5405
  %v5517 = vcombine.low %v5406, %v5484
  %v5518 = vcombine.low %v5407, %v5408
  %v5519 = vcombine.low %v5485, %v5409
  %v5520 = vcombine.low %v5410, %v5486
  %v5521 = vcombine.low %v5411, %v5412
  %v5522 = vcombine.low %v5487, %v5413
  %v5523 = vcombine.low %v5414, %v5488
  %v5524 = vcombine.low %v5415, %v5416
  %v5525 = vcombine.low %v5489, %v5417
  %5526 = vrot.lane.b32.xlu0 %v5490, 18
  %v5527 = vpop.permute.xlu0 %5526
  %5528 = vrot.lane.b32.xlu0 %v5491, 18
  %v5529 = vpop.permute.xlu0 %5528
  %5530 = vrot.lane.b32.xlu0 %v5492, 18
  %v5531 = vpop.permute.xlu0 %5530
  %5532 = vrot.lane.b32.xlu0 %v5493, 18
  %v5533 = vpop.permute.xlu0 %5532
  %5534 = vrot.lane.b32.xlu0 %v5494, 18
  %v5535 = vpop.permute.xlu0 %5534
  %5536 = vrot.lane.b32.xlu0 %v5495, 18
  %v5537 = vpop.permute.xlu0 %5536
  %5538 = vrot.lane.b32.xlu0 %v5496, 18
  %v5539 = vpop.permute.xlu0 %5538
  %5540 = vrot.lane.b32.xlu0 %v5497, 18
  %v5541 = vpop.permute.xlu0 %5540
  %5542 = vrot.lane.b32.xlu0 %v5498, 18
  %v5543 = vpop.permute.xlu0 %5542
  %5544 = vrot.lane.b32.xlu0 %v5499, 18
  %v5545 = vpop.permute.xlu0 %5544
  %5546 = vrot.lane.b32.xlu0 %v5500, 18
  %v5547 = vpop.permute.xlu0 %5546
  %5548 = vrot.lane.b32.xlu0 %v5501, 18
  %v5549 = vpop.permute.xlu0 %5548
  %5550 = vrot.lane.b32.xlu0 %v5502, 18
  %v5551 = vpop.permute.xlu0 %5550
  %5552 = vrot.lane.b32.xlu0 %v5503, 18
  %v5553 = vpop.permute.xlu0 %5552
  %5554 = vrot.lane.b32.xlu0 %v5504, 18
  %v5555 = vpop.permute.xlu0 %5554
  %5556 = vrot.lane.b32.xlu0 %v5505, 18
  %v5557 = vpop.permute.xlu0 %5556
  %5558 = vrot.lane.b32.xlu0 %v5506, 18
  %v5559 = vpop.permute.xlu0 %5558
  %5560 = vrot.lane.b32.xlu0 %v5507, 18
  %v5561 = vpop.permute.xlu0 %5560
  %5562 = vrot.lane.b32.xlu0 %v5508, 18
  %v5563 = vpop.permute.xlu0 %5562
  %5564 = vrot.lane.b32.xlu0 %v5509, 18
  %v5565 = vpop.permute.xlu0 %5564
  %5566 = vrot.lane.b32.xlu0 %v5510, 18
  %v5567 = vpop.permute.xlu0 %5566
  %5568 = vrot.lane.b32.xlu0 %v5511, 18
  %v5569 = vpop.permute.xlu0 %5568
  %5570 = vrot.lane.b32.xlu0 %v5512, 18
  %v5571 = vpop.permute.xlu0 %5570
  %5572 = vrot.lane.b32.xlu0 %v5513, 18
  %v5573 = vpop.permute.xlu0 %5572
  %5574 = vrot.lane.b32.xlu0 %v5514, 18
  %v5575 = vpop.permute.xlu0 %5574
  %5576 = vrot.lane.b32.xlu0 %v5515, 18
  %v5577 = vpop.permute.xlu0 %5576
  %5578 = vrot.lane.b32.xlu0 %v5516, 18
  %v5579 = vpop.permute.xlu0 %5578
  %5580 = vrot.lane.b32.xlu0 %v5517, 18
  %v5581 = vpop.permute.xlu0 %5580
  %5582 = vrot.lane.b32.xlu0 %v5518, 18
  %v5583 = vpop.permute.xlu0 %5582
  %5584 = vrot.lane.b32.xlu0 %v5519, 18
  %v5585 = vpop.permute.xlu0 %5584
  %5586 = vrot.lane.b32.xlu0 %v5520, 18
  %v5587 = vpop.permute.xlu0 %5586
  %5588 = vrot.lane.b32.xlu0 %v5521, 18
  %v5589 = vpop.permute.xlu0 %5588
  %5590 = vrot.lane.b32.xlu0 %v5522, 18
  %v5591 = vpop.permute.xlu0 %5590
  %5592 = vrot.lane.b32.xlu0 %v5523, 18
  %v5593 = vpop.permute.xlu0 %5592
  %5594 = vrot.lane.b32.xlu0 %v5524, 18
  %v5595 = vpop.permute.xlu0 %5594
  %5596 = vrot.lane.b32.xlu0 %v5525, 18
  %v5597 = vpop.permute.xlu0 %5596
  %vm5634 = vcmask 154768
  %5635 = vst.msk [vmem:[#allocation2] sm:$0xff] %vm5634, %v5527
  %5636 = vst.msk [vmem:[#allocation2 + $0x8] sm:$0xff] %vm5634, %v5529
  %5637 = vst.msk [vmem:[#allocation2 + $0x10] sm:$0xff] %vm5634, %v5531
  %5638 = vst.msk [vmem:[#allocation2 + $0x18] sm:$0xff] %vm5634, %v5533
  %5639 = vst.msk [vmem:[#allocation2 + $0x20] sm:$0xff] %vm5634, %v5535
  %5640 = vst.msk [vmem:[#allocation2 + $0x28] sm:$0xff] %vm5634, %v5537
  %5641 = vst.msk [vmem:[#allocation2 + $0x30] sm:$0xff] %vm5634, %v5539
  %5642 = vst.msk [vmem:[#allocation2 + $0x38] sm:$0xff] %vm5634, %v5541
  %5643 = vst.msk [vmem:[#allocation2 + $0x40] sm:$0xff] %vm5634, %v5543
  %5644 = vst.msk [vmem:[#allocation2 + $0x48] sm:$0xff] %vm5634, %v5545
  %5645 = vst.msk [vmem:[#allocation2 + $0x50] sm:$0xff] %vm5634, %v5547
  %5646 = vst.msk [vmem:[#allocation2 + $0x58] sm:$0xff] %vm5634, %v5549
  %5647 = vst.msk [vmem:[#allocation2 + $0x60] sm:$0xff] %vm5634, %v5551
  %5648 = vst.msk [vmem:[#allocation2 + $0x68] sm:$0xff] %vm5634, %v5553
  %5649 = vst.msk [vmem:[#allocation2 + $0x70] sm:$0xff] %vm5634, %v5555
  %5650 = vst.msk [vmem:[#allocation2 + $0x78] sm:$0xff] %vm5634, %v5557
  %5651 = vst.msk [vmem:[#allocation2 + $0x80] sm:$0xff] %vm5634, %v5559
  %5652 = vst.msk [vmem:[#allocation2 + $0x88] sm:$0xff] %vm5634, %v5561
  %5653 = vst.msk [vmem:[#allocation2 + $0x90] sm:$0xff] %vm5634, %v5563
  %5654 = vst.msk [vmem:[#allocation2 + $0x98] sm:$0xff] %vm5634, %v5565
  %5655 = vst.msk [vmem:[#allocation2 + $0xa0] sm:$0xff] %vm5634, %v5567
  %5656 = vst.msk [vmem:[#allocation2 + $0xa8] sm:$0xff] %vm5634, %v5569
  %5657 = vst.msk [vmem:[#allocation2 + $0xb0] sm:$0xff] %vm5634, %v5571
  %5658 = vst.msk [vmem:[#allocation2 + $0xb8] sm:$0xff] %vm5634, %v5573
  %5659 = vst.msk [vmem:[#allocation2 + $0xc0] sm:$0xff] %vm5634, %v5575
  %5660 = vst.msk [vmem:[#allocation2 + $0xc8] sm:$0xff] %vm5634, %v5577
  %5661 = vst.msk [vmem:[#allocation2 + $0xd0] sm:$0xff] %vm5634, %v5579
  %5662 = vst.msk [vmem:[#allocation2 + $0xd8] sm:$0xff] %vm5634, %v5581
  %5663 = vst.msk [vmem:[#allocation2 + $0xe0] sm:$0xff] %vm5634, %v5583
  %5664 = vst.msk [vmem:[#allocation2 + $0xe8] sm:$0xff] %vm5634, %v5585
  %5665 = vst.msk [vmem:[#allocation2 + $0xf0] sm:$0xff] %vm5634, %v5587
  %5666 = vst.msk [vmem:[#allocation2 + $0xf8] sm:$0xff] %vm5634, %v5589
  %5667 = vst.msk [vmem:[#allocation2 + $0x100] sm:$0xff] %vm5634, %v5591
  %5668 = vst.msk [vmem:[#allocation2 + $0x108] sm:$0xff] %vm5634, %v5593
  %5669 = vst.msk [vmem:[#allocation2 + $0x110] sm:$0xff] %vm5634, %v5595
  %5670 = vst.msk [vmem:[#allocation2 + $0x118] sm:$0xff] %vm5634, %v5597
  %v5671 = vld [vmem:[%s4466 + $0x4] sm:$0xff]
  %v5672 = vld [vmem:[%s4466 + $0xc] sm:$0xf]
  %v5673 = vld [vmem:[%s4466 + $0x14] sm:$0xff]
  %v5674 = vld [vmem:[%s4466 + $0x1c] sm:$0xf]
  %v5675 = vld [vmem:[%s4466 + $0x24] sm:$0xff]
  %v5676 = vld [vmem:[%s4466 + $0x2c] sm:$0xf]
  %v5677 = vld [vmem:[%s4466 + $0x34] sm:$0xff]
  %v5678 = vld [vmem:[%s4466 + $0x3c] sm:$0xf]
  %v5679 = vld [vmem:[%s4466 + $0x44] sm:$0xff]
  %v5680 = vld [vmem:[%s4466 + $0x4c] sm:$0xf]
  %v5681 = vld [vmem:[%s4466 + $0x54] sm:$0xff]
  %v5682 = vld [vmem:[%s4466 + $0x5c] sm:$0xf]
  %v5683 = vld [vmem:[%s4466 + $0x64] sm:$0xff]
  %v5684 = vld [vmem:[%s4466 + $0x6c] sm:$0xf]
  %v5685 = vld [vmem:[%s4466 + $0x74] sm:$0xff]
  %v5686 = vld [vmem:[%s4466 + $0x7c] sm:$0xf]
  %v5687 = vld [vmem:[%s4466 + $0x84] sm:$0xff]
  %v5688 = vld [vmem:[%s4466 + $0x8c] sm:$0xf]
  %v5689 = vld [vmem:[%s4466 + $0x94] sm:$0xff]
  %v5690 = vld [vmem:[%s4466 + $0x9c] sm:$0xf]
  %v5691 = vld [vmem:[%s4466 + $0xa4] sm:$0xff]
  %v5692 = vld [vmem:[%s4466 + $0xac] sm:$0xf]
  %v5693 = vld [vmem:[%s4466 + $0xb4] sm:$0xff]
  %v5694 = vld [vmem:[%s4466 + $0xbc] sm:$0xf]
  %v5695 = vld [vmem:[%s4466 + $0x104] sm:$0xff]
  %v5696 = vld [vmem:[%s4466 + $0x10c] sm:$0xf]
  %v5697 = vld [vmem:[%s4466 + $0x114] sm:$0xff]
  %v5698 = vld [vmem:[%s4466 + $0x11c] sm:$0xf]
  %v5699 = vld [vmem:[%s4466 + $0x124] sm:$0xff]
  %v5700 = vld [vmem:[%s4466 + $0x12c] sm:$0xf]
  %v5701 = vld [vmem:[%s4466 + $0x134] sm:$0xff]
  %v5702 = vld [vmem:[%s4466 + $0x13c] sm:$0xf]
  %v5703 = vld [vmem:[%s4466 + $0x144] sm:$0xff]
  %v5704 = vld [vmem:[%s4466 + $0x14c] sm:$0xf]
  %v5705 = vld [vmem:[%s4466 + $0x154] sm:$0xff]
  %v5706 = vld [vmem:[%s4466 + $0x15c] sm:$0xf]
  %v5707 = vld [vmem:[%s4466 + $0x164] sm:$0xff]
  %v5708 = vld [vmem:[%s4466 + $0x16c] sm:$0xf]
  %v5709 = vld [vmem:[%s4466 + $0x174] sm:$0xff]
  %v5710 = vld [vmem:[%s4466 + $0x17c] sm:$0xf]
  %v5711 = vld [vmem:[%s4466 + $0x184] sm:$0xff]
  %v5712 = vld [vmem:[%s4466 + $0x18c] sm:$0xf]
  %v5713 = vld [vmem:[%s4466 + $0x194] sm:$0xff]
  %v5714 = vld [vmem:[%s4466 + $0x19c] sm:$0xf]
  %v5715 = vld [vmem:[%s4466 + $0x1a4] sm:$0xff]
  %v5716 = vld [vmem:[%s4466 + $0x1ac] sm:$0xf]
  %v5717 = vld [vmem:[%s4466 + $0x1b4] sm:$0xff]
  %v5718 = vld [vmem:[%s4466 + $0x1bc] sm:$0xf]
  %v5767 = vcombine.high %v5671, %v5671
  %v5768 = vcombine.high %v5673, %v5673
  %v5769 = vcombine.high %v5675, %v5675
  %v5770 = vcombine.high %v5677, %v5677
  %v5771 = vcombine.high %v5679, %v5679
  %v5772 = vcombine.high %v5681, %v5681
  %v5773 = vcombine.high %v5683, %v5683
  %v5774 = vcombine.high %v5685, %v5685
  %v5775 = vcombine.high %v5687, %v5687
  %v5776 = vcombine.high %v5689, %v5689
  %v5777 = vcombine.high %v5691, %v5691
  %v5778 = vcombine.high %v5693, %v5693
  %v5779 = vcombine.high %v5695, %v5695
  %v5780 = vcombine.high %v5697, %v5697
  %v5781 = vcombine.high %v5699, %v5699
  %v5782 = vcombine.high %v5701, %v5701
  %v5783 = vcombine.high %v5703, %v5703
  %v5784 = vcombine.high %v5705, %v5705
  %v5785 = vcombine.high %v5707, %v5707
  %v5786 = vcombine.high %v5709, %v5709
  %v5787 = vcombine.high %v5711, %v5711
  %v5788 = vcombine.high %v5713, %v5713
  %v5789 = vcombine.high %v5715, %v5715
  %v5790 = vcombine.high %v5717, %v5717
  %v5791 = vcombine.low %v5671, %v5767
  %v5792 = vcombine.low %v5672, %v5673
  %v5793 = vcombine.low %v5768, %v5674
  %v5794 = vcombine.low %v5675, %v5769
  %v5795 = vcombine.low %v5676, %v5677
  %v5796 = vcombine.low %v5770, %v5678
  %v5797 = vcombine.low %v5679, %v5771
  %v5798 = vcombine.low %v5680, %v5681
  %v5799 = vcombine.low %v5772, %v5682
  %v5800 = vcombine.low %v5683, %v5773
  %v5801 = vcombine.low %v5684, %v5685
  %v5802 = vcombine.low %v5774, %v5686
  %v5803 = vcombine.low %v5687, %v5775
  %v5804 = vcombine.low %v5688, %v5689
  %v5805 = vcombine.low %v5776, %v5690
  %v5806 = vcombine.low %v5691, %v5777
  %v5807 = vcombine.low %v5692, %v5693
  %v5808 = vcombine.low %v5778, %v5694
  %v5809 = vcombine.low %v5695, %v5779
  %v5810 = vcombine.low %v5696, %v5697
  %v5811 = vcombine.low %v5780, %v5698
  %v5812 = vcombine.low %v5699, %v5781
  %v5813 = vcombine.low %v5700, %v5701
  %v5814 = vcombine.low %v5782, %v5702
  %v5815 = vcombine.low %v5703, %v5783
  %v5816 = vcombine.low %v5704, %v5705
  %v5817 = vcombine.low %v5784, %v5706
  %v5818 = vcombine.low %v5707, %v5785
  %v5819 = vcombine.low %v5708, %v5709
  %v5820 = vcombine.low %v5786, %v5710
  %v5821 = vcombine.low %v5711, %v5787
  %v5822 = vcombine.low %v5712, %v5713
  %v5823 = vcombine.low %v5788, %v5714
  %v5824 = vcombine.low %v5715, %v5789
  %v5825 = vcombine.low %v5716, %v5717
  %v5826 = vcombine.low %v5790, %v5718
  %5827 = vrot.lane.b32.xlu0 %v5791, 19
  %v5828 = vpop.permute.xlu0 %5827
  %5829 = vrot.lane.b32.xlu0 %v5792, 19
  %v5830 = vpop.permute.xlu0 %5829
  %5831 = vrot.lane.b32.xlu0 %v5793, 19
  %v5832 = vpop.permute.xlu0 %5831
  %5833 = vrot.lane.b32.xlu0 %v5794, 19
  %v5834 = vpop.permute.xlu0 %5833
  %5835 = vrot.lane.b32.xlu0 %v5795, 19
  %v5836 = vpop.permute.xlu0 %5835
  %5837 = vrot.lane.b32.xlu0 %v5796, 19
  %v5838 = vpop.permute.xlu0 %5837
  %5839 = vrot.lane.b32.xlu0 %v5797, 19
  %v5840 = vpop.permute.xlu0 %5839
  %5841 = vrot.lane.b32.xlu0 %v5798, 19
  %v5842 = vpop.permute.xlu0 %5841
  %5843 = vrot.lane.b32.xlu0 %v5799, 19
  %v5844 = vpop.permute.xlu0 %5843
  %5845 = vrot.lane.b32.xlu0 %v5800, 19
  %v5846 = vpop.permute.xlu0 %5845
  %5847 = vrot.lane.b32.xlu0 %v5801, 19
  %v5848 = vpop.permute.xlu0 %5847
  %5849 = vrot.lane.b32.xlu0 %v5802, 19
  %v5850 = vpop.permute.xlu0 %5849
  %5851 = vrot.lane.b32.xlu0 %v5803, 19
  %v5852 = vpop.permute.xlu0 %5851
  %5853 = vrot.lane.b32.xlu0 %v5804, 19
  %v5854 = vpop.permute.xlu0 %5853
  %5855 = vrot.lane.b32.xlu0 %v5805, 19
  %v5856 = vpop.permute.xlu0 %5855
  %5857 = vrot.lane.b32.xlu0 %v5806, 19
  %v5858 = vpop.permute.xlu0 %5857
  %5859 = vrot.lane.b32.xlu0 %v5807, 19
  %v5860 = vpop.permute.xlu0 %5859
  %5861 = vrot.lane.b32.xlu0 %v5808, 19
  %v5862 = vpop.permute.xlu0 %5861
  %5863 = vrot.lane.b32.xlu0 %v5809, 19
  %v5864 = vpop.permute.xlu0 %5863
  %5865 = vrot.lane.b32.xlu0 %v5810, 19
  %v5866 = vpop.permute.xlu0 %5865
  %5867 = vrot.lane.b32.xlu0 %v5811, 19
  %v5868 = vpop.permute.xlu0 %5867
  %5869 = vrot.lane.b32.xlu0 %v5812, 19
  %v5870 = vpop.permute.xlu0 %5869
  %5871 = vrot.lane.b32.xlu0 %v5813, 19
  %v5872 = vpop.permute.xlu0 %5871
  %5873 = vrot.lane.b32.xlu0 %v5814, 19
  %v5874 = vpop.permute.xlu0 %5873
  %5875 = vrot.lane.b32.xlu0 %v5815, 19
  %v5876 = vpop.permute.xlu0 %5875
  %5877 = vrot.lane.b32.xlu0 %v5816, 19
  %v5878 = vpop.permute.xlu0 %5877
  %5879 = vrot.lane.b32.xlu0 %v5817, 19
  %v5880 = vpop.permute.xlu0 %5879
  %5881 = vrot.lane.b32.xlu0 %v5818, 19
  %v5882 = vpop.permute.xlu0 %5881
  %5883 = vrot.lane.b32.xlu0 %v5819, 19
  %v5884 = vpop.permute.xlu0 %5883
  %5885 = vrot.lane.b32.xlu0 %v5820, 19
  %v5886 = vpop.permute.xlu0 %5885
  %5887 = vrot.lane.b32.xlu0 %v5821, 19
  %v5888 = vpop.permute.xlu0 %5887
  %5889 = vrot.lane.b32.xlu0 %v5822, 19
  %v5890 = vpop.permute.xlu0 %5889
  %5891 = vrot.lane.b32.xlu0 %v5823, 19
  %v5892 = vpop.permute.xlu0 %5891
  %5893 = vrot.lane.b32.xlu0 %v5824, 19
  %v5894 = vpop.permute.xlu0 %5893
  %5895 = vrot.lane.b32.xlu0 %v5825, 19
  %v5896 = vpop.permute.xlu0 %5895
  %5897 = vrot.lane.b32.xlu0 %v5826, 19
  %v5898 = vpop.permute.xlu0 %5897
  %vm5935 = vcmask 162968
  %5936 = vst.msk [vmem:[#allocation2] sm:$0xff] %vm5935, %v5828
  %5937 = vst.msk [vmem:[#allocation2 + $0x8] sm:$0xff] %vm5935, %v5830
  %5938 = vst.msk [vmem:[#allocation2 + $0x10] sm:$0xff] %vm5935, %v5832
  %5939 = vst.msk [vmem:[#allocation2 + $0x18] sm:$0xff] %vm5935, %v5834
  %5940 = vst.msk [vmem:[#allocation2 + $0x20] sm:$0xff] %vm5935, %v5836
  %5941 = vst.msk [vmem:[#allocation2 + $0x28] sm:$0xff] %vm5935, %v5838
  %5942 = vst.msk [vmem:[#allocation2 + $0x30] sm:$0xff] %vm5935, %v5840
  %5943 = vst.msk [vmem:[#allocation2 + $0x38] sm:$0xff] %vm5935, %v5842
  %5944 = vst.msk [vmem:[#allocation2 + $0x40] sm:$0xff] %vm5935, %v5844
  %5945 = vst.msk [vmem:[#allocation2 + $0x48] sm:$0xff] %vm5935, %v5846
  %5946 = vst.msk [vmem:[#allocation2 + $0x50] sm:$0xff] %vm5935, %v5848
  %5947 = vst.msk [vmem:[#allocation2 + $0x58] sm:$0xff] %vm5935, %v5850
  %5948 = vst.msk [vmem:[#allocation2 + $0x60] sm:$0xff] %vm5935, %v5852
  %5949 = vst.msk [vmem:[#allocation2 + $0x68] sm:$0xff] %vm5935, %v5854
  %5950 = vst.msk [vmem:[#allocation2 + $0x70] sm:$0xff] %vm5935, %v5856
  %5951 = vst.msk [vmem:[#allocation2 + $0x78] sm:$0xff] %vm5935, %v5858
  %5952 = vst.msk [vmem:[#allocation2 + $0x80] sm:$0xff] %vm5935, %v5860
  %5953 = vst.msk [vmem:[#allocation2 + $0x88] sm:$0xff] %vm5935, %v5862
  %5954 = vst.msk [vmem:[#allocation2 + $0x90] sm:$0xff] %vm5935, %v5864
  %5955 = vst.msk [vmem:[#allocation2 + $0x98] sm:$0xff] %vm5935, %v5866
  %5956 = vst.msk [vmem:[#allocation2 + $0xa0] sm:$0xff] %vm5935, %v5868
  %5957 = vst.msk [vmem:[#allocation2 + $0xa8] sm:$0xff] %vm5935, %v5870
  %5958 = vst.msk [vmem:[#allocation2 + $0xb0] sm:$0xff] %vm5935, %v5872
  %5959 = vst.msk [vmem:[#allocation2 + $0xb8] sm:$0xff] %vm5935, %v5874
  %5960 = vst.msk [vmem:[#allocation2 + $0xc0] sm:$0xff] %vm5935, %v5876
  %5961 = vst.msk [vmem:[#allocation2 + $0xc8] sm:$0xff] %vm5935, %v5878
  %5962 = vst.msk [vmem:[#allocation2 + $0xd0] sm:$0xff] %vm5935, %v5880
  %5963 = vst.msk [vmem:[#allocation2 + $0xd8] sm:$0xff] %vm5935, %v5882
  %5964 = vst.msk [vmem:[#allocation2 + $0xe0] sm:$0xff] %vm5935, %v5884
  %5965 = vst.msk [vmem:[#allocation2 + $0xe8] sm:$0xff] %vm5935, %v5886
  %5966 = vst.msk [vmem:[#allocation2 + $0xf0] sm:$0xff] %vm5935, %v5888
  %5967 = vst.msk [vmem:[#allocation2 + $0xf8] sm:$0xff] %vm5935, %v5890
  %5968 = vst.msk [vmem:[#allocation2 + $0x100] sm:$0xff] %vm5935, %v5892
  %5969 = vst.msk [vmem:[#allocation2 + $0x108] sm:$0xff] %vm5935, %v5894
  %5970 = vst.msk [vmem:[#allocation2 + $0x110] sm:$0xff] %vm5935, %v5896
  %5971 = vst.msk [vmem:[#allocation2 + $0x118] sm:$0xff] %vm5935, %v5898
  %s5972 = scalar_lea.vmem %s0, 64
  %v5973 = vld [vmem:[%s5972] sm:$0xff]
  %v5974 = vld [vmem:[%s5972 + $0x8] sm:$0xf]
  %v5975 = vld [vmem:[%s5972 + $0x10] sm:$0xff]
  %v5976 = vld [vmem:[%s5972 + $0x18] sm:$0xf]
  %v5977 = vld [vmem:[%s5972 + $0x20] sm:$0xff]
  %v5978 = vld [vmem:[%s5972 + $0x28] sm:$0xf]
  %v5979 = vld [vmem:[%s5972 + $0x30] sm:$0xff]
  %v5980 = vld [vmem:[%s5972 + $0x38] sm:$0xf]
  %v5981 = vld [vmem:[%s5972 + $0x40] sm:$0xff]
  %v5982 = vld [vmem:[%s5972 + $0x48] sm:$0xf]
  %v5983 = vld [vmem:[%s5972 + $0x50] sm:$0xff]
  %v5984 = vld [vmem:[%s5972 + $0x58] sm:$0xf]
  %v5985 = vld [vmem:[%s5972 + $0x60] sm:$0xff]
  %v5986 = vld [vmem:[%s5972 + $0x68] sm:$0xf]
  %v5987 = vld [vmem:[%s5972 + $0x70] sm:$0xff]
  %v5988 = vld [vmem:[%s5972 + $0x78] sm:$0xf]
  %v5989 = vld [vmem:[%s5972 + $0x80] sm:$0xff]
  %v5990 = vld [vmem:[%s5972 + $0x88] sm:$0xf]
  %v5991 = vld [vmem:[%s5972 + $0x90] sm:$0xff]
  %v5992 = vld [vmem:[%s5972 + $0x98] sm:$0xf]
  %v5993 = vld [vmem:[%s5972 + $0xa0] sm:$0xff]
  %v5994 = vld [vmem:[%s5972 + $0xa8] sm:$0xf]
  %v5995 = vld [vmem:[%s5972 + $0xb0] sm:$0xff]
  %v5996 = vld [vmem:[%s5972 + $0xb8] sm:$0xf]
  %v5997 = vld [vmem:[%s5972 + $0x100] sm:$0xff]
  %v5998 = vld [vmem:[%s5972 + $0x108] sm:$0xf]
  %v5999 = vld [vmem:[%s5972 + $0x110] sm:$0xff]
  %v6000 = vld [vmem:[%s5972 + $0x118] sm:$0xf]
  %v6001 = vld [vmem:[%s5972 + $0x120] sm:$0xff]
  %v6002 = vld [vmem:[%s5972 + $0x128] sm:$0xf]
  %v6003 = vld [vmem:[%s5972 + $0x130] sm:$0xff]
  %v6004 = vld [vmem:[%s5972 + $0x138] sm:$0xf]
  %v6005 = vld [vmem:[%s5972 + $0x140] sm:$0xff]
  %v6006 = vld [vmem:[%s5972 + $0x148] sm:$0xf]
  %v6007 = vld [vmem:[%s5972 + $0x150] sm:$0xff]
  %v6008 = vld [vmem:[%s5972 + $0x158] sm:$0xf]
  %v6009 = vld [vmem:[%s5972 + $0x160] sm:$0xff]
  %v6010 = vld [vmem:[%s5972 + $0x168] sm:$0xf]
  %v6011 = vld [vmem:[%s5972 + $0x170] sm:$0xff]
  %v6012 = vld [vmem:[%s5972 + $0x178] sm:$0xf]
  %v6013 = vld [vmem:[%s5972 + $0x180] sm:$0xff]
  %v6014 = vld [vmem:[%s5972 + $0x188] sm:$0xf]
  %v6015 = vld [vmem:[%s5972 + $0x190] sm:$0xff]
  %v6016 = vld [vmem:[%s5972 + $0x198] sm:$0xf]
  %v6017 = vld [vmem:[%s5972 + $0x1a0] sm:$0xff]
  %v6018 = vld [vmem:[%s5972 + $0x1a8] sm:$0xf]
  %v6019 = vld [vmem:[%s5972 + $0x1b0] sm:$0xff]
  %v6020 = vld [vmem:[%s5972 + $0x1b8] sm:$0xf]
  %v6069 = vcombine.high %v5973, %v5973
  %v6070 = vcombine.high %v5975, %v5975
  %v6071 = vcombine.high %v5977, %v5977
  %v6072 = vcombine.high %v5979, %v5979
  %v6073 = vcombine.high %v5981, %v5981
  %v6074 = vcombine.high %v5983, %v5983
  %v6075 = vcombine.high %v5985, %v5985
  %v6076 = vcombine.high %v5987, %v5987
  %v6077 = vcombine.high %v5989, %v5989
  %v6078 = vcombine.high %v5991, %v5991
  %v6079 = vcombine.high %v5993, %v5993
  %v6080 = vcombine.high %v5995, %v5995
  %v6081 = vcombine.high %v5997, %v5997
  %v6082 = vcombine.high %v5999, %v5999
  %v6083 = vcombine.high %v6001, %v6001
  %v6084 = vcombine.high %v6003, %v6003
  %v6085 = vcombine.high %v6005, %v6005
  %v6086 = vcombine.high %v6007, %v6007
  %v6087 = vcombine.high %v6009, %v6009
  %v6088 = vcombine.high %v6011, %v6011
  %v6089 = vcombine.high %v6013, %v6013
  %v6090 = vcombine.high %v6015, %v6015
  %v6091 = vcombine.high %v6017, %v6017
  %v6092 = vcombine.high %v6019, %v6019
  %v6093 = vcombine.low %v5973, %v6069
  %v6094 = vcombine.low %v5974, %v5975
  %v6095 = vcombine.low %v6070, %v5976
  %v6096 = vcombine.low %v5977, %v6071
  %v6097 = vcombine.low %v5978, %v5979
  %v6098 = vcombine.low %v6072, %v5980
  %v6099 = vcombine.low %v5981, %v6073
  %v6100 = vcombine.low %v5982, %v5983
  %v6101 = vcombine.low %v6074, %v5984
  %v6102 = vcombine.low %v5985, %v6075
  %v6103 = vcombine.low %v5986, %v5987
  %v6104 = vcombine.low %v6076, %v5988
  %v6105 = vcombine.low %v5989, %v6077
  %v6106 = vcombine.low %v5990, %v5991
  %v6107 = vcombine.low %v6078, %v5992
  %v6108 = vcombine.low %v5993, %v6079
  %v6109 = vcombine.low %v5994, %v5995
  %v6110 = vcombine.low %v6080, %v5996
  %v6111 = vcombine.low %v5997, %v6081
  %v6112 = vcombine.low %v5998, %v5999
  %v6113 = vcombine.low %v6082, %v6000
  %v6114 = vcombine.low %v6001, %v6083
  %v6115 = vcombine.low %v6002, %v6003
  %v6116 = vcombine.low %v6084, %v6004
  %v6117 = vcombine.low %v6005, %v6085
  %v6118 = vcombine.low %v6006, %v6007
  %v6119 = vcombine.low %v6086, %v6008
  %v6120 = vcombine.low %v6009, %v6087
  %v6121 = vcombine.low %v6010, %v6011
  %v6122 = vcombine.low %v6088, %v6012
  %v6123 = vcombine.low %v6013, %v6089
  %v6124 = vcombine.low %v6014, %v6015
  %v6125 = vcombine.low %v6090, %v6016
  %v6126 = vcombine.low %v6017, %v6091
  %v6127 = vcombine.low %v6018, %v6019
  %v6128 = vcombine.low %v6092, %v6020
  %6129 = vrot.lane.b32.xlu0 %v6093, 20
  %v6130 = vpop.permute.xlu0 %6129
  %6131 = vrot.lane.b32.xlu0 %v6094, 20
  %v6132 = vpop.permute.xlu0 %6131
  %6133 = vrot.lane.b32.xlu0 %v6095, 20
  %v6134 = vpop.permute.xlu0 %6133
  %6135 = vrot.lane.b32.xlu0 %v6096, 20
  %v6136 = vpop.permute.xlu0 %6135
  %6137 = vrot.lane.b32.xlu0 %v6097, 20
  %v6138 = vpop.permute.xlu0 %6137
  %6139 = vrot.lane.b32.xlu0 %v6098, 20
  %v6140 = vpop.permute.xlu0 %6139
  %6141 = vrot.lane.b32.xlu0 %v6099, 20
  %v6142 = vpop.permute.xlu0 %6141
  %6143 = vrot.lane.b32.xlu0 %v6100, 20
  %v6144 = vpop.permute.xlu0 %6143
  %6145 = vrot.lane.b32.xlu0 %v6101, 20
  %v6146 = vpop.permute.xlu0 %6145
  %6147 = vrot.lane.b32.xlu0 %v6102, 20
  %v6148 = vpop.permute.xlu0 %6147
  %6149 = vrot.lane.b32.xlu0 %v6103, 20
  %v6150 = vpop.permute.xlu0 %6149
  %6151 = vrot.lane.b32.xlu0 %v6104, 20
  %v6152 = vpop.permute.xlu0 %6151
  %6153 = vrot.lane.b32.xlu0 %v6105, 20
  %v6154 = vpop.permute.xlu0 %6153
  %6155 = vrot.lane.b32.xlu0 %v6106, 20
  %v6156 = vpop.permute.xlu0 %6155
  %6157 = vrot.lane.b32.xlu0 %v6107, 20
  %v6158 = vpop.permute.xlu0 %6157
  %6159 = vrot.lane.b32.xlu0 %v6108, 20
  %v6160 = vpop.permute.xlu0 %6159
  %6161 = vrot.lane.b32.xlu0 %v6109, 20
  %v6162 = vpop.permute.xlu0 %6161
  %6163 = vrot.lane.b32.xlu0 %v6110, 20
  %v6164 = vpop.permute.xlu0 %6163
  %6165 = vrot.lane.b32.xlu0 %v6111, 20
  %v6166 = vpop.permute.xlu0 %6165
  %6167 = vrot.lane.b32.xlu0 %v6112, 20
  %v6168 = vpop.permute.xlu0 %6167
  %6169 = vrot.lane.b32.xlu0 %v6113, 20
  %v6170 = vpop.permute.xlu0 %6169
  %6171 = vrot.lane.b32.xlu0 %v6114, 20
  %v6172 = vpop.permute.xlu0 %6171
  %6173 = vrot.lane.b32.xlu0 %v6115, 20
  %v6174 = vpop.permute.xlu0 %6173
  %6175 = vrot.lane.b32.xlu0 %v6116, 20
  %v6176 = vpop.permute.xlu0 %6175
  %6177 = vrot.lane.b32.xlu0 %v6117, 20
  %v6178 = vpop.permute.xlu0 %6177
  %6179 = vrot.lane.b32.xlu0 %v6118, 20
  %v6180 = vpop.permute.xlu0 %6179
  %6181 = vrot.lane.b32.xlu0 %v6119, 20
  %v6182 = vpop.permute.xlu0 %6181
  %6183 = vrot.lane.b32.xlu0 %v6120, 20
  %v6184 = vpop.permute.xlu0 %6183
  %6185 = vrot.lane.b32.xlu0 %v6121, 20
  %v6186 = vpop.permute.xlu0 %6185
  %6187 = vrot.lane.b32.xlu0 %v6122, 20
  %v6188 = vpop.permute.xlu0 %6187
  %6189 = vrot.lane.b32.xlu0 %v6123, 20
  %v6190 = vpop.permute.xlu0 %6189
  %6191 = vrot.lane.b32.xlu0 %v6124, 20
  %v6192 = vpop.permute.xlu0 %6191
  %6193 = vrot.lane.b32.xlu0 %v6125, 20
  %v6194 = vpop.permute.xlu0 %6193
  %6195 = vrot.lane.b32.xlu0 %v6126, 20
  %v6196 = vpop.permute.xlu0 %6195
  %6197 = vrot.lane.b32.xlu0 %v6127, 20
  %v6198 = vpop.permute.xlu0 %6197
  %6199 = vrot.lane.b32.xlu0 %v6128, 20
  %v6200 = vpop.permute.xlu0 %6199
  %vm6237 = vcmask 171168
  %6238 = vst.msk [vmem:[#allocation2] sm:$0xff] %vm6237, %v6130
  %6239 = vst.msk [vmem:[#allocation2 + $0x8] sm:$0xff] %vm6237, %v6132
  %6240 = vst.msk [vmem:[#allocation2 + $0x10] sm:$0xff] %vm6237, %v6134
  %6241 = vst.msk [vmem:[#allocation2 + $0x18] sm:$0xff] %vm6237, %v6136
  %6242 = vst.msk [vmem:[#allocation2 + $0x20] sm:$0xff] %vm6237, %v6138
  %6243 = vst.msk [vmem:[#allocation2 + $0x28] sm:$0xff] %vm6237, %v6140
  %6244 = vst.msk [vmem:[#allocation2 + $0x30] sm:$0xff] %vm6237, %v6142
  %6245 = vst.msk [vmem:[#allocation2 + $0x38] sm:$0xff] %vm6237, %v6144
  %6246 = vst.msk [vmem:[#allocation2 + $0x40] sm:$0xff] %vm6237, %v6146
  %6247 = vst.msk [vmem:[#allocation2 + $0x48] sm:$0xff] %vm6237, %v6148
  %6248 = vst.msk [vmem:[#allocation2 + $0x50] sm:$0xff] %vm6237, %v6150
  %6249 = vst.msk [vmem:[#allocation2 + $0x58] sm:$0xff] %vm6237, %v6152
  %6250 = vst.msk [vmem:[#allocation2 + $0x60] sm:$0xff] %vm6237, %v6154
  %6251 = vst.msk [vmem:[#allocation2 + $0x68] sm:$0xff] %vm6237, %v6156
  %6252 = vst.msk [vmem:[#allocation2 + $0x70] sm:$0xff] %vm6237, %v6158
  %6253 = vst.msk [vmem:[#allocation2 + $0x78] sm:$0xff] %vm6237, %v6160
  %6254 = vst.msk [vmem:[#allocation2 + $0x80] sm:$0xff] %vm6237, %v6162
  %6255 = vst.msk [vmem:[#allocation2 + $0x88] sm:$0xff] %vm6237, %v6164
  %6256 = vst.msk [vmem:[#allocation2 + $0x90] sm:$0xff] %vm6237, %v6166
  %6257 = vst.msk [vmem:[#allocation2 + $0x98] sm:$0xff] %vm6237, %v6168
  %6258 = vst.msk [vmem:[#allocation2 + $0xa0] sm:$0xff] %vm6237, %v6170
  %6259 = vst.msk [vmem:[#allocation2 + $0xa8] sm:$0xff] %vm6237, %v6172
  %6260 = vst.msk [vmem:[#allocation2 + $0xb0] sm:$0xff] %vm6237, %v6174
  %6261 = vst.msk [vmem:[#allocation2 + $0xb8] sm:$0xff] %vm6237, %v6176
  %6262 = vst.msk [vmem:[#allocation2 + $0xc0] sm:$0xff] %vm6237, %v6178
  %6263 = vst.msk [vmem:[#allocation2 + $0xc8] sm:$0xff] %vm6237, %v6180
  %6264 = vst.msk [vmem:[#allocation2 + $0xd0] sm:$0xff] %vm6237, %v6182
  %6265 = vst.msk [vmem:[#allocation2 + $0xd8] sm:$0xff] %vm6237, %v6184
  %6266 = vst.msk [vmem:[#allocation2 + $0xe0] sm:$0xff] %vm6237, %v6186
  %6267 = vst.msk [vmem:[#allocation2 + $0xe8] sm:$0xff] %vm6237, %v6188
  %6268 = vst.msk [vmem:[#allocation2 + $0xf0] sm:$0xff] %vm6237, %v6190
  %6269 = vst.msk [vmem:[#allocation2 + $0xf8] sm:$0xff] %vm6237, %v6192
  %6270 = vst.msk [vmem:[#allocation2 + $0x100] sm:$0xff] %vm6237, %v6194
  %6271 = vst.msk [vmem:[#allocation2 + $0x108] sm:$0xff] %vm6237, %v6196
  %6272 = vst.msk [vmem:[#allocation2 + $0x110] sm:$0xff] %vm6237, %v6198
  %6273 = vst.msk [vmem:[#allocation2 + $0x118] sm:$0xff] %vm6237, %v6200
  %v6274 = vld [vmem:[%s5972 + $0x1] sm:$0xff]
  %v6275 = vld [vmem:[%s5972 + $0x9] sm:$0xf]
  %v6276 = vld [vmem:[%s5972 + $0x11] sm:$0xff]
  %v6277 = vld [vmem:[%s5972 + $0x19] sm:$0xf]
  %v6278 = vld [vmem:[%s5972 + $0x21] sm:$0xff]
  %v6279 = vld [vmem:[%s5972 + $0x29] sm:$0xf]
  %v6280 = vld [vmem:[%s5972 + $0x31] sm:$0xff]
  %v6281 = vld [vmem:[%s5972 + $0x39] sm:$0xf]
  %v6282 = vld [vmem:[%s5972 + $0x41] sm:$0xff]
  %v6283 = vld [vmem:[%s5972 + $0x49] sm:$0xf]
  %v6284 = vld [vmem:[%s5972 + $0x51] sm:$0xff]
  %v6285 = vld [vmem:[%s5972 + $0x59] sm:$0xf]
  %v6286 = vld [vmem:[%s5972 + $0x61] sm:$0xff]
  %v6287 = vld [vmem:[%s5972 + $0x69] sm:$0xf]
  %v6288 = vld [vmem:[%s5972 + $0x71] sm:$0xff]
  %v6289 = vld [vmem:[%s5972 + $0x79] sm:$0xf]
  %v6290 = vld [vmem:[%s5972 + $0x81] sm:$0xff]
  %v6291 = vld [vmem:[%s5972 + $0x89] sm:$0xf]
  %v6292 = vld [vmem:[%s5972 + $0x91] sm:$0xff]
  %v6293 = vld [vmem:[%s5972 + $0x99] sm:$0xf]
  %v6294 = vld [vmem:[%s5972 + $0xa1] sm:$0xff]
  %v6295 = vld [vmem:[%s5972 + $0xa9] sm:$0xf]
  %v6296 = vld [vmem:[%s5972 + $0xb1] sm:$0xff]
  %v6297 = vld [vmem:[%s5972 + $0xb9] sm:$0xf]
  %v6298 = vld [vmem:[%s5972 + $0x101] sm:$0xff]
  %v6299 = vld [vmem:[%s5972 + $0x109] sm:$0xf]
  %v6300 = vld [vmem:[%s5972 + $0x111] sm:$0xff]
  %v6301 = vld [vmem:[%s5972 + $0x119] sm:$0xf]
  %v6302 = vld [vmem:[%s5972 + $0x121] sm:$0xff]
  %v6303 = vld [vmem:[%s5972 + $0x129] sm:$0xf]
  %v6304 = vld [vmem:[%s5972 + $0x131] sm:$0xff]
  %v6305 = vld [vmem:[%s5972 + $0x139] sm:$0xf]
  %v6306 = vld [vmem:[%s5972 + $0x141] sm:$0xff]
  %v6307 = vld [vmem:[%s5972 + $0x149] sm:$0xf]
  %v6308 = vld [vmem:[%s5972 + $0x151] sm:$0xff]
  %v6309 = vld [vmem:[%s5972 + $0x159] sm:$0xf]
  %v6310 = vld [vmem:[%s5972 + $0x161] sm:$0xff]
  %v6311 = vld [vmem:[%s5972 + $0x169] sm:$0xf]
  %v6312 = vld [vmem:[%s5972 + $0x171] sm:$0xff]
  %v6313 = vld [vmem:[%s5972 + $0x179] sm:$0xf]
  %v6314 = vld [vmem:[%s5972 + $0x181] sm:$0xff]
  %v6315 = vld [vmem:[%s5972 + $0x189] sm:$0xf]
  %v6316 = vld [vmem:[%s5972 + $0x191] sm:$0xff]
  %v6317 = vld [vmem:[%s5972 + $0x199] sm:$0xf]
  %v6318 = vld [vmem:[%s5972 + $0x1a1] sm:$0xff]
  %v6319 = vld [vmem:[%s5972 + $0x1a9] sm:$0xf]
  %v6320 = vld [vmem:[%s5972 + $0x1b1] sm:$0xff]
  %v6321 = vld [vmem:[%s5972 + $0x1b9] sm:$0xf]
  %v6370 = vcombine.high %v6274, %v6274
  %v6371 = vcombine.high %v6276, %v6276
  %v6372 = vcombine.high %v6278, %v6278
  %v6373 = vcombine.high %v6280, %v6280
  %v6374 = vcombine.high %v6282, %v6282
  %v6375 = vcombine.high %v6284, %v6284
  %v6376 = vcombine.high %v6286, %v6286
  %v6377 = vcombine.high %v6288, %v6288
  %v6378 = vcombine.high %v6290, %v6290
  %v6379 = vcombine.high %v6292, %v6292
  %v6380 = vcombine.high %v6294, %v6294
  %v6381 = vcombine.high %v6296, %v6296
  %v6382 = vcombine.high %v6298, %v6298
  %v6383 = vcombine.high %v6300, %v6300
  %v6384 = vcombine.high %v6302, %v6302
  %v6385 = vcombine.high %v6304, %v6304
  %v6386 = vcombine.high %v6306, %v6306
  %v6387 = vcombine.high %v6308, %v6308
  %v6388 = vcombine.high %v6310, %v6310
  %v6389 = vcombine.high %v6312, %v6312
  %v6390 = vcombine.high %v6314, %v6314
  %v6391 = vcombine.high %v6316, %v6316
  %v6392 = vcombine.high %v6318, %v6318
  %v6393 = vcombine.high %v6320, %v6320
  %v6394 = vcombine.low %v6274, %v6370
  %v6395 = vcombine.low %v6275, %v6276
  %v6396 = vcombine.low %v6371, %v6277
  %v6397 = vcombine.low %v6278, %v6372
  %v6398 = vcombine.low %v6279, %v6280
  %v6399 = vcombine.low %v6373, %v6281
  %v6400 = vcombine.low %v6282, %v6374
  %v6401 = vcombine.low %v6283, %v6284
  %v6402 = vcombine.low %v6375, %v6285
  %v6403 = vcombine.low %v6286, %v6376
  %v6404 = vcombine.low %v6287, %v6288
  %v6405 = vcombine.low %v6377, %v6289
  %v6406 = vcombine.low %v6290, %v6378
  %v6407 = vcombine.low %v6291, %v6292
  %v6408 = vcombine.low %v6379, %v6293
  %v6409 = vcombine.low %v6294, %v6380
  %v6410 = vcombine.low %v6295, %v6296
  %v6411 = vcombine.low %v6381, %v6297
  %v6412 = vcombine.low %v6298, %v6382
  %v6413 = vcombine.low %v6299, %v6300
  %v6414 = vcombine.low %v6383, %v6301
  %v6415 = vcombine.low %v6302, %v6384
  %v6416 = vcombine.low %v6303, %v6304
  %v6417 = vcombine.low %v6385, %v6305
  %v6418 = vcombine.low %v6306, %v6386
  %v6419 = vcombine.low %v6307, %v6308
  %v6420 = vcombine.low %v6387, %v6309
  %v6421 = vcombine.low %v6310, %v6388
  %v6422 = vcombine.low %v6311, %v6312
  %v6423 = vcombine.low %v6389, %v6313
  %v6424 = vcombine.low %v6314, %v6390
  %v6425 = vcombine.low %v6315, %v6316
  %v6426 = vcombine.low %v6391, %v6317
  %v6427 = vcombine.low %v6318, %v6392
  %v6428 = vcombine.low %v6319, %v6320
  %v6429 = vcombine.low %v6393, %v6321
  %6430 = vrot.lane.b32.xlu0 %v6394, 21
  %v6431 = vpop.permute.xlu0 %6430
  %6432 = vrot.lane.b32.xlu0 %v6395, 21
  %v6433 = vpop.permute.xlu0 %6432
  %6434 = vrot.lane.b32.xlu0 %v6396, 21
  %v6435 = vpop.permute.xlu0 %6434
  %6436 = vrot.lane.b32.xlu0 %v6397, 21
  %v6437 = vpop.permute.xlu0 %6436
  %6438 = vrot.lane.b32.xlu0 %v6398, 21
  %v6439 = vpop.permute.xlu0 %6438
  %6440 = vrot.lane.b32.xlu0 %v6399, 21
  %v6441 = vpop.permute.xlu0 %6440
  %6442 = vrot.lane.b32.xlu0 %v6400, 21
  %v6443 = vpop.permute.xlu0 %6442
  %6444 = vrot.lane.b32.xlu0 %v6401, 21
  %v6445 = vpop.permute.xlu0 %6444
  %6446 = vrot.lane.b32.xlu0 %v6402, 21
  %v6447 = vpop.permute.xlu0 %6446
  %6448 = vrot.lane.b32.xlu0 %v6403, 21
  %v6449 = vpop.permute.xlu0 %6448
  %6450 = vrot.lane.b32.xlu0 %v6404, 21
  %v6451 = vpop.permute.xlu0 %6450
  %6452 = vrot.lane.b32.xlu0 %v6405, 21
  %v6453 = vpop.permute.xlu0 %6452
  %6454 = vrot.lane.b32.xlu0 %v6406, 21
  %v6455 = vpop.permute.xlu0 %6454
  %6456 = vrot.lane.b32.xlu0 %v6407, 21
  %v6457 = vpop.permute.xlu0 %6456
  %6458 = vrot.lane.b32.xlu0 %v6408, 21
  %v6459 = vpop.permute.xlu0 %6458
  %6460 = vrot.lane.b32.xlu0 %v6409, 21
  %v6461 = vpop.permute.xlu0 %6460
  %6462 = vrot.lane.b32.xlu0 %v6410, 21
  %v6463 = vpop.permute.xlu0 %6462
  %6464 = vrot.lane.b32.xlu0 %v6411, 21
  %v6465 = vpop.permute.xlu0 %6464
  %6466 = vrot.lane.b32.xlu0 %v6412, 21
  %v6467 = vpop.permute.xlu0 %6466
  %6468 = vrot.lane.b32.xlu0 %v6413, 21
  %v6469 = vpop.permute.xlu0 %6468
  %6470 = vrot.lane.b32.xlu0 %v6414, 21
  %v6471 = vpop.permute.xlu0 %6470
  %6472 = vrot.lane.b32.xlu0 %v6415, 21
  %v6473 = vpop.permute.xlu0 %6472
  %6474 = vrot.lane.b32.xlu0 %v6416, 21
  %v6475 = vpop.permute.xlu0 %6474
  %6476 = vrot.lane.b32.xlu0 %v6417, 21
  %v6477 = vpop.permute.xlu0 %6476
  %6478 = vrot.lane.b32.xlu0 %v6418, 21
  %v6479 = vpop.permute.xlu0 %6478
  %6480 = vrot.lane.b32.xlu0 %v6419, 21
  %v6481 = vpop.permute.xlu0 %6480
  %6482 = vrot.lane.b32.xlu0 %v6420, 21
  %v6483 = vpop.permute.xlu0 %6482
  %6484 = vrot.lane.b32.xlu0 %v6421, 21
  %v6485 = vpop.permute.xlu0 %6484
  %6486 = vrot.lane.b32.xlu0 %v6422, 21
  %v6487 = vpop.permute.xlu0 %6486
  %6488 = vrot.lane.b32.xlu0 %v6423, 21
  %v6489 = vpop.permute.xlu0 %6488
  %6490 = vrot.lane.b32.xlu0 %v6424, 21
  %v6491 = vpop.permute.xlu0 %6490
  %6492 = vrot.lane.b32.xlu0 %v6425, 21
  %v6493 = vpop.permute.xlu0 %6492
  %6494 = vrot.lane.b32.xlu0 %v6426, 21
  %v6495 = vpop.permute.xlu0 %6494
  %6496 = vrot.lane.b32.xlu0 %v6427, 21
  %v6497 = vpop.permute.xlu0 %6496
  %6498 = vrot.lane.b32.xlu0 %v6428, 21
  %v6499 = vpop.permute.xlu0 %6498
  %6500 = vrot.lane.b32.xlu0 %v6429, 21
  %v6501 = vpop.permute.xlu0 %6500
  %vm6538 = vcmask 179368
  %6539 = vst.msk [vmem:[#allocation2] sm:$0xff] %vm6538, %v6431
  %6540 = vst.msk [vmem:[#allocation2 + $0x8] sm:$0xff] %vm6538, %v6433
  %6541 = vst.msk [vmem:[#allocation2 + $0x10] sm:$0xff] %vm6538, %v6435
  %6542 = vst.msk [vmem:[#allocation2 + $0x18] sm:$0xff] %vm6538, %v6437
  %6543 = vst.msk [vmem:[#allocation2 + $0x20] sm:$0xff] %vm6538, %v6439
  %6544 = vst.msk [vmem:[#allocation2 + $0x28] sm:$0xff] %vm6538, %v6441
  %6545 = vst.msk [vmem:[#allocation2 + $0x30] sm:$0xff] %vm6538, %v6443
  %6546 = vst.msk [vmem:[#allocation2 + $0x38] sm:$0xff] %vm6538, %v6445
  %6547 = vst.msk [vmem:[#allocation2 + $0x40] sm:$0xff] %vm6538, %v6447
  %6548 = vst.msk [vmem:[#allocation2 + $0x48] sm:$0xff] %vm6538, %v6449
  %6549 = vst.msk [vmem:[#allocation2 + $0x50] sm:$0xff] %vm6538, %v6451
  %6550 = vst.msk [vmem:[#allocation2 + $0x58] sm:$0xff] %vm6538, %v6453
  %6551 = vst.msk [vmem:[#allocation2 + $0x60] sm:$0xff] %vm6538, %v6455
  %6552 = vst.msk [vmem:[#allocation2 + $0x68] sm:$0xff] %vm6538, %v6457
  %6553 = vst.msk [vmem:[#allocation2 + $0x70] sm:$0xff] %vm6538, %v6459
  %6554 = vst.msk [vmem:[#allocation2 + $0x78] sm:$0xff] %vm6538, %v6461
  %6555 = vst.msk [vmem:[#allocation2 + $0x80] sm:$0xff] %vm6538, %v6463
  %6556 = vst.msk [vmem:[#allocation2 + $0x88] sm:$0xff] %vm6538, %v6465
  %6557 = vst.msk [vmem:[#allocation2 + $0x90] sm:$0xff] %vm6538, %v6467
  %6558 = vst.msk [vmem:[#allocation2 + $0x98] sm:$0xff] %vm6538, %v6469
  %6559 = vst.msk [vmem:[#allocation2 + $0xa0] sm:$0xff] %vm6538, %v6471
  %6560 = vst.msk [vmem:[#allocation2 + $0xa8] sm:$0xff] %vm6538, %v6473
  %6561 = vst.msk [vmem:[#allocation2 + $0xb0] sm:$0xff] %vm6538, %v6475
  %6562 = vst.msk [vmem:[#allocation2 + $0xb8] sm:$0xff] %vm6538, %v6477
  %6563 = vst.msk [vmem:[#allocation2 + $0xc0] sm:$0xff] %vm6538, %v6479
  %6564 = vst.msk [vmem:[#allocation2 + $0xc8] sm:$0xff] %vm6538, %v6481
  %6565 = vst.msk [vmem:[#allocation2 + $0xd0] sm:$0xff] %vm6538, %v6483
  %6566 = vst.msk [vmem:[#allocation2 + $0xd8] sm:$0xff] %vm6538, %v6485
  %6567 = vst.msk [vmem:[#allocation2 + $0xe0] sm:$0xff] %vm6538, %v6487
  %6568 = vst.msk [vmem:[#allocation2 + $0xe8] sm:$0xff] %vm6538, %v6489
  %6569 = vst.msk [vmem:[#allocation2 + $0xf0] sm:$0xff] %vm6538, %v6491
  %6570 = vst.msk [vmem:[#allocation2 + $0xf8] sm:$0xff] %vm6538, %v6493
  %6571 = vst.msk [vmem:[#allocation2 + $0x100] sm:$0xff] %vm6538, %v6495
  %6572 = vst.msk [vmem:[#allocation2 + $0x108] sm:$0xff] %vm6538, %v6497
  %6573 = vst.msk [vmem:[#allocation2 + $0x110] sm:$0xff] %vm6538, %v6499
  %6574 = vst.msk [vmem:[#allocation2 + $0x118] sm:$0xff] %vm6538, %v6501
  %v6575 = vld [vmem:[%s5972 + $0x2] sm:$0xff]
  %v6576 = vld [vmem:[%s5972 + $0xa] sm:$0xf]
  %v6577 = vld [vmem:[%s5972 + $0x12] sm:$0xff]
  %v6578 = vld [vmem:[%s5972 + $0x1a] sm:$0xf]
  %v6579 = vld [vmem:[%s5972 + $0x22] sm:$0xff]
  %v6580 = vld [vmem:[%s5972 + $0x2a] sm:$0xf]
  %v6581 = vld [vmem:[%s5972 + $0x32] sm:$0xff]
  %v6582 = vld [vmem:[%s5972 + $0x3a] sm:$0xf]
  %v6583 = vld [vmem:[%s5972 + $0x42] sm:$0xff]
  %v6584 = vld [vmem:[%s5972 + $0x4a] sm:$0xf]
  %v6585 = vld [vmem:[%s5972 + $0x52] sm:$0xff]
  %v6586 = vld [vmem:[%s5972 + $0x5a] sm:$0xf]
  %v6587 = vld [vmem:[%s5972 + $0x62] sm:$0xff]
  %v6588 = vld [vmem:[%s5972 + $0x6a] sm:$0xf]
  %v6589 = vld [vmem:[%s5972 + $0x72] sm:$0xff]
  %v6590 = vld [vmem:[%s5972 + $0x7a] sm:$0xf]
  %v6591 = vld [vmem:[%s5972 + $0x82] sm:$0xff]
  %v6592 = vld [vmem:[%s5972 + $0x8a] sm:$0xf]
  %v6593 = vld [vmem:[%s5972 + $0x92] sm:$0xff]
  %v6594 = vld [vmem:[%s5972 + $0x9a] sm:$0xf]
  %v6595 = vld [vmem:[%s5972 + $0xa2] sm:$0xff]
  %v6596 = vld [vmem:[%s5972 + $0xaa] sm:$0xf]
  %v6597 = vld [vmem:[%s5972 + $0xb2] sm:$0xff]
  %v6598 = vld [vmem:[%s5972 + $0xba] sm:$0xf]
  %v6599 = vld [vmem:[%s5972 + $0x102] sm:$0xff]
  %v6600 = vld [vmem:[%s5972 + $0x10a] sm:$0xf]
  %v6601 = vld [vmem:[%s5972 + $0x112] sm:$0xff]
  %v6602 = vld [vmem:[%s5972 + $0x11a] sm:$0xf]
  %v6603 = vld [vmem:[%s5972 + $0x122] sm:$0xff]
  %v6604 = vld [vmem:[%s5972 + $0x12a] sm:$0xf]
  %v6605 = vld [vmem:[%s5972 + $0x132] sm:$0xff]
  %v6606 = vld [vmem:[%s5972 + $0x13a] sm:$0xf]
  %v6607 = vld [vmem:[%s5972 + $0x142] sm:$0xff]
  %v6608 = vld [vmem:[%s5972 + $0x14a] sm:$0xf]
  %v6609 = vld [vmem:[%s5972 + $0x152] sm:$0xff]
  %v6610 = vld [vmem:[%s5972 + $0x15a] sm:$0xf]
  %v6611 = vld [vmem:[%s5972 + $0x162] sm:$0xff]
  %v6612 = vld [vmem:[%s5972 + $0x16a] sm:$0xf]
  %v6613 = vld [vmem:[%s5972 + $0x172] sm:$0xff]
  %v6614 = vld [vmem:[%s5972 + $0x17a] sm:$0xf]
  %v6615 = vld [vmem:[%s5972 + $0x182] sm:$0xff]
  %v6616 = vld [vmem:[%s5972 + $0x18a] sm:$0xf]
  %v6617 = vld [vmem:[%s5972 + $0x192] sm:$0xff]
  %v6618 = vld [vmem:[%s5972 + $0x19a] sm:$0xf]
  %v6619 = vld [vmem:[%s5972 + $0x1a2] sm:$0xff]
  %v6620 = vld [vmem:[%s5972 + $0x1aa] sm:$0xf]
  %v6621 = vld [vmem:[%s5972 + $0x1b2] sm:$0xff]
  %v6622 = vld [vmem:[%s5972 + $0x1ba] sm:$0xf]
  %v6671 = vcombine.high %v6575, %v6575
  %v6672 = vcombine.high %v6577, %v6577
  %v6673 = vcombine.high %v6579, %v6579
  %v6674 = vcombine.high %v6581, %v6581
  %v6675 = vcombine.high %v6583, %v6583
  %v6676 = vcombine.high %v6585, %v6585
  %v6677 = vcombine.high %v6587, %v6587
  %v6678 = vcombine.high %v6589, %v6589
  %v6679 = vcombine.high %v6591, %v6591
  %v6680 = vcombine.high %v6593, %v6593
  %v6681 = vcombine.high %v6595, %v6595
  %v6682 = vcombine.high %v6597, %v6597
  %v6683 = vcombine.high %v6599, %v6599
  %v6684 = vcombine.high %v6601, %v6601
  %v6685 = vcombine.high %v6603, %v6603
  %v6686 = vcombine.high %v6605, %v6605
  %v6687 = vcombine.high %v6607, %v6607
  %v6688 = vcombine.high %v6609, %v6609
  %v6689 = vcombine.high %v6611, %v6611
  %v6690 = vcombine.high %v6613, %v6613
  %v6691 = vcombine.high %v6615, %v6615
  %v6692 = vcombine.high %v6617, %v6617
  %v6693 = vcombine.high %v6619, %v6619
  %v6694 = vcombine.high %v6621, %v6621
  %v6695 = vcombine.low %v6575, %v6671
  %v6696 = vcombine.low %v6576, %v6577
  %v6697 = vcombine.low %v6672, %v6578
  %v6698 = vcombine.low %v6579, %v6673
  %v6699 = vcombine.low %v6580, %v6581
  %v6700 = vcombine.low %v6674, %v6582
  %v6701 = vcombine.low %v6583, %v6675
  %v6702 = vcombine.low %v6584, %v6585
  %v6703 = vcombine.low %v6676, %v6586
  %v6704 = vcombine.low %v6587, %v6677
  %v6705 = vcombine.low %v6588, %v6589
  %v6706 = vcombine.low %v6678, %v6590
  %v6707 = vcombine.low %v6591, %v6679
  %v6708 = vcombine.low %v6592, %v6593
  %v6709 = vcombine.low %v6680, %v6594
  %v6710 = vcombine.low %v6595, %v6681
  %v6711 = vcombine.low %v6596, %v6597
  %v6712 = vcombine.low %v6682, %v6598
  %v6713 = vcombine.low %v6599, %v6683
  %v6714 = vcombine.low %v6600, %v6601
  %v6715 = vcombine.low %v6684, %v6602
  %v6716 = vcombine.low %v6603, %v6685
  %v6717 = vcombine.low %v6604, %v6605
  %v6718 = vcombine.low %v6686, %v6606
  %v6719 = vcombine.low %v6607, %v6687
  %v6720 = vcombine.low %v6608, %v6609
  %v6721 = vcombine.low %v6688, %v6610
  %v6722 = vcombine.low %v6611, %v6689
  %v6723 = vcombine.low %v6612, %v6613
  %v6724 = vcombine.low %v6690, %v6614
  %v6725 = vcombine.low %v6615, %v6691
  %v6726 = vcombine.low %v6616, %v6617
  %v6727 = vcombine.low %v6692, %v6618
  %v6728 = vcombine.low %v6619, %v6693
  %v6729 = vcombine.low %v6620, %v6621
  %v6730 = vcombine.low %v6694, %v6622
  %6731 = vrot.lane.b32.xlu0 %v6695, 22
  %v6732 = vpop.permute.xlu0 %6731
  %6733 = vrot.lane.b32.xlu0 %v6696, 22
  %v6734 = vpop.permute.xlu0 %6733
  %6735 = vrot.lane.b32.xlu0 %v6697, 22
  %v6736 = vpop.permute.xlu0 %6735
  %6737 = vrot.lane.b32.xlu0 %v6698, 22
  %v6738 = vpop.permute.xlu0 %6737
  %6739 = vrot.lane.b32.xlu0 %v6699, 22
  %v6740 = vpop.permute.xlu0 %6739
  %6741 = vrot.lane.b32.xlu0 %v6700, 22
  %v6742 = vpop.permute.xlu0 %6741
  %6743 = vrot.lane.b32.xlu0 %v6701, 22
  %v6744 = vpop.permute.xlu0 %6743
  %6745 = vrot.lane.b32.xlu0 %v6702, 22
  %v6746 = vpop.permute.xlu0 %6745
  %6747 = vrot.lane.b32.xlu0 %v6703, 22
  %v6748 = vpop.permute.xlu0 %6747
  %6749 = vrot.lane.b32.xlu0 %v6704, 22
  %v6750 = vpop.permute.xlu0 %6749
  %6751 = vrot.lane.b32.xlu0 %v6705, 22
  %v6752 = vpop.permute.xlu0 %6751
  %6753 = vrot.lane.b32.xlu0 %v6706, 22
  %v6754 = vpop.permute.xlu0 %6753
  %6755 = vrot.lane.b32.xlu0 %v6707, 22
  %v6756 = vpop.permute.xlu0 %6755
  %6757 = vrot.lane.b32.xlu0 %v6708, 22
  %v6758 = vpop.permute.xlu0 %6757
  %6759 = vrot.lane.b32.xlu0 %v6709, 22
  %v6760 = vpop.permute.xlu0 %6759
  %6761 = vrot.lane.b32.xlu0 %v6710, 22
  %v6762 = vpop.permute.xlu0 %6761
  %6763 = vrot.lane.b32.xlu0 %v6711, 22
  %v6764 = vpop.permute.xlu0 %6763
  %6765 = vrot.lane.b32.xlu0 %v6712, 22
  %v6766 = vpop.permute.xlu0 %6765
  %6767 = vrot.lane.b32.xlu0 %v6713, 22
  %v6768 = vpop.permute.xlu0 %6767
  %6769 = vrot.lane.b32.xlu0 %v6714, 22
  %v6770 = vpop.permute.xlu0 %6769
  %6771 = vrot.lane.b32.xlu0 %v6715, 22
  %v6772 = vpop.permute.xlu0 %6771
  %6773 = vrot.lane.b32.xlu0 %v6716, 22
  %v6774 = vpop.permute.xlu0 %6773
  %6775 = vrot.lane.b32.xlu0 %v6717, 22
  %v6776 = vpop.permute.xlu0 %6775
  %6777 = vrot.lane.b32.xlu0 %v6718, 22
  %v6778 = vpop.permute.xlu0 %6777
  %6779 = vrot.lane.b32.xlu0 %v6719, 22
  %v6780 = vpop.permute.xlu0 %6779
  %6781 = vrot.lane.b32.xlu0 %v6720, 22
  %v6782 = vpop.permute.xlu0 %6781
  %6783 = vrot.lane.b32.xlu0 %v6721, 22
  %v6784 = vpop.permute.xlu0 %6783
  %6785 = vrot.lane.b32.xlu0 %v6722, 22
  %v6786 = vpop.permute.xlu0 %6785
  %6787 = vrot.lane.b32.xlu0 %v6723, 22
  %v6788 = vpop.permute.xlu0 %6787
  %6789 = vrot.lane.b32.xlu0 %v6724, 22
  %v6790 = vpop.permute.xlu0 %6789
  %6791 = vrot.lane.b32.xlu0 %v6725, 22
  %v6792 = vpop.permute.xlu0 %6791
  %6793 = vrot.lane.b32.xlu0 %v6726, 22
  %v6794 = vpop.permute.xlu0 %6793
  %6795 = vrot.lane.b32.xlu0 %v6727, 22
  %v6796 = vpop.permute.xlu0 %6795
  %6797 = vrot.lane.b32.xlu0 %v6728, 22
  %v6798 = vpop.permute.xlu0 %6797
  %6799 = vrot.lane.b32.xlu0 %v6729, 22
  %v6800 = vpop.permute.xlu0 %6799
  %6801 = vrot.lane.b32.xlu0 %v6730, 22
  %v6802 = vpop.permute.xlu0 %6801
  %vm6839 = vcmask 187568
  %6840 = vst.msk [vmem:[#allocation2] sm:$0xff] %vm6839, %v6732
  %6841 = vst.msk [vmem:[#allocation2 + $0x8] sm:$0xff] %vm6839, %v6734
  %6842 = vst.msk [vmem:[#allocation2 + $0x10] sm:$0xff] %vm6839, %v6736
  %6843 = vst.msk [vmem:[#allocation2 + $0x18] sm:$0xff] %vm6839, %v6738
  %6844 = vst.msk [vmem:[#allocation2 + $0x20] sm:$0xff] %vm6839, %v6740
  %6845 = vst.msk [vmem:[#allocation2 + $0x28] sm:$0xff] %vm6839, %v6742
  %6846 = vst.msk [vmem:[#allocation2 + $0x30] sm:$0xff] %vm6839, %v6744
  %6847 = vst.msk [vmem:[#allocation2 + $0x38] sm:$0xff] %vm6839, %v6746
  %6848 = vst.msk [vmem:[#allocation2 + $0x40] sm:$0xff] %vm6839, %v6748
  %6849 = vst.msk [vmem:[#allocation2 + $0x48] sm:$0xff] %vm6839, %v6750
  %6850 = vst.msk [vmem:[#allocation2 + $0x50] sm:$0xff] %vm6839, %v6752
  %6851 = vst.msk [vmem:[#allocation2 + $0x58] sm:$0xff] %vm6839, %v6754
  %6852 = vst.msk [vmem:[#allocation2 + $0x60] sm:$0xff] %vm6839, %v6756
  %6853 = vst.msk [vmem:[#allocation2 + $0x68] sm:$0xff] %vm6839, %v6758
  %6854 = vst.msk [vmem:[#allocation2 + $0x70] sm:$0xff] %vm6839, %v6760
  %6855 = vst.msk [vmem:[#allocation2 + $0x78] sm:$0xff] %vm6839, %v6762
  %6856 = vst.msk [vmem:[#allocation2 + $0x80] sm:$0xff] %vm6839, %v6764
  %6857 = vst.msk [vmem:[#allocation2 + $0x88] sm:$0xff] %vm6839, %v6766
  %6858 = vst.msk [vmem:[#allocation2 + $0x90] sm:$0xff] %vm6839, %v6768
  %6859 = vst.msk [vmem:[#allocation2 + $0x98] sm:$0xff] %vm6839, %v6770
  %6860 = vst.msk [vmem:[#allocation2 + $0xa0] sm:$0xff] %vm6839, %v6772
  %6861 = vst.msk [vmem:[#allocation2 + $0xa8] sm:$0xff] %vm6839, %v6774
  %6862 = vst.msk [vmem:[#allocation2 + $0xb0] sm:$0xff] %vm6839, %v6776
  %6863 = vst.msk [vmem:[#allocation2 + $0xb8] sm:$0xff] %vm6839, %v6778
  %6864 = vst.msk [vmem:[#allocation2 + $0xc0] sm:$0xff] %vm6839, %v6780
  %6865 = vst.msk [vmem:[#allocation2 + $0xc8] sm:$0xff] %vm6839, %v6782
  %6866 = vst.msk [vmem:[#allocation2 + $0xd0] sm:$0xff] %vm6839, %v6784
  %6867 = vst.msk [vmem:[#allocation2 + $0xd8] sm:$0xff] %vm6839, %v6786
  %6868 = vst.msk [vmem:[#allocation2 + $0xe0] sm:$0xff] %vm6839, %v6788
  %6869 = vst.msk [vmem:[#allocation2 + $0xe8] sm:$0xff] %vm6839, %v6790
  %6870 = vst.msk [vmem:[#allocation2 + $0xf0] sm:$0xff] %vm6839, %v6792
  %6871 = vst.msk [vmem:[#allocation2 + $0xf8] sm:$0xff] %vm6839, %v6794
  %6872 = vst.msk [vmem:[#allocation2 + $0x100] sm:$0xff] %vm6839, %v6796
  %6873 = vst.msk [vmem:[#allocation2 + $0x108] sm:$0xff] %vm6839, %v6798
  %6874 = vst.msk [vmem:[#allocation2 + $0x110] sm:$0xff] %vm6839, %v6800
  %6875 = vst.msk [vmem:[#allocation2 + $0x118] sm:$0xff] %vm6839, %v6802
  %v6876 = vld [vmem:[%s5972 + $0x3] sm:$0xff]
  %v6877 = vld [vmem:[%s5972 + $0xb] sm:$0xf]
  %v6878 = vld [vmem:[%s5972 + $0x13] sm:$0xff]
  %v6879 = vld [vmem:[%s5972 + $0x1b] sm:$0xf]
  %v6880 = vld [vmem:[%s5972 + $0x23] sm:$0xff]
  %v6881 = vld [vmem:[%s5972 + $0x2b] sm:$0xf]
  %v6882 = vld [vmem:[%s5972 + $0x33] sm:$0xff]
  %v6883 = vld [vmem:[%s5972 + $0x3b] sm:$0xf]
  %v6884 = vld [vmem:[%s5972 + $0x43] sm:$0xff]
  %v6885 = vld [vmem:[%s5972 + $0x4b] sm:$0xf]
  %v6886 = vld [vmem:[%s5972 + $0x53] sm:$0xff]
  %v6887 = vld [vmem:[%s5972 + $0x5b] sm:$0xf]
  %v6888 = vld [vmem:[%s5972 + $0x63] sm:$0xff]
  %v6889 = vld [vmem:[%s5972 + $0x6b] sm:$0xf]
  %v6890 = vld [vmem:[%s5972 + $0x73] sm:$0xff]
  %v6891 = vld [vmem:[%s5972 + $0x7b] sm:$0xf]
  %v6892 = vld [vmem:[%s5972 + $0x83] sm:$0xff]
  %v6893 = vld [vmem:[%s5972 + $0x8b] sm:$0xf]
  %v6894 = vld [vmem:[%s5972 + $0x93] sm:$0xff]
  %v6895 = vld [vmem:[%s5972 + $0x9b] sm:$0xf]
  %v6896 = vld [vmem:[%s5972 + $0xa3] sm:$0xff]
  %v6897 = vld [vmem:[%s5972 + $0xab] sm:$0xf]
  %v6898 = vld [vmem:[%s5972 + $0xb3] sm:$0xff]
  %v6899 = vld [vmem:[%s5972 + $0xbb] sm:$0xf]
  %v6900 = vld [vmem:[%s5972 + $0x103] sm:$0xff]
  %v6901 = vld [vmem:[%s5972 + $0x10b] sm:$0xf]
  %v6902 = vld [vmem:[%s5972 + $0x113] sm:$0xff]
  %v6903 = vld [vmem:[%s5972 + $0x11b] sm:$0xf]
  %v6904 = vld [vmem:[%s5972 + $0x123] sm:$0xff]
  %v6905 = vld [vmem:[%s5972 + $0x12b] sm:$0xf]
  %v6906 = vld [vmem:[%s5972 + $0x133] sm:$0xff]
  %v6907 = vld [vmem:[%s5972 + $0x13b] sm:$0xf]
  %v6908 = vld [vmem:[%s5972 + $0x143] sm:$0xff]
  %v6909 = vld [vmem:[%s5972 + $0x14b] sm:$0xf]
  %v6910 = vld [vmem:[%s5972 + $0x153] sm:$0xff]
  %v6911 = vld [vmem:[%s5972 + $0x15b] sm:$0xf]
  %v6912 = vld [vmem:[%s5972 + $0x163] sm:$0xff]
  %v6913 = vld [vmem:[%s5972 + $0x16b] sm:$0xf]
  %v6914 = vld [vmem:[%s5972 + $0x173] sm:$0xff]
  %v6915 = vld [vmem:[%s5972 + $0x17b] sm:$0xf]
  %v6916 = vld [vmem:[%s5972 + $0x183] sm:$0xff]
  %v6917 = vld [vmem:[%s5972 + $0x18b] sm:$0xf]
  %v6918 = vld [vmem:[%s5972 + $0x193] sm:$0xff]
  %v6919 = vld [vmem:[%s5972 + $0x19b] sm:$0xf]
  %v6920 = vld [vmem:[%s5972 + $0x1a3] sm:$0xff]
  %v6921 = vld [vmem:[%s5972 + $0x1ab] sm:$0xf]
  %v6922 = vld [vmem:[%s5972 + $0x1b3] sm:$0xff]
  %v6923 = vld [vmem:[%s5972 + $0x1bb] sm:$0xf]
  %v6972 = vcombine.high %v6876, %v6876
  %v6973 = vcombine.high %v6878, %v6878
  %v6974 = vcombine.high %v6880, %v6880
  %v6975 = vcombine.high %v6882, %v6882
  %v6976 = vcombine.high %v6884, %v6884
  %v6977 = vcombine.high %v6886, %v6886
  %v6978 = vcombine.high %v6888, %v6888
  %v6979 = vcombine.high %v6890, %v6890
  %v6980 = vcombine.high %v6892, %v6892
  %v6981 = vcombine.high %v6894, %v6894
  %v6982 = vcombine.high %v6896, %v6896
  %v6983 = vcombine.high %v6898, %v6898
  %v6984 = vcombine.high %v6900, %v6900
  %v6985 = vcombine.high %v6902, %v6902
  %v6986 = vcombine.high %v6904, %v6904
  %v6987 = vcombine.high %v6906, %v6906
  %v6988 = vcombine.high %v6908, %v6908
  %v6989 = vcombine.high %v6910, %v6910
  %v6990 = vcombine.high %v6912, %v6912
  %v6991 = vcombine.high %v6914, %v6914
  %v6992 = vcombine.high %v6916, %v6916
  %v6993 = vcombine.high %v6918, %v6918
  %v6994 = vcombine.high %v6920, %v6920
  %v6995 = vcombine.high %v6922, %v6922
  %v6996 = vcombine.low %v6876, %v6972
  %v6997 = vcombine.low %v6877, %v6878
  %v6998 = vcombine.low %v6973, %v6879
  %v6999 = vcombine.low %v6880, %v6974
  %v7000 = vcombine.low %v6881, %v6882
  %v7001 = vcombine.low %v6975, %v6883
  %v7002 = vcombine.low %v6884, %v6976
  %v7003 = vcombine.low %v6885, %v6886
  %v7004 = vcombine.low %v6977, %v6887
  %v7005 = vcombine.low %v6888, %v6978
  %v7006 = vcombine.low %v6889, %v6890
  %v7007 = vcombine.low %v6979, %v6891
  %v7008 = vcombine.low %v6892, %v6980
  %v7009 = vcombine.low %v6893, %v6894
  %v7010 = vcombine.low %v6981, %v6895
  %v7011 = vcombine.low %v6896, %v6982
  %v7012 = vcombine.low %v6897, %v6898
  %v7013 = vcombine.low %v6983, %v6899
  %v7014 = vcombine.low %v6900, %v6984
  %v7015 = vcombine.low %v6901, %v6902
  %v7016 = vcombine.low %v6985, %v6903
  %v7017 = vcombine.low %v6904, %v6986
  %v7018 = vcombine.low %v6905, %v6906
  %v7019 = vcombine.low %v6987, %v6907
  %v7020 = vcombine.low %v6908, %v6988
  %v7021 = vcombine.low %v6909, %v6910
  %v7022 = vcombine.low %v6989, %v6911
  %v7023 = vcombine.low %v6912, %v6990
  %v7024 = vcombine.low %v6913, %v6914
  %v7025 = vcombine.low %v6991, %v6915
  %v7026 = vcombine.low %v6916, %v6992
  %v7027 = vcombine.low %v6917, %v6918
  %v7028 = vcombine.low %v6993, %v6919
  %v7029 = vcombine.low %v6920, %v6994
  %v7030 = vcombine.low %v6921, %v6922
  %v7031 = vcombine.low %v6995, %v6923
  %7032 = vrot.lane.b32.xlu0 %v6996, 23
  %v7033 = vpop.permute.xlu0 %7032
  %7034 = vrot.lane.b32.xlu0 %v6997, 23
  %v7035 = vpop.permute.xlu0 %7034
  %7036 = vrot.lane.b32.xlu0 %v6998, 23
  %v7037 = vpop.permute.xlu0 %7036
  %7038 = vrot.lane.b32.xlu0 %v6999, 23
  %v7039 = vpop.permute.xlu0 %7038
  %7040 = vrot.lane.b32.xlu0 %v7000, 23
  %v7041 = vpop.permute.xlu0 %7040
  %7042 = vrot.lane.b32.xlu0 %v7001, 23
  %v7043 = vpop.permute.xlu0 %7042
  %7044 = vrot.lane.b32.xlu0 %v7002, 23
  %v7045 = vpop.permute.xlu0 %7044
  %7046 = vrot.lane.b32.xlu0 %v7003, 23
  %v7047 = vpop.permute.xlu0 %7046
  %7048 = vrot.lane.b32.xlu0 %v7004, 23
  %v7049 = vpop.permute.xlu0 %7048
  %7050 = vrot.lane.b32.xlu0 %v7005, 23
  %v7051 = vpop.permute.xlu0 %7050
  %7052 = vrot.lane.b32.xlu0 %v7006, 23
  %v7053 = vpop.permute.xlu0 %7052
  %7054 = vrot.lane.b32.xlu0 %v7007, 23
  %v7055 = vpop.permute.xlu0 %7054
  %7056 = vrot.lane.b32.xlu0 %v7008, 23
  %v7057 = vpop.permute.xlu0 %7056
  %7058 = vrot.lane.b32.xlu0 %v7009, 23
  %v7059 = vpop.permute.xlu0 %7058
  %7060 = vrot.lane.b32.xlu0 %v7010, 23
  %v7061 = vpop.permute.xlu0 %7060
  %7062 = vrot.lane.b32.xlu0 %v7011, 23
  %v7063 = vpop.permute.xlu0 %7062
  %7064 = vrot.lane.b32.xlu0 %v7012, 23
  %v7065 = vpop.permute.xlu0 %7064
  %7066 = vrot.lane.b32.xlu0 %v7013, 23
  %v7067 = vpop.permute.xlu0 %7066
  %7068 = vrot.lane.b32.xlu0 %v7014, 23
  %v7069 = vpop.permute.xlu0 %7068
  %7070 = vrot.lane.b32.xlu0 %v7015, 23
  %v7071 = vpop.permute.xlu0 %7070
  %7072 = vrot.lane.b32.xlu0 %v7016, 23
  %v7073 = vpop.permute.xlu0 %7072
  %7074 = vrot.lane.b32.xlu0 %v7017, 23
  %v7075 = vpop.permute.xlu0 %7074
  %7076 = vrot.lane.b32.xlu0 %v7018, 23
  %v7077 = vpop.permute.xlu0 %7076
  %7078 = vrot.lane.b32.xlu0 %v7019, 23
  %v7079 = vpop.permute.xlu0 %7078
  %7080 = vrot.lane.b32.xlu0 %v7020, 23
  %v7081 = vpop.permute.xlu0 %7080
  %7082 = vrot.lane.b32.xlu0 %v7021, 23
  %v7083 = vpop.permute.xlu0 %7082
  %7084 = vrot.lane.b32.xlu0 %v7022, 23
  %v7085 = vpop.permute.xlu0 %7084
  %7086 = vrot.lane.b32.xlu0 %v7023, 23
  %v7087 = vpop.permute.xlu0 %7086
  %7088 = vrot.lane.b32.xlu0 %v7024, 23
  %v7089 = vpop.permute.xlu0 %7088
  %7090 = vrot.lane.b32.xlu0 %v7025, 23
  %v7091 = vpop.permute.xlu0 %7090
  %7092 = vrot.lane.b32.xlu0 %v7026, 23
  %v7093 = vpop.permute.xlu0 %7092
  %7094 = vrot.lane.b32.xlu0 %v7027, 23
  %v7095 = vpop.permute.xlu0 %7094
  %7096 = vrot.lane.b32.xlu0 %v7028, 23
  %v7097 = vpop.permute.xlu0 %7096
  %7098 = vrot.lane.b32.xlu0 %v7029, 23
  %v7099 = vpop.permute.xlu0 %7098
  %7100 = vrot.lane.b32.xlu0 %v7030, 23
  %v7101 = vpop.permute.xlu0 %7100
  %7102 = vrot.lane.b32.xlu0 %v7031, 23
  %v7103 = vpop.permute.xlu0 %7102
  %vm7140 = vcmask 195768
  %7141 = vst.msk [vmem:[#allocation2] sm:$0xff] %vm7140, %v7033
  %7142 = vst.msk [vmem:[#allocation2 + $0x8] sm:$0xff] %vm7140, %v7035
  %7143 = vst.msk [vmem:[#allocation2 + $0x10] sm:$0xff] %vm7140, %v7037
  %7144 = vst.msk [vmem:[#allocation2 + $0x18] sm:$0xff] %vm7140, %v7039
  %7145 = vst.msk [vmem:[#allocation2 + $0x20] sm:$0xff] %vm7140, %v7041
  %7146 = vst.msk [vmem:[#allocation2 + $0x28] sm:$0xff] %vm7140, %v7043
  %7147 = vst.msk [vmem:[#allocation2 + $0x30] sm:$0xff] %vm7140, %v7045
  %7148 = vst.msk [vmem:[#allocation2 + $0x38] sm:$0xff] %vm7140, %v7047
  %7149 = vst.msk [vmem:[#allocation2 + $0x40] sm:$0xff] %vm7140, %v7049
  %7150 = vst.msk [vmem:[#allocation2 + $0x48] sm:$0xff] %vm7140, %v7051
  %7151 = vst.msk [vmem:[#allocation2 + $0x50] sm:$0xff] %vm7140, %v7053
  %7152 = vst.msk [vmem:[#allocation2 + $0x58] sm:$0xff] %vm7140, %v7055
  %7153 = vst.msk [vmem:[#allocation2 + $0x60] sm:$0xff] %vm7140, %v7057
  %7154 = vst.msk [vmem:[#allocation2 + $0x68] sm:$0xff] %vm7140, %v7059
  %7155 = vst.msk [vmem:[#allocation2 + $0x70] sm:$0xff] %vm7140, %v7061
  %7156 = vst.msk [vmem:[#allocation2 + $0x78] sm:$0xff] %vm7140, %v7063
  %7157 = vst.msk [vmem:[#allocation2 + $0x80] sm:$0xff] %vm7140, %v7065
  %7158 = vst.msk [vmem:[#allocation2 + $0x88] sm:$0xff] %vm7140, %v7067
  %7159 = vst.msk [vmem:[#allocation2 + $0x90] sm:$0xff] %vm7140, %v7069
  %7160 = vst.msk [vmem:[#allocation2 + $0x98] sm:$0xff] %vm7140, %v7071
  %7161 = vst.msk [vmem:[#allocation2 + $0xa0] sm:$0xff] %vm7140, %v7073
  %7162 = vst.msk [vmem:[#allocation2 + $0xa8] sm:$0xff] %vm7140, %v7075
  %7163 = vst.msk [vmem:[#allocation2 + $0xb0] sm:$0xff] %vm7140, %v7077
  %7164 = vst.msk [vmem:[#allocation2 + $0xb8] sm:$0xff] %vm7140, %v7079
  %7165 = vst.msk [vmem:[#allocation2 + $0xc0] sm:$0xff] %vm7140, %v7081
  %7166 = vst.msk [vmem:[#allocation2 + $0xc8] sm:$0xff] %vm7140, %v7083
  %7167 = vst.msk [vmem:[#allocation2 + $0xd0] sm:$0xff] %vm7140, %v7085
  %7168 = vst.msk [vmem:[#allocation2 + $0xd8] sm:$0xff] %vm7140, %v7087
  %7169 = vst.msk [vmem:[#allocation2 + $0xe0] sm:$0xff] %vm7140, %v7089
  %7170 = vst.msk [vmem:[#allocation2 + $0xe8] sm:$0xff] %vm7140, %v7091
  %7171 = vst.msk [vmem:[#allocation2 + $0xf0] sm:$0xff] %vm7140, %v7093
  %7172 = vst.msk [vmem:[#allocation2 + $0xf8] sm:$0xff] %vm7140, %v7095
  %7173 = vst.msk [vmem:[#allocation2 + $0x100] sm:$0xff] %vm7140, %v7097
  %7174 = vst.msk [vmem:[#allocation2 + $0x108] sm:$0xff] %vm7140, %v7099
  %7175 = vst.msk [vmem:[#allocation2 + $0x110] sm:$0xff] %vm7140, %v7101
  %7176 = vst.msk [vmem:[#allocation2 + $0x118] sm:$0xff] %vm7140, %v7103
  %v7177 = vld [vmem:[%s5972 + $0x4] sm:$0xff]
  %v7178 = vld [vmem:[%s5972 + $0xc] sm:$0xf]
  %v7179 = vld [vmem:[%s5972 + $0x14] sm:$0xff]
  %v7180 = vld [vmem:[%s5972 + $0x1c] sm:$0xf]
  %v7181 = vld [vmem:[%s5972 + $0x24] sm:$0xff]
  %v7182 = vld [vmem:[%s5972 + $0x2c] sm:$0xf]
  %v7183 = vld [vmem:[%s5972 + $0x34] sm:$0xff]
  %v7184 = vld [vmem:[%s5972 + $0x3c] sm:$0xf]
  %v7185 = vld [vmem:[%s5972 + $0x44] sm:$0xff]
  %v7186 = vld [vmem:[%s5972 + $0x4c] sm:$0xf]
  %v7187 = vld [vmem:[%s5972 + $0x54] sm:$0xff]
  %v7188 = vld [vmem:[%s5972 + $0x5c] sm:$0xf]
  %v7189 = vld [vmem:[%s5972 + $0x64] sm:$0xff]
  %v7190 = vld [vmem:[%s5972 + $0x6c] sm:$0xf]
  %v7191 = vld [vmem:[%s5972 + $0x74] sm:$0xff]
  %v7192 = vld [vmem:[%s5972 + $0x7c] sm:$0xf]
  %v7193 = vld [vmem:[%s5972 + $0x84] sm:$0xff]
  %v7194 = vld [vmem:[%s5972 + $0x8c] sm:$0xf]
  %v7195 = vld [vmem:[%s5972 + $0x94] sm:$0xff]
  %v7196 = vld [vmem:[%s5972 + $0x9c] sm:$0xf]
  %v7197 = vld [vmem:[%s5972 + $0xa4] sm:$0xff]
  %v7198 = vld [vmem:[%s5972 + $0xac] sm:$0xf]
  %v7199 = vld [vmem:[%s5972 + $0xb4] sm:$0xff]
  %v7200 = vld [vmem:[%s5972 + $0xbc] sm:$0xf]
  %v7201 = vld [vmem:[%s5972 + $0x104] sm:$0xff]
  %v7202 = vld [vmem:[%s5972 + $0x10c] sm:$0xf]
  %v7203 = vld [vmem:[%s5972 + $0x114] sm:$0xff]
  %v7204 = vld [vmem:[%s5972 + $0x11c] sm:$0xf]
  %v7205 = vld [vmem:[%s5972 + $0x124] sm:$0xff]
  %v7206 = vld [vmem:[%s5972 + $0x12c] sm:$0xf]
  %v7207 = vld [vmem:[%s5972 + $0x134] sm:$0xff]
  %v7208 = vld [vmem:[%s5972 + $0x13c] sm:$0xf]
  %v7209 = vld [vmem:[%s5972 + $0x144] sm:$0xff]
  %v7210 = vld [vmem:[%s5972 + $0x14c] sm:$0xf]
  %v7211 = vld [vmem:[%s5972 + $0x154] sm:$0xff]
  %v7212 = vld [vmem:[%s5972 + $0x15c] sm:$0xf]
  %v7213 = vld [vmem:[%s5972 + $0x164] sm:$0xff]
  %v7214 = vld [vmem:[%s5972 + $0x16c] sm:$0xf]
  %v7215 = vld [vmem:[%s5972 + $0x174] sm:$0xff]
  %v7216 = vld [vmem:[%s5972 + $0x17c] sm:$0xf]
  %v7217 = vld [vmem:[%s5972 + $0x184] sm:$0xff]
  %v7218 = vld [vmem:[%s5972 + $0x18c] sm:$0xf]
  %v7219 = vld [vmem:[%s5972 + $0x194] sm:$0xff]
  %v7220 = vld [vmem:[%s5972 + $0x19c] sm:$0xf]
  %v7221 = vld [vmem:[%s5972 + $0x1a4] sm:$0xff]
  %v7222 = vld [vmem:[%s5972 + $0x1ac] sm:$0xf]
  %v7223 = vld [vmem:[%s5972 + $0x1b4] sm:$0xff]
  %v7224 = vld [vmem:[%s5972 + $0x1bc] sm:$0xf]
  %v7273 = vcombine.high %v7177, %v7177
  %v7274 = vcombine.high %v7179, %v7179
  %v7275 = vcombine.high %v7181, %v7181
  %v7276 = vcombine.high %v7183, %v7183
  %v7277 = vcombine.high %v7185, %v7185
  %v7278 = vcombine.high %v7187, %v7187
  %v7279 = vcombine.high %v7189, %v7189
  %v7280 = vcombine.high %v7191, %v7191
  %v7281 = vcombine.high %v7193, %v7193
  %v7282 = vcombine.high %v7195, %v7195
  %v7283 = vcombine.high %v7197, %v7197
  %v7284 = vcombine.high %v7199, %v7199
  %v7285 = vcombine.high %v7201, %v7201
  %v7286 = vcombine.high %v7203, %v7203
  %v7287 = vcombine.high %v7205, %v7205
  %v7288 = vcombine.high %v7207, %v7207
  %v7289 = vcombine.high %v7209, %v7209
  %v7290 = vcombine.high %v7211, %v7211
  %v7291 = vcombine.high %v7213, %v7213
  %v7292 = vcombine.high %v7215, %v7215
  %v7293 = vcombine.high %v7217, %v7217
  %v7294 = vcombine.high %v7219, %v7219
  %v7295 = vcombine.high %v7221, %v7221
  %v7296 = vcombine.high %v7223, %v7223
  %v7297 = vcombine.low %v7177, %v7273
  %v7298 = vcombine.low %v7178, %v7179
  %v7299 = vcombine.low %v7274, %v7180
  %v7300 = vcombine.low %v7181, %v7275
  %v7301 = vcombine.low %v7182, %v7183
  %v7302 = vcombine.low %v7276, %v7184
  %v7303 = vcombine.low %v7185, %v7277
  %v7304 = vcombine.low %v7186, %v7187
  %v7305 = vcombine.low %v7278, %v7188
  %v7306 = vcombine.low %v7189, %v7279
  %v7307 = vcombine.low %v7190, %v7191
  %v7308 = vcombine.low %v7280, %v7192
  %v7309 = vcombine.low %v7193, %v7281
  %v7310 = vcombine.low %v7194, %v7195
  %v7311 = vcombine.low %v7282, %v7196
  %v7312 = vcombine.low %v7197, %v7283
  %v7313 = vcombine.low %v7198, %v7199
  %v7314 = vcombine.low %v7284, %v7200
  %v7315 = vcombine.low %v7201, %v7285
  %v7316 = vcombine.low %v7202, %v7203
  %v7317 = vcombine.low %v7286, %v7204
  %v7318 = vcombine.low %v7205, %v7287
  %v7319 = vcombine.low %v7206, %v7207
  %v7320 = vcombine.low %v7288, %v7208
  %v7321 = vcombine.low %v7209, %v7289
  %v7322 = vcombine.low %v7210, %v7211
  %v7323 = vcombine.low %v7290, %v7212
  %v7324 = vcombine.low %v7213, %v7291
  %v7325 = vcombine.low %v7214, %v7215
  %v7326 = vcombine.low %v7292, %v7216
  %v7327 = vcombine.low %v7217, %v7293
  %v7328 = vcombine.low %v7218, %v7219
  %v7329 = vcombine.low %v7294, %v7220
  %v7330 = vcombine.low %v7221, %v7295
  %v7331 = vcombine.low %v7222, %v7223
  %v7332 = vcombine.low %v7296, %v7224
  %7333 = vrot.lane.b32.xlu0 %v7297, 24
  %v7334 = vpop.permute.xlu0 %7333
  %7335 = vrot.lane.b32.xlu0 %v7298, 24
  %v7336 = vpop.permute.xlu0 %7335
  %7337 = vrot.lane.b32.xlu0 %v7299, 24
  %v7338 = vpop.permute.xlu0 %7337
  %7339 = vrot.lane.b32.xlu0 %v7300, 24
  %v7340 = vpop.permute.xlu0 %7339
  %7341 = vrot.lane.b32.xlu0 %v7301, 24
  %v7342 = vpop.permute.xlu0 %7341
  %7343 = vrot.lane.b32.xlu0 %v7302, 24
  %v7344 = vpop.permute.xlu0 %7343
  %7345 = vrot.lane.b32.xlu0 %v7303, 24
  %v7346 = vpop.permute.xlu0 %7345
  %7347 = vrot.lane.b32.xlu0 %v7304, 24
  %v7348 = vpop.permute.xlu0 %7347
  %7349 = vrot.lane.b32.xlu0 %v7305, 24
  %v7350 = vpop.permute.xlu0 %7349
  %7351 = vrot.lane.b32.xlu0 %v7306, 24
  %v7352 = vpop.permute.xlu0 %7351
  %7353 = vrot.lane.b32.xlu0 %v7307, 24
  %v7354 = vpop.permute.xlu0 %7353
  %7355 = vrot.lane.b32.xlu0 %v7308, 24
  %v7356 = vpop.permute.xlu0 %7355
  %7357 = vrot.lane.b32.xlu0 %v7309, 24
  %v7358 = vpop.permute.xlu0 %7357
  %7359 = vrot.lane.b32.xlu0 %v7310, 24
  %v7360 = vpop.permute.xlu0 %7359
  %7361 = vrot.lane.b32.xlu0 %v7311, 24
  %v7362 = vpop.permute.xlu0 %7361
  %7363 = vrot.lane.b32.xlu0 %v7312, 24
  %v7364 = vpop.permute.xlu0 %7363
  %7365 = vrot.lane.b32.xlu0 %v7313, 24
  %v7366 = vpop.permute.xlu0 %7365
  %7367 = vrot.lane.b32.xlu0 %v7314, 24
  %v7368 = vpop.permute.xlu0 %7367
  %7369 = vrot.lane.b32.xlu0 %v7315, 24
  %v7370 = vpop.permute.xlu0 %7369
  %7371 = vrot.lane.b32.xlu0 %v7316, 24
  %v7372 = vpop.permute.xlu0 %7371
  %7373 = vrot.lane.b32.xlu0 %v7317, 24
  %v7374 = vpop.permute.xlu0 %7373
  %7375 = vrot.lane.b32.xlu0 %v7318, 24
  %v7376 = vpop.permute.xlu0 %7375
  %7377 = vrot.lane.b32.xlu0 %v7319, 24
  %v7378 = vpop.permute.xlu0 %7377
  %7379 = vrot.lane.b32.xlu0 %v7320, 24
  %v7380 = vpop.permute.xlu0 %7379
  %7381 = vrot.lane.b32.xlu0 %v7321, 24
  %v7382 = vpop.permute.xlu0 %7381
  %7383 = vrot.lane.b32.xlu0 %v7322, 24
  %v7384 = vpop.permute.xlu0 %7383
  %7385 = vrot.lane.b32.xlu0 %v7323, 24
  %v7386 = vpop.permute.xlu0 %7385
  %7387 = vrot.lane.b32.xlu0 %v7324, 24
  %v7388 = vpop.permute.xlu0 %7387
  %7389 = vrot.lane.b32.xlu0 %v7325, 24
  %v7390 = vpop.permute.xlu0 %7389
  %7391 = vrot.lane.b32.xlu0 %v7326, 24
  %v7392 = vpop.permute.xlu0 %7391
  %7393 = vrot.lane.b32.xlu0 %v7327, 24
  %v7394 = vpop.permute.xlu0 %7393
  %7395 = vrot.lane.b32.xlu0 %v7328, 24
  %v7396 = vpop.permute.xlu0 %7395
  %7397 = vrot.lane.b32.xlu0 %v7329, 24
  %v7398 = vpop.permute.xlu0 %7397
  %7399 = vrot.lane.b32.xlu0 %v7330, 24
  %v7400 = vpop.permute.xlu0 %7399
  %7401 = vrot.lane.b32.xlu0 %v7331, 24
  %v7402 = vpop.permute.xlu0 %7401
  %7403 = vrot.lane.b32.xlu0 %v7332, 24
  %v7404 = vpop.permute.xlu0 %7403
  %vm7441 = vcmask 203968
  %7442 = vst.msk [vmem:[#allocation2] sm:$0xff] %vm7441, %v7334
  %7443 = vst.msk [vmem:[#allocation2 + $0x8] sm:$0xff] %vm7441, %v7336
  %7444 = vst.msk [vmem:[#allocation2 + $0x10] sm:$0xff] %vm7441, %v7338
  %7445 = vst.msk [vmem:[#allocation2 + $0x18] sm:$0xff] %vm7441, %v7340
  %7446 = vst.msk [vmem:[#allocation2 + $0x20] sm:$0xff] %vm7441, %v7342
  %7447 = vst.msk [vmem:[#allocation2 + $0x28] sm:$0xff] %vm7441, %v7344
  %7448 = vst.msk [vmem:[#allocation2 + $0x30] sm:$0xff] %vm7441, %v7346
  %7449 = vst.msk [vmem:[#allocation2 + $0x38] sm:$0xff] %vm7441, %v7348
  %7450 = vst.msk [vmem:[#allocation2 + $0x40] sm:$0xff] %vm7441, %v7350
  %7451 = vst.msk [vmem:[#allocation2 + $0x48] sm:$0xff] %vm7441, %v7352
  %7452 = vst.msk [vmem:[#allocation2 + $0x50] sm:$0xff] %vm7441, %v7354
  %7453 = vst.msk [vmem:[#allocation2 + $0x58] sm:$0xff] %vm7441, %v7356
  %7454 = vst.msk [vmem:[#allocation2 + $0x60] sm:$0xff] %vm7441, %v7358
  %7455 = vst.msk [vmem:[#allocation2 + $0x68] sm:$0xff] %vm7441, %v7360
  %7456 = vst.msk [vmem:[#allocation2 + $0x70] sm:$0xff] %vm7441, %v7362
  %7457 = vst.msk [vmem:[#allocation2 + $0x78] sm:$0xff] %vm7441, %v7364
  %7458 = vst.msk [vmem:[#allocation2 + $0x80] sm:$0xff] %vm7441, %v7366
  %7459 = vst.msk [vmem:[#allocation2 + $0x88] sm:$0xff] %vm7441, %v7368
  %7460 = vst.msk [vmem:[#allocation2 + $0x90] sm:$0xff] %vm7441, %v7370
  %7461 = vst.msk [vmem:[#allocation2 + $0x98] sm:$0xff] %vm7441, %v7372
  %7462 = vst.msk [vmem:[#allocation2 + $0xa0] sm:$0xff] %vm7441, %v7374
  %7463 = vst.msk [vmem:[#allocation2 + $0xa8] sm:$0xff] %vm7441, %v7376
  %7464 = vst.msk [vmem:[#allocation2 + $0xb0] sm:$0xff] %vm7441, %v7378
  %7465 = vst.msk [vmem:[#allocation2 + $0xb8] sm:$0xff] %vm7441, %v7380
  %7466 = vst.msk [vmem:[#allocation2 + $0xc0] sm:$0xff] %vm7441, %v7382
  %7467 = vst.msk [vmem:[#allocation2 + $0xc8] sm:$0xff] %vm7441, %v7384
  %7468 = vst.msk [vmem:[#allocation2 + $0xd0] sm:$0xff] %vm7441, %v7386
  %7469 = vst.msk [vmem:[#allocation2 + $0xd8] sm:$0xff] %vm7441, %v7388
  %7470 = vst.msk [vmem:[#allocation2 + $0xe0] sm:$0xff] %vm7441, %v7390
  %7471 = vst.msk [vmem:[#allocation2 + $0xe8] sm:$0xff] %vm7441, %v7392
  %7472 = vst.msk [vmem:[#allocation2 + $0xf0] sm:$0xff] %vm7441, %v7394
  %7473 = vst.msk [vmem:[#allocation2 + $0xf8] sm:$0xff] %vm7441, %v7396
  %7474 = vst.msk [vmem:[#allocation2 + $0x100] sm:$0xff] %vm7441, %v7398
  %7475 = vst.msk [vmem:[#allocation2 + $0x108] sm:$0xff] %vm7441, %v7400
  %7476 = vst.msk [vmem:[#allocation2 + $0x110] sm:$0xff] %vm7441, %v7402
  %7477 = vst.msk [vmem:[#allocation2 + $0x118] sm:$0xff] %vm7441, %v7404
  %v7478 = vld [vmem:[#allocation2] sm:$0xff]
  %v7479 = vld [vmem:[#allocation2 + $0x8] sm:$0xff]
  %v7480 = vld [vmem:[#allocation2 + $0x10] sm:$0xff]
  %v7481 = vld [vmem:[#allocation2 + $0x18] sm:$0xff]
  %v7482 = vld [vmem:[#allocation2 + $0x20] sm:$0xff]
  %v7483 = vld [vmem:[#allocation2 + $0x28] sm:$0xff]
  %v7484 = vld [vmem:[#allocation2 + $0x30] sm:$0xff]
  %v7485 = vld [vmem:[#allocation2 + $0x38] sm:$0xff]
  %v7486 = vld [vmem:[#allocation2 + $0x40] sm:$0xff]
  %v7487 = vld [vmem:[#allocation2 + $0x48] sm:$0xff]
  %v7488 = vld [vmem:[#allocation2 + $0x50] sm:$0xff]
  %v7489 = vld [vmem:[#allocation2 + $0x58] sm:$0xff]
  %v7490 = vld [vmem:[#allocation2 + $0x60] sm:$0xff]
  %v7491 = vld [vmem:[#allocation2 + $0x68] sm:$0xff]
  %v7492 = vld [vmem:[#allocation2 + $0x70] sm:$0xff]
  %v7493 = vld [vmem:[#allocation2 + $0x78] sm:$0xff]
  %v7494 = vld [vmem:[#allocation2 + $0x80] sm:$0xff]
  %v7495 = vld [vmem:[#allocation2 + $0x88] sm:$0xff]
  %v7496 = vld [vmem:[#allocation2 + $0x90] sm:$0xff]
  %v7497 = vld [vmem:[#allocation2 + $0x98] sm:$0xff]
  %v7498 = vld [vmem:[#allocation2 + $0xa0] sm:$0xff]
  %v7499 = vld [vmem:[#allocation2 + $0xa8] sm:$0xff]
  %v7500 = vld [vmem:[#allocation2 + $0xb0] sm:$0xff]
  %v7501 = vld [vmem:[#allocation2 + $0xb8] sm:$0xff]
  %v7502 = vld [vmem:[#allocation2 + $0xc0] sm:$0xff]
  %v7503 = vld [vmem:[#allocation2 + $0xc8] sm:$0xff]
  %v7504 = vld [vmem:[#allocation2 + $0xd0] sm:$0xff]
  %v7505 = vld [vmem:[#allocation2 + $0xd8] sm:$0xff]
  %v7506 = vld [vmem:[#allocation2 + $0xe0] sm:$0xff]
  %v7507 = vld [vmem:[#allocation2 + $0xe8] sm:$0xff]
  %v7508 = vld [vmem:[#allocation2 + $0xf0] sm:$0xff]
  %v7509 = vld [vmem:[#allocation2 + $0xf8] sm:$0xff]
  %v7510 = vld [vmem:[#allocation2 + $0x100] sm:$0xff]
  %v7511 = vld [vmem:[#allocation2 + $0x108] sm:$0xff]
  %v7512 = vld [vmem:[#allocation2 + $0x110] sm:$0xff]
  %v7513 = vld [vmem:[#allocation2 + $0x118] sm:$0xff]
  %v7514 = vpack.c.bf16 %v7479, %v7478
  %v7515 = vpack.c.bf16 %v7481, %v7480
  %v7516 = vpack.c.bf16 %v7483, %v7482
  %v7517 = vpack.c.bf16 %v7485, %v7484
  %v7518 = vpack.c.bf16 %v7487, %v7486
  %v7519 = vpack.c.bf16 %v7489, %v7488
  %v7520 = vpack.c.bf16 %v7491, %v7490
  %v7521 = vpack.c.bf16 %v7493, %v7492
  %v7522 = vpack.c.bf16 %v7495, %v7494
  %v7523 = vpack.c.bf16 %v7497, %v7496
  %v7524 = vpack.c.bf16 %v7499, %v7498
  %v7525 = vpack.c.bf16 %v7501, %v7500
  %v7526 = vpack.c.bf16 %v7503, %v7502
  %v7527 = vpack.c.bf16 %v7505, %v7504
  %v7528 = vpack.c.bf16 %v7507, %v7506
  %v7529 = vpack.c.bf16 %v7509, %v7508
  %v7530 = vpack.c.bf16 %v7511, %v7510
  %v7531 = vpack.c.bf16 %v7513, %v7512
  %v7532 = vld [vmem:[%s1] sm:$0xf]
  %v7533 = vld [vmem:[%s1 + $0x4] sm:$0xf]
  %v7534 = vld [vmem:[%s1 + $0x8] sm:$0xf]
  %v7535 = vld [vmem:[%s1 + $0xc] sm:$0x1]
  %v7536 = vld [vmem:[%s2] sm:$0x1]
  %v7538 = vlaneseq
  %v7539 = vshrl.u32 %v7538, 7
  %v7540 = vsub.s32 0, %v7539
  %v7541 = vrot.slane %v7536, %v7540
  %v7547 = vunpack.c.l.b16 %v7532
  %v7548 = vunpack.c.l.b16 %v7533
  %v7549 = vunpack.c.l.b16 %v7534
  %v7550 = vunpack.c.l.b16 %v7535
  %v7551 = vpack.c.b16 %v7548, %v7547
  %v7552 = vpack.c.b16 %v7550, %v7549
  %vm7554 = vcmask 203776
  %v7556 = vsel %vm7554, %v7514, 0
  %v7559 = vsel %vm7554, %v7515, 0
  %v7562 = vsel %vm7554, %v7516, 0
  %v7565 = vsel %vm7554, %v7517, 0
  %v7568 = vsel %vm7554, %v7518, 0
  %v7571 = vsel %vm7554, %v7519, 0
  %v7574 = vsel %vm7554, %v7520, 0
  %v7577 = vsel %vm7554, %v7521, 0
  %v7580 = vsel %vm7554, %v7522, 0
  %v7583 = vsel %vm7554, %v7523, 0
  %v7586 = vsel %vm7554, %v7524, 0
  %v7589 = vsel %vm7554, %v7525, 0
  %v7592 = vsel %vm7554, %v7526, 0
  %v7595 = vsel %vm7554, %v7527, 0
  %v7598 = vsel %vm7554, %v7528, 0
  %v7601 = vsel %vm7554, %v7529, 0
  %v7604 = vsel %vm7554, %v7530, 0
  %v7607 = vsel %vm7554, %v7531, 0
  %vm7609 = vcmask 1043456
  %vm7610 = vcmask 1044480
  %v7611 = vsel %vm7609, 4294967295, 65535
  %v7612 = vsel %vm7610, %v7611, 0
  %v7614 = vand.u32 %v7552, %v7612
  %7616 = vmatprep.subr.bf16.mxu0 0
  %7617 = vmatpush1.bf16.msra.mxu0 0
  %7618 = vmatprep.subr.bf16.mxu0 0
  %7619 = vmatpush1.bf16.msra.mxu0 0
  %7620 = vmatprep.subr.bf16.mxu0 0
  %7621 = vmatpush1.bf16.msra.mxu0 0
  %7622 = vmatprep.subr.bf16.mxu0 0
  %7623 = vmatpush1.bf16.msra.mxu0 0
  %7624 = vmatprep.subr.bf16.mxu0 0
  %7625 = vmatpush1.bf16.msra.mxu0 0
  %7626 = vmatprep.subr.bf16.mxu0 0
  %7627 = vmatpush1.bf16.msra.mxu0 0
  %7628 = vmatprep.subr.bf16.mxu0 0
  %7629 = vmatpush1.bf16.msra.mxu0 %v7614
  %7630 = vmatprep.subr.bf16.mxu0 0
  %7631 = vmatpush1.bf16.msra.mxu0 %v7551
  %7632 = vmatprep.subr.bf16.mxu0 0
  %7633 = vmatpush2.bf16.msra.mxu0 0
  %7634 = vmatprep.subr.bf16.mxu0 0
  %7635 = vmatpush2.bf16.msra.mxu0 0
  %7636 = vmatprep.subr.bf16.mxu0 0
  %7637 = vmatpush2.bf16.msra.mxu0 0
  %7638 = vmatprep.subr.bf16.mxu0 0
  %7639 = vmatpush2.bf16.msra.mxu0 0
  %7640 = vmatprep.subr.bf16.mxu0 0
  %7641 = vmatpush2.bf16.msra.mxu0 0
  %7642 = vmatprep.subr.bf16.mxu0 0
  %7643 = vmatpush2.bf16.msra.mxu0 0
  %7644 = vmatprep.subr.bf16.mxu0 0
  %7645 = vmatpush2.bf16.msra.mxu0 0
  %7646 = vmatprep.subr.bf16.mxu0 0
  %7647 = vmatpush2.bf16.msra.mxu0 0
  %7648 = vmatprep.mubr.bf16.mxu0 0
  %7649 = vmatmul.mubr.bf16.gmra.mxu0 %v7556
  %v7650 = vpop.f32.mrf.mxu0
  %v7651 = vadd.f32 %v7541, %v7650
  %v7652 = vpop.f32.mrf.mxu0
  %v7653 = vpop.f32.mrf.mxu0
  %v7654 = vadd.f32 %v7541, %v7653
  %v7655 = vpop.f32.mrf.mxu0
  %7656 = vmatprep.mubr.bf16.mxu0 0
  %7657 = vmatmul.mubr.bf16.gmra.mxu0 %v7559
  %v7658 = vpop.f32.mrf.mxu0
  %v7659 = vadd.f32 %v7541, %v7658
  %v7660 = vpop.f32.mrf.mxu0
  %v7661 = vpop.f32.mrf.mxu0
  %v7662 = vadd.f32 %v7541, %v7661
  %v7663 = vpop.f32.mrf.mxu0
  %7664 = vmatprep.mubr.bf16.mxu0 0
  %7665 = vmatmul.mubr.bf16.gmra.mxu0 %v7562
  %v7666 = vpop.f32.mrf.mxu0
  %v7667 = vadd.f32 %v7541, %v7666
  %v7668 = vpop.f32.mrf.mxu0
  %v7669 = vpop.f32.mrf.mxu0
  %v7670 = vadd.f32 %v7541, %v7669
  %v7671 = vpop.f32.mrf.mxu0
  %7672 = vmatprep.mubr.bf16.mxu0 0
  %7673 = vmatmul.mubr.bf16.gmra.mxu0 %v7565
  %v7674 = vpop.f32.mrf.mxu0
  %v7675 = vadd.f32 %v7541, %v7674
  %v7676 = vpop.f32.mrf.mxu0
  %v7677 = vpop.f32.mrf.mxu0
  %v7678 = vadd.f32 %v7541, %v7677
  %v7679 = vpop.f32.mrf.mxu0
  %7680 = vmatprep.mubr.bf16.mxu0 0
  %7681 = vmatmul.mubr.bf16.gmra.mxu0 %v7568
  %v7682 = vpop.f32.mrf.mxu0
  %v7683 = vadd.f32 %v7541, %v7682
  %v7684 = vpop.f32.mrf.mxu0
  %v7685 = vpop.f32.mrf.mxu0
  %v7686 = vadd.f32 %v7541, %v7685
  %v7687 = vpop.f32.mrf.mxu0
  %7688 = vmatprep.mubr.bf16.mxu0 0
  %7689 = vmatmul.mubr.bf16.gmra.mxu0 %v7571
  %v7690 = vpop.f32.mrf.mxu0
  %v7691 = vadd.f32 %v7541, %v7690
  %v7692 = vpop.f32.mrf.mxu0
  %v7693 = vpop.f32.mrf.mxu0
  %v7694 = vadd.f32 %v7541, %v7693
  %v7695 = vpop.f32.mrf.mxu0
  %7696 = vmatprep.mubr.bf16.mxu0 0
  %7697 = vmatmul.mubr.bf16.gmra.mxu0 %v7574
  %v7698 = vpop.f32.mrf.mxu0
  %v7699 = vadd.f32 %v7541, %v7698
  %v7700 = vpop.f32.mrf.mxu0
  %v7701 = vpop.f32.mrf.mxu0
  %v7702 = vadd.f32 %v7541, %v7701
  %v7703 = vpop.f32.mrf.mxu0
  %7704 = vmatprep.mubr.bf16.mxu0 0
  %7705 = vmatmul.mubr.bf16.gmra.mxu0 %v7577
  %v7706 = vpop.f32.mrf.mxu0
  %v7707 = vadd.f32 %v7541, %v7706
  %v7708 = vpop.f32.mrf.mxu0
  %v7709 = vpop.f32.mrf.mxu0
  %v7710 = vadd.f32 %v7541, %v7709
  %v7711 = vpop.f32.mrf.mxu0
  %7712 = vmatprep.mubr.bf16.mxu0 0
  %7713 = vmatmul.mubr.bf16.gmra.mxu0 %v7580
  %v7714 = vpop.f32.mrf.mxu0
  %v7715 = vadd.f32 %v7541, %v7714
  %v7716 = vpop.f32.mrf.mxu0
  %v7717 = vpop.f32.mrf.mxu0
  %v7718 = vadd.f32 %v7541, %v7717
  %v7719 = vpop.f32.mrf.mxu0
  %7720 = vmatprep.mubr.bf16.mxu0 0
  %7721 = vmatmul.mubr.bf16.gmra.mxu0 %v7583
  %v7722 = vpop.f32.mrf.mxu0
  %v7723 = vadd.f32 %v7541, %v7722
  %v7724 = vpop.f32.mrf.mxu0
  %v7725 = vpop.f32.mrf.mxu0
  %v7726 = vadd.f32 %v7541, %v7725
  %v7727 = vpop.f32.mrf.mxu0
  %7728 = vmatprep.mubr.bf16.mxu0 0
  %7729 = vmatmul.mubr.bf16.gmra.mxu0 %v7586
  %v7730 = vpop.f32.mrf.mxu0
  %v7731 = vadd.f32 %v7541, %v7730
  %v7732 = vpop.f32.mrf.mxu0
  %v7733 = vpop.f32.mrf.mxu0
  %v7734 = vadd.f32 %v7541, %v7733
  %v7735 = vpop.f32.mrf.mxu0
  %7736 = vmatprep.mubr.bf16.mxu0 0
  %7737 = vmatmul.mubr.bf16.gmra.mxu0 %v7589
  %v7738 = vpop.f32.mrf.mxu0
  %v7739 = vadd.f32 %v7541, %v7738
  %v7740 = vpop.f32.mrf.mxu0
  %v7741 = vpop.f32.mrf.mxu0
  %v7742 = vadd.f32 %v7541, %v7741
  %v7743 = vpop.f32.mrf.mxu0
  %7744 = vmatprep.mubr.bf16.mxu0 0
  %7745 = vmatmul.mubr.bf16.gmra.mxu0 %v7592
  %v7746 = vpop.f32.mrf.mxu0
  %v7747 = vadd.f32 %v7541, %v7746
  %v7748 = vpop.f32.mrf.mxu0
  %v7749 = vpop.f32.mrf.mxu0
  %v7750 = vadd.f32 %v7541, %v7749
  %v7751 = vpop.f32.mrf.mxu0
  %7752 = vmatprep.mubr.bf16.mxu0 0
  %7753 = vmatmul.mubr.bf16.gmra.mxu0 %v7595
  %v7754 = vpop.f32.mrf.mxu0
  %v7755 = vadd.f32 %v7541, %v7754
  %v7756 = vpop.f32.mrf.mxu0
  %v7757 = vpop.f32.mrf.mxu0
  %v7758 = vadd.f32 %v7541, %v7757
  %v7759 = vpop.f32.mrf.mxu0
  %7760 = vmatprep.mubr.bf16.mxu0 0
  %7761 = vmatmul.mubr.bf16.gmra.mxu0 %v7598
  %v7762 = vpop.f32.mrf.mxu0
  %v7763 = vadd.f32 %v7541, %v7762
  %v7764 = vpop.f32.mrf.mxu0
  %v7765 = vpop.f32.mrf.mxu0
  %v7766 = vadd.f32 %v7541, %v7765
  %v7767 = vpop.f32.mrf.mxu0
  %7768 = vmatprep.mubr.bf16.mxu0 0
  %7769 = vmatmul.mubr.bf16.gmra.mxu0 %v7601
  %v7770 = vpop.f32.mrf.mxu0
  %v7771 = vadd.f32 %v7541, %v7770
  %v7772 = vpop.f32.mrf.mxu0
  %v7773 = vpop.f32.mrf.mxu0
  %v7774 = vadd.f32 %v7541, %v7773
  %v7775 = vpop.f32.mrf.mxu0
  %7776 = vmatprep.mubr.bf16.mxu0 0
  %7777 = vmatmul.mubr.bf16.gmra.mxu0 %v7604
  %v7778 = vpop.f32.mrf.mxu0
  %v7779 = vadd.f32 %v7541, %v7778
  %v7780 = vpop.f32.mrf.mxu0
  %v7781 = vpop.f32.mrf.mxu0
  %v7782 = vadd.f32 %v7541, %v7781
  %v7783 = vpop.f32.mrf.mxu0
  %7784 = vmatprep.mubr.bf16.mxu0 0
  %7785 = vmatmul.mubr.bf16.gmra.mxu0 %v7607
  %v7786 = vpop.f32.mrf.mxu0
  %v7787 = vadd.f32 %v7541, %v7786
  %v7788 = vpop.f32.mrf.mxu0
  %v7789 = vpop.f32.mrf.mxu0
  %v7790 = vadd.f32 %v7541, %v7789
  %v7791 = vpop.f32.mrf.mxu0
  %7792 = vdwg.mxu0
  %v7793 = vmax.f32 %v7651, 0.0
  %v7794 = vmax.f32 %v7654, 0.0
  %v7795 = vmax.f32 %v7659, 0.0
  %v7796 = vmax.f32 %v7662, 0.0
  %v7797 = vmax.f32 %v7667, 0.0
  %v7798 = vmax.f32 %v7670, 0.0
  %v7799 = vmax.f32 %v7675, 0.0
  %v7800 = vmax.f32 %v7678, 0.0
  %v7801 = vmax.f32 %v7683, 0.0
  %v7802 = vmax.f32 %v7686, 0.0
  %v7803 = vmax.f32 %v7691, 0.0
  %v7804 = vmax.f32 %v7694, 0.0
  %v7805 = vmax.f32 %v7699, 0.0
  %v7806 = vmax.f32 %v7702, 0.0
  %v7807 = vmax.f32 %v7707, 0.0
  %v7808 = vmax.f32 %v7710, 0.0
  %v7809 = vmax.f32 %v7715, 0.0
  %v7810 = vmax.f32 %v7718, 0.0
  %v7811 = vmax.f32 %v7723, 0.0
  %v7812 = vmax.f32 %v7726, 0.0
  %v7813 = vmax.f32 %v7731, 0.0
  %v7814 = vmax.f32 %v7734, 0.0
  %v7815 = vmax.f32 %v7739, 0.0
  %v7816 = vmax.f32 %v7742, 0.0
  %v7817 = vmax.f32 %v7747, 0.0
  %v7818 = vmax.f32 %v7750, 0.0
  %v7819 = vmax.f32 %v7755, 0.0
  %v7820 = vmax.f32 %v7758, 0.0
  %v7821 = vmax.f32 %v7763, 0.0
  %v7822 = vmax.f32 %v7766, 0.0
  %v7823 = vmax.f32 %v7771, 0.0
  %v7824 = vmax.f32 %v7774, 0.0
  %v7825 = vmax.f32 %v7779, 0.0
  %v7826 = vmax.f32 %v7782, 0.0
  %v7827 = vmax.f32 %v7787, 0.0
  %v7828 = vmax.f32 %v7790, 0.0
  %v7865 = vcombine.high %v7793, %v7793
  %v7866 = vcombine.high %v7794, %v7794
  %v7867 = vcombine.high %v7795, %v7795
  %v7868 = vcombine.high %v7796, %v7796
  %v7869 = vcombine.high %v7797, %v7797
  %v7870 = vcombine.high %v7798, %v7798
  %v7871 = vcombine.high %v7799, %v7799
  %v7872 = vcombine.high %v7800, %v7800
  %v7873 = vcombine.high %v7801, %v7801
  %v7874 = vcombine.high %v7802, %v7802
  %v7875 = vcombine.high %v7803, %v7803
  %v7876 = vcombine.high %v7804, %v7804
  %v7877 = vcombine.high %v7805, %v7805
  %v7878 = vcombine.high %v7806, %v7806
  %v7879 = vcombine.high %v7807, %v7807
  %v7880 = vcombine.high %v7808, %v7808
  %v7881 = vcombine.high %v7809, %v7809
  %v7882 = vcombine.high %v7810, %v7810
  %v7883 = vcombine.high %v7811, %v7811
  %v7884 = vcombine.high %v7812, %v7812
  %v7885 = vcombine.high %v7813, %v7813
  %v7886 = vcombine.high %v7814, %v7814
  %v7887 = vcombine.high %v7815, %v7815
  %v7888 = vcombine.high %v7816, %v7816
  %v7889 = vcombine.high %v7817, %v7817
  %v7890 = vcombine.high %v7818, %v7818
  %v7891 = vcombine.high %v7819, %v7819
  %v7892 = vcombine.high %v7820, %v7820
  %v7893 = vcombine.high %v7821, %v7821
  %v7894 = vcombine.high %v7822, %v7822
  %v7895 = vcombine.high %v7823, %v7823
  %v7896 = vcombine.high %v7824, %v7824
  %v7897 = vcombine.high %v7825, %v7825
  %v7898 = vcombine.high %v7826, %v7826
  %v7899 = vcombine.high %v7827, %v7827
  %v7900 = vcombine.high %v7828, %v7828
  %v7913 = vcombine.low %v7793, %v7865
  %v7914 = vcombine.low %v7866, %v7795
  %v7915 = vcombine.low %v7796, %v7868
  %v7916 = vcombine.low %v7869, %v7798
  %v7917 = vcombine.low %v7799, %v7871
  %v7918 = vcombine.low %v7872, %v7801
  %v7919 = vcombine.low %v7802, %v7874
  %v7920 = vcombine.low %v7875, %v7804
  %v7921 = vcombine.low %v7805, %v7877
  %v7922 = vcombine.low %v7878, %v7807
  %v7923 = vcombine.low %v7808, %v7880
  %v7924 = vcombine.low %v7881, %v7810
  %v7925 = vcombine.low %v7811, %v7883
  %v7926 = vcombine.low %v7884, %v7813
  %v7927 = vcombine.low %v7814, %v7886
  %v7928 = vcombine.low %v7887, %v7816
  %v7929 = vcombine.low %v7817, %v7889
  %v7930 = vcombine.low %v7890, %v7819
  %v7931 = vcombine.low %v7820, %v7892
  %v7932 = vcombine.low %v7893, %v7822
  %v7933 = vcombine.low %v7823, %v7895
  %v7934 = vcombine.low %v7896, %v7825
  %v7935 = vcombine.low %v7826, %v7898
  %v7936 = vcombine.low %v7899, %v7828
  %7961 = vst [vmem:[#allocation3] sm:$0xff] %v7913
  %7962 = vst [vmem:[#allocation3 + $0x8] sm:$0xf] %v7794
  %7963 = vst [vmem:[#allocation3 + $0x10] sm:$0xff] %v7914
  %7964 = vst [vmem:[#allocation3 + $0x18] sm:$0xf] %v7867
  %7965 = vst [vmem:[#allocation3 + $0x20] sm:$0xff] %v7915
  %7966 = vst [vmem:[#allocation3 + $0x28] sm:$0xf] %v7797
  %7967 = vst [vmem:[#allocation3 + $0x30] sm:$0xff] %v7916
  %7968 = vst [vmem:[#allocation3 + $0x38] sm:$0xf] %v7870
  %7969 = vst [vmem:[#allocation3 + $0x40] sm:$0xff] %v7917
  %7970 = vst [vmem:[#allocation3 + $0x48] sm:$0xf] %v7800
  %7971 = vst [vmem:[#allocation3 + $0x50] sm:$0xff] %v7918
  %7972 = vst [vmem:[#allocation3 + $0x58] sm:$0xf] %v7873
  %7973 = vst [vmem:[#allocation3 + $0x60] sm:$0xff] %v7919
  %7974 = vst [vmem:[#allocation3 + $0x68] sm:$0xf] %v7803
  %7975 = vst [vmem:[#allocation3 + $0x70] sm:$0xff] %v7920
  %7976 = vst [vmem:[#allocation3 + $0x78] sm:$0xf] %v7876
  %7977 = vst [vmem:[#allocation3 + $0x80] sm:$0xff] %v7921
  %7978 = vst [vmem:[#allocation3 + $0x88] sm:$0xf] %v7806
  %7979 = vst [vmem:[#allocation3 + $0x90] sm:$0xff] %v7922
  %7980 = vst [vmem:[#allocation3 + $0x98] sm:$0xf] %v7879
  %7981 = vst [vmem:[#allocation3 + $0xa0] sm:$0xff] %v7923
  %7982 = vst [vmem:[#allocation3 + $0xa8] sm:$0xf] %v7809
  %7983 = vst [vmem:[#allocation3 + $0xb0] sm:$0xff] %v7924
  %7984 = vst [vmem:[#allocation3 + $0xb8] sm:$0xf] %v7882
  %7985 = vst [vmem:[#allocation3 + $0xc0] sm:$0xff] %v7925
  %7986 = vst [vmem:[#allocation3 + $0xc8] sm:$0xf] %v7812
  %7987 = vst [vmem:[#allocation3 + $0xd0] sm:$0xff] %v7926
  %7988 = vst [vmem:[#allocation3 + $0xd8] sm:$0xf] %v7885
  %7989 = vst [vmem:[#allocation3 + $0xe0] sm:$0xff] %v7927
  %7990 = vst [vmem:[#allocation3 + $0xe8] sm:$0xf] %v7815
  %7991 = vst [vmem:[#allocation3 + $0xf0] sm:$0xff] %v7928
  %7992 = vst [vmem:[#allocation3 + $0xf8] sm:$0xf] %v7888
  %7993 = vst [vmem:[#allocation3 + $0x100] sm:$0xff] %v7929
  %7994 = vst [vmem:[#allocation3 + $0x108] sm:$0xf] %v7818
  %7995 = vst [vmem:[#allocation3 + $0x110] sm:$0xff] %v7930
  %7996 = vst [vmem:[#allocation3 + $0x118] sm:$0xf] %v7891
  %7997 = vst [vmem:[#allocation3 + $0x120] sm:$0xff] %v7931
  %7998 = vst [vmem:[#allocation3 + $0x128] sm:$0xf] %v7821
  %7999 = vst [vmem:[#allocation3 + $0x130] sm:$0xff] %v7932
  %8000 = vst [vmem:[#allocation3 + $0x138] sm:$0xf] %v7894
  %8001 = vst [vmem:[#allocation3 + $0x140] sm:$0xff] %v7933
  %8002 = vst [vmem:[#allocation3 + $0x148] sm:$0xf] %v7824
  %8003 = vst [vmem:[#allocation3 + $0x150] sm:$0xff] %v7934
  %8004 = vst [vmem:[#allocation3 + $0x158] sm:$0xf] %v7897
  %8005 = vst [vmem:[#allocation3 + $0x160] sm:$0xff] %v7935
  %8006 = vst [vmem:[#allocation3 + $0x168] sm:$0xf] %v7827
  %8007 = vst [vmem:[#allocation3 + $0x170] sm:$0xff] %v7936
  %8008 = vst [vmem:[#allocation3 + $0x178] sm:$0xf] %v7900
  %v8009 = vld [vmem:[#allocation3] sm:$0xff]
  %v8010 = vld [vmem:[#allocation3 + $0x10] sm:$0xff]
  %v8011 = vld [vmem:[#allocation3 + $0x20] sm:$0xff]
  %v8012 = vld [vmem:[#allocation3 + $0x30] sm:$0xff]
  %v8013 = vld [vmem:[#allocation3 + $0x40] sm:$0xff]
  %v8014 = vld [vmem:[#allocation3 + $0x50] sm:$0xff]
  %v8015 = vld [vmem:[#allocation3 + $0x60] sm:$0xff]
  %v8016 = vld [vmem:[#allocation3 + $0x70] sm:$0xff]
  %v8017 = vld [vmem:[#allocation3 + $0xc0] sm:$0xff]
  %v8018 = vld [vmem:[#allocation3 + $0xd0] sm:$0xff]
  %v8019 = vld [vmem:[#allocation3 + $0xe0] sm:$0xff]
  %v8020 = vld [vmem:[#allocation3 + $0xf0] sm:$0xff]
  %v8021 = vld [vmem:[#allocation3 + $0x100] sm:$0xff]
  %v8022 = vld [vmem:[#allocation3 + $0x110] sm:$0xff]
  %v8023 = vld [vmem:[#allocation3 + $0x120] sm:$0xff]
  %v8024 = vld [vmem:[#allocation3 + $0x130] sm:$0xff]
  %vm8025 = vcmask 162816
  %8026 = vst.msk [vmem:[#allocation4] sm:$0xff] %vm8025, %v8009
  %8027 = vst.msk [vmem:[#allocation4 + $0x20] sm:$0xff] %vm8025, %v8010
  %8028 = vst.msk [vmem:[#allocation4 + $0x40] sm:$0xff] %vm8025, %v8011
  %8029 = vst.msk [vmem:[#allocation4 + $0x60] sm:$0xff] %vm8025, %v8012
  %8030 = vst.msk [vmem:[#allocation4 + $0x80] sm:$0xff] %vm8025, %v8013
  %8031 = vst.msk [vmem:[#allocation4 + $0xa0] sm:$0xff] %vm8025, %v8014
  %8032 = vst.msk [vmem:[#allocation4 + $0xc0] sm:$0xff] %vm8025, %v8015
  %8033 = vst.msk [vmem:[#allocation4 + $0xe0] sm:$0xff] %vm8025, %v8016
  %8034 = vst.msk [vmem:[#allocation4 + $0x100] sm:$0xff] %vm8025, %v8017
  %8035 = vst.msk [vmem:[#allocation4 + $0x120] sm:$0xff] %vm8025, %v8018
  %8036 = vst.msk [vmem:[#allocation4 + $0x140] sm:$0xff] %vm8025, %v8019
  %8037 = vst.msk [vmem:[#allocation4 + $0x160] sm:$0xff] %vm8025, %v8020
  %8038 = vst.msk [vmem:[#allocation4 + $0x180] sm:$0xff] %vm8025, %v8021
  %8039 = vst.msk [vmem:[#allocation4 + $0x1a0] sm:$0xff] %vm8025, %v8022
  %8040 = vst.msk [vmem:[#allocation4 + $0x1c0] sm:$0xff] %vm8025, %v8023
  %8041 = vst.msk [vmem:[#allocation4 + $0x1e0] sm:$0xff] %vm8025, %v8024
  %v8042 = vld [vmem:[#allocation3 + $0x1] sm:$0xff]
  %v8043 = vld [vmem:[#allocation3 + $0x11] sm:$0xff]
  %v8044 = vld [vmem:[#allocation3 + $0x21] sm:$0xff]
  %v8045 = vld [vmem:[#allocation3 + $0x31] sm:$0xff]
  %v8046 = vld [vmem:[#allocation3 + $0x41] sm:$0xff]
  %v8047 = vld [vmem:[#allocation3 + $0x51] sm:$0xff]
  %v8048 = vld [vmem:[#allocation3 + $0x61] sm:$0xff]
  %v8049 = vld [vmem:[#allocation3 + $0x71] sm:$0xff]
  %v8050 = vld [vmem:[#allocation3 + $0xc1] sm:$0xff]
  %v8051 = vld [vmem:[#allocation3 + $0xd1] sm:$0xff]
  %v8052 = vld [vmem:[#allocation3 + $0xe1] sm:$0xff]
  %v8053 = vld [vmem:[#allocation3 + $0xf1] sm:$0xff]
  %v8054 = vld [vmem:[#allocation3 + $0x101] sm:$0xff]
  %v8055 = vld [vmem:[#allocation3 + $0x111] sm:$0xff]
  %v8056 = vld [vmem:[#allocation3 + $0x121] sm:$0xff]
  %v8057 = vld [vmem:[#allocation3 + $0x131] sm:$0xff]
  %8074 = vrot.lane.b32.xlu0 %v8042, 20
  %v8075 = vpop.permute.xlu0 %8074
  %8076 = vrot.lane.b32.xlu0 %v8043, 20
  %v8077 = vpop.permute.xlu0 %8076
  %8078 = vrot.lane.b32.xlu0 %v8044, 20
  %v8079 = vpop.permute.xlu0 %8078
  %8080 = vrot.lane.b32.xlu0 %v8045, 20
  %v8081 = vpop.permute.xlu0 %8080
  %8082 = vrot.lane.b32.xlu0 %v8046, 20
  %v8083 = vpop.permute.xlu0 %8082
  %8084 = vrot.lane.b32.xlu0 %v8047, 20
  %v8085 = vpop.permute.xlu0 %8084
  %8086 = vrot.lane.b32.xlu0 %v8048, 20
  %v8087 = vpop.permute.xlu0 %8086
  %8088 = vrot.lane.b32.xlu0 %v8049, 20
  %v8089 = vpop.permute.xlu0 %8088
  %8090 = vrot.lane.b32.xlu0 %v8050, 20
  %v8091 = vpop.permute.xlu0 %8090
  %8092 = vrot.lane.b32.xlu0 %v8051, 20
  %v8093 = vpop.permute.xlu0 %8092
  %8094 = vrot.lane.b32.xlu0 %v8052, 20
  %v8095 = vpop.permute.xlu0 %8094
  %8096 = vrot.lane.b32.xlu0 %v8053, 20
  %v8097 = vpop.permute.xlu0 %8096
  %8098 = vrot.lane.b32.xlu0 %v8054, 20
  %v8099 = vpop.permute.xlu0 %8098
  %8100 = vrot.lane.b32.xlu0 %v8055, 20
  %v8101 = vpop.permute.xlu0 %8100
  %8102 = vrot.lane.b32.xlu0 %v8056, 20
  %v8103 = vpop.permute.xlu0 %8102
  %8104 = vrot.lane.b32.xlu0 %v8057, 20
  %v8105 = vpop.permute.xlu0 %8104
  %vm8122 = vcmask 326816
  %8123 = vst.msk [vmem:[#allocation4] sm:$0xff] %vm8122, %v8075
  %8124 = vst.msk [vmem:[#allocation4 + $0x20] sm:$0xff] %vm8122, %v8077
  %8125 = vst.msk [vmem:[#allocation4 + $0x40] sm:$0xff] %vm8122, %v8079
  %8126 = vst.msk [vmem:[#allocation4 + $0x60] sm:$0xff] %vm8122, %v8081
  %8127 = vst.msk [vmem:[#allocation4 + $0x80] sm:$0xff] %vm8122, %v8083
  %8128 = vst.msk [vmem:[#allocation4 + $0xa0] sm:$0xff] %vm8122, %v8085
  %8129 = vst.msk [vmem:[#allocation4 + $0xc0] sm:$0xff] %vm8122, %v8087
  %8130 = vst.msk [vmem:[#allocation4 + $0xe0] sm:$0xff] %vm8122, %v8089
  %8131 = vst.msk [vmem:[#allocation4 + $0x100] sm:$0xff] %vm8122, %v8091
  %8132 = vst.msk [vmem:[#allocation4 + $0x120] sm:$0xff] %vm8122, %v8093
  %8133 = vst.msk [vmem:[#allocation4 + $0x140] sm:$0xff] %vm8122, %v8095
  %8134 = vst.msk [vmem:[#allocation4 + $0x160] sm:$0xff] %vm8122, %v8097
  %8135 = vst.msk [vmem:[#allocation4 + $0x180] sm:$0xff] %vm8122, %v8099
  %8136 = vst.msk [vmem:[#allocation4 + $0x1a0] sm:$0xff] %vm8122, %v8101
  %8137 = vst.msk [vmem:[#allocation4 + $0x1c0] sm:$0xff] %vm8122, %v8103
  %8138 = vst.msk [vmem:[#allocation4 + $0x1e0] sm:$0xff] %vm8122, %v8105
  %v8139 = vld [vmem:[#allocation3 + $0x2] sm:$0xff]
  %v8140 = vld [vmem:[#allocation3 + $0x12] sm:$0xff]
  %v8141 = vld [vmem:[#allocation3 + $0x22] sm:$0xff]
  %v8142 = vld [vmem:[#allocation3 + $0x32] sm:$0xff]
  %v8143 = vld [vmem:[#allocation3 + $0x42] sm:$0xff]
  %v8144 = vld [vmem:[#allocation3 + $0x52] sm:$0xff]
  %v8145 = vld [vmem:[#allocation3 + $0x62] sm:$0xff]
  %v8146 = vld [vmem:[#allocation3 + $0x72] sm:$0xff]
  %v8147 = vld [vmem:[#allocation3 + $0xc2] sm:$0xff]
  %v8148 = vld [vmem:[#allocation3 + $0xd2] sm:$0xff]
  %v8149 = vld [vmem:[#allocation3 + $0xe2] sm:$0xff]
  %v8150 = vld [vmem:[#allocation3 + $0xf2] sm:$0xff]
  %v8151 = vld [vmem:[#allocation3 + $0x102] sm:$0xff]
  %v8152 = vld [vmem:[#allocation3 + $0x112] sm:$0xff]
  %v8153 = vld [vmem:[#allocation3 + $0x122] sm:$0xff]
  %v8154 = vld [vmem:[#allocation3 + $0x132] sm:$0xff]
  %8171 = vrot.lane.b32.xlu0 %v8139, 40
  %v8172 = vpop.permute.xlu0 %8171
  %8173 = vrot.lane.b32.xlu0 %v8140, 40
  %v8174 = vpop.permute.xlu0 %8173
  %8175 = vrot.lane.b32.xlu0 %v8141, 40
  %v8176 = vpop.permute.xlu0 %8175
  %8177 = vrot.lane.b32.xlu0 %v8142, 40
  %v8178 = vpop.permute.xlu0 %8177
  %8179 = vrot.lane.b32.xlu0 %v8143, 40
  %v8180 = vpop.permute.xlu0 %8179
  %8181 = vrot.lane.b32.xlu0 %v8144, 40
  %v8182 = vpop.permute.xlu0 %8181
  %8183 = vrot.lane.b32.xlu0 %v8145, 40
  %v8184 = vpop.permute.xlu0 %8183
  %8185 = vrot.lane.b32.xlu0 %v8146, 40
  %v8186 = vpop.permute.xlu0 %8185
  %8187 = vrot.lane.b32.xlu0 %v8147, 40
  %v8188 = vpop.permute.xlu0 %8187
  %8189 = vrot.lane.b32.xlu0 %v8148, 40
  %v8190 = vpop.permute.xlu0 %8189
  %8191 = vrot.lane.b32.xlu0 %v8149, 40
  %v8192 = vpop.permute.xlu0 %8191
  %8193 = vrot.lane.b32.xlu0 %v8150, 40
  %v8194 = vpop.permute.xlu0 %8193
  %8195 = vrot.lane.b32.xlu0 %v8151, 40
  %v8196 = vpop.permute.xlu0 %8195
  %8197 = vrot.lane.b32.xlu0 %v8152, 40
  %v8198 = vpop.permute.xlu0 %8197
  %8199 = vrot.lane.b32.xlu0 %v8153, 40
  %v8200 = vpop.permute.xlu0 %8199
  %8201 = vrot.lane.b32.xlu0 %v8154, 40
  %v8202 = vpop.permute.xlu0 %8201
  %vm8219 = vcmask 490816
  %8220 = vst.msk [vmem:[#allocation4] sm:$0xff] %vm8219, %v8172
  %8221 = vst.msk [vmem:[#allocation4 + $0x20] sm:$0xff] %vm8219, %v8174
  %8222 = vst.msk [vmem:[#allocation4 + $0x40] sm:$0xff] %vm8219, %v8176
  %8223 = vst.msk [vmem:[#allocation4 + $0x60] sm:$0xff] %vm8219, %v8178
  %8224 = vst.msk [vmem:[#allocation4 + $0x80] sm:$0xff] %vm8219, %v8180
  %8225 = vst.msk [vmem:[#allocation4 + $0xa0] sm:$0xff] %vm8219, %v8182
  %8226 = vst.msk [vmem:[#allocation4 + $0xc0] sm:$0xff] %vm8219, %v8184
  %8227 = vst.msk [vmem:[#allocation4 + $0xe0] sm:$0xff] %vm8219, %v8186
  %8228 = vst.msk [vmem:[#allocation4 + $0x100] sm:$0xff] %vm8219, %v8188
  %8229 = vst.msk [vmem:[#allocation4 + $0x120] sm:$0xff] %vm8219, %v8190
  %8230 = vst.msk [vmem:[#allocation4 + $0x140] sm:$0xff] %vm8219, %v8192
  %8231 = vst.msk [vmem:[#allocation4 + $0x160] sm:$0xff] %vm8219, %v8194
  %8232 = vst.msk [vmem:[#allocation4 + $0x180] sm:$0xff] %vm8219, %v8196
  %8233 = vst.msk [vmem:[#allocation4 + $0x1a0] sm:$0xff] %vm8219, %v8198
  %8234 = vst.msk [vmem:[#allocation4 + $0x1c0] sm:$0xff] %vm8219, %v8200
  %8235 = vst.msk [vmem:[#allocation4 + $0x1e0] sm:$0xff] %vm8219, %v8202
  %v8236 = vld [vmem:[#allocation3 + $0x3] sm:$0xff]
  %v8237 = vld [vmem:[#allocation3 + $0x13] sm:$0xff]
  %v8238 = vld [vmem:[#allocation3 + $0x23] sm:$0xff]
  %v8239 = vld [vmem:[#allocation3 + $0x33] sm:$0xff]
  %v8240 = vld [vmem:[#allocation3 + $0x43] sm:$0xff]
  %v8241 = vld [vmem:[#allocation3 + $0x53] sm:$0xff]
  %v8242 = vld [vmem:[#allocation3 + $0x63] sm:$0xff]
  %v8243 = vld [vmem:[#allocation3 + $0x73] sm:$0xff]
  %v8244 = vld [vmem:[#allocation3 + $0xc3] sm:$0xff]
  %v8245 = vld [vmem:[#allocation3 + $0xd3] sm:$0xff]
  %v8246 = vld [vmem:[#allocation3 + $0xe3] sm:$0xff]
  %v8247 = vld [vmem:[#allocation3 + $0xf3] sm:$0xff]
  %v8248 = vld [vmem:[#allocation3 + $0x103] sm:$0xff]
  %v8249 = vld [vmem:[#allocation3 + $0x113] sm:$0xff]
  %v8250 = vld [vmem:[#allocation3 + $0x123] sm:$0xff]
  %v8251 = vld [vmem:[#allocation3 + $0x133] sm:$0xff]
  %8268 = vrot.lane.b32.xlu0 %v8236, 60
  %v8269 = vpop.permute.xlu0 %8268
  %8270 = vrot.lane.b32.xlu0 %v8237, 60
  %v8271 = vpop.permute.xlu0 %8270
  %8272 = vrot.lane.b32.xlu0 %v8238, 60
  %v8273 = vpop.permute.xlu0 %8272
  %8274 = vrot.lane.b32.xlu0 %v8239, 60
  %v8275 = vpop.permute.xlu0 %8274
  %8276 = vrot.lane.b32.xlu0 %v8240, 60
  %v8277 = vpop.permute.xlu0 %8276
  %8278 = vrot.lane.b32.xlu0 %v8241, 60
  %v8279 = vpop.permute.xlu0 %8278
  %8280 = vrot.lane.b32.xlu0 %v8242, 60
  %v8281 = vpop.permute.xlu0 %8280
  %8282 = vrot.lane.b32.xlu0 %v8243, 60
  %v8283 = vpop.permute.xlu0 %8282
  %8284 = vrot.lane.b32.xlu0 %v8244, 60
  %v8285 = vpop.permute.xlu0 %8284
  %8286 = vrot.lane.b32.xlu0 %v8245, 60
  %v8287 = vpop.permute.xlu0 %8286
  %8288 = vrot.lane.b32.xlu0 %v8246, 60
  %v8289 = vpop.permute.xlu0 %8288
  %8290 = vrot.lane.b32.xlu0 %v8247, 60
  %v8291 = vpop.permute.xlu0 %8290
  %8292 = vrot.lane.b32.xlu0 %v8248, 60
  %v8293 = vpop.permute.xlu0 %8292
  %8294 = vrot.lane.b32.xlu0 %v8249, 60
  %v8295 = vpop.permute.xlu0 %8294
  %8296 = vrot.lane.b32.xlu0 %v8250, 60
  %v8297 = vpop.permute.xlu0 %8296
  %8298 = vrot.lane.b32.xlu0 %v8251, 60
  %v8299 = vpop.permute.xlu0 %8298
  %vm8316 = vcmask 654816
  %8317 = vst.msk [vmem:[#allocation4] sm:$0xff] %vm8316, %v8269
  %8318 = vst.msk [vmem:[#allocation4 + $0x20] sm:$0xff] %vm8316, %v8271
  %8319 = vst.msk [vmem:[#allocation4 + $0x40] sm:$0xff] %vm8316, %v8273
  %8320 = vst.msk [vmem:[#allocation4 + $0x60] sm:$0xff] %vm8316, %v8275
  %8321 = vst.msk [vmem:[#allocation4 + $0x80] sm:$0xff] %vm8316, %v8277
  %8322 = vst.msk [vmem:[#allocation4 + $0xa0] sm:$0xff] %vm8316, %v8279
  %8323 = vst.msk [vmem:[#allocation4 + $0xc0] sm:$0xff] %vm8316, %v8281
  %8324 = vst.msk [vmem:[#allocation4 + $0xe0] sm:$0xff] %vm8316, %v8283
  %8325 = vst.msk [vmem:[#allocation4 + $0x100] sm:$0xff] %vm8316, %v8285
  %8326 = vst.msk [vmem:[#allocation4 + $0x120] sm:$0xff] %vm8316, %v8287
  %8327 = vst.msk [vmem:[#allocation4 + $0x140] sm:$0xff] %vm8316, %v8289
  %8328 = vst.msk [vmem:[#allocation4 + $0x160] sm:$0xff] %vm8316, %v8291
  %8329 = vst.msk [vmem:[#allocation4 + $0x180] sm:$0xff] %vm8316, %v8293
  %8330 = vst.msk [vmem:[#allocation4 + $0x1a0] sm:$0xff] %vm8316, %v8295
  %8331 = vst.msk [vmem:[#allocation4 + $0x1c0] sm:$0xff] %vm8316, %v8297
  %8332 = vst.msk [vmem:[#allocation4 + $0x1e0] sm:$0xff] %vm8316, %v8299
  %v8333 = vld [vmem:[#allocation3 + $0x4] sm:$0xff]
  %v8334 = vld [vmem:[#allocation3 + $0x14] sm:$0xff]
  %v8335 = vld [vmem:[#allocation3 + $0x24] sm:$0xff]
  %v8336 = vld [vmem:[#allocation3 + $0x34] sm:$0xff]
  %v8337 = vld [vmem:[#allocation3 + $0x44] sm:$0xff]
  %v8338 = vld [vmem:[#allocation3 + $0x54] sm:$0xff]
  %v8339 = vld [vmem:[#allocation3 + $0x64] sm:$0xff]
  %v8340 = vld [vmem:[#allocation3 + $0x74] sm:$0xff]
  %v8341 = vld [vmem:[#allocation3 + $0xc4] sm:$0xff]
  %v8342 = vld [vmem:[#allocation3 + $0xd4] sm:$0xff]
  %v8343 = vld [vmem:[#allocation3 + $0xe4] sm:$0xff]
  %v8344 = vld [vmem:[#allocation3 + $0xf4] sm:$0xff]
  %v8345 = vld [vmem:[#allocation3 + $0x104] sm:$0xff]
  %v8346 = vld [vmem:[#allocation3 + $0x114] sm:$0xff]
  %v8347 = vld [vmem:[#allocation3 + $0x124] sm:$0xff]
  %v8348 = vld [vmem:[#allocation3 + $0x134] sm:$0xff]
  %8365 = vrot.lane.b32.xlu0 %v8333, 80
  %v8366 = vpop.permute.xlu0 %8365
  %8367 = vrot.lane.b32.xlu0 %v8334, 80
  %v8368 = vpop.permute.xlu0 %8367
  %8369 = vrot.lane.b32.xlu0 %v8335, 80
  %v8370 = vpop.permute.xlu0 %8369
  %8371 = vrot.lane.b32.xlu0 %v8336, 80
  %v8372 = vpop.permute.xlu0 %8371
  %8373 = vrot.lane.b32.xlu0 %v8337, 80
  %v8374 = vpop.permute.xlu0 %8373
  %8375 = vrot.lane.b32.xlu0 %v8338, 80
  %v8376 = vpop.permute.xlu0 %8375
  %8377 = vrot.lane.b32.xlu0 %v8339, 80
  %v8378 = vpop.permute.xlu0 %8377
  %8379 = vrot.lane.b32.xlu0 %v8340, 80
  %v8380 = vpop.permute.xlu0 %8379
  %8381 = vrot.lane.b32.xlu0 %v8341, 80
  %v8382 = vpop.permute.xlu0 %8381
  %8383 = vrot.lane.b32.xlu0 %v8342, 80
  %v8384 = vpop.permute.xlu0 %8383
  %8385 = vrot.lane.b32.xlu0 %v8343, 80
  %v8386 = vpop.permute.xlu0 %8385
  %8387 = vrot.lane.b32.xlu0 %v8344, 80
  %v8388 = vpop.permute.xlu0 %8387
  %8389 = vrot.lane.b32.xlu0 %v8345, 80
  %v8390 = vpop.permute.xlu0 %8389
  %8391 = vrot.lane.b32.xlu0 %v8346, 80
  %v8392 = vpop.permute.xlu0 %8391
  %8393 = vrot.lane.b32.xlu0 %v8347, 80
  %v8394 = vpop.permute.xlu0 %8393
  %8395 = vrot.lane.b32.xlu0 %v8348, 80
  %v8396 = vpop.permute.xlu0 %8395
  %vm8413 = vcmask 818816
  %8414 = vst.msk [vmem:[#allocation4] sm:$0xff] %vm8413, %v8366
  %8415 = vst.msk [vmem:[#allocation4 + $0x20] sm:$0xff] %vm8413, %v8368
  %8416 = vst.msk [vmem:[#allocation4 + $0x40] sm:$0xff] %vm8413, %v8370
  %8417 = vst.msk [vmem:[#allocation4 + $0x60] sm:$0xff] %vm8413, %v8372
  %8418 = vst.msk [vmem:[#allocation4 + $0x80] sm:$0xff] %vm8413, %v8374
  %8419 = vst.msk [vmem:[#allocation4 + $0xa0] sm:$0xff] %vm8413, %v8376
  %8420 = vst.msk [vmem:[#allocation4 + $0xc0] sm:$0xff] %vm8413, %v8378
  %8421 = vst.msk [vmem:[#allocation4 + $0xe0] sm:$0xff] %vm8413, %v8380
  %8422 = vst.msk [vmem:[#allocation4 + $0x100] sm:$0xff] %vm8413, %v8382
  %8423 = vst.msk [vmem:[#allocation4 + $0x120] sm:$0xff] %vm8413, %v8384
  %8424 = vst.msk [vmem:[#allocation4 + $0x140] sm:$0xff] %vm8413, %v8386
  %8425 = vst.msk [vmem:[#allocation4 + $0x160] sm:$0xff] %vm8413, %v8388
  %8426 = vst.msk [vmem:[#allocation4 + $0x180] sm:$0xff] %vm8413, %v8390
  %8427 = vst.msk [vmem:[#allocation4 + $0x1a0] sm:$0xff] %vm8413, %v8392
  %8428 = vst.msk [vmem:[#allocation4 + $0x1c0] sm:$0xff] %vm8413, %v8394
  %8429 = vst.msk [vmem:[#allocation4 + $0x1e0] sm:$0xff] %vm8413, %v8396
  %s8430 = scalar_lea.vmem [#allocation3], 16
  %v8431 = vld [vmem:[%s8430] sm:$0xff]
  %v8432 = vld [vmem:[%s8430 + $0x10] sm:$0xff]
  %v8433 = vld [vmem:[%s8430 + $0x20] sm:$0xff]
  %v8434 = vld [vmem:[%s8430 + $0x30] sm:$0xff]
  %v8435 = vld [vmem:[%s8430 + $0x40] sm:$0xff]
  %v8436 = vld [vmem:[%s8430 + $0x50] sm:$0xff]
  %v8437 = vld [vmem:[%s8430 + $0x60] sm:$0xff]
  %v8438 = vld [vmem:[%s8430 + $0x70] sm:$0xff]
  %v8439 = vld [vmem:[%s8430 + $0xc0] sm:$0xff]
  %v8440 = vld [vmem:[%s8430 + $0xd0] sm:$0xff]
  %v8441 = vld [vmem:[%s8430 + $0xe0] sm:$0xff]
  %v8442 = vld [vmem:[%s8430 + $0xf0] sm:$0xff]
  %v8443 = vld [vmem:[%s8430 + $0x100] sm:$0xff]
  %v8444 = vld [vmem:[%s8430 + $0x110] sm:$0xff]
  %v8445 = vld [vmem:[%s8430 + $0x120] sm:$0xff]
  %v8446 = vld [vmem:[%s8430 + $0x130] sm:$0xff]
  %8463 = vrot.lane.b32.xlu0 %v8431, 100
  %v8464 = vpop.permute.xlu0 %8463
  %8465 = vrot.lane.b32.xlu0 %v8432, 100
  %v8466 = vpop.permute.xlu0 %8465
  %8467 = vrot.lane.b32.xlu0 %v8433, 100
  %v8468 = vpop.permute.xlu0 %8467
  %8469 = vrot.lane.b32.xlu0 %v8434, 100
  %v8470 = vpop.permute.xlu0 %8469
  %8471 = vrot.lane.b32.xlu0 %v8435, 100
  %v8472 = vpop.permute.xlu0 %8471
  %8473 = vrot.lane.b32.xlu0 %v8436, 100
  %v8474 = vpop.permute.xlu0 %8473
  %8475 = vrot.lane.b32.xlu0 %v8437, 100
  %v8476 = vpop.permute.xlu0 %8475
  %8477 = vrot.lane.b32.xlu0 %v8438, 100
  %v8478 = vpop.permute.xlu0 %8477
  %8479 = vrot.lane.b32.xlu0 %v8439, 100
  %v8480 = vpop.permute.xlu0 %8479
  %8481 = vrot.lane.b32.xlu0 %v8440, 100
  %v8482 = vpop.permute.xlu0 %8481
  %8483 = vrot.lane.b32.xlu0 %v8441, 100
  %v8484 = vpop.permute.xlu0 %8483
  %8485 = vrot.lane.b32.xlu0 %v8442, 100
  %v8486 = vpop.permute.xlu0 %8485
  %8487 = vrot.lane.b32.xlu0 %v8443, 100
  %v8488 = vpop.permute.xlu0 %8487
  %8489 = vrot.lane.b32.xlu0 %v8444, 100
  %v8490 = vpop.permute.xlu0 %8489
  %8491 = vrot.lane.b32.xlu0 %v8445, 100
  %v8492 = vpop.permute.xlu0 %8491
  %8493 = vrot.lane.b32.xlu0 %v8446, 100
  %v8494 = vpop.permute.xlu0 %8493
  %vm8511 = vcmask 982816
  %8512 = vst.msk [vmem:[#allocation4] sm:$0xff] %vm8511, %v8464
  %8513 = vst.msk [vmem:[#allocation4 + $0x20] sm:$0xff] %vm8511, %v8466
  %8514 = vst.msk [vmem:[#allocation4 + $0x40] sm:$0xff] %vm8511, %v8468
  %8515 = vst.msk [vmem:[#allocation4 + $0x60] sm:$0xff] %vm8511, %v8470
  %8516 = vst.msk [vmem:[#allocation4 + $0x80] sm:$0xff] %vm8511, %v8472
  %8517 = vst.msk [vmem:[#allocation4 + $0xa0] sm:$0xff] %vm8511, %v8474
  %8518 = vst.msk [vmem:[#allocation4 + $0xc0] sm:$0xff] %vm8511, %v8476
  %8519 = vst.msk [vmem:[#allocation4 + $0xe0] sm:$0xff] %vm8511, %v8478
  %8520 = vst.msk [vmem:[#allocation4 + $0x100] sm:$0xff] %vm8511, %v8480
  %8521 = vst.msk [vmem:[#allocation4 + $0x120] sm:$0xff] %vm8511, %v8482
  %8522 = vst.msk [vmem:[#allocation4 + $0x140] sm:$0xff] %vm8511, %v8484
  %8523 = vst.msk [vmem:[#allocation4 + $0x160] sm:$0xff] %vm8511, %v8486
  %8524 = vst.msk [vmem:[#allocation4 + $0x180] sm:$0xff] %vm8511, %v8488
  %8525 = vst.msk [vmem:[#allocation4 + $0x1a0] sm:$0xff] %vm8511, %v8490
  %8526 = vst.msk [vmem:[#allocation4 + $0x1c0] sm:$0xff] %vm8511, %v8492
  %8527 = vst.msk [vmem:[#allocation4 + $0x1e0] sm:$0xff] %vm8511, %v8494
  %v8528 = vld [vmem:[%s8430 + $0x1] sm:$0xff]
  %v8529 = vld [vmem:[%s8430 + $0x11] sm:$0xff]
  %v8530 = vld [vmem:[%s8430 + $0x21] sm:$0xff]
  %v8531 = vld [vmem:[%s8430 + $0x31] sm:$0xff]
  %v8532 = vld [vmem:[%s8430 + $0x41] sm:$0xff]
  %v8533 = vld [vmem:[%s8430 + $0x51] sm:$0xff]
  %v8534 = vld [vmem:[%s8430 + $0x61] sm:$0xff]
  %v8535 = vld [vmem:[%s8430 + $0x71] sm:$0xff]
  %v8536 = vld [vmem:[%s8430 + $0xc1] sm:$0xff]
  %v8537 = vld [vmem:[%s8430 + $0xd1] sm:$0xff]
  %v8538 = vld [vmem:[%s8430 + $0xe1] sm:$0xff]
  %v8539 = vld [vmem:[%s8430 + $0xf1] sm:$0xff]
  %v8540 = vld [vmem:[%s8430 + $0x101] sm:$0xff]
  %v8541 = vld [vmem:[%s8430 + $0x111] sm:$0xff]
  %v8542 = vld [vmem:[%s8430 + $0x121] sm:$0xff]
  %v8543 = vld [vmem:[%s8430 + $0x131] sm:$0xff]
  %8560 = vrot.lane.b32.xlu0 %v8528, 120
  %v8561 = vpop.permute.xlu0 %8560
  %8562 = vrot.lane.b32.xlu0 %v8529, 120
  %v8563 = vpop.permute.xlu0 %8562
  %8564 = vrot.lane.b32.xlu0 %v8530, 120
  %v8565 = vpop.permute.xlu0 %8564
  %8566 = vrot.lane.b32.xlu0 %v8531, 120
  %v8567 = vpop.permute.xlu0 %8566
  %8568 = vrot.lane.b32.xlu0 %v8532, 120
  %v8569 = vpop.permute.xlu0 %8568
  %8570 = vrot.lane.b32.xlu0 %v8533, 120
  %v8571 = vpop.permute.xlu0 %8570
  %8572 = vrot.lane.b32.xlu0 %v8534, 120
  %v8573 = vpop.permute.xlu0 %8572
  %8574 = vrot.lane.b32.xlu0 %v8535, 120
  %v8575 = vpop.permute.xlu0 %8574
  %8576 = vrot.lane.b32.xlu0 %v8536, 120
  %v8577 = vpop.permute.xlu0 %8576
  %8578 = vrot.lane.b32.xlu0 %v8537, 120
  %v8579 = vpop.permute.xlu0 %8578
  %8580 = vrot.lane.b32.xlu0 %v8538, 120
  %v8581 = vpop.permute.xlu0 %8580
  %8582 = vrot.lane.b32.xlu0 %v8539, 120
  %v8583 = vpop.permute.xlu0 %8582
  %8584 = vrot.lane.b32.xlu0 %v8540, 120
  %v8585 = vpop.permute.xlu0 %8584
  %8586 = vrot.lane.b32.xlu0 %v8541, 120
  %v8587 = vpop.permute.xlu0 %8586
  %8588 = vrot.lane.b32.xlu0 %v8542, 120
  %v8589 = vpop.permute.xlu0 %8588
  %8590 = vrot.lane.b32.xlu0 %v8543, 120
  %v8591 = vpop.permute.xlu0 %8590
  %vm8608 = vcmask 1048512
  %8609 = vst.msk [vmem:[#allocation4] sm:$0xff] %vm8608, %v8561
  %vm8610 = vcmask 97280
  %8611 = vst.msk [vmem:[#allocation4 + $0x8] sm:$0xff] %vm8610, %v8561
  %8612 = vst.msk [vmem:[#allocation4 + $0x20] sm:$0xff] %vm8608, %v8563
  %8613 = vst.msk [vmem:[#allocation4 + $0x28] sm:$0xff] %vm8610, %v8563
  %8614 = vst.msk [vmem:[#allocation4 + $0x40] sm:$0xff] %vm8608, %v8565
  %8615 = vst.msk [vmem:[#allocation4 + $0x48] sm:$0xff] %vm8610, %v8565
  %8616 = vst.msk [vmem:[#allocation4 + $0x60] sm:$0xff] %vm8608, %v8567
  %8617 = vst.msk [vmem:[#allocation4 + $0x68] sm:$0xff] %vm8610, %v8567
  %8618 = vst.msk [vmem:[#allocation4 + $0x80] sm:$0xff] %vm8608, %v8569
  %8619 = vst.msk [vmem:[#allocation4 + $0x88] sm:$0xff] %vm8610, %v8569
  %8620 = vst.msk [vmem:[#allocation4 + $0xa0] sm:$0xff] %vm8608, %v8571
  %8621 = vst.msk [vmem:[#allocation4 + $0xa8] sm:$0xff] %vm8610, %v8571
  %8622 = vst.msk [vmem:[#allocation4 + $0xc0] sm:$0xff] %vm8608, %v8573
  %8623 = vst.msk [vmem:[#allocation4 + $0xc8] sm:$0xff] %vm8610, %v8573
  %8624 = vst.msk [vmem:[#allocation4 + $0xe0] sm:$0xff] %vm8608, %v8575
  %8625 = vst.msk [vmem:[#allocation4 + $0xe8] sm:$0xff] %vm8610, %v8575
  %8626 = vst.msk [vmem:[#allocation4 + $0x100] sm:$0xff] %vm8608, %v8577
  %8627 = vst.msk [vmem:[#allocation4 + $0x108] sm:$0xff] %vm8610, %v8577
  %8628 = vst.msk [vmem:[#allocation4 + $0x120] sm:$0xff] %vm8608, %v8579
  %8629 = vst.msk [vmem:[#allocation4 + $0x128] sm:$0xff] %vm8610, %v8579
  %8630 = vst.msk [vmem:[#allocation4 + $0x140] sm:$0xff] %vm8608, %v8581
  %8631 = vst.msk [vmem:[#allocation4 + $0x148] sm:$0xff] %vm8610, %v8581
  %8632 = vst.msk [vmem:[#allocation4 + $0x160] sm:$0xff] %vm8608, %v8583
  %8633 = vst.msk [vmem:[#allocation4 + $0x168] sm:$0xff] %vm8610, %v8583
  %8634 = vst.msk [vmem:[#allocation4 + $0x180] sm:$0xff] %vm8608, %v8585
  %8635 = vst.msk [vmem:[#allocation4 + $0x188] sm:$0xff] %vm8610, %v8585
  %8636 = vst.msk [vmem:[#allocation4 + $0x1a0] sm:$0xff] %vm8608, %v8587
  %8637 = vst.msk [vmem:[#allocation4 + $0x1a8] sm:$0xff] %vm8610, %v8587
  %8638 = vst.msk [vmem:[#allocation4 + $0x1c0] sm:$0xff] %vm8608, %v8589
  %8639 = vst.msk [vmem:[#allocation4 + $0x1c8] sm:$0xff] %vm8610, %v8589
  %8640 = vst.msk [vmem:[#allocation4 + $0x1e0] sm:$0xff] %vm8608, %v8591
  %8641 = vst.msk [vmem:[#allocation4 + $0x1e8] sm:$0xff] %vm8610, %v8591
  %v8642 = vld [vmem:[%s8430 + $0x2] sm:$0xff]
  %v8643 = vld [vmem:[%s8430 + $0x12] sm:$0xff]
  %v8644 = vld [vmem:[%s8430 + $0x22] sm:$0xff]
  %v8645 = vld [vmem:[%s8430 + $0x32] sm:$0xff]
  %v8646 = vld [vmem:[%s8430 + $0x42] sm:$0xff]
  %v8647 = vld [vmem:[%s8430 + $0x52] sm:$0xff]
  %v8648 = vld [vmem:[%s8430 + $0x62] sm:$0xff]
  %v8649 = vld [vmem:[%s8430 + $0x72] sm:$0xff]
  %v8650 = vld [vmem:[%s8430 + $0xc2] sm:$0xff]
  %v8651 = vld [vmem:[%s8430 + $0xd2] sm:$0xff]
  %v8652 = vld [vmem:[%s8430 + $0xe2] sm:$0xff]
  %v8653 = vld [vmem:[%s8430 + $0xf2] sm:$0xff]
  %v8654 = vld [vmem:[%s8430 + $0x102] sm:$0xff]
  %v8655 = vld [vmem:[%s8430 + $0x112] sm:$0xff]
  %v8656 = vld [vmem:[%s8430 + $0x122] sm:$0xff]
  %v8657 = vld [vmem:[%s8430 + $0x132] sm:$0xff]
  %8674 = vrot.lane.b32.xlu0 %v8642, 12
  %v8675 = vpop.permute.xlu0 %8674
  %8676 = vrot.lane.b32.xlu0 %v8643, 12
  %v8677 = vpop.permute.xlu0 %8676
  %8678 = vrot.lane.b32.xlu0 %v8644, 12
  %v8679 = vpop.permute.xlu0 %8678
  %8680 = vrot.lane.b32.xlu0 %v8645, 12
  %v8681 = vpop.permute.xlu0 %8680
  %8682 = vrot.lane.b32.xlu0 %v8646, 12
  %v8683 = vpop.permute.xlu0 %8682
  %8684 = vrot.lane.b32.xlu0 %v8647, 12
  %v8685 = vpop.permute.xlu0 %8684
  %8686 = vrot.lane.b32.xlu0 %v8648, 12
  %v8687 = vpop.permute.xlu0 %8686
  %8688 = vrot.lane.b32.xlu0 %v8649, 12
  %v8689 = vpop.permute.xlu0 %8688
  %8690 = vrot.lane.b32.xlu0 %v8650, 12
  %v8691 = vpop.permute.xlu0 %8690
  %8692 = vrot.lane.b32.xlu0 %v8651, 12
  %v8693 = vpop.permute.xlu0 %8692
  %8694 = vrot.lane.b32.xlu0 %v8652, 12
  %v8695 = vpop.permute.xlu0 %8694
  %8696 = vrot.lane.b32.xlu0 %v8653, 12
  %v8697 = vpop.permute.xlu0 %8696
  %8698 = vrot.lane.b32.xlu0 %v8654, 12
  %v8699 = vpop.permute.xlu0 %8698
  %8700 = vrot.lane.b32.xlu0 %v8655, 12
  %v8701 = vpop.permute.xlu0 %8700
  %8702 = vrot.lane.b32.xlu0 %v8656, 12
  %v8703 = vpop.permute.xlu0 %8702
  %8704 = vrot.lane.b32.xlu0 %v8657, 12
  %v8705 = vpop.permute.xlu0 %8704
  %vm8722 = vcmask 261216
  %8723 = vst.msk [vmem:[#allocation4 + $0x8] sm:$0xff] %vm8722, %v8675
  %8724 = vst.msk [vmem:[#allocation4 + $0x28] sm:$0xff] %vm8722, %v8677
  %8725 = vst.msk [vmem:[#allocation4 + $0x48] sm:$0xff] %vm8722, %v8679
  %8726 = vst.msk [vmem:[#allocation4 + $0x68] sm:$0xff] %vm8722, %v8681
  %8727 = vst.msk [vmem:[#allocation4 + $0x88] sm:$0xff] %vm8722, %v8683
  %8728 = vst.msk [vmem:[#allocation4 + $0xa8] sm:$0xff] %vm8722, %v8685
  %8729 = vst.msk [vmem:[#allocation4 + $0xc8] sm:$0xff] %vm8722, %v8687
  %8730 = vst.msk [vmem:[#allocation4 + $0xe8] sm:$0xff] %vm8722, %v8689
  %8731 = vst.msk [vmem:[#allocation4 + $0x108] sm:$0xff] %vm8722, %v8691
  %8732 = vst.msk [vmem:[#allocation4 + $0x128] sm:$0xff] %vm8722, %v8693
  %8733 = vst.msk [vmem:[#allocation4 + $0x148] sm:$0xff] %vm8722, %v8695
  %8734 = vst.msk [vmem:[#allocation4 + $0x168] sm:$0xff] %vm8722, %v8697
  %8735 = vst.msk [vmem:[#allocation4 + $0x188] sm:$0xff] %vm8722, %v8699
  %8736 = vst.msk [vmem:[#allocation4 + $0x1a8] sm:$0xff] %vm8722, %v8701
  %8737 = vst.msk [vmem:[#allocation4 + $0x1c8] sm:$0xff] %vm8722, %v8703
  %8738 = vst.msk [vmem:[#allocation4 + $0x1e8] sm:$0xff] %vm8722, %v8705
  %v8739 = vld [vmem:[%s8430 + $0x3] sm:$0xff]
  %v8740 = vld [vmem:[%s8430 + $0x13] sm:$0xff]
  %v8741 = vld [vmem:[%s8430 + $0x23] sm:$0xff]
  %v8742 = vld [vmem:[%s8430 + $0x33] sm:$0xff]
  %v8743 = vld [vmem:[%s8430 + $0x43] sm:$0xff]
  %v8744 = vld [vmem:[%s8430 + $0x53] sm:$0xff]
  %v8745 = vld [vmem:[%s8430 + $0x63] sm:$0xff]
  %v8746 = vld [vmem:[%s8430 + $0x73] sm:$0xff]
  %v8747 = vld [vmem:[%s8430 + $0xc3] sm:$0xff]
  %v8748 = vld [vmem:[%s8430 + $0xd3] sm:$0xff]
  %v8749 = vld [vmem:[%s8430 + $0xe3] sm:$0xff]
  %v8750 = vld [vmem:[%s8430 + $0xf3] sm:$0xff]
  %v8751 = vld [vmem:[%s8430 + $0x103] sm:$0xff]
  %v8752 = vld [vmem:[%s8430 + $0x113] sm:$0xff]
  %v8753 = vld [vmem:[%s8430 + $0x123] sm:$0xff]
  %v8754 = vld [vmem:[%s8430 + $0x133] sm:$0xff]
  %8771 = vrot.lane.b32.xlu0 %v8739, 32
  %v8772 = vpop.permute.xlu0 %8771
  %8773 = vrot.lane.b32.xlu0 %v8740, 32
  %v8774 = vpop.permute.xlu0 %8773
  %8775 = vrot.lane.b32.xlu0 %v8741, 32
  %v8776 = vpop.permute.xlu0 %8775
  %8777 = vrot.lane.b32.xlu0 %v8742, 32
  %v8778 = vpop.permute.xlu0 %8777
  %8779 = vrot.lane.b32.xlu0 %v8743, 32
  %v8780 = vpop.permute.xlu0 %8779
  %8781 = vrot.lane.b32.xlu0 %v8744, 32
  %v8782 = vpop.permute.xlu0 %8781
  %8783 = vrot.lane.b32.xlu0 %v8745, 32
  %v8784 = vpop.permute.xlu0 %8783
  %8785 = vrot.lane.b32.xlu0 %v8746, 32
  %v8786 = vpop.permute.xlu0 %8785
  %8787 = vrot.lane.b32.xlu0 %v8747, 32
  %v8788 = vpop.permute.xlu0 %8787
  %8789 = vrot.lane.b32.xlu0 %v8748, 32
  %v8790 = vpop.permute.xlu0 %8789
  %8791 = vrot.lane.b32.xlu0 %v8749, 32
  %v8792 = vpop.permute.xlu0 %8791
  %8793 = vrot.lane.b32.xlu0 %v8750, 32
  %v8794 = vpop.permute.xlu0 %8793
  %8795 = vrot.lane.b32.xlu0 %v8751, 32
  %v8796 = vpop.permute.xlu0 %8795
  %8797 = vrot.lane.b32.xlu0 %v8752, 32
  %v8798 = vpop.permute.xlu0 %8797
  %8799 = vrot.lane.b32.xlu0 %v8753, 32
  %v8800 = vpop.permute.xlu0 %8799
  %8801 = vrot.lane.b32.xlu0 %v8754, 32
  %v8802 = vpop.permute.xlu0 %8801
  %vm8819 = vcmask 425216
  %8820 = vst.msk [vmem:[#allocation4 + $0x8] sm:$0xff] %vm8819, %v8772
  %8821 = vst.msk [vmem:[#allocation4 + $0x28] sm:$0xff] %vm8819, %v8774
  %8822 = vst.msk [vmem:[#allocation4 + $0x48] sm:$0xff] %vm8819, %v8776
  %8823 = vst.msk [vmem:[#allocation4 + $0x68] sm:$0xff] %vm8819, %v8778
  %8824 = vst.msk [vmem:[#allocation4 + $0x88] sm:$0xff] %vm8819, %v8780
  %8825 = vst.msk [vmem:[#allocation4 + $0xa8] sm:$0xff] %vm8819, %v8782
  %8826 = vst.msk [vmem:[#allocation4 + $0xc8] sm:$0xff] %vm8819, %v8784
  %8827 = vst.msk [vmem:[#allocation4 + $0xe8] sm:$0xff] %vm8819, %v8786
  %8828 = vst.msk [vmem:[#allocation4 + $0x108] sm:$0xff] %vm8819, %v8788
  %8829 = vst.msk [vmem:[#allocation4 + $0x128] sm:$0xff] %vm8819, %v8790
  %8830 = vst.msk [vmem:[#allocation4 + $0x148] sm:$0xff] %vm8819, %v8792
  %8831 = vst.msk [vmem:[#allocation4 + $0x168] sm:$0xff] %vm8819, %v8794
  %8832 = vst.msk [vmem:[#allocation4 + $0x188] sm:$0xff] %vm8819, %v8796
  %8833 = vst.msk [vmem:[#allocation4 + $0x1a8] sm:$0xff] %vm8819, %v8798
  %8834 = vst.msk [vmem:[#allocation4 + $0x1c8] sm:$0xff] %vm8819, %v8800
  %8835 = vst.msk [vmem:[#allocation4 + $0x1e8] sm:$0xff] %vm8819, %v8802
  %v8836 = vld [vmem:[%s8430 + $0x4] sm:$0xff]
  %v8837 = vld [vmem:[%s8430 + $0x14] sm:$0xff]
  %v8838 = vld [vmem:[%s8430 + $0x24] sm:$0xff]
  %v8839 = vld [vmem:[%s8430 + $0x34] sm:$0xff]
  %v8840 = vld [vmem:[%s8430 + $0x44] sm:$0xff]
  %v8841 = vld [vmem:[%s8430 + $0x54] sm:$0xff]
  %v8842 = vld [vmem:[%s8430 + $0x64] sm:$0xff]
  %v8843 = vld [vmem:[%s8430 + $0x74] sm:$0xff]
  %v8844 = vld [vmem:[%s8430 + $0xc4] sm:$0xff]
  %v8845 = vld [vmem:[%s8430 + $0xd4] sm:$0xff]
  %v8846 = vld [vmem:[%s8430 + $0xe4] sm:$0xff]
  %v8847 = vld [vmem:[%s8430 + $0xf4] sm:$0xff]
  %v8848 = vld [vmem:[%s8430 + $0x104] sm:$0xff]
  %v8849 = vld [vmem:[%s8430 + $0x114] sm:$0xff]
  %v8850 = vld [vmem:[%s8430 + $0x124] sm:$0xff]
  %v8851 = vld [vmem:[%s8430 + $0x134] sm:$0xff]
  %8868 = vrot.lane.b32.xlu0 %v8836, 52
  %v8869 = vpop.permute.xlu0 %8868
  %8870 = vrot.lane.b32.xlu0 %v8837, 52
  %v8871 = vpop.permute.xlu0 %8870
  %8872 = vrot.lane.b32.xlu0 %v8838, 52
  %v8873 = vpop.permute.xlu0 %8872
  %8874 = vrot.lane.b32.xlu0 %v8839, 52
  %v8875 = vpop.permute.xlu0 %8874
  %8876 = vrot.lane.b32.xlu0 %v8840, 52
  %v8877 = vpop.permute.xlu0 %8876
  %8878 = vrot.lane.b32.xlu0 %v8841, 52
  %v8879 = vpop.permute.xlu0 %8878
  %8880 = vrot.lane.b32.xlu0 %v8842, 52
  %v8881 = vpop.permute.xlu0 %8880
  %8882 = vrot.lane.b32.xlu0 %v8843, 52
  %v8883 = vpop.permute.xlu0 %8882
  %8884 = vrot.lane.b32.xlu0 %v8844, 52
  %v8885 = vpop.permute.xlu0 %8884
  %8886 = vrot.lane.b32.xlu0 %v8845, 52
  %v8887 = vpop.permute.xlu0 %8886
  %8888 = vrot.lane.b32.xlu0 %v8846, 52
  %v8889 = vpop.permute.xlu0 %8888
  %8890 = vrot.lane.b32.xlu0 %v8847, 52
  %v8891 = vpop.permute.xlu0 %8890
  %8892 = vrot.lane.b32.xlu0 %v8848, 52
  %v8893 = vpop.permute.xlu0 %8892
  %8894 = vrot.lane.b32.xlu0 %v8849, 52
  %v8895 = vpop.permute.xlu0 %8894
  %8896 = vrot.lane.b32.xlu0 %v8850, 52
  %v8897 = vpop.permute.xlu0 %8896
  %8898 = vrot.lane.b32.xlu0 %v8851, 52
  %v8899 = vpop.permute.xlu0 %8898
  %vm8916 = vcmask 589216
  %8917 = vst.msk [vmem:[#allocation4 + $0x8] sm:$0xff] %vm8916, %v8869
  %8918 = vst.msk [vmem:[#allocation4 + $0x28] sm:$0xff] %vm8916, %v8871
  %8919 = vst.msk [vmem:[#allocation4 + $0x48] sm:$0xff] %vm8916, %v8873
  %8920 = vst.msk [vmem:[#allocation4 + $0x68] sm:$0xff] %vm8916, %v8875
  %8921 = vst.msk [vmem:[#allocation4 + $0x88] sm:$0xff] %vm8916, %v8877
  %8922 = vst.msk [vmem:[#allocation4 + $0xa8] sm:$0xff] %vm8916, %v8879
  %8923 = vst.msk [vmem:[#allocation4 + $0xc8] sm:$0xff] %vm8916, %v8881
  %8924 = vst.msk [vmem:[#allocation4 + $0xe8] sm:$0xff] %vm8916, %v8883
  %8925 = vst.msk [vmem:[#allocation4 + $0x108] sm:$0xff] %vm8916, %v8885
  %8926 = vst.msk [vmem:[#allocation4 + $0x128] sm:$0xff] %vm8916, %v8887
  %8927 = vst.msk [vmem:[#allocation4 + $0x148] sm:$0xff] %vm8916, %v8889
  %8928 = vst.msk [vmem:[#allocation4 + $0x168] sm:$0xff] %vm8916, %v8891
  %8929 = vst.msk [vmem:[#allocation4 + $0x188] sm:$0xff] %vm8916, %v8893
  %8930 = vst.msk [vmem:[#allocation4 + $0x1a8] sm:$0xff] %vm8916, %v8895
  %8931 = vst.msk [vmem:[#allocation4 + $0x1c8] sm:$0xff] %vm8916, %v8897
  %8932 = vst.msk [vmem:[#allocation4 + $0x1e8] sm:$0xff] %vm8916, %v8899
  %s8933 = scalar_lea.vmem [#allocation3], 32
  %v8934 = vld [vmem:[%s8933] sm:$0xff]
  %v8935 = vld [vmem:[%s8933 + $0x10] sm:$0xff]
  %v8936 = vld [vmem:[%s8933 + $0x20] sm:$0xff]
  %v8937 = vld [vmem:[%s8933 + $0x30] sm:$0xff]
  %v8938 = vld [vmem:[%s8933 + $0x40] sm:$0xff]
  %v8939 = vld [vmem:[%s8933 + $0x50] sm:$0xff]
  %v8940 = vld [vmem:[%s8933 + $0x60] sm:$0xff]
  %v8941 = vld [vmem:[%s8933 + $0x70] sm:$0xff]
  %v8942 = vld [vmem:[%s8933 + $0xc0] sm:$0xff]
  %v8943 = vld [vmem:[%s8933 + $0xd0] sm:$0xff]
  %v8944 = vld [vmem:[%s8933 + $0xe0] sm:$0xff]
  %v8945 = vld [vmem:[%s8933 + $0xf0] sm:$0xff]
  %v8946 = vld [vmem:[%s8933 + $0x100] sm:$0xff]
  %v8947 = vld [vmem:[%s8933 + $0x110] sm:$0xff]
  %v8948 = vld [vmem:[%s8933 + $0x120] sm:$0xff]
  %v8949 = vld [vmem:[%s8933 + $0x130] sm:$0xff]
  %8966 = vrot.lane.b32.xlu0 %v8934, 72
  %v8967 = vpop.permute.xlu0 %8966
  %8968 = vrot.lane.b32.xlu0 %v8935, 72
  %v8969 = vpop.permute.xlu0 %8968
  %8970 = vrot.lane.b32.xlu0 %v8936, 72
  %v8971 = vpop.permute.xlu0 %8970
  %8972 = vrot.lane.b32.xlu0 %v8937, 72
  %v8973 = vpop.permute.xlu0 %8972
  %8974 = vrot.lane.b32.xlu0 %v8938, 72
  %v8975 = vpop.permute.xlu0 %8974
  %8976 = vrot.lane.b32.xlu0 %v8939, 72
  %v8977 = vpop.permute.xlu0 %8976
  %8978 = vrot.lane.b32.xlu0 %v8940, 72
  %v8979 = vpop.permute.xlu0 %8978
  %8980 = vrot.lane.b32.xlu0 %v8941, 72
  %v8981 = vpop.permute.xlu0 %8980
  %8982 = vrot.lane.b32.xlu0 %v8942, 72
  %v8983 = vpop.permute.xlu0 %8982
  %8984 = vrot.lane.b32.xlu0 %v8943, 72
  %v8985 = vpop.permute.xlu0 %8984
  %8986 = vrot.lane.b32.xlu0 %v8944, 72
  %v8987 = vpop.permute.xlu0 %8986
  %8988 = vrot.lane.b32.xlu0 %v8945, 72
  %v8989 = vpop.permute.xlu0 %8988
  %8990 = vrot.lane.b32.xlu0 %v8946, 72
  %v8991 = vpop.permute.xlu0 %8990
  %8992 = vrot.lane.b32.xlu0 %v8947, 72
  %v8993 = vpop.permute.xlu0 %8992
  %8994 = vrot.lane.b32.xlu0 %v8948, 72
  %v8995 = vpop.permute.xlu0 %8994
  %8996 = vrot.lane.b32.xlu0 %v8949, 72
  %v8997 = vpop.permute.xlu0 %8996
  %vm9014 = vcmask 753216
  %9015 = vst.msk [vmem:[#allocation4 + $0x8] sm:$0xff] %vm9014, %v8967
  %9016 = vst.msk [vmem:[#allocation4 + $0x28] sm:$0xff] %vm9014, %v8969
  %9017 = vst.msk [vmem:[#allocation4 + $0x48] sm:$0xff] %vm9014, %v8971
  %9018 = vst.msk [vmem:[#allocation4 + $0x68] sm:$0xff] %vm9014, %v8973
  %9019 = vst.msk [vmem:[#allocation4 + $0x88] sm:$0xff] %vm9014, %v8975
  %9020 = vst.msk [vmem:[#allocation4 + $0xa8] sm:$0xff] %vm9014, %v8977
  %9021 = vst.msk [vmem:[#allocation4 + $0xc8] sm:$0xff] %vm9014, %v8979
  %9022 = vst.msk [vmem:[#allocation4 + $0xe8] sm:$0xff] %vm9014, %v8981
  %9023 = vst.msk [vmem:[#allocation4 + $0x108] sm:$0xff] %vm9014, %v8983
  %9024 = vst.msk [vmem:[#allocation4 + $0x128] sm:$0xff] %vm9014, %v8985
  %9025 = vst.msk [vmem:[#allocation4 + $0x148] sm:$0xff] %vm9014, %v8987
  %9026 = vst.msk [vmem:[#allocation4 + $0x168] sm:$0xff] %vm9014, %v8989
  %9027 = vst.msk [vmem:[#allocation4 + $0x188] sm:$0xff] %vm9014, %v8991
  %9028 = vst.msk [vmem:[#allocation4 + $0x1a8] sm:$0xff] %vm9014, %v8993
  %9029 = vst.msk [vmem:[#allocation4 + $0x1c8] sm:$0xff] %vm9014, %v8995
  %9030 = vst.msk [vmem:[#allocation4 + $0x1e8] sm:$0xff] %vm9014, %v8997
  %v9031 = vld [vmem:[%s8933 + $0x1] sm:$0xff]
  %v9032 = vld [vmem:[%s8933 + $0x11] sm:$0xff]
  %v9033 = vld [vmem:[%s8933 + $0x21] sm:$0xff]
  %v9034 = vld [vmem:[%s8933 + $0x31] sm:$0xff]
  %v9035 = vld [vmem:[%s8933 + $0x41] sm:$0xff]
  %v9036 = vld [vmem:[%s8933 + $0x51] sm:$0xff]
  %v9037 = vld [vmem:[%s8933 + $0x61] sm:$0xff]
  %v9038 = vld [vmem:[%s8933 + $0x71] sm:$0xff]
  %v9039 = vld [vmem:[%s8933 + $0xc1] sm:$0xff]
  %v9040 = vld [vmem:[%s8933 + $0xd1] sm:$0xff]
  %v9041 = vld [vmem:[%s8933 + $0xe1] sm:$0xff]
  %v9042 = vld [vmem:[%s8933 + $0xf1] sm:$0xff]
  %v9043 = vld [vmem:[%s8933 + $0x101] sm:$0xff]
  %v9044 = vld [vmem:[%s8933 + $0x111] sm:$0xff]
  %v9045 = vld [vmem:[%s8933 + $0x121] sm:$0xff]
  %v9046 = vld [vmem:[%s8933 + $0x131] sm:$0xff]
  %9063 = vrot.lane.b32.xlu0 %v9031, 92
  %v9064 = vpop.permute.xlu0 %9063
  %9065 = vrot.lane.b32.xlu0 %v9032, 92
  %v9066 = vpop.permute.xlu0 %9065
  %9067 = vrot.lane.b32.xlu0 %v9033, 92
  %v9068 = vpop.permute.xlu0 %9067
  %9069 = vrot.lane.b32.xlu0 %v9034, 92
  %v9070 = vpop.permute.xlu0 %9069
  %9071 = vrot.lane.b32.xlu0 %v9035, 92
  %v9072 = vpop.permute.xlu0 %9071
  %9073 = vrot.lane.b32.xlu0 %v9036, 92
  %v9074 = vpop.permute.xlu0 %9073
  %9075 = vrot.lane.b32.xlu0 %v9037, 92
  %v9076 = vpop.permute.xlu0 %9075
  %9077 = vrot.lane.b32.xlu0 %v9038, 92
  %v9078 = vpop.permute.xlu0 %9077
  %9079 = vrot.lane.b32.xlu0 %v9039, 92
  %v9080 = vpop.permute.xlu0 %9079
  %9081 = vrot.lane.b32.xlu0 %v9040, 92
  %v9082 = vpop.permute.xlu0 %9081
  %9083 = vrot.lane.b32.xlu0 %v9041, 92
  %v9084 = vpop.permute.xlu0 %9083
  %9085 = vrot.lane.b32.xlu0 %v9042, 92
  %v9086 = vpop.permute.xlu0 %9085
  %9087 = vrot.lane.b32.xlu0 %v9043, 92
  %v9088 = vpop.permute.xlu0 %9087
  %9089 = vrot.lane.b32.xlu0 %v9044, 92
  %v9090 = vpop.permute.xlu0 %9089
  %9091 = vrot.lane.b32.xlu0 %v9045, 92
  %v9092 = vpop.permute.xlu0 %9091
  %9093 = vrot.lane.b32.xlu0 %v9046, 92
  %v9094 = vpop.permute.xlu0 %9093
  %vm9111 = vcmask 917216
  %9112 = vst.msk [vmem:[#allocation4 + $0x8] sm:$0xff] %vm9111, %v9064
  %9113 = vst.msk [vmem:[#allocation4 + $0x28] sm:$0xff] %vm9111, %v9066
  %9114 = vst.msk [vmem:[#allocation4 + $0x48] sm:$0xff] %vm9111, %v9068
  %9115 = vst.msk [vmem:[#allocation4 + $0x68] sm:$0xff] %vm9111, %v9070
  %9116 = vst.msk [vmem:[#allocation4 + $0x88] sm:$0xff] %vm9111, %v9072
  %9117 = vst.msk [vmem:[#allocation4 + $0xa8] sm:$0xff] %vm9111, %v9074
  %9118 = vst.msk [vmem:[#allocation4 + $0xc8] sm:$0xff] %vm9111, %v9076
  %9119 = vst.msk [vmem:[#allocation4 + $0xe8] sm:$0xff] %vm9111, %v9078
  %9120 = vst.msk [vmem:[#allocation4 + $0x108] sm:$0xff] %vm9111, %v9080
  %9121 = vst.msk [vmem:[#allocation4 + $0x128] sm:$0xff] %vm9111, %v9082
  %9122 = vst.msk [vmem:[#allocation4 + $0x148] sm:$0xff] %vm9111, %v9084
  %9123 = vst.msk [vmem:[#allocation4 + $0x168] sm:$0xff] %vm9111, %v9086
  %9124 = vst.msk [vmem:[#allocation4 + $0x188] sm:$0xff] %vm9111, %v9088
  %9125 = vst.msk [vmem:[#allocation4 + $0x1a8] sm:$0xff] %vm9111, %v9090
  %9126 = vst.msk [vmem:[#allocation4 + $0x1c8] sm:$0xff] %vm9111, %v9092
  %9127 = vst.msk [vmem:[#allocation4 + $0x1e8] sm:$0xff] %vm9111, %v9094
  %v9128 = vld [vmem:[%s8933 + $0x2] sm:$0xff]
  %v9129 = vld [vmem:[%s8933 + $0x12] sm:$0xff]
  %v9130 = vld [vmem:[%s8933 + $0x22] sm:$0xff]
  %v9131 = vld [vmem:[%s8933 + $0x32] sm:$0xff]
  %v9132 = vld [vmem:[%s8933 + $0x42] sm:$0xff]
  %v9133 = vld [vmem:[%s8933 + $0x52] sm:$0xff]
  %v9134 = vld [vmem:[%s8933 + $0x62] sm:$0xff]
  %v9135 = vld [vmem:[%s8933 + $0x72] sm:$0xff]
  %v9136 = vld [vmem:[%s8933 + $0xc2] sm:$0xff]
  %v9137 = vld [vmem:[%s8933 + $0xd2] sm:$0xff]
  %v9138 = vld [vmem:[%s8933 + $0xe2] sm:$0xff]
  %v9139 = vld [vmem:[%s8933 + $0xf2] sm:$0xff]
  %v9140 = vld [vmem:[%s8933 + $0x102] sm:$0xff]
  %v9141 = vld [vmem:[%s8933 + $0x112] sm:$0xff]
  %v9142 = vld [vmem:[%s8933 + $0x122] sm:$0xff]
  %v9143 = vld [vmem:[%s8933 + $0x132] sm:$0xff]
  %9160 = vrot.lane.b32.xlu0 %v9128, 112
  %v9161 = vpop.permute.xlu0 %9160
  %9162 = vrot.lane.b32.xlu0 %v9129, 112
  %v9163 = vpop.permute.xlu0 %9162
  %9164 = vrot.lane.b32.xlu0 %v9130, 112
  %v9165 = vpop.permute.xlu0 %9164
  %9166 = vrot.lane.b32.xlu0 %v9131, 112
  %v9167 = vpop.permute.xlu0 %9166
  %9168 = vrot.lane.b32.xlu0 %v9132, 112
  %v9169 = vpop.permute.xlu0 %9168
  %9170 = vrot.lane.b32.xlu0 %v9133, 112
  %v9171 = vpop.permute.xlu0 %9170
  %9172 = vrot.lane.b32.xlu0 %v9134, 112
  %v9173 = vpop.permute.xlu0 %9172
  %9174 = vrot.lane.b32.xlu0 %v9135, 112
  %v9175 = vpop.permute.xlu0 %9174
  %9176 = vrot.lane.b32.xlu0 %v9136, 112
  %v9177 = vpop.permute.xlu0 %9176
  %9178 = vrot.lane.b32.xlu0 %v9137, 112
  %v9179 = vpop.permute.xlu0 %9178
  %9180 = vrot.lane.b32.xlu0 %v9138, 112
  %v9181 = vpop.permute.xlu0 %9180
  %9182 = vrot.lane.b32.xlu0 %v9139, 112
  %v9183 = vpop.permute.xlu0 %9182
  %9184 = vrot.lane.b32.xlu0 %v9140, 112
  %v9185 = vpop.permute.xlu0 %9184
  %9186 = vrot.lane.b32.xlu0 %v9141, 112
  %v9187 = vpop.permute.xlu0 %9186
  %9188 = vrot.lane.b32.xlu0 %v9142, 112
  %v9189 = vpop.permute.xlu0 %9188
  %9190 = vrot.lane.b32.xlu0 %v9143, 112
  %v9191 = vpop.permute.xlu0 %9190
  %vm9208 = vcmask 1048448
  %9209 = vst.msk [vmem:[#allocation4 + $0x8] sm:$0xff] %vm9208, %v9161
  %vm9210 = vcmask 31744
  %9211 = vst.msk [vmem:[#allocation4 + $0x10] sm:$0xff] %vm9210, %v9161
  %9212 = vst.msk [vmem:[#allocation4 + $0x28] sm:$0xff] %vm9208, %v9163
  %9213 = vst.msk [vmem:[#allocation4 + $0x30] sm:$0xff] %vm9210, %v9163
  %9214 = vst.msk [vmem:[#allocation4 + $0x48] sm:$0xff] %vm9208, %v9165
  %9215 = vst.msk [vmem:[#allocation4 + $0x50] sm:$0xff] %vm9210, %v9165
  %9216 = vst.msk [vmem:[#allocation4 + $0x68] sm:$0xff] %vm9208, %v9167
  %9217 = vst.msk [vmem:[#allocation4 + $0x70] sm:$0xff] %vm9210, %v9167
  %9218 = vst.msk [vmem:[#allocation4 + $0x88] sm:$0xff] %vm9208, %v9169
  %9219 = vst.msk [vmem:[#allocation4 + $0x90] sm:$0xff] %vm9210, %v9169
  %9220 = vst.msk [vmem:[#allocation4 + $0xa8] sm:$0xff] %vm9208, %v9171
  %9221 = vst.msk [vmem:[#allocation4 + $0xb0] sm:$0xff] %vm9210, %v9171
  %9222 = vst.msk [vmem:[#allocation4 + $0xc8] sm:$0xff] %vm9208, %v9173
  %9223 = vst.msk [vmem:[#allocation4 + $0xd0] sm:$0xff] %vm9210, %v9173
  %9224 = vst.msk [vmem:[#allocation4 + $0xe8] sm:$0xff] %vm9208, %v9175
  %9225 = vst.msk [vmem:[#allocation4 + $0xf0] sm:$0xff] %vm9210, %v9175
  %9226 = vst.msk [vmem:[#allocation4 + $0x108] sm:$0xff] %vm9208, %v9177
  %9227 = vst.msk [vmem:[#allocation4 + $0x110] sm:$0xff] %vm9210, %v9177
  %9228 = vst.msk [vmem:[#allocation4 + $0x128] sm:$0xff] %vm9208, %v9179
  %9229 = vst.msk [vmem:[#allocation4 + $0x130] sm:$0xff] %vm9210, %v9179
  %9230 = vst.msk [vmem:[#allocation4 + $0x148] sm:$0xff] %vm9208, %v9181
  %9231 = vst.msk [vmem:[#allocation4 + $0x150] sm:$0xff] %vm9210, %v9181
  %9232 = vst.msk [vmem:[#allocation4 + $0x168] sm:$0xff] %vm9208, %v9183
  %9233 = vst.msk [vmem:[#allocation4 + $0x170] sm:$0xff] %vm9210, %v9183
  %9234 = vst.msk [vmem:[#allocation4 + $0x188] sm:$0xff] %vm9208, %v9185
  %9235 = vst.msk [vmem:[#allocation4 + $0x190] sm:$0xff] %vm9210, %v9185
  %9236 = vst.msk [vmem:[#allocation4 + $0x1a8] sm:$0xff] %vm9208, %v9187
  %9237 = vst.msk [vmem:[#allocation4 + $0x1b0] sm:$0xff] %vm9210, %v9187
  %9238 = vst.msk [vmem:[#allocation4 + $0x1c8] sm:$0xff] %vm9208, %v9189
  %9239 = vst.msk [vmem:[#allocation4 + $0x1d0] sm:$0xff] %vm9210, %v9189
  %9240 = vst.msk [vmem:[#allocation4 + $0x1e8] sm:$0xff] %vm9208, %v9191
  %9241 = vst.msk [vmem:[#allocation4 + $0x1f0] sm:$0xff] %vm9210, %v9191
  %v9242 = vld [vmem:[%s8933 + $0x3] sm:$0xff]
  %v9243 = vld [vmem:[%s8933 + $0x13] sm:$0xff]
  %v9244 = vld [vmem:[%s8933 + $0x23] sm:$0xff]
  %v9245 = vld [vmem:[%s8933 + $0x33] sm:$0xff]
  %v9246 = vld [vmem:[%s8933 + $0x43] sm:$0xff]
  %v9247 = vld [vmem:[%s8933 + $0x53] sm:$0xff]
  %v9248 = vld [vmem:[%s8933 + $0x63] sm:$0xff]
  %v9249 = vld [vmem:[%s8933 + $0x73] sm:$0xff]
  %v9250 = vld [vmem:[%s8933 + $0xc3] sm:$0xff]
  %v9251 = vld [vmem:[%s8933 + $0xd3] sm:$0xff]
  %v9252 = vld [vmem:[%s8933 + $0xe3] sm:$0xff]
  %v9253 = vld [vmem:[%s8933 + $0xf3] sm:$0xff]
  %v9254 = vld [vmem:[%s8933 + $0x103] sm:$0xff]
  %v9255 = vld [vmem:[%s8933 + $0x113] sm:$0xff]
  %v9256 = vld [vmem:[%s8933 + $0x123] sm:$0xff]
  %v9257 = vld [vmem:[%s8933 + $0x133] sm:$0xff]
  %9274 = vrot.lane.b32.xlu0 %v9242, 4
  %v9275 = vpop.permute.xlu0 %9274
  %9276 = vrot.lane.b32.xlu0 %v9243, 4
  %v9277 = vpop.permute.xlu0 %9276
  %9278 = vrot.lane.b32.xlu0 %v9244, 4
  %v9279 = vpop.permute.xlu0 %9278
  %9280 = vrot.lane.b32.xlu0 %v9245, 4
  %v9281 = vpop.permute.xlu0 %9280
  %9282 = vrot.lane.b32.xlu0 %v9246, 4
  %v9283 = vpop.permute.xlu0 %9282
  %9284 = vrot.lane.b32.xlu0 %v9247, 4
  %v9285 = vpop.permute.xlu0 %9284
  %9286 = vrot.lane.b32.xlu0 %v9248, 4
  %v9287 = vpop.permute.xlu0 %9286
  %9288 = vrot.lane.b32.xlu0 %v9249, 4
  %v9289 = vpop.permute.xlu0 %9288
  %9290 = vrot.lane.b32.xlu0 %v9250, 4
  %v9291 = vpop.permute.xlu0 %9290
  %9292 = vrot.lane.b32.xlu0 %v9251, 4
  %v9293 = vpop.permute.xlu0 %9292
  %9294 = vrot.lane.b32.xlu0 %v9252, 4
  %v9295 = vpop.permute.xlu0 %9294
  %9296 = vrot.lane.b32.xlu0 %v9253, 4
  %v9297 = vpop.permute.xlu0 %9296
  %9298 = vrot.lane.b32.xlu0 %v9254, 4
  %v9299 = vpop.permute.xlu0 %9298
  %9300 = vrot.lane.b32.xlu0 %v9255, 4
  %v9301 = vpop.permute.xlu0 %9300
  %9302 = vrot.lane.b32.xlu0 %v9256, 4
  %v9303 = vpop.permute.xlu0 %9302
  %9304 = vrot.lane.b32.xlu0 %v9257, 4
  %v9305 = vpop.permute.xlu0 %9304
  %vm9322 = vcmask 195616
  %9323 = vst.msk [vmem:[#allocation4 + $0x10] sm:$0xff] %vm9322, %v9275
  %9324 = vst.msk [vmem:[#allocation4 + $0x30] sm:$0xff] %vm9322, %v9277
  %9325 = vst.msk [vmem:[#allocation4 + $0x50] sm:$0xff] %vm9322, %v9279
  %9326 = vst.msk [vmem:[#allocation4 + $0x70] sm:$0xff] %vm9322, %v9281
  %9327 = vst.msk [vmem:[#allocation4 + $0x90] sm:$0xff] %vm9322, %v9283
  %9328 = vst.msk [vmem:[#allocation4 + $0xb0] sm:$0xff] %vm9322, %v9285
  %9329 = vst.msk [vmem:[#allocation4 + $0xd0] sm:$0xff] %vm9322, %v9287
  %9330 = vst.msk [vmem:[#allocation4 + $0xf0] sm:$0xff] %vm9322, %v9289
  %9331 = vst.msk [vmem:[#allocation4 + $0x110] sm:$0xff] %vm9322, %v9291
  %9332 = vst.msk [vmem:[#allocation4 + $0x130] sm:$0xff] %vm9322, %v9293
  %9333 = vst.msk [vmem:[#allocation4 + $0x150] sm:$0xff] %vm9322, %v9295
  %9334 = vst.msk [vmem:[#allocation4 + $0x170] sm:$0xff] %vm9322, %v9297
  %9335 = vst.msk [vmem:[#allocation4 + $0x190] sm:$0xff] %vm9322, %v9299
  %9336 = vst.msk [vmem:[#allocation4 + $0x1b0] sm:$0xff] %vm9322, %v9301
  %9337 = vst.msk [vmem:[#allocation4 + $0x1d0] sm:$0xff] %vm9322, %v9303
  %9338 = vst.msk [vmem:[#allocation4 + $0x1f0] sm:$0xff] %vm9322, %v9305
  %v9339 = vld [vmem:[%s8933 + $0x4] sm:$0xff]
  %v9340 = vld [vmem:[%s8933 + $0x14] sm:$0xff]
  %v9341 = vld [vmem:[%s8933 + $0x24] sm:$0xff]
  %v9342 = vld [vmem:[%s8933 + $0x34] sm:$0xff]
  %v9343 = vld [vmem:[%s8933 + $0x44] sm:$0xff]
  %v9344 = vld [vmem:[%s8933 + $0x54] sm:$0xff]
  %v9345 = vld [vmem:[%s8933 + $0x64] sm:$0xff]
  %v9346 = vld [vmem:[%s8933 + $0x74] sm:$0xff]
  %v9347 = vld [vmem:[%s8933 + $0xc4] sm:$0xff]
  %v9348 = vld [vmem:[%s8933 + $0xd4] sm:$0xff]
  %v9349 = vld [vmem:[%s8933 + $0xe4] sm:$0xff]
  %v9350 = vld [vmem:[%s8933 + $0xf4] sm:$0xff]
  %v9351 = vld [vmem:[%s8933 + $0x104] sm:$0xff]
  %v9352 = vld [vmem:[%s8933 + $0x114] sm:$0xff]
  %v9353 = vld [vmem:[%s8933 + $0x124] sm:$0xff]
  %v9354 = vld [vmem:[%s8933 + $0x134] sm:$0xff]
  %9371 = vrot.lane.b32.xlu0 %v9339, 24
  %v9372 = vpop.permute.xlu0 %9371
  %9373 = vrot.lane.b32.xlu0 %v9340, 24
  %v9374 = vpop.permute.xlu0 %9373
  %9375 = vrot.lane.b32.xlu0 %v9341, 24
  %v9376 = vpop.permute.xlu0 %9375
  %9377 = vrot.lane.b32.xlu0 %v9342, 24
  %v9378 = vpop.permute.xlu0 %9377
  %9379 = vrot.lane.b32.xlu0 %v9343, 24
  %v9380 = vpop.permute.xlu0 %9379
  %9381 = vrot.lane.b32.xlu0 %v9344, 24
  %v9382 = vpop.permute.xlu0 %9381
  %9383 = vrot.lane.b32.xlu0 %v9345, 24
  %v9384 = vpop.permute.xlu0 %9383
  %9385 = vrot.lane.b32.xlu0 %v9346, 24
  %v9386 = vpop.permute.xlu0 %9385
  %9387 = vrot.lane.b32.xlu0 %v9347, 24
  %v9388 = vpop.permute.xlu0 %9387
  %9389 = vrot.lane.b32.xlu0 %v9348, 24
  %v9390 = vpop.permute.xlu0 %9389
  %9391 = vrot.lane.b32.xlu0 %v9349, 24
  %v9392 = vpop.permute.xlu0 %9391
  %9393 = vrot.lane.b32.xlu0 %v9350, 24
  %v9394 = vpop.permute.xlu0 %9393
  %9395 = vrot.lane.b32.xlu0 %v9351, 24
  %v9396 = vpop.permute.xlu0 %9395
  %9397 = vrot.lane.b32.xlu0 %v9352, 24
  %v9398 = vpop.permute.xlu0 %9397
  %9399 = vrot.lane.b32.xlu0 %v9353, 24
  %v9400 = vpop.permute.xlu0 %9399
  %9401 = vrot.lane.b32.xlu0 %v9354, 24
  %v9402 = vpop.permute.xlu0 %9401
  %vm9419 = vcmask 359616
  %9420 = vst.msk [vmem:[#allocation4 + $0x10] sm:$0xff] %vm9419, %v9372
  %9421 = vst.msk [vmem:[#allocation4 + $0x30] sm:$0xff] %vm9419, %v9374
  %9422 = vst.msk [vmem:[#allocation4 + $0x50] sm:$0xff] %vm9419, %v9376
  %9423 = vst.msk [vmem:[#allocation4 + $0x70] sm:$0xff] %vm9419, %v9378
  %9424 = vst.msk [vmem:[#allocation4 + $0x90] sm:$0xff] %vm9419, %v9380
  %9425 = vst.msk [vmem:[#allocation4 + $0xb0] sm:$0xff] %vm9419, %v9382
  %9426 = vst.msk [vmem:[#allocation4 + $0xd0] sm:$0xff] %vm9419, %v9384
  %9427 = vst.msk [vmem:[#allocation4 + $0xf0] sm:$0xff] %vm9419, %v9386
  %9428 = vst.msk [vmem:[#allocation4 + $0x110] sm:$0xff] %vm9419, %v9388
  %9429 = vst.msk [vmem:[#allocation4 + $0x130] sm:$0xff] %vm9419, %v9390
  %9430 = vst.msk [vmem:[#allocation4 + $0x150] sm:$0xff] %vm9419, %v9392
  %9431 = vst.msk [vmem:[#allocation4 + $0x170] sm:$0xff] %vm9419, %v9394
  %9432 = vst.msk [vmem:[#allocation4 + $0x190] sm:$0xff] %vm9419, %v9396
  %9433 = vst.msk [vmem:[#allocation4 + $0x1b0] sm:$0xff] %vm9419, %v9398
  %9434 = vst.msk [vmem:[#allocation4 + $0x1d0] sm:$0xff] %vm9419, %v9400
  %9435 = vst.msk [vmem:[#allocation4 + $0x1f0] sm:$0xff] %vm9419, %v9402
  %s9436 = scalar_lea.vmem [#allocation3], 48
  %v9437 = vld [vmem:[%s9436] sm:$0xff]
  %v9438 = vld [vmem:[%s9436 + $0x10] sm:$0xff]
  %v9439 = vld [vmem:[%s9436 + $0x20] sm:$0xff]
  %v9440 = vld [vmem:[%s9436 + $0x30] sm:$0xff]
  %v9441 = vld [vmem:[%s9436 + $0x40] sm:$0xff]
  %v9442 = vld [vmem:[%s9436 + $0x50] sm:$0xff]
  %v9443 = vld [vmem:[%s9436 + $0x60] sm:$0xff]
  %v9444 = vld [vmem:[%s9436 + $0x70] sm:$0xff]
  %v9445 = vld [vmem:[%s9436 + $0xc0] sm:$0xff]
  %v9446 = vld [vmem:[%s9436 + $0xd0] sm:$0xff]
  %v9447 = vld [vmem:[%s9436 + $0xe0] sm:$0xff]
  %v9448 = vld [vmem:[%s9436 + $0xf0] sm:$0xff]
  %v9449 = vld [vmem:[%s9436 + $0x100] sm:$0xff]
  %v9450 = vld [vmem:[%s9436 + $0x110] sm:$0xff]
  %v9451 = vld [vmem:[%s9436 + $0x120] sm:$0xff]
  %v9452 = vld [vmem:[%s9436 + $0x130] sm:$0xff]
  %9469 = vrot.lane.b32.xlu0 %v9437, 44
  %v9470 = vpop.permute.xlu0 %9469
  %9471 = vrot.lane.b32.xlu0 %v9438, 44
  %v9472 = vpop.permute.xlu0 %9471
  %9473 = vrot.lane.b32.xlu0 %v9439, 44
  %v9474 = vpop.permute.xlu0 %9473
  %9475 = vrot.lane.b32.xlu0 %v9440, 44
  %v9476 = vpop.permute.xlu0 %9475
  %9477 = vrot.lane.b32.xlu0 %v9441, 44
  %v9478 = vpop.permute.xlu0 %9477
  %9479 = vrot.lane.b32.xlu0 %v9442, 44
  %v9480 = vpop.permute.xlu0 %9479
  %9481 = vrot.lane.b32.xlu0 %v9443, 44
  %v9482 = vpop.permute.xlu0 %9481
  %9483 = vrot.lane.b32.xlu0 %v9444, 44
  %v9484 = vpop.permute.xlu0 %9483
  %9485 = vrot.lane.b32.xlu0 %v9445, 44
  %v9486 = vpop.permute.xlu0 %9485
  %9487 = vrot.lane.b32.xlu0 %v9446, 44
  %v9488 = vpop.permute.xlu0 %9487
  %9489 = vrot.lane.b32.xlu0 %v9447, 44
  %v9490 = vpop.permute.xlu0 %9489
  %9491 = vrot.lane.b32.xlu0 %v9448, 44
  %v9492 = vpop.permute.xlu0 %9491
  %9493 = vrot.lane.b32.xlu0 %v9449, 44
  %v9494 = vpop.permute.xlu0 %9493
  %9495 = vrot.lane.b32.xlu0 %v9450, 44
  %v9496 = vpop.permute.xlu0 %9495
  %9497 = vrot.lane.b32.xlu0 %v9451, 44
  %v9498 = vpop.permute.xlu0 %9497
  %9499 = vrot.lane.b32.xlu0 %v9452, 44
  %v9500 = vpop.permute.xlu0 %9499
  %vm9517 = vcmask 523616
  %9518 = vst.msk [vmem:[#allocation4 + $0x10] sm:$0xff] %vm9517, %v9470
  %9519 = vst.msk [vmem:[#allocation4 + $0x30] sm:$0xff] %vm9517, %v9472
  %9520 = vst.msk [vmem:[#allocation4 + $0x50] sm:$0xff] %vm9517, %v9474
  %9521 = vst.msk [vmem:[#allocation4 + $0x70] sm:$0xff] %vm9517, %v9476
  %9522 = vst.msk [vmem:[#allocation4 + $0x90] sm:$0xff] %vm9517, %v9478
  %9523 = vst.msk [vmem:[#allocation4 + $0xb0] sm:$0xff] %vm9517, %v9480
  %9524 = vst.msk [vmem:[#allocation4 + $0xd0] sm:$0xff] %vm9517, %v9482
  %9525 = vst.msk [vmem:[#allocation4 + $0xf0] sm:$0xff] %vm9517, %v9484
  %9526 = vst.msk [vmem:[#allocation4 + $0x110] sm:$0xff] %vm9517, %v9486
  %9527 = vst.msk [vmem:[#allocation4 + $0x130] sm:$0xff] %vm9517, %v9488
  %9528 = vst.msk [vmem:[#allocation4 + $0x150] sm:$0xff] %vm9517, %v9490
  %9529 = vst.msk [vmem:[#allocation4 + $0x170] sm:$0xff] %vm9517, %v9492
  %9530 = vst.msk [vmem:[#allocation4 + $0x190] sm:$0xff] %vm9517, %v9494
  %9531 = vst.msk [vmem:[#allocation4 + $0x1b0] sm:$0xff] %vm9517, %v9496
  %9532 = vst.msk [vmem:[#allocation4 + $0x1d0] sm:$0xff] %vm9517, %v9498
  %9533 = vst.msk [vmem:[#allocation4 + $0x1f0] sm:$0xff] %vm9517, %v9500
  %v9534 = vld [vmem:[%s9436 + $0x1] sm:$0xff]
  %v9535 = vld [vmem:[%s9436 + $0x11] sm:$0xff]
  %v9536 = vld [vmem:[%s9436 + $0x21] sm:$0xff]
  %v9537 = vld [vmem:[%s9436 + $0x31] sm:$0xff]
  %v9538 = vld [vmem:[%s9436 + $0x41] sm:$0xff]
  %v9539 = vld [vmem:[%s9436 + $0x51] sm:$0xff]
  %v9540 = vld [vmem:[%s9436 + $0x61] sm:$0xff]
  %v9541 = vld [vmem:[%s9436 + $0x71] sm:$0xff]
  %v9542 = vld [vmem:[%s9436 + $0xc1] sm:$0xff]
  %v9543 = vld [vmem:[%s9436 + $0xd1] sm:$0xff]
  %v9544 = vld [vmem:[%s9436 + $0xe1] sm:$0xff]
  %v9545 = vld [vmem:[%s9436 + $0xf1] sm:$0xff]
  %v9546 = vld [vmem:[%s9436 + $0x101] sm:$0xff]
  %v9547 = vld [vmem:[%s9436 + $0x111] sm:$0xff]
  %v9548 = vld [vmem:[%s9436 + $0x121] sm:$0xff]
  %v9549 = vld [vmem:[%s9436 + $0x131] sm:$0xff]
  %9566 = vrot.lane.b32.xlu0 %v9534, 64
  %v9567 = vpop.permute.xlu0 %9566
  %9568 = vrot.lane.b32.xlu0 %v9535, 64
  %v9569 = vpop.permute.xlu0 %9568
  %9570 = vrot.lane.b32.xlu0 %v9536, 64
  %v9571 = vpop.permute.xlu0 %9570
  %9572 = vrot.lane.b32.xlu0 %v9537, 64
  %v9573 = vpop.permute.xlu0 %9572
  %9574 = vrot.lane.b32.xlu0 %v9538, 64
  %v9575 = vpop.permute.xlu0 %9574
  %9576 = vrot.lane.b32.xlu0 %v9539, 64
  %v9577 = vpop.permute.xlu0 %9576
  %9578 = vrot.lane.b32.xlu0 %v9540, 64
  %v9579 = vpop.permute.xlu0 %9578
  %9580 = vrot.lane.b32.xlu0 %v9541, 64
  %v9581 = vpop.permute.xlu0 %9580
  %9582 = vrot.lane.b32.xlu0 %v9542, 64
  %v9583 = vpop.permute.xlu0 %9582
  %9584 = vrot.lane.b32.xlu0 %v9543, 64
  %v9585 = vpop.permute.xlu0 %9584
  %9586 = vrot.lane.b32.xlu0 %v9544, 64
  %v9587 = vpop.permute.xlu0 %9586
  %9588 = vrot.lane.b32.xlu0 %v9545, 64
  %v9589 = vpop.permute.xlu0 %9588
  %9590 = vrot.lane.b32.xlu0 %v9546, 64
  %v9591 = vpop.permute.xlu0 %9590
  %9592 = vrot.lane.b32.xlu0 %v9547, 64
  %v9593 = vpop.permute.xlu0 %9592
  %9594 = vrot.lane.b32.xlu0 %v9548, 64
  %v9595 = vpop.permute.xlu0 %9594
  %9596 = vrot.lane.b32.xlu0 %v9549, 64
  %v9597 = vpop.permute.xlu0 %9596
  %vm9614 = vcmask 687616
  %9615 = vst.msk [vmem:[#allocation4 + $0x10] sm:$0xff] %vm9614, %v9567
  %9616 = vst.msk [vmem:[#allocation4 + $0x30] sm:$0xff] %vm9614, %v9569
  %9617 = vst.msk [vmem:[#allocation4 + $0x50] sm:$0xff] %vm9614, %v9571
  %9618 = vst.msk [vmem:[#allocation4 + $0x70] sm:$0xff] %vm9614, %v9573
  %9619 = vst.msk [vmem:[#allocation4 + $0x90] sm:$0xff] %vm9614, %v9575
  %9620 = vst.msk [vmem:[#allocation4 + $0xb0] sm:$0xff] %vm9614, %v9577
  %9621 = vst.msk [vmem:[#allocation4 + $0xd0] sm:$0xff] %vm9614, %v9579
  %9622 = vst.msk [vmem:[#allocation4 + $0xf0] sm:$0xff] %vm9614, %v9581
  %9623 = vst.msk [vmem:[#allocation4 + $0x110] sm:$0xff] %vm9614, %v9583
  %9624 = vst.msk [vmem:[#allocation4 + $0x130] sm:$0xff] %vm9614, %v9585
  %9625 = vst.msk [vmem:[#allocation4 + $0x150] sm:$0xff] %vm9614, %v9587
  %9626 = vst.msk [vmem:[#allocation4 + $0x170] sm:$0xff] %vm9614, %v9589
  %9627 = vst.msk [vmem:[#allocation4 + $0x190] sm:$0xff] %vm9614, %v9591
  %9628 = vst.msk [vmem:[#allocation4 + $0x1b0] sm:$0xff] %vm9614, %v9593
  %9629 = vst.msk [vmem:[#allocation4 + $0x1d0] sm:$0xff] %vm9614, %v9595
  %9630 = vst.msk [vmem:[#allocation4 + $0x1f0] sm:$0xff] %vm9614, %v9597
  %v9631 = vld [vmem:[%s9436 + $0x2] sm:$0xff]
  %v9632 = vld [vmem:[%s9436 + $0x12] sm:$0xff]
  %v9633 = vld [vmem:[%s9436 + $0x22] sm:$0xff]
  %v9634 = vld [vmem:[%s9436 + $0x32] sm:$0xff]
  %v9635 = vld [vmem:[%s9436 + $0x42] sm:$0xff]
  %v9636 = vld [vmem:[%s9436 + $0x52] sm:$0xff]
  %v9637 = vld [vmem:[%s9436 + $0x62] sm:$0xff]
  %v9638 = vld [vmem:[%s9436 + $0x72] sm:$0xff]
  %v9639 = vld [vmem:[%s9436 + $0xc2] sm:$0xff]
  %v9640 = vld [vmem:[%s9436 + $0xd2] sm:$0xff]
  %v9641 = vld [vmem:[%s9436 + $0xe2] sm:$0xff]
  %v9642 = vld [vmem:[%s9436 + $0xf2] sm:$0xff]
  %v9643 = vld [vmem:[%s9436 + $0x102] sm:$0xff]
  %v9644 = vld [vmem:[%s9436 + $0x112] sm:$0xff]
  %v9645 = vld [vmem:[%s9436 + $0x122] sm:$0xff]
  %v9646 = vld [vmem:[%s9436 + $0x132] sm:$0xff]
  %9663 = vrot.lane.b32.xlu0 %v9631, 84
  %v9664 = vpop.permute.xlu0 %9663
  %9665 = vrot.lane.b32.xlu0 %v9632, 84
  %v9666 = vpop.permute.xlu0 %9665
  %9667 = vrot.lane.b32.xlu0 %v9633, 84
  %v9668 = vpop.permute.xlu0 %9667
  %9669 = vrot.lane.b32.xlu0 %v9634, 84
  %v9670 = vpop.permute.xlu0 %9669
  %9671 = vrot.lane.b32.xlu0 %v9635, 84
  %v9672 = vpop.permute.xlu0 %9671
  %9673 = vrot.lane.b32.xlu0 %v9636, 84
  %v9674 = vpop.permute.xlu0 %9673
  %9675 = vrot.lane.b32.xlu0 %v9637, 84
  %v9676 = vpop.permute.xlu0 %9675
  %9677 = vrot.lane.b32.xlu0 %v9638, 84
  %v9678 = vpop.permute.xlu0 %9677
  %9679 = vrot.lane.b32.xlu0 %v9639, 84
  %v9680 = vpop.permute.xlu0 %9679
  %9681 = vrot.lane.b32.xlu0 %v9640, 84
  %v9682 = vpop.permute.xlu0 %9681
  %9683 = vrot.lane.b32.xlu0 %v9641, 84
  %v9684 = vpop.permute.xlu0 %9683
  %9685 = vrot.lane.b32.xlu0 %v9642, 84
  %v9686 = vpop.permute.xlu0 %9685
  %9687 = vrot.lane.b32.xlu0 %v9643, 84
  %v9688 = vpop.permute.xlu0 %9687
  %9689 = vrot.lane.b32.xlu0 %v9644, 84
  %v9690 = vpop.permute.xlu0 %9689
  %9691 = vrot.lane.b32.xlu0 %v9645, 84
  %v9692 = vpop.permute.xlu0 %9691
  %9693 = vrot.lane.b32.xlu0 %v9646, 84
  %v9694 = vpop.permute.xlu0 %9693
  %vm9711 = vcmask 851616
  %9712 = vst.msk [vmem:[#allocation4 + $0x10] sm:$0xff] %vm9711, %v9664
  %9713 = vst.msk [vmem:[#allocation4 + $0x30] sm:$0xff] %vm9711, %v9666
  %9714 = vst.msk [vmem:[#allocation4 + $0x50] sm:$0xff] %vm9711, %v9668
  %9715 = vst.msk [vmem:[#allocation4 + $0x70] sm:$0xff] %vm9711, %v9670
  %9716 = vst.msk [vmem:[#allocation4 + $0x90] sm:$0xff] %vm9711, %v9672
  %9717 = vst.msk [vmem:[#allocation4 + $0xb0] sm:$0xff] %vm9711, %v9674
  %9718 = vst.msk [vmem:[#allocation4 + $0xd0] sm:$0xff] %vm9711, %v9676
  %9719 = vst.msk [vmem:[#allocation4 + $0xf0] sm:$0xff] %vm9711, %v9678
  %9720 = vst.msk [vmem:[#allocation4 + $0x110] sm:$0xff] %vm9711, %v9680
  %9721 = vst.msk [vmem:[#allocation4 + $0x130] sm:$0xff] %vm9711, %v9682
  %9722 = vst.msk [vmem:[#allocation4 + $0x150] sm:$0xff] %vm9711, %v9684
  %9723 = vst.msk [vmem:[#allocation4 + $0x170] sm:$0xff] %vm9711, %v9686
  %9724 = vst.msk [vmem:[#allocation4 + $0x190] sm:$0xff] %vm9711, %v9688
  %9725 = vst.msk [vmem:[#allocation4 + $0x1b0] sm:$0xff] %vm9711, %v9690
  %9726 = vst.msk [vmem:[#allocation4 + $0x1d0] sm:$0xff] %vm9711, %v9692
  %9727 = vst.msk [vmem:[#allocation4 + $0x1f0] sm:$0xff] %vm9711, %v9694
  %v9728 = vld [vmem:[%s9436 + $0x3] sm:$0xff]
  %v9729 = vld [vmem:[%s9436 + $0x13] sm:$0xff]
  %v9730 = vld [vmem:[%s9436 + $0x23] sm:$0xff]
  %v9731 = vld [vmem:[%s9436 + $0x33] sm:$0xff]
  %v9732 = vld [vmem:[%s9436 + $0x43] sm:$0xff]
  %v9733 = vld [vmem:[%s9436 + $0x53] sm:$0xff]
  %v9734 = vld [vmem:[%s9436 + $0x63] sm:$0xff]
  %v9735 = vld [vmem:[%s9436 + $0x73] sm:$0xff]
  %v9736 = vld [vmem:[%s9436 + $0xc3] sm:$0xff]
  %v9737 = vld [vmem:[%s9436 + $0xd3] sm:$0xff]
  %v9738 = vld [vmem:[%s9436 + $0xe3] sm:$0xff]
  %v9739 = vld [vmem:[%s9436 + $0xf3] sm:$0xff]
  %v9740 = vld [vmem:[%s9436 + $0x103] sm:$0xff]
  %v9741 = vld [vmem:[%s9436 + $0x113] sm:$0xff]
  %v9742 = vld [vmem:[%s9436 + $0x123] sm:$0xff]
  %v9743 = vld [vmem:[%s9436 + $0x133] sm:$0xff]
  %9760 = vrot.lane.b32.xlu0 %v9728, 104
  %v9761 = vpop.permute.xlu0 %9760
  %9762 = vrot.lane.b32.xlu0 %v9729, 104
  %v9763 = vpop.permute.xlu0 %9762
  %9764 = vrot.lane.b32.xlu0 %v9730, 104
  %v9765 = vpop.permute.xlu0 %9764
  %9766 = vrot.lane.b32.xlu0 %v9731, 104
  %v9767 = vpop.permute.xlu0 %9766
  %9768 = vrot.lane.b32.xlu0 %v9732, 104
  %v9769 = vpop.permute.xlu0 %9768
  %9770 = vrot.lane.b32.xlu0 %v9733, 104
  %v9771 = vpop.permute.xlu0 %9770
  %9772 = vrot.lane.b32.xlu0 %v9734, 104
  %v9773 = vpop.permute.xlu0 %9772
  %9774 = vrot.lane.b32.xlu0 %v9735, 104
  %v9775 = vpop.permute.xlu0 %9774
  %9776 = vrot.lane.b32.xlu0 %v9736, 104
  %v9777 = vpop.permute.xlu0 %9776
  %9778 = vrot.lane.b32.xlu0 %v9737, 104
  %v9779 = vpop.permute.xlu0 %9778
  %9780 = vrot.lane.b32.xlu0 %v9738, 104
  %v9781 = vpop.permute.xlu0 %9780
  %9782 = vrot.lane.b32.xlu0 %v9739, 104
  %v9783 = vpop.permute.xlu0 %9782
  %9784 = vrot.lane.b32.xlu0 %v9740, 104
  %v9785 = vpop.permute.xlu0 %9784
  %9786 = vrot.lane.b32.xlu0 %v9741, 104
  %v9787 = vpop.permute.xlu0 %9786
  %9788 = vrot.lane.b32.xlu0 %v9742, 104
  %v9789 = vpop.permute.xlu0 %9788
  %9790 = vrot.lane.b32.xlu0 %v9743, 104
  %v9791 = vpop.permute.xlu0 %9790
  %vm9808 = vcmask 1015616
  %9809 = vst.msk [vmem:[#allocation4 + $0x10] sm:$0xff] %vm9808, %v9761
  %9810 = vst.msk [vmem:[#allocation4 + $0x30] sm:$0xff] %vm9808, %v9763
  %9811 = vst.msk [vmem:[#allocation4 + $0x50] sm:$0xff] %vm9808, %v9765
  %9812 = vst.msk [vmem:[#allocation4 + $0x70] sm:$0xff] %vm9808, %v9767
  %9813 = vst.msk [vmem:[#allocation4 + $0x90] sm:$0xff] %vm9808, %v9769
  %9814 = vst.msk [vmem:[#allocation4 + $0xb0] sm:$0xff] %vm9808, %v9771
  %9815 = vst.msk [vmem:[#allocation4 + $0xd0] sm:$0xff] %vm9808, %v9773
  %9816 = vst.msk [vmem:[#allocation4 + $0xf0] sm:$0xff] %vm9808, %v9775
  %9817 = vst.msk [vmem:[#allocation4 + $0x110] sm:$0xff] %vm9808, %v9777
  %9818 = vst.msk [vmem:[#allocation4 + $0x130] sm:$0xff] %vm9808, %v9779
  %9819 = vst.msk [vmem:[#allocation4 + $0x150] sm:$0xff] %vm9808, %v9781
  %9820 = vst.msk [vmem:[#allocation4 + $0x170] sm:$0xff] %vm9808, %v9783
  %9821 = vst.msk [vmem:[#allocation4 + $0x190] sm:$0xff] %vm9808, %v9785
  %9822 = vst.msk [vmem:[#allocation4 + $0x1b0] sm:$0xff] %vm9808, %v9787
  %9823 = vst.msk [vmem:[#allocation4 + $0x1d0] sm:$0xff] %vm9808, %v9789
  %9824 = vst.msk [vmem:[#allocation4 + $0x1f0] sm:$0xff] %vm9808, %v9791
  %v9825 = vld [vmem:[%s9436 + $0x4] sm:$0xff]
  %v9826 = vld [vmem:[%s9436 + $0x14] sm:$0xff]
  %v9827 = vld [vmem:[%s9436 + $0x24] sm:$0xff]
  %v9828 = vld [vmem:[%s9436 + $0x34] sm:$0xff]
  %v9829 = vld [vmem:[%s9436 + $0x44] sm:$0xff]
  %v9830 = vld [vmem:[%s9436 + $0x54] sm:$0xff]
  %v9831 = vld [vmem:[%s9436 + $0x64] sm:$0xff]
  %v9832 = vld [vmem:[%s9436 + $0x74] sm:$0xff]
  %v9833 = vld [vmem:[%s9436 + $0xc4] sm:$0xff]
  %v9834 = vld [vmem:[%s9436 + $0xd4] sm:$0xff]
  %v9835 = vld [vmem:[%s9436 + $0xe4] sm:$0xff]
  %v9836 = vld [vmem:[%s9436 + $0xf4] sm:$0xff]
  %v9837 = vld [vmem:[%s9436 + $0x104] sm:$0xff]
  %v9838 = vld [vmem:[%s9436 + $0x114] sm:$0xff]
  %v9839 = vld [vmem:[%s9436 + $0x124] sm:$0xff]
  %v9840 = vld [vmem:[%s9436 + $0x134] sm:$0xff]
  %9857 = vrot.lane.b32.xlu0 %v9825, 124
  %v9858 = vpop.permute.xlu0 %9857
  %9859 = vrot.lane.b32.xlu0 %v9826, 124
  %v9860 = vpop.permute.xlu0 %9859
  %9861 = vrot.lane.b32.xlu0 %v9827, 124
  %v9862 = vpop.permute.xlu0 %9861
  %9863 = vrot.lane.b32.xlu0 %v9828, 124
  %v9864 = vpop.permute.xlu0 %9863
  %9865 = vrot.lane.b32.xlu0 %v9829, 124
  %v9866 = vpop.permute.xlu0 %9865
  %9867 = vrot.lane.b32.xlu0 %v9830, 124
  %v9868 = vpop.permute.xlu0 %9867
  %9869 = vrot.lane.b32.xlu0 %v9831, 124
  %v9870 = vpop.permute.xlu0 %9869
  %9871 = vrot.lane.b32.xlu0 %v9832, 124
  %v9872 = vpop.permute.xlu0 %9871
  %9873 = vrot.lane.b32.xlu0 %v9833, 124
  %v9874 = vpop.permute.xlu0 %9873
  %9875 = vrot.lane.b32.xlu0 %v9834, 124
  %v9876 = vpop.permute.xlu0 %9875
  %9877 = vrot.lane.b32.xlu0 %v9835, 124
  %v9878 = vpop.permute.xlu0 %9877
  %9879 = vrot.lane.b32.xlu0 %v9836, 124
  %v9880 = vpop.permute.xlu0 %9879
  %9881 = vrot.lane.b32.xlu0 %v9837, 124
  %v9882 = vpop.permute.xlu0 %9881
  %9883 = vrot.lane.b32.xlu0 %v9838, 124
  %v9884 = vpop.permute.xlu0 %9883
  %9885 = vrot.lane.b32.xlu0 %v9839, 124
  %v9886 = vpop.permute.xlu0 %9885
  %9887 = vrot.lane.b32.xlu0 %v9840, 124
  %v9888 = vpop.permute.xlu0 %9887
  %vm9905 = vcmask 1048544
  %9906 = vst.msk [vmem:[#allocation4 + $0x10] sm:$0xff] %vm9905, %v9858
  %vm9907 = vcmask 130048
  %9908 = vst.msk [vmem:[#allocation4 + $0x18] sm:$0xff] %vm9907, %v9858
  %9909 = vst.msk [vmem:[#allocation4 + $0x30] sm:$0xff] %vm9905, %v9860
  %9910 = vst.msk [vmem:[#allocation4 + $0x38] sm:$0xff] %vm9907, %v9860
  %9911 = vst.msk [vmem:[#allocation4 + $0x50] sm:$0xff] %vm9905, %v9862
  %9912 = vst.msk [vmem:[#allocation4 + $0x58] sm:$0xff] %vm9907, %v9862
  %9913 = vst.msk [vmem:[#allocation4 + $0x70] sm:$0xff] %vm9905, %v9864
  %9914 = vst.msk [vmem:[#allocation4 + $0x78] sm:$0xff] %vm9907, %v9864
  %9915 = vst.msk [vmem:[#allocation4 + $0x90] sm:$0xff] %vm9905, %v9866
  %9916 = vst.msk [vmem:[#allocation4 + $0x98] sm:$0xff] %vm9907, %v9866
  %9917 = vst.msk [vmem:[#allocation4 + $0xb0] sm:$0xff] %vm9905, %v9868
  %9918 = vst.msk [vmem:[#allocation4 + $0xb8] sm:$0xff] %vm9907, %v9868
  %9919 = vst.msk [vmem:[#allocation4 + $0xd0] sm:$0xff] %vm9905, %v9870
  %9920 = vst.msk [vmem:[#allocation4 + $0xd8] sm:$0xff] %vm9907, %v9870
  %9921 = vst.msk [vmem:[#allocation4 + $0xf0] sm:$0xff] %vm9905, %v9872
  %9922 = vst.msk [vmem:[#allocation4 + $0xf8] sm:$0xff] %vm9907, %v9872
  %9923 = vst.msk [vmem:[#allocation4 + $0x110] sm:$0xff] %vm9905, %v9874
  %9924 = vst.msk [vmem:[#allocation4 + $0x118] sm:$0xff] %vm9907, %v9874
  %9925 = vst.msk [vmem:[#allocation4 + $0x130] sm:$0xff] %vm9905, %v9876
  %9926 = vst.msk [vmem:[#allocation4 + $0x138] sm:$0xff] %vm9907, %v9876
  %9927 = vst.msk [vmem:[#allocation4 + $0x150] sm:$0xff] %vm9905, %v9878
  %9928 = vst.msk [vmem:[#allocation4 + $0x158] sm:$0xff] %vm9907, %v9878
  %9929 = vst.msk [vmem:[#allocation4 + $0x170] sm:$0xff] %vm9905, %v9880
  %9930 = vst.msk [vmem:[#allocation4 + $0x178] sm:$0xff] %vm9907, %v9880
  %9931 = vst.msk [vmem:[#allocation4 + $0x190] sm:$0xff] %vm9905, %v9882
  %9932 = vst.msk [vmem:[#allocation4 + $0x198] sm:$0xff] %vm9907, %v9882
  %9933 = vst.msk [vmem:[#allocation4 + $0x1b0] sm:$0xff] %vm9905, %v9884
  %9934 = vst.msk [vmem:[#allocation4 + $0x1b8] sm:$0xff] %vm9907, %v9884
  %9935 = vst.msk [vmem:[#allocation4 + $0x1d0] sm:$0xff] %vm9905, %v9886
  %9936 = vst.msk [vmem:[#allocation4 + $0x1d8] sm:$0xff] %vm9907, %v9886
  %9937 = vst.msk [vmem:[#allocation4 + $0x1f0] sm:$0xff] %vm9905, %v9888
  %9938 = vst.msk [vmem:[#allocation4 + $0x1f8] sm:$0xff] %vm9907, %v9888
  %s9939 = scalar_lea.vmem [#allocation3], 64
  %v9940 = vld [vmem:[%s9939] sm:$0xff]
  %v9941 = vld [vmem:[%s9939 + $0x10] sm:$0xff]
  %v9942 = vld [vmem:[%s9939 + $0x20] sm:$0xff]
  %v9943 = vld [vmem:[%s9939 + $0x30] sm:$0xff]
  %v9944 = vld [vmem:[%s9939 + $0x40] sm:$0xff]
  %v9945 = vld [vmem:[%s9939 + $0x50] sm:$0xff]
  %v9946 = vld [vmem:[%s9939 + $0x60] sm:$0xff]
  %v9947 = vld [vmem:[%s9939 + $0x70] sm:$0xff]
  %v9948 = vld [vmem:[%s9939 + $0xc0] sm:$0xff]
  %v9949 = vld [vmem:[%s9939 + $0xd0] sm:$0xff]
  %v9950 = vld [vmem:[%s9939 + $0xe0] sm:$0xff]
  %v9951 = vld [vmem:[%s9939 + $0xf0] sm:$0xff]
  %v9952 = vld [vmem:[%s9939 + $0x100] sm:$0xff]
  %v9953 = vld [vmem:[%s9939 + $0x110] sm:$0xff]
  %v9954 = vld [vmem:[%s9939 + $0x120] sm:$0xff]
  %v9955 = vld [vmem:[%s9939 + $0x130] sm:$0xff]
  %9972 = vrot.lane.b32.xlu0 %v9940, 16
  %v9973 = vpop.permute.xlu0 %9972
  %9974 = vrot.lane.b32.xlu0 %v9941, 16
  %v9975 = vpop.permute.xlu0 %9974
  %9976 = vrot.lane.b32.xlu0 %v9942, 16
  %v9977 = vpop.permute.xlu0 %9976
  %9978 = vrot.lane.b32.xlu0 %v9943, 16
  %v9979 = vpop.permute.xlu0 %9978
  %9980 = vrot.lane.b32.xlu0 %v9944, 16
  %v9981 = vpop.permute.xlu0 %9980
  %9982 = vrot.lane.b32.xlu0 %v9945, 16
  %v9983 = vpop.permute.xlu0 %9982
  %9984 = vrot.lane.b32.xlu0 %v9946, 16
  %v9985 = vpop.permute.xlu0 %9984
  %9986 = vrot.lane.b32.xlu0 %v9947, 16
  %v9987 = vpop.permute.xlu0 %9986
  %9988 = vrot.lane.b32.xlu0 %v9948, 16
  %v9989 = vpop.permute.xlu0 %9988
  %9990 = vrot.lane.b32.xlu0 %v9949, 16
  %v9991 = vpop.permute.xlu0 %9990
  %9992 = vrot.lane.b32.xlu0 %v9950, 16
  %v9993 = vpop.permute.xlu0 %9992
  %9994 = vrot.lane.b32.xlu0 %v9951, 16
  %v9995 = vpop.permute.xlu0 %9994
  %9996 = vrot.lane.b32.xlu0 %v9952, 16
  %v9997 = vpop.permute.xlu0 %9996
  %9998 = vrot.lane.b32.xlu0 %v9953, 16
  %v9999 = vpop.permute.xlu0 %9998
  %10000 = vrot.lane.b32.xlu0 %v9954, 16
  %v10001 = vpop.permute.xlu0 %10000
  %10002 = vrot.lane.b32.xlu0 %v9955, 16
  %v10003 = vpop.permute.xlu0 %10002
  %vm10020 = vcmask 294016
  %10021 = vst.msk [vmem:[#allocation4 + $0x18] sm:$0xff] %vm10020, %v9973
  %10022 = vst.msk [vmem:[#allocation4 + $0x38] sm:$0xff] %vm10020, %v9975
  %10023 = vst.msk [vmem:[#allocation4 + $0x58] sm:$0xff] %vm10020, %v9977
  %10024 = vst.msk [vmem:[#allocation4 + $0x78] sm:$0xff] %vm10020, %v9979
  %10025 = vst.msk [vmem:[#allocation4 + $0x98] sm:$0xff] %vm10020, %v9981
  %10026 = vst.msk [vmem:[#allocation4 + $0xb8] sm:$0xff] %vm10020, %v9983
  %10027 = vst.msk [vmem:[#allocation4 + $0xd8] sm:$0xff] %vm10020, %v9985
  %10028 = vst.msk [vmem:[#allocation4 + $0xf8] sm:$0xff] %vm10020, %v9987
  %10029 = vst.msk [vmem:[#allocation4 + $0x118] sm:$0xff] %vm10020, %v9989
  %10030 = vst.msk [vmem:[#allocation4 + $0x138] sm:$0xff] %vm10020, %v9991
  %10031 = vst.msk [vmem:[#allocation4 + $0x158] sm:$0xff] %vm10020, %v9993
  %10032 = vst.msk [vmem:[#allocation4 + $0x178] sm:$0xff] %vm10020, %v9995
  %10033 = vst.msk [vmem:[#allocation4 + $0x198] sm:$0xff] %vm10020, %v9997
  %10034 = vst.msk [vmem:[#allocation4 + $0x1b8] sm:$0xff] %vm10020, %v9999
  %10035 = vst.msk [vmem:[#allocation4 + $0x1d8] sm:$0xff] %vm10020, %v10001
  %10036 = vst.msk [vmem:[#allocation4 + $0x1f8] sm:$0xff] %vm10020, %v10003
  %v10037 = vld [vmem:[%s9939 + $0x1] sm:$0xff]
  %v10038 = vld [vmem:[%s9939 + $0x11] sm:$0xff]
  %v10039 = vld [vmem:[%s9939 + $0x21] sm:$0xff]
  %v10040 = vld [vmem:[%s9939 + $0x31] sm:$0xff]
  %v10041 = vld [vmem:[%s9939 + $0x41] sm:$0xff]
  %v10042 = vld [vmem:[%s9939 + $0x51] sm:$0xff]
  %v10043 = vld [vmem:[%s9939 + $0x61] sm:$0xff]
  %v10044 = vld [vmem:[%s9939 + $0x71] sm:$0xff]
  %v10045 = vld [vmem:[%s9939 + $0xc1] sm:$0xff]
  %v10046 = vld [vmem:[%s9939 + $0xd1] sm:$0xff]
  %v10047 = vld [vmem:[%s9939 + $0xe1] sm:$0xff]
  %v10048 = vld [vmem:[%s9939 + $0xf1] sm:$0xff]
  %v10049 = vld [vmem:[%s9939 + $0x101] sm:$0xff]
  %v10050 = vld [vmem:[%s9939 + $0x111] sm:$0xff]
  %v10051 = vld [vmem:[%s9939 + $0x121] sm:$0xff]
  %v10052 = vld [vmem:[%s9939 + $0x131] sm:$0xff]
  %10069 = vrot.lane.b32.xlu0 %v10037, 36
  %v10070 = vpop.permute.xlu0 %10069
  %10071 = vrot.lane.b32.xlu0 %v10038, 36
  %v10072 = vpop.permute.xlu0 %10071
  %10073 = vrot.lane.b32.xlu0 %v10039, 36
  %v10074 = vpop.permute.xlu0 %10073
  %10075 = vrot.lane.b32.xlu0 %v10040, 36
  %v10076 = vpop.permute.xlu0 %10075
  %10077 = vrot.lane.b32.xlu0 %v10041, 36
  %v10078 = vpop.permute.xlu0 %10077
  %10079 = vrot.lane.b32.xlu0 %v10042, 36
  %v10080 = vpop.permute.xlu0 %10079
  %10081 = vrot.lane.b32.xlu0 %v10043, 36
  %v10082 = vpop.permute.xlu0 %10081
  %10083 = vrot.lane.b32.xlu0 %v10044, 36
  %v10084 = vpop.permute.xlu0 %10083
  %10085 = vrot.lane.b32.xlu0 %v10045, 36
  %v10086 = vpop.permute.xlu0 %10085
  %10087 = vrot.lane.b32.xlu0 %v10046, 36
  %v10088 = vpop.permute.xlu0 %10087
  %10089 = vrot.lane.b32.xlu0 %v10047, 36
  %v10090 = vpop.permute.xlu0 %10089
  %10091 = vrot.lane.b32.xlu0 %v10048, 36
  %v10092 = vpop.permute.xlu0 %10091
  %10093 = vrot.lane.b32.xlu0 %v10049, 36
  %v10094 = vpop.permute.xlu0 %10093
  %10095 = vrot.lane.b32.xlu0 %v10050, 36
  %v10096 = vpop.permute.xlu0 %10095
  %10097 = vrot.lane.b32.xlu0 %v10051, 36
  %v10098 = vpop.permute.xlu0 %10097
  %10099 = vrot.lane.b32.xlu0 %v10052, 36
  %v10100 = vpop.permute.xlu0 %10099
  %vm10117 = vcmask 458016
  %10118 = vst.msk [vmem:[#allocation4 + $0x18] sm:$0xff] %vm10117, %v10070
  %10119 = vst.msk [vmem:[#allocation4 + $0x38] sm:$0xff] %vm10117, %v10072
  %10120 = vst.msk [vmem:[#allocation4 + $0x58] sm:$0xff] %vm10117, %v10074
  %10121 = vst.msk [vmem:[#allocation4 + $0x78] sm:$0xff] %vm10117, %v10076
  %10122 = vst.msk [vmem:[#allocation4 + $0x98] sm:$0xff] %vm10117, %v10078
  %10123 = vst.msk [vmem:[#allocation4 + $0xb8] sm:$0xff] %vm10117, %v10080
  %10124 = vst.msk [vmem:[#allocation4 + $0xd8] sm:$0xff] %vm10117, %v10082
  %10125 = vst.msk [vmem:[#allocation4 + $0xf8] sm:$0xff] %vm10117, %v10084
  %10126 = vst.msk [vmem:[#allocation4 + $0x118] sm:$0xff] %vm10117, %v10086
  %10127 = vst.msk [vmem:[#allocation4 + $0x138] sm:$0xff] %vm10117, %v10088
  %10128 = vst.msk [vmem:[#allocation4 + $0x158] sm:$0xff] %vm10117, %v10090
  %10129 = vst.msk [vmem:[#allocation4 + $0x178] sm:$0xff] %vm10117, %v10092
  %10130 = vst.msk [vmem:[#allocation4 + $0x198] sm:$0xff] %vm10117, %v10094
  %10131 = vst.msk [vmem:[#allocation4 + $0x1b8] sm:$0xff] %vm10117, %v10096
  %10132 = vst.msk [vmem:[#allocation4 + $0x1d8] sm:$0xff] %vm10117, %v10098
  %10133 = vst.msk [vmem:[#allocation4 + $0x1f8] sm:$0xff] %vm10117, %v10100
  %v10134 = vld [vmem:[%s9939 + $0x2] sm:$0xff]
  %v10135 = vld [vmem:[%s9939 + $0x12] sm:$0xff]
  %v10136 = vld [vmem:[%s9939 + $0x22] sm:$0xff]
  %v10137 = vld [vmem:[%s9939 + $0x32] sm:$0xff]
  %v10138 = vld [vmem:[%s9939 + $0x42] sm:$0xff]
  %v10139 = vld [vmem:[%s9939 + $0x52] sm:$0xff]
  %v10140 = vld [vmem:[%s9939 + $0x62] sm:$0xff]
  %v10141 = vld [vmem:[%s9939 + $0x72] sm:$0xff]
  %v10142 = vld [vmem:[%s9939 + $0xc2] sm:$0xff]
  %v10143 = vld [vmem:[%s9939 + $0xd2] sm:$0xff]
  %v10144 = vld [vmem:[%s9939 + $0xe2] sm:$0xff]
  %v10145 = vld [vmem:[%s9939 + $0xf2] sm:$0xff]
  %v10146 = vld [vmem:[%s9939 + $0x102] sm:$0xff]
  %v10147 = vld [vmem:[%s9939 + $0x112] sm:$0xff]
  %v10148 = vld [vmem:[%s9939 + $0x122] sm:$0xff]
  %v10149 = vld [vmem:[%s9939 + $0x132] sm:$0xff]
  %10166 = vrot.lane.b32.xlu0 %v10134, 56
  %v10167 = vpop.permute.xlu0 %10166
  %10168 = vrot.lane.b32.xlu0 %v10135, 56
  %v10169 = vpop.permute.xlu0 %10168
  %10170 = vrot.lane.b32.xlu0 %v10136, 56
  %v10171 = vpop.permute.xlu0 %10170
  %10172 = vrot.lane.b32.xlu0 %v10137, 56
  %v10173 = vpop.permute.xlu0 %10172
  %10174 = vrot.lane.b32.xlu0 %v10138, 56
  %v10175 = vpop.permute.xlu0 %10174
  %10176 = vrot.lane.b32.xlu0 %v10139, 56
  %v10177 = vpop.permute.xlu0 %10176
  %10178 = vrot.lane.b32.xlu0 %v10140, 56
  %v10179 = vpop.permute.xlu0 %10178
  %10180 = vrot.lane.b32.xlu0 %v10141, 56
  %v10181 = vpop.permute.xlu0 %10180
  %10182 = vrot.lane.b32.xlu0 %v10142, 56
  %v10183 = vpop.permute.xlu0 %10182
  %10184 = vrot.lane.b32.xlu0 %v10143, 56
  %v10185 = vpop.permute.xlu0 %10184
  %10186 = vrot.lane.b32.xlu0 %v10144, 56
  %v10187 = vpop.permute.xlu0 %10186
  %10188 = vrot.lane.b32.xlu0 %v10145, 56
  %v10189 = vpop.permute.xlu0 %10188
  %10190 = vrot.lane.b32.xlu0 %v10146, 56
  %v10191 = vpop.permute.xlu0 %10190
  %10192 = vrot.lane.b32.xlu0 %v10147, 56
  %v10193 = vpop.permute.xlu0 %10192
  %10194 = vrot.lane.b32.xlu0 %v10148, 56
  %v10195 = vpop.permute.xlu0 %10194
  %10196 = vrot.lane.b32.xlu0 %v10149, 56
  %v10197 = vpop.permute.xlu0 %10196
  %vm10214 = vcmask 622016
  %10215 = vst.msk [vmem:[#allocation4 + $0x18] sm:$0xff] %vm10214, %v10167
  %10216 = vst.msk [vmem:[#allocation4 + $0x38] sm:$0xff] %vm10214, %v10169
  %10217 = vst.msk [vmem:[#allocation4 + $0x58] sm:$0xff] %vm10214, %v10171
  %10218 = vst.msk [vmem:[#allocation4 + $0x78] sm:$0xff] %vm10214, %v10173
  %10219 = vst.msk [vmem:[#allocation4 + $0x98] sm:$0xff] %vm10214, %v10175
  %10220 = vst.msk [vmem:[#allocation4 + $0xb8] sm:$0xff] %vm10214, %v10177
  %10221 = vst.msk [vmem:[#allocation4 + $0xd8] sm:$0xff] %vm10214, %v10179
  %10222 = vst.msk [vmem:[#allocation4 + $0xf8] sm:$0xff] %vm10214, %v10181
  %10223 = vst.msk [vmem:[#allocation4 + $0x118] sm:$0xff] %vm10214, %v10183
  %10224 = vst.msk [vmem:[#allocation4 + $0x138] sm:$0xff] %vm10214, %v10185
  %10225 = vst.msk [vmem:[#allocation4 + $0x158] sm:$0xff] %vm10214, %v10187
  %10226 = vst.msk [vmem:[#allocation4 + $0x178] sm:$0xff] %vm10214, %v10189
  %10227 = vst.msk [vmem:[#allocation4 + $0x198] sm:$0xff] %vm10214, %v10191
  %10228 = vst.msk [vmem:[#allocation4 + $0x1b8] sm:$0xff] %vm10214, %v10193
  %10229 = vst.msk [vmem:[#allocation4 + $0x1d8] sm:$0xff] %vm10214, %v10195
  %10230 = vst.msk [vmem:[#allocation4 + $0x1f8] sm:$0xff] %vm10214, %v10197
  %v10231 = vld [vmem:[%s9939 + $0x3] sm:$0xff]
  %v10232 = vld [vmem:[%s9939 + $0x13] sm:$0xff]
  %v10233 = vld [vmem:[%s9939 + $0x23] sm:$0xff]
  %v10234 = vld [vmem:[%s9939 + $0x33] sm:$0xff]
  %v10235 = vld [vmem:[%s9939 + $0x43] sm:$0xff]
  %v10236 = vld [vmem:[%s9939 + $0x53] sm:$0xff]
  %v10237 = vld [vmem:[%s9939 + $0x63] sm:$0xff]
  %v10238 = vld [vmem:[%s9939 + $0x73] sm:$0xff]
  %v10239 = vld [vmem:[%s9939 + $0xc3] sm:$0xff]
  %v10240 = vld [vmem:[%s9939 + $0xd3] sm:$0xff]
  %v10241 = vld [vmem:[%s9939 + $0xe3] sm:$0xff]
  %v10242 = vld [vmem:[%s9939 + $0xf3] sm:$0xff]
  %v10243 = vld [vmem:[%s9939 + $0x103] sm:$0xff]
  %v10244 = vld [vmem:[%s9939 + $0x113] sm:$0xff]
  %v10245 = vld [vmem:[%s9939 + $0x123] sm:$0xff]
  %v10246 = vld [vmem:[%s9939 + $0x133] sm:$0xff]
  %10263 = vrot.lane.b32.xlu0 %v10231, 76
  %v10264 = vpop.permute.xlu0 %10263
  %10265 = vrot.lane.b32.xlu0 %v10232, 76
  %v10266 = vpop.permute.xlu0 %10265
  %10267 = vrot.lane.b32.xlu0 %v10233, 76
  %v10268 = vpop.permute.xlu0 %10267
  %10269 = vrot.lane.b32.xlu0 %v10234, 76
  %v10270 = vpop.permute.xlu0 %10269
  %10271 = vrot.lane.b32.xlu0 %v10235, 76
  %v10272 = vpop.permute.xlu0 %10271
  %10273 = vrot.lane.b32.xlu0 %v10236, 76
  %v10274 = vpop.permute.xlu0 %10273
  %10275 = vrot.lane.b32.xlu0 %v10237, 76
  %v10276 = vpop.permute.xlu0 %10275
  %10277 = vrot.lane.b32.xlu0 %v10238, 76
  %v10278 = vpop.permute.xlu0 %10277
  %10279 = vrot.lane.b32.xlu0 %v10239, 76
  %v10280 = vpop.permute.xlu0 %10279
  %10281 = vrot.lane.b32.xlu0 %v10240, 76
  %v10282 = vpop.permute.xlu0 %10281
  %10283 = vrot.lane.b32.xlu0 %v10241, 76
  %v10284 = vpop.permute.xlu0 %10283
  %10285 = vrot.lane.b32.xlu0 %v10242, 76
  %v10286 = vpop.permute.xlu0 %10285
  %10287 = vrot.lane.b32.xlu0 %v10243, 76
  %v10288 = vpop.permute.xlu0 %10287
  %10289 = vrot.lane.b32.xlu0 %v10244, 76
  %v10290 = vpop.permute.xlu0 %10289
  %10291 = vrot.lane.b32.xlu0 %v10245, 76
  %v10292 = vpop.permute.xlu0 %10291
  %10293 = vrot.lane.b32.xlu0 %v10246, 76
  %v10294 = vpop.permute.xlu0 %10293
  %vm10311 = vcmask 786016
  %10312 = vst.msk [vmem:[#allocation4 + $0x18] sm:$0xff] %vm10311, %v10264
  %10313 = vst.msk [vmem:[#allocation4 + $0x38] sm:$0xff] %vm10311, %v10266
  %10314 = vst.msk [vmem:[#allocation4 + $0x58] sm:$0xff] %vm10311, %v10268
  %10315 = vst.msk [vmem:[#allocation4 + $0x78] sm:$0xff] %vm10311, %v10270
  %10316 = vst.msk [vmem:[#allocation4 + $0x98] sm:$0xff] %vm10311, %v10272
  %10317 = vst.msk [vmem:[#allocation4 + $0xb8] sm:$0xff] %vm10311, %v10274
  %10318 = vst.msk [vmem:[#allocation4 + $0xd8] sm:$0xff] %vm10311, %v10276
  %10319 = vst.msk [vmem:[#allocation4 + $0xf8] sm:$0xff] %vm10311, %v10278
  %10320 = vst.msk [vmem:[#allocation4 + $0x118] sm:$0xff] %vm10311, %v10280
  %10321 = vst.msk [vmem:[#allocation4 + $0x138] sm:$0xff] %vm10311, %v10282
  %10322 = vst.msk [vmem:[#allocation4 + $0x158] sm:$0xff] %vm10311, %v10284
  %10323 = vst.msk [vmem:[#allocation4 + $0x178] sm:$0xff] %vm10311, %v10286
  %10324 = vst.msk [vmem:[#allocation4 + $0x198] sm:$0xff] %vm10311, %v10288
  %10325 = vst.msk [vmem:[#allocation4 + $0x1b8] sm:$0xff] %vm10311, %v10290
  %10326 = vst.msk [vmem:[#allocation4 + $0x1d8] sm:$0xff] %vm10311, %v10292
  %10327 = vst.msk [vmem:[#allocation4 + $0x1f8] sm:$0xff] %vm10311, %v10294
  %v10328 = vld [vmem:[%s9939 + $0x4] sm:$0xff]
  %v10329 = vld [vmem:[%s9939 + $0x14] sm:$0xff]
  %v10330 = vld [vmem:[%s9939 + $0x24] sm:$0xff]
  %v10331 = vld [vmem:[%s9939 + $0x34] sm:$0xff]
  %v10332 = vld [vmem:[%s9939 + $0x44] sm:$0xff]
  %v10333 = vld [vmem:[%s9939 + $0x54] sm:$0xff]
  %v10334 = vld [vmem:[%s9939 + $0x64] sm:$0xff]
  %v10335 = vld [vmem:[%s9939 + $0x74] sm:$0xff]
  %v10336 = vld [vmem:[%s9939 + $0xc4] sm:$0xff]
  %v10337 = vld [vmem:[%s9939 + $0xd4] sm:$0xff]
  %v10338 = vld [vmem:[%s9939 + $0xe4] sm:$0xff]
  %v10339 = vld [vmem:[%s9939 + $0xf4] sm:$0xff]
  %v10340 = vld [vmem:[%s9939 + $0x104] sm:$0xff]
  %v10341 = vld [vmem:[%s9939 + $0x114] sm:$0xff]
  %v10342 = vld [vmem:[%s9939 + $0x124] sm:$0xff]
  %v10343 = vld [vmem:[%s9939 + $0x134] sm:$0xff]
  %10360 = vrot.lane.b32.xlu0 %v10328, 96
  %v10361 = vpop.permute.xlu0 %10360
  %10362 = vrot.lane.b32.xlu0 %v10329, 96
  %v10363 = vpop.permute.xlu0 %10362
  %10364 = vrot.lane.b32.xlu0 %v10330, 96
  %v10365 = vpop.permute.xlu0 %10364
  %10366 = vrot.lane.b32.xlu0 %v10331, 96
  %v10367 = vpop.permute.xlu0 %10366
  %10368 = vrot.lane.b32.xlu0 %v10332, 96
  %v10369 = vpop.permute.xlu0 %10368
  %10370 = vrot.lane.b32.xlu0 %v10333, 96
  %v10371 = vpop.permute.xlu0 %10370
  %10372 = vrot.lane.b32.xlu0 %v10334, 96
  %v10373 = vpop.permute.xlu0 %10372
  %10374 = vrot.lane.b32.xlu0 %v10335, 96
  %v10375 = vpop.permute.xlu0 %10374
  %10376 = vrot.lane.b32.xlu0 %v10336, 96
  %v10377 = vpop.permute.xlu0 %10376
  %10378 = vrot.lane.b32.xlu0 %v10337, 96
  %v10379 = vpop.permute.xlu0 %10378
  %10380 = vrot.lane.b32.xlu0 %v10338, 96
  %v10381 = vpop.permute.xlu0 %10380
  %10382 = vrot.lane.b32.xlu0 %v10339, 96
  %v10383 = vpop.permute.xlu0 %10382
  %10384 = vrot.lane.b32.xlu0 %v10340, 96
  %v10385 = vpop.permute.xlu0 %10384
  %10386 = vrot.lane.b32.xlu0 %v10341, 96
  %v10387 = vpop.permute.xlu0 %10386
  %10388 = vrot.lane.b32.xlu0 %v10342, 96
  %v10389 = vpop.permute.xlu0 %10388
  %10390 = vrot.lane.b32.xlu0 %v10343, 96
  %v10391 = vpop.permute.xlu0 %10390
  %vm10408 = vcmask 950016
  %10409 = vst.msk [vmem:[#allocation4 + $0x18] sm:$0xff] %vm10408, %v10361
  %10410 = vst.msk [vmem:[#allocation4 + $0x38] sm:$0xff] %vm10408, %v10363
  %10411 = vst.msk [vmem:[#allocation4 + $0x58] sm:$0xff] %vm10408, %v10365
  %10412 = vst.msk [vmem:[#allocation4 + $0x78] sm:$0xff] %vm10408, %v10367
  %10413 = vst.msk [vmem:[#allocation4 + $0x98] sm:$0xff] %vm10408, %v10369
  %10414 = vst.msk [vmem:[#allocation4 + $0xb8] sm:$0xff] %vm10408, %v10371
  %10415 = vst.msk [vmem:[#allocation4 + $0xd8] sm:$0xff] %vm10408, %v10373
  %10416 = vst.msk [vmem:[#allocation4 + $0xf8] sm:$0xff] %vm10408, %v10375
  %10417 = vst.msk [vmem:[#allocation4 + $0x118] sm:$0xff] %vm10408, %v10377
  %10418 = vst.msk [vmem:[#allocation4 + $0x138] sm:$0xff] %vm10408, %v10379
  %10419 = vst.msk [vmem:[#allocation4 + $0x158] sm:$0xff] %vm10408, %v10381
  %10420 = vst.msk [vmem:[#allocation4 + $0x178] sm:$0xff] %vm10408, %v10383
  %10421 = vst.msk [vmem:[#allocation4 + $0x198] sm:$0xff] %vm10408, %v10385
  %10422 = vst.msk [vmem:[#allocation4 + $0x1b8] sm:$0xff] %vm10408, %v10387
  %10423 = vst.msk [vmem:[#allocation4 + $0x1d8] sm:$0xff] %vm10408, %v10389
  %10424 = vst.msk [vmem:[#allocation4 + $0x1f8] sm:$0xff] %vm10408, %v10391
  %v10425 = vld [vmem:[#allocation4] sm:$0xff]
  %v10426 = vld [vmem:[#allocation4 + $0x8] sm:$0xff]
  %v10427 = vld [vmem:[#allocation4 + $0x10] sm:$0xff]
  %v10428 = vld [vmem:[#allocation4 + $0x18] sm:$0xff]
  %v10429 = vld [vmem:[#allocation4 + $0x20] sm:$0xff]
  %v10430 = vld [vmem:[#allocation4 + $0x28] sm:$0xff]
  %v10431 = vld [vmem:[#allocation4 + $0x30] sm:$0xff]
  %v10432 = vld [vmem:[#allocation4 + $0x38] sm:$0xff]
  %v10433 = vld [vmem:[#allocation4 + $0x40] sm:$0xff]
  %v10434 = vld [vmem:[#allocation4 + $0x48] sm:$0xff]
  %v10435 = vld [vmem:[#allocation4 + $0x50] sm:$0xff]
  %v10436 = vld [vmem:[#allocation4 + $0x58] sm:$0xff]
  %v10437 = vld [vmem:[#allocation4 + $0x60] sm:$0xff]
  %v10438 = vld [vmem:[#allocation4 + $0x68] sm:$0xff]
  %v10439 = vld [vmem:[#allocation4 + $0x70] sm:$0xff]
  %v10440 = vld [vmem:[#allocation4 + $0x78] sm:$0xff]
  %v10441 = vld [vmem:[#allocation4 + $0x80] sm:$0xff]
  %v10442 = vld [vmem:[#allocation4 + $0x88] sm:$0xff]
  %v10443 = vld [vmem:[#allocation4 + $0x90] sm:$0xff]
  %v10444 = vld [vmem:[#allocation4 + $0x98] sm:$0xff]
  %v10445 = vld [vmem:[#allocation4 + $0xa0] sm:$0xff]
  %v10446 = vld [vmem:[#allocation4 + $0xa8] sm:$0xff]
  %v10447 = vld [vmem:[#allocation4 + $0xb0] sm:$0xff]
  %v10448 = vld [vmem:[#allocation4 + $0xb8] sm:$0xff]
  %v10449 = vld [vmem:[#allocation4 + $0xc0] sm:$0xff]
  %v10450 = vld [vmem:[#allocation4 + $0xc8] sm:$0xff]
  %v10451 = vld [vmem:[#allocation4 + $0xd0] sm:$0xff]
  %v10452 = vld [vmem:[#allocation4 + $0xd8] sm:$0xff]
  %v10453 = vld [vmem:[#allocation4 + $0xe0] sm:$0xff]
  %v10454 = vld [vmem:[#allocation4 + $0xe8] sm:$0xff]
  %v10455 = vld [vmem:[#allocation4 + $0xf0] sm:$0xff]
  %v10456 = vld [vmem:[#allocation4 + $0xf8] sm:$0xff]
  %v10457 = vld [vmem:[#allocation4 + $0x100] sm:$0xff]
  %v10458 = vld [vmem:[#allocation4 + $0x108] sm:$0xff]
  %v10459 = vld [vmem:[#allocation4 + $0x110] sm:$0xff]
  %v10460 = vld [vmem:[#allocation4 + $0x118] sm:$0xff]
  %v10461 = vld [vmem:[#allocation4 + $0x120] sm:$0xff]
  %v10462 = vld [vmem:[#allocation4 + $0x128] sm:$0xff]
  %v10463 = vld [vmem:[#allocation4 + $0x130] sm:$0xff]
  %v10464 = vld [vmem:[#allocation4 + $0x138] sm:$0xff]
  %v10465 = vld [vmem:[#allocation4 + $0x140] sm:$0xff]
  %v10466 = vld [vmem:[#allocation4 + $0x148] sm:$0xff]
  %v10467 = vld [vmem:[#allocation4 + $0x150] sm:$0xff]
  %v10468 = vld [vmem:[#allocation4 + $0x158] sm:$0xff]
  %v10469 = vld [vmem:[#allocation4 + $0x160] sm:$0xff]
  %v10470 = vld [vmem:[#allocation4 + $0x168] sm:$0xff]
  %v10471 = vld [vmem:[#allocation4 + $0x170] sm:$0xff]
  %v10472 = vld [vmem:[#allocation4 + $0x178] sm:$0xff]
  %v10473 = vld [vmem:[#allocation4 + $0x180] sm:$0xff]
  %v10474 = vld [vmem:[#allocation4 + $0x188] sm:$0xff]
  %v10475 = vld [vmem:[#allocation4 + $0x190] sm:$0xff]
  %v10476 = vld [vmem:[#allocation4 + $0x198] sm:$0xff]
  %v10477 = vld [vmem:[#allocation4 + $0x1a0] sm:$0xff]
  %v10478 = vld [vmem:[#allocation4 + $0x1a8] sm:$0xff]
  %v10479 = vld [vmem:[#allocation4 + $0x1b0] sm:$0xff]
  %v10480 = vld [vmem:[#allocation4 + $0x1b8] sm:$0xff]
  %v10481 = vld [vmem:[#allocation4 + $0x1c0] sm:$0xff]
  %v10482 = vld [vmem:[#allocation4 + $0x1c8] sm:$0xff]
  %v10483 = vld [vmem:[#allocation4 + $0x1d0] sm:$0xff]
  %v10484 = vld [vmem:[#allocation4 + $0x1d8] sm:$0xff]
  %v10485 = vld [vmem:[#allocation4 + $0x1e0] sm:$0xff]
  %v10486 = vld [vmem:[#allocation4 + $0x1e8] sm:$0xff]
  %v10487 = vld [vmem:[#allocation4 + $0x1f0] sm:$0xff]
  %v10488 = vld [vmem:[#allocation4 + $0x1f8] sm:$0xff]
  %v10489 = vpack.c.bf16 %v10429, %v10425
  %v10490 = vpack.c.bf16 %v10430, %v10426
  %v10491 = vpack.c.bf16 %v10431, %v10427
  %v10492 = vpack.c.bf16 %v10432, %v10428
  %v10493 = vpack.c.bf16 %v10437, %v10433
  %v10494 = vpack.c.bf16 %v10438, %v10434
  %v10495 = vpack.c.bf16 %v10439, %v10435
  %v10496 = vpack.c.bf16 %v10440, %v10436
  %v10497 = vpack.c.bf16 %v10445, %v10441
  %v10498 = vpack.c.bf16 %v10446, %v10442
  %v10499 = vpack.c.bf16 %v10447, %v10443
  %v10500 = vpack.c.bf16 %v10448, %v10444
  %v10501 = vpack.c.bf16 %v10453, %v10449
  %v10502 = vpack.c.bf16 %v10454, %v10450
  %v10503 = vpack.c.bf16 %v10455, %v10451
  %v10504 = vpack.c.bf16 %v10456, %v10452
  %v10505 = vpack.c.bf16 %v10461, %v10457
  %v10506 = vpack.c.bf16 %v10462, %v10458
  %v10507 = vpack.c.bf16 %v10463, %v10459
  %v10508 = vpack.c.bf16 %v10464, %v10460
  %v10509 = vpack.c.bf16 %v10469, %v10465
  %v10510 = vpack.c.bf16 %v10470, %v10466
  %v10511 = vpack.c.bf16 %v10471, %v10467
  %v10512 = vpack.c.bf16 %v10472, %v10468
  %v10513 = vpack.c.bf16 %v10477, %v10473
  %v10514 = vpack.c.bf16 %v10478, %v10474
  %v10515 = vpack.c.bf16 %v10479, %v10475
  %v10516 = vpack.c.bf16 %v10480, %v10476
  %v10517 = vpack.c.bf16 %v10485, %v10481
  %v10518 = vpack.c.bf16 %v10486, %v10482
  %v10519 = vpack.c.bf16 %v10487, %v10483
  %v10520 = vpack.c.bf16 %v10488, %v10484
  %v10521 = vld [vmem:[%s3] sm:$0xf]
  %v10522 = vld [vmem:[%s3 + $0x4] sm:$0xf]
  %v10523 = vld [vmem:[%s3 + $0x8] sm:$0xf]
  %v10524 = vld [vmem:[%s3 + $0xc] sm:$0xf]
  %v10525 = vld [vmem:[%s3 + $0x10] sm:$0xf]
  %v10526 = vld [vmem:[%s3 + $0x14] sm:$0xf]
  %v10527 = vld [vmem:[%s3 + $0x18] sm:$0xf]
  %v10528 = vld [vmem:[%s3 + $0x1c] sm:$0xf]
  %v10529 = vld [vmem:[%s3 + $0x20] sm:$0xf]
  %v10530 = vld [vmem:[%s3 + $0x24] sm:$0xf]
  %v10531 = vld [vmem:[%s3 + $0x28] sm:$0xf]
  %v10532 = vld [vmem:[%s3 + $0x2c] sm:$0xf]
  %v10533 = vld [vmem:[%s3 + $0x30] sm:$0xf]
  %v10534 = vld [vmem:[%s3 + $0x34] sm:$0xf]
  %v10535 = vld [vmem:[%s3 + $0x38] sm:$0xf]
  %v10536 = vld [vmem:[%s3 + $0x3c] sm:$0xf]
  %v10537 = vld [vmem:[%s3 + $0x40] sm:$0xf]
  %v10538 = vld [vmem:[%s3 + $0x44] sm:$0xf]
  %v10539 = vld [vmem:[%s3 + $0x48] sm:$0xf]
  %v10540 = vld [vmem:[%s3 + $0x4c] sm:$0xf]
  %v10541 = vld [vmem:[%s3 + $0x50] sm:$0xf]
  %v10542 = vld [vmem:[%s3 + $0x54] sm:$0xf]
  %v10543 = vld [vmem:[%s3 + $0x58] sm:$0xf]
  %v10544 = vld [vmem:[%s3 + $0x5c] sm:$0xf]
  %v10545 = vld [vmem:[%s3 + $0x60] sm:$0xf]
  %v10546 = vld [vmem:[%s3 + $0x64] sm:$0xf]
  %v10547 = vld [vmem:[%s3 + $0x68] sm:$0xf]
  %v10548 = vld [vmem:[%s3 + $0x6c] sm:$0xf]
  %v10549 = vld [vmem:[%s3 + $0x70] sm:$0xf]
  %v10550 = vld [vmem:[%s3 + $0x74] sm:$0xf]
  %v10551 = vld [vmem:[%s3 + $0x78] sm:$0xf]
  %v10552 = vld [vmem:[%s3 + $0x7c] sm:$0xf]
  %v10553 = vld [vmem:[%s3 + $0x80] sm:$0xf]
  %v10554 = vld [vmem:[%s3 + $0x84] sm:$0xf]
  %v10555 = vld [vmem:[%s3 + $0x88] sm:$0xf]
  %v10556 = vld [vmem:[%s3 + $0x8c] sm:$0xf]
  %v10557 = vld [vmem:[%s3 + $0x90] sm:$0xf]
  %v10558 = vld [vmem:[%s3 + $0x94] sm:$0xf]
  %v10559 = vld [vmem:[%s3 + $0x98] sm:$0xf]
  %v10560 = vld [vmem:[%s3 + $0x9c] sm:$0xf]
  %v10561 = vld [vmem:[%s3 + $0xa0] sm:$0xf]
  %v10562 = vld [vmem:[%s3 + $0xa4] sm:$0xf]
  %v10563 = vld [vmem:[%s3 + $0xa8] sm:$0xf]
  %v10564 = vld [vmem:[%s3 + $0xac] sm:$0xf]
  %v10565 = vld [vmem:[%s3 + $0xb0] sm:$0xf]
  %v10566 = vld [vmem:[%s3 + $0xb4] sm:$0xf]
  %v10567 = vld [vmem:[%s3 + $0xb8] sm:$0xf]
  %v10568 = vld [vmem:[%s3 + $0xbc] sm:$0xf]
  %v10569 = vld [vmem:[%s3 + $0xc0] sm:$0xf]
  %v10570 = vld [vmem:[%s3 + $0xc4] sm:$0xf]
  %v10571 = vld [vmem:[%s3 + $0xc8] sm:$0xf]
  %v10572 = vld [vmem:[%s3 + $0xcc] sm:$0xf]
  %v10573 = vld [vmem:[%s3 + $0xd0] sm:$0xf]
  %v10574 = vld [vmem:[%s3 + $0xd4] sm:$0xf]
  %v10575 = vld [vmem:[%s3 + $0xd8] sm:$0xf]
  %v10576 = vld [vmem:[%s3 + $0xdc] sm:$0xf]
  %v10577 = vld [vmem:[%s3 + $0xe0] sm:$0xf]
  %v10578 = vld [vmem:[%s3 + $0xe4] sm:$0xf]
  %v10579 = vld [vmem:[%s3 + $0xe8] sm:$0xf]
  %v10580 = vld [vmem:[%s3 + $0xec] sm:$0xf]
  %v10581 = vld [vmem:[%s3 + $0xf0] sm:$0xf]
  %v10582 = vld [vmem:[%s3 + $0xf4] sm:$0xf]
  %v10583 = vld [vmem:[%s3 + $0xf8] sm:$0x3]
  %v10584 = vld [vmem:[%s4] sm:$0x1]
  %v10586 = vlaneseq
  %v10587 = vshrl.u32 %v10586, 7
  %v10588 = vsub.s32 0, %v10587
  %v10589 = vrot.slane %v10584, %v10588
  %v10654 = vunpack.c.l.b16 %v10521
  %v10655 = vunpack.c.l.b16 %v10522
  %v10656 = vunpack.c.l.b16 %v10523
  %v10657 = vunpack.c.l.b16 %v10524
  %v10658 = vunpack.c.l.b16 %v10525
  %v10659 = vunpack.c.l.b16 %v10526
  %v10660 = vunpack.c.l.b16 %v10527
  %v10661 = vunpack.c.l.b16 %v10528
  %v10662 = vunpack.c.l.b16 %v10529
  %v10663 = vunpack.c.l.b16 %v10530
  %v10664 = vunpack.c.l.b16 %v10531
  %v10665 = vunpack.c.l.b16 %v10532
  %v10666 = vunpack.c.l.b16 %v10533
  %v10667 = vunpack.c.l.b16 %v10534
  %v10668 = vunpack.c.l.b16 %v10535
  %v10669 = vunpack.c.l.b16 %v10536
  %v10670 = vunpack.c.l.b16 %v10537
  %v10671 = vunpack.c.l.b16 %v10538
  %v10672 = vunpack.c.l.b16 %v10539
  %v10673 = vunpack.c.l.b16 %v10540
  %v10674 = vunpack.c.l.b16 %v10541
  %v10675 = vunpack.c.l.b16 %v10542
  %v10676 = vunpack.c.l.b16 %v10543
  %v10677 = vunpack.c.l.b16 %v10544
  %v10678 = vunpack.c.l.b16 %v10545
  %v10679 = vunpack.c.l.b16 %v10546
  %v10680 = vunpack.c.l.b16 %v10547
  %v10681 = vunpack.c.l.b16 %v10548
  %v10682 = vunpack.c.l.b16 %v10549
  %v10683 = vunpack.c.l.b16 %v10550
  %v10684 = vunpack.c.l.b16 %v10551
  %v10685 = vunpack.c.l.b16 %v10552
  %v10686 = vunpack.c.l.b16 %v10553
  %v10687 = vunpack.c.l.b16 %v10554
  %v10688 = vunpack.c.l.b16 %v10555
  %v10689 = vunpack.c.l.b16 %v10556
  %v10690 = vunpack.c.l.b16 %v10557
  %v10691 = vunpack.c.l.b16 %v10558
  %v10692 = vunpack.c.l.b16 %v10559
  %v10693 = vunpack.c.l.b16 %v10560
  %v10694 = vunpack.c.l.b16 %v10561
  %v10695 = vunpack.c.l.b16 %v10562
  %v10696 = vunpack.c.l.b16 %v10563
  %v10697 = vunpack.c.l.b16 %v10564
  %v10698 = vunpack.c.l.b16 %v10565
  %v10699 = vunpack.c.l.b16 %v10566
  %v10700 = vunpack.c.l.b16 %v10567
  %v10701 = vunpack.c.l.b16 %v10568
  %v10702 = vunpack.c.l.b16 %v10569
  %v10703 = vunpack.c.l.b16 %v10570
  %v10704 = vunpack.c.l.b16 %v10571
  %v10705 = vunpack.c.l.b16 %v10572
  %v10706 = vunpack.c.l.b16 %v10573
  %v10707 = vunpack.c.l.b16 %v10574
  %v10708 = vunpack.c.l.b16 %v10575
  %v10709 = vunpack.c.l.b16 %v10576
  %v10710 = vunpack.c.l.b16 %v10577
  %v10711 = vunpack.c.l.b16 %v10578
  %v10712 = vunpack.c.l.b16 %v10579
  %v10713 = vunpack.c.l.b16 %v10580
  %v10714 = vunpack.c.l.b16 %v10581
  %v10715 = vunpack.c.l.b16 %v10582
  %v10716 = vunpack.c.l.b16 %v10583
  %v10717 = vpack.c.b16 %v10655, %v10654
  %v10718 = vpack.c.b16 %v10657, %v10656
  %v10719 = vpack.c.b16 %v10659, %v10658
  %v10720 = vpack.c.b16 %v10661, %v10660
  %v10721 = vpack.c.b16 %v10663, %v10662
  %v10722 = vpack.c.b16 %v10665, %v10664
  %v10723 = vpack.c.b16 %v10667, %v10666
  %v10724 = vpack.c.b16 %v10669, %v10668
  %v10725 = vpack.c.b16 %v10671, %v10670
  %v10726 = vpack.c.b16 %v10673, %v10672
  %v10727 = vpack.c.b16 %v10675, %v10674
  %v10728 = vpack.c.b16 %v10677, %v10676
  %v10729 = vpack.c.b16 %v10679, %v10678
  %v10730 = vpack.c.b16 %v10681, %v10680
  %v10731 = vpack.c.b16 %v10683, %v10682
  %v10732 = vpack.c.b16 %v10685, %v10684
  %v10733 = vpack.c.b16 %v10687, %v10686
  %v10734 = vpack.c.b16 %v10689, %v10688
  %v10735 = vpack.c.b16 %v10691, %v10690
  %v10736 = vpack.c.b16 %v10693, %v10692
  %v10737 = vpack.c.b16 %v10695, %v10694
  %v10738 = vpack.c.b16 %v10697, %v10696
  %v10739 = vpack.c.b16 %v10699, %v10698
  %v10740 = vpack.c.b16 %v10701, %v10700
  %v10741 = vpack.c.b16 %v10703, %v10702
  %v10742 = vpack.c.b16 %v10705, %v10704
  %v10743 = vpack.c.b16 %v10707, %v10706
  %v10744 = vpack.c.b16 %v10709, %v10708
  %v10745 = vpack.c.b16 %v10711, %v10710
  %v10746 = vpack.c.b16 %v10713, %v10712
  %v10747 = vpack.c.b16 %v10715, %v10714
  %v10748 = vpack.c.b16 %v10716, %v10716
  %vm10780 = vcmask 949248
  %v10782 = vsel %vm10780, %v10492, 0
  %v10785 = vsel %vm10780, %v10496, 0
  %v10788 = vsel %vm10780, %v10500, 0
  %v10791 = vsel %vm10780, %v10504, 0
  %v10794 = vsel %vm10780, %v10508, 0
  %v10797 = vsel %vm10780, %v10512, 0
  %v10800 = vsel %vm10780, %v10516, 0
  %v10803 = vsel %vm10780, %v10520, 0
  %vm10805 = vcmask 1041408
  %v10807 = vsel %vm10805, %v10748, 0
  %10809 = vmatprep.subr.bf16.mxu0 0
  %10810 = vmatpush1.bf16.msra.mxu0 %v10724
  %10811 = vmatprep.subr.bf16.mxu0 0
  %10812 = vmatpush1.bf16.msra.mxu0 %v10723
  %10813 = vmatprep.subr.bf16.mxu0 0
  %10814 = vmatpush1.bf16.msra.mxu0 %v10722
  %10815 = vmatprep.subr.bf16.mxu0 0
  %10816 = vmatpush1.bf16.msra.mxu0 %v10721
  %10817 = vmatprep.subr.bf16.mxu0 0
  %10818 = vmatpush1.bf16.msra.mxu0 %v10720
  %10819 = vmatprep.subr.bf16.mxu0 0
  %10820 = vmatpush1.bf16.msra.mxu0 %v10719
  %10821 = vmatprep.subr.bf16.mxu0 0
  %10822 = vmatpush1.bf16.msra.mxu0 %v10718
  %10823 = vmatprep.subr.bf16.mxu0 0
  %10824 = vmatpush1.bf16.msra.mxu0 %v10717
  %10825 = vmatprep.subr.bf16.mxu0 0
  %10826 = vmatpush2.bf16.msra.mxu0 %v10732
  %10827 = vmatprep.subr.bf16.mxu0 0
  %10828 = vmatpush2.bf16.msra.mxu0 %v10731
  %10829 = vmatprep.subr.bf16.mxu0 0
  %10830 = vmatpush2.bf16.msra.mxu0 %v10730
  %10831 = vmatprep.subr.bf16.mxu0 0
  %10832 = vmatpush2.bf16.msra.mxu0 %v10729
  %10833 = vmatprep.subr.bf16.mxu0 0
  %10834 = vmatpush2.bf16.msra.mxu0 %v10728
  %10835 = vmatprep.subr.bf16.mxu0 0
  %10836 = vmatpush2.bf16.msra.mxu0 %v10727
  %10837 = vmatprep.subr.bf16.mxu0 0
  %10838 = vmatpush2.bf16.msra.mxu0 %v10726
  %10839 = vmatprep.subr.bf16.mxu0 0
  %10840 = vmatpush2.bf16.msra.mxu0 %v10725
  %10841 = vmatprep.mubr.bf16.mxu0 %v10490
  %10842 = vmatmul.mubr.bf16.gmra.mxu0 %v10489
  %v10843 = vpop.f32.mrf.mxu0
  %v10844 = vadd.f32 %v10589, %v10843
  %v10845 = vpop.f32.mrf.mxu0
  %v10846 = vpop.f32.mrf.mxu0
  %v10847 = vadd.f32 %v10589, %v10846
  %v10848 = vpop.f32.mrf.mxu0
  %10849 = vmatprep.mubr.bf16.mxu0 %v10494
  %10850 = vmatmul.mubr.bf16.gmra.mxu0 %v10493
  %v10851 = vpop.f32.mrf.mxu0
  %v10852 = vadd.f32 %v10589, %v10851
  %v10853 = vpop.f32.mrf.mxu0
  %v10854 = vpop.f32.mrf.mxu0
  %v10855 = vadd.f32 %v10589, %v10854
  %v10856 = vpop.f32.mrf.mxu0
  %10857 = vmatprep.mubr.bf16.mxu0 %v10498
  %10858 = vmatmul.mubr.bf16.gmra.mxu0 %v10497
  %v10859 = vpop.f32.mrf.mxu0
  %v10860 = vadd.f32 %v10589, %v10859
  %v10861 = vpop.f32.mrf.mxu0
  %v10862 = vpop.f32.mrf.mxu0
  %v10863 = vadd.f32 %v10589, %v10862
  %v10864 = vpop.f32.mrf.mxu0
  %10865 = vmatprep.mubr.bf16.mxu0 %v10502
  %10866 = vmatmul.mubr.bf16.gmra.mxu0 %v10501
  %v10867 = vpop.f32.mrf.mxu0
  %v10868 = vadd.f32 %v10589, %v10867
  %v10869 = vpop.f32.mrf.mxu0
  %v10870 = vpop.f32.mrf.mxu0
  %v10871 = vadd.f32 %v10589, %v10870
  %v10872 = vpop.f32.mrf.mxu0
  %10873 = vmatprep.mubr.bf16.mxu0 %v10506
  %10874 = vmatmul.mubr.bf16.gmra.mxu0 %v10505
  %v10875 = vpop.f32.mrf.mxu0
  %v10876 = vadd.f32 %v10589, %v10875
  %v10877 = vpop.f32.mrf.mxu0
  %v10878 = vpop.f32.mrf.mxu0
  %v10879 = vadd.f32 %v10589, %v10878
  %v10880 = vpop.f32.mrf.mxu0
  %10881 = vmatprep.mubr.bf16.mxu0 %v10510
  %10882 = vmatmul.mubr.bf16.gmra.mxu0 %v10509
  %v10883 = vpop.f32.mrf.mxu0
  %v10884 = vadd.f32 %v10589, %v10883
  %v10885 = vpop.f32.mrf.mxu0
  %v10886 = vpop.f32.mrf.mxu0
  %v10887 = vadd.f32 %v10589, %v10886
  %v10888 = vpop.f32.mrf.mxu0
  %10889 = vmatprep.mubr.bf16.mxu0 %v10514
  %10890 = vmatmul.mubr.bf16.gmra.mxu0 %v10513
  %v10891 = vpop.f32.mrf.mxu0
  %v10892 = vadd.f32 %v10589, %v10891
  %v10893 = vpop.f32.mrf.mxu0
  %v10894 = vpop.f32.mrf.mxu0
  %v10895 = vadd.f32 %v10589, %v10894
  %v10896 = vpop.f32.mrf.mxu0
  %10897 = vmatprep.mubr.bf16.mxu0 %v10518
  %10898 = vmatmul.mubr.bf16.gmra.mxu0 %v10517
  %v10899 = vpop.f32.mrf.mxu0
  %v10900 = vadd.f32 %v10589, %v10899
  %v10901 = vpop.f32.mrf.mxu0
  %v10902 = vpop.f32.mrf.mxu0
  %v10903 = vadd.f32 %v10589, %v10902
  %v10904 = vpop.f32.mrf.mxu0
  %10905 = vdwg.mxu0
  %10906 = vmatprep.subr.bf16.mxu0 0
  %10907 = vmatpush1.bf16.msra.mxu0 %v10740
  %10908 = vmatprep.subr.bf16.mxu0 0
  %10909 = vmatpush1.bf16.msra.mxu0 %v10739
  %10910 = vmatprep.subr.bf16.mxu0 0
  %10911 = vmatpush1.bf16.msra.mxu0 %v10738
  %10912 = vmatprep.subr.bf16.mxu0 0
  %10913 = vmatpush1.bf16.msra.mxu0 %v10737
  %10914 = vmatprep.subr.bf16.mxu0 0
  %10915 = vmatpush1.bf16.msra.mxu0 %v10736
  %10916 = vmatprep.subr.bf16.mxu0 0
  %10917 = vmatpush1.bf16.msra.mxu0 %v10735
  %10918 = vmatprep.subr.bf16.mxu0 0
  %10919 = vmatpush1.bf16.msra.mxu0 %v10734
  %10920 = vmatprep.subr.bf16.mxu0 0
  %10921 = vmatpush1.bf16.msra.mxu0 %v10733
  %10922 = vmatprep.subr.bf16.mxu0 0
  %10923 = vmatpush2.bf16.msra.mxu0 %v10807
  %10924 = vmatprep.subr.bf16.mxu0 0
  %10925 = vmatpush2.bf16.msra.mxu0 %v10747
  %10926 = vmatprep.subr.bf16.mxu0 0
  %10927 = vmatpush2.bf16.msra.mxu0 %v10746
  %10928 = vmatprep.subr.bf16.mxu0 0
  %10929 = vmatpush2.bf16.msra.mxu0 %v10745
  %10930 = vmatprep.subr.bf16.mxu0 0
  %10931 = vmatpush2.bf16.msra.mxu0 %v10744
  %10932 = vmatprep.subr.bf16.mxu0 0
  %10933 = vmatpush2.bf16.msra.mxu0 %v10743
  %10934 = vmatprep.subr.bf16.mxu0 0
  %10935 = vmatpush2.bf16.msra.mxu0 %v10742
  %10936 = vmatprep.subr.bf16.mxu0 0
  %10937 = vmatpush2.bf16.msra.mxu0 %v10741
  %10938 = vmatprep.mubr.bf16.mxu0 %v10782
  %10939 = vmatmul.mubr.bf16.gmra.mxu0 %v10491
  %v10940 = vpop.f32.mrf.mxu0
  %v10941 = vadd.f32 %v10844, %v10940
  %v10942 = vpop.f32.mrf.mxu0
  %v10943 = vpop.f32.mrf.mxu0
  %v10944 = vadd.f32 %v10847, %v10943
  %v10945 = vpop.f32.mrf.mxu0
  %10946 = vmatprep.mubr.bf16.mxu0 %v10785
  %10947 = vmatmul.mubr.bf16.gmra.mxu0 %v10495
  %v10948 = vpop.f32.mrf.mxu0
  %v10949 = vadd.f32 %v10852, %v10948
  %v10950 = vpop.f32.mrf.mxu0
  %v10951 = vpop.f32.mrf.mxu0
  %v10952 = vadd.f32 %v10855, %v10951
  %v10953 = vpop.f32.mrf.mxu0
  %10954 = vmatprep.mubr.bf16.mxu0 %v10788
  %10955 = vmatmul.mubr.bf16.gmra.mxu0 %v10499
  %v10956 = vpop.f32.mrf.mxu0
  %v10957 = vadd.f32 %v10860, %v10956
  %v10958 = vpop.f32.mrf.mxu0
  %v10959 = vpop.f32.mrf.mxu0
  %v10960 = vadd.f32 %v10863, %v10959
  %v10961 = vpop.f32.mrf.mxu0
  %10962 = vmatprep.mubr.bf16.mxu0 %v10791
  %10963 = vmatmul.mubr.bf16.gmra.mxu0 %v10503
  %v10964 = vpop.f32.mrf.mxu0
  %v10965 = vadd.f32 %v10868, %v10964
  %v10966 = vpop.f32.mrf.mxu0
  %v10967 = vpop.f32.mrf.mxu0
  %v10968 = vadd.f32 %v10871, %v10967
  %v10969 = vpop.f32.mrf.mxu0
  %10970 = vmatprep.mubr.bf16.mxu0 %v10794
  %10971 = vmatmul.mubr.bf16.gmra.mxu0 %v10507
  %v10972 = vpop.f32.mrf.mxu0
  %v10973 = vadd.f32 %v10876, %v10972
  %v10974 = vpop.f32.mrf.mxu0
  %v10975 = vpop.f32.mrf.mxu0
  %v10976 = vadd.f32 %v10879, %v10975
  %v10977 = vpop.f32.mrf.mxu0
  %10978 = vmatprep.mubr.bf16.mxu0 %v10797
  %10979 = vmatmul.mubr.bf16.gmra.mxu0 %v10511
  %v10980 = vpop.f32.mrf.mxu0
  %v10981 = vadd.f32 %v10884, %v10980
  %v10982 = vpop.f32.mrf.mxu0
  %v10983 = vpop.f32.mrf.mxu0
  %v10984 = vadd.f32 %v10887, %v10983
  %v10985 = vpop.f32.mrf.mxu0
  %10986 = vmatprep.mubr.bf16.mxu0 %v10800
  %10987 = vmatmul.mubr.bf16.gmra.mxu0 %v10515
  %v10988 = vpop.f32.mrf.mxu0
  %v10989 = vadd.f32 %v10892, %v10988
  %v10990 = vpop.f32.mrf.mxu0
  %v10991 = vpop.f32.mrf.mxu0
  %v10992 = vadd.f32 %v10895, %v10991
  %v10993 = vpop.f32.mrf.mxu0
  %10994 = vmatprep.mubr.bf16.mxu0 %v10803
  %10995 = vmatmul.mubr.bf16.gmra.mxu0 %v10519
  %v10996 = vpop.f32.mrf.mxu0
  %v10997 = vadd.f32 %v10900, %v10996
  %v10998 = vpop.f32.mrf.mxu0
  %v10999 = vpop.f32.mrf.mxu0
  %v11000 = vadd.f32 %v10903, %v10999
  %v11001 = vpop.f32.mrf.mxu0
  %11002 = vdwg.mxu0
  %v11003 = vmax.f32 %v10941, 0.0
  %v11004 = vmax.f32 %v10944, 0.0
  %v11005 = vmax.f32 %v10949, 0.0
  %v11006 = vmax.f32 %v10952, 0.0
  %v11007 = vmax.f32 %v10957, 0.0
  %v11008 = vmax.f32 %v10960, 0.0
  %v11009 = vmax.f32 %v10965, 0.0
  %v11010 = vmax.f32 %v10968, 0.0
  %v11011 = vmax.f32 %v10973, 0.0
  %v11012 = vmax.f32 %v10976, 0.0
  %v11013 = vmax.f32 %v10981, 0.0
  %v11014 = vmax.f32 %v10984, 0.0
  %v11015 = vmax.f32 %v10989, 0.0
  %v11016 = vmax.f32 %v10992, 0.0
  %v11017 = vmax.f32 %v10997, 0.0
  %v11018 = vmax.f32 %v11000, 0.0
  %11019 = vxpose.xlu0.b32.start [1/16] %v11003, 128
  %11020 = vxpose.xlu0.b32.cont [2/16] %v11004, 128
  %11021 = vxpose.xlu0.b32.cont [3/16] %v11005, 128
  %11022 = vxpose.xlu0.b32.cont [4/16] %v11006, 128
  %11023 = vxpose.xlu0.b32.cont [5/16] %v11007, 128
  %11024 = vxpose.xlu0.b32.cont [6/16] %v11008, 128
  %11025 = vxpose.xlu0.b32.cont [7/16] %v11009, 128
  %11026 = vxpose.xlu0.b32.cont [8/16] %v11010, 128
  %11027 = vxpose.xlu0.b32.cont [9/16] %v11011, 128
  %11028 = vxpose.xlu0.b32.cont [10/16] %v11012, 128
  %11029 = vxpose.xlu0.b32.cont [11/16] %v11013, 128
  %11030 = vxpose.xlu0.b32.cont [12/16] %v11014, 128
  %11031 = vxpose.xlu0.b32.cont [13/16] %v11015, 128
  %11032 = vxpose.xlu0.b32.cont [14/16] %v11016, 128
  %11033 = vxpose.xlu0.b32.cont [15/16] %v11017, 128
  %11034 = vxpose.xlu0.b32.end [16/16] %v11018, 128
  %v11035 = vpop.trf.xlu0
  %v11036 = vpop.trf.xlu0
  %v11037 = vpop.trf.xlu0
  %v11038 = vpop.trf.xlu0
  %v11039 = vpop.trf.xlu0
  %v11040 = vpop.trf.xlu0
  %v11041 = vpop.trf.xlu0
  %v11042 = vpop.trf.xlu0
  %v11043 = vpop.trf.xlu0
  %v11044 = vpop.trf.xlu0
  %v11045 = vpop.trf.xlu0
  %v11046 = vpop.trf.xlu0
  %v11047 = vpop.trf.xlu0
  %v11048 = vpop.trf.xlu0
  %v11049 = vpop.trf.xlu0
  %v11050 = vpop.trf.xlu0
  %vm11051 = vcmask 523264
  %11052 = vst.msk [vmem:[%s5] sm:$0xff] %vm11051, %v11035
  %11053 = vst.msk [vmem:[%s5 + $0x8] sm:$0xff] %vm11051, %v11036
  %vm11054 = vcmask 519168
  %11055 = vst.msk [vmem:[%s5 + $0x10] sm:$0xf] %vm11054, %v11037
  %11059 = vrot.lane.b32.xlu0 %v11035, 64
  %v11060 = vpop.permute.xlu0 %11059
  %11061 = vrot.lane.b32.xlu0 %v11036, 64
  %v11062 = vpop.permute.xlu0 %11061
  %11063 = vrot.lane.b32.xlu0 %v11037, 64
  %v11064 = vpop.permute.xlu0 %11063
  %s11068 = scalar_lea.vmem %s5, 24
  %11069 = vst.msk [vmem:[%s11068] sm:$0xff] %vm11051, %v11060
  %11070 = vst.msk [vmem:[%s11068 + $0x8] sm:$0xff] %vm11051, %v11062
  %11071 = vst.msk [vmem:[%s11068 + $0x10] sm:$0xf] %vm11054, %v11064
  // Predicated region
  $region22: #{tpu_custom_call.1} parent=0 // pred_check
    _
  $region23: #{tpu_custom_call.1} parent=0 // pred_check_branch
    %11073 = sbr.rel (0) target = $region25
  $region24: #{tpu_custom_call.1} parent=0 // pred_region
    _
  $region25: #{tpu_custom_call.1} parent=0 // pred_fallthru
    _
  // Predicated region
  $region26: #{tpu_custom_call.1} parent=0 // pred_check
    _
  $region27: #{tpu_custom_call.1} parent=0 // pred_check_branch
    %11075 = sbr.rel (0) target = $region29
  $region28: #{tpu_custom_call.1} parent=0 // pred_region
    _
  $region29: #{tpu_custom_call.1} parent=0 // pred_fallthru
    _

</llo_original>
